<compile_context>
chip_gen: v6e
topology: v6e:2x2x1
jax: 0.10.0
libtpu: 0.0.40
codegen_flags: <defaults>
</compile_context>

<pallas_src>
import functools

import jax
import jax.numpy as jnp
from jax.experimental import pallas as pl
from jax.experimental.pallas import tpu as pltpu


# ----------------------------------------------------------------------------
# Fused conv-GEMM + BatchNorm + activation kernel
#   grid = (KH,)  -- reduction over kernel rows ("arbitrary"), pipelined DMA of
#   per-row patch slabs; f32 accumulator in VMEM scratch; BN+act in finalize.
# ----------------------------------------------------------------------------
def _conv_bn_act_kernel(a_ref, w_ref, g_ref, b_ref, o_ref, acc_ref, *, act, eps):
    ky = pl.program_id(0)

    @pl.when(ky == 0)
    def _():
        acc_ref[...] = jnp.zeros_like(acc_ref)

    # (Cout, KW*Cin) @ (KW*Cin, M) -> (Cout, M); M is lane-dense.
    acc_ref[...] += jnp.dot(w_ref[...], a_ref[...],
                            preferred_element_type=jnp.float32)

    @pl.when(ky == pl.num_programs(0) - 1)
    def _():
        acc = acc_ref[...]
        # PyTorch training-mode BatchNorm2d: per-channel mean / biased variance
        # over N*OH*OW (the lane axis here -> XLU reduction).
        mean = jnp.mean(acc, axis=1, keepdims=True)
        var = jnp.mean((acc - mean) ** 2, axis=1, keepdims=True)
        y = (acc - mean) * jax.lax.rsqrt(var + eps) * g_ref[...] + b_ref[...]
        if act == "relu":
            y = jnp.maximum(y, 0.0)
        else:  # sigmoid
            y = 1.0 / (1.0 + jnp.exp(-y))
        o_ref[...] = y


def conv_gemm_bn_act(a, w_rows, gamma, beta, *, act="relu", eps=1e-5):
    """a: (KH, KW*Cin, M) bf16;  w_rows: (KH, Cout, KW*Cin) bf16 -> (Cout, M) f32."""
    KH, Kc, M = a.shape
    KH2, Cout, Kc2 = w_rows.shape
    assert KH == KH2 and Kc == Kc2
    kern = functools.partial(_conv_bn_act_kernel, act=act, eps=eps)
    return pl.pallas_call(
        kern,
        out_shape=jax.ShapeDtypeStruct((Cout, M), jnp.float32),
        grid=(KH,),
        in_specs=[
            pl.BlockSpec((None, Kc, M), lambda ky: (ky, 0, 0)),
            pl.BlockSpec((None, Cout, Kc), lambda ky: (ky, 0, 0)),
            pl.BlockSpec((Cout, 1), lambda ky: (0, 0)),
            pl.BlockSpec((Cout, 1), lambda ky: (0, 0)),
        ],
        out_specs=pl.BlockSpec((Cout, M), lambda ky: (0, 0)),
        scratch_shapes=[pltpu.VMEM((Cout, M), jnp.float32)],
        compiler_params=pltpu.CompilerParams(
            dimension_semantics=("arbitrary",),
            vmem_limit_bytes=32 * 1024 * 1024,
        ),
    )(a, w_rows,
      gamma.reshape(Cout, 1).astype(jnp.float32),
      beta.reshape(Cout, 1).astype(jnp.float32))


# ----------------------------------------------------------------------------
# im2col (per-kernel-row slabs, channel-major so M lands on the lane axis)
# ----------------------------------------------------------------------------
def _im2col_rows(x_nchw, kh, kw, stride, pad):
    """Returns (KH, KW*Cin, N*OH*OW) bf16 and the output geometry."""
    N, C, H, W = x_nchw.shape
    xp = jnp.pad(x_nchw, ((0, 0), (0, 0), (pad, pad), (pad, pad)))
    OH = (H + 2 * pad - kh) // stride + 1
    OW = (W + 2 * pad - kw) // stride + 1
    M = N * OH * OW
    rows = []
    for ky in range(kh):
        cols = []
        for kx in range(kw):
            sl = xp[:, :,
                    ky:ky + (OH - 1) * stride + 1:stride,
                    kx:kx + (OW - 1) * stride + 1:stride]        # (N, C, OH, OW)
            cols.append(jnp.transpose(sl, (1, 0, 2, 3)).reshape(C, M))
        rows.append(jnp.concatenate(cols, axis=0))                # (KW*C, M)
    a = jnp.stack(rows, axis=0).astype(jnp.bfloat16)              # (KH, KW*C, M)
    return a, (N, OH, OW)
    # TODO(synk): fuse the patch extraction into the pallas_call index_map
    #             (strided-window DMA) so the KH*KW-expanded slab stack is
    #             never materialized in HBM.


def conv2d_bn_relu(x_nchw, w, gamma, beta, stride, pad):
    # w: (Cout, Cin, KH, KW) -- PyTorch Conv2d layout (bias folded away by BN).
    Cout, Cin, KH, KW = w.shape
    a, (N, OH, OW) = _im2col_rows(x_nchw, KH, KW, stride, pad)
    w_rows = jnp.transpose(w, (2, 0, 3, 1)).reshape(KH, Cout, KW * Cin)
    y = conv_gemm_bn_act(a, w_rows.astype(jnp.bfloat16), gamma, beta, act="relu")
    return jnp.transpose(y.reshape(Cout, N, OH, OW), (1, 0, 2, 3))   # NCHW


def convtranspose2d_bn_relu(x_nchw, w, gamma, beta, stride, pad):
    # w: (Cin, Cout, KH, KW) -- PyTorch ConvTranspose2d layout.
    Cin, Cout, KH, KW = w.shape
    N, C, H, W = x_nchw.shape
    # zero-insertion dilation; equivalent direct conv with flipped kernel,
    # swapped channel axes, stride 1, padding K-1-pad.
    Hd, Wd = (H - 1) * stride + 1, (W - 1) * stride + 1
    xd = jnp.zeros((N, C, Hd, Wd), x_nchw.dtype)
    xd = xd.at[:, :, ::stride, ::stride].set(x_nchw)
    w_conv = jnp.transpose(jnp.flip(w, axis=(2, 3)), (1, 0, 2, 3))   # (Cout,Cin,KH,KW)
    a, (N2, OH, OW) = _im2col_rows(xd, KH, KW, 1, KH - 1 - pad)
    w_rows = jnp.transpose(w_conv, (2, 0, 3, 1)).reshape(KH, Cout, KW * Cin)
    y = conv_gemm_bn_act(a, w_rows.astype(jnp.bfloat16), gamma, beta, act="relu")
    return jnp.transpose(y.reshape(Cout, N, OH, OW), (1, 0, 2, 3))   # NCHW
    # TODO(synk): replace zero-insertion with a sub-pixel (stride^2 phase)
    #             decomposition to drop the ~75-89% zero MACs in the GEMM.


# ----------------------------------------------------------------------------
# All six Linear + BatchNorm1d + act layers fused into ONE kernel
# ----------------------------------------------------------------------------
def _mlp_kernel(*refs, eps, acts):
    x_ref = refs[0]
    h_ref, d_ref = refs[-2], refs[-1]
    lrefs = refs[1:-2]                    # (wT, gamma, beta) x 6
    x = x_ref[...]
    for li, act in enumerate(acts):
        w_ref, g_ref, b_ref = lrefs[3 * li], lrefs[3 * li + 1], lrefs[3 * li + 2]
        y = jnp.dot(x, w_ref[...], preferred_element_type=jnp.float32)
        mean = jnp.mean(y, axis=0, keepdims=True)      # BatchNorm1d: over batch
        var = jnp.mean((y - mean) ** 2, axis=0, keepdims=True)
        y = (y - mean) * jax.lax.rsqrt(var + eps) * g_ref[...] + b_ref[...]
        if act == "relu":
            y = jnp.maximum(y, 0.0)
        else:  # sigmoid
            y = 1.0 / (1.0 + jnp.exp(-y))
        if li == 2:
            h_ref[...] = y                # encoder code h (after sigmoid)
        x = y
    d_ref[...] = x                        # decoder-linear output


def mlp_fused(x, layers, h_dim_out, flat_out, eps=1e-5):
    """layers: 6 tuples (wT (Fin,Fout), gamma (Fout,), beta (Fout,))."""
    N = x.shape[0]
    acts = ("relu", "relu", "sigmoid", "relu", "relu", "relu")
    inputs = [x.astype(jnp.float32)]
    for wT, g, b in layers:
        Fout = wT.shape[1]
        inputs += [wT.astype(jnp.float32),
                   g.reshape(1, Fout).astype(jnp.float32),
                   b.reshape(1, Fout).astype(jnp.float32)]
    in_specs = [pl.BlockSpec(a.shape, lambda i: (0, 0)) for a in inputs]
    kern = functools.partial(_mlp_kernel, eps=eps, acts=acts)
    h, d = pl.pallas_call(
        kern,
        out_shape=(jax.ShapeDtypeStruct((N, h_dim_out), jnp.float32),
                   jax.ShapeDtypeStruct((N, flat_out), jnp.float32)),
        grid=(1,),
        in_specs=in_specs,
        out_specs=[pl.BlockSpec((N, h_dim_out), lambda i: (0, 0)),
                   pl.BlockSpec((N, flat_out), lambda i: (0, 0))],
        compiler_params=pltpu.CompilerParams(
            dimension_semantics=("arbitrary",)),
    )(*inputs)
    return h, d


# ----------------------------------------------------------------------------
# Parameters (deterministic synthetic init).  Conv/Linear biases are omitted:
# a per-channel bias right before training-mode BatchNorm is exactly cancelled
# by the batch-mean subtraction, so it cannot affect the forward output.
# ----------------------------------------------------------------------------
def init_params(key, color_ch, cnn, hdims, H, W):
    c0, c1, c2, c3 = cnn
    h0, h1, h2 = hdims
    in_ch = color_ch * 2
    flat = c3 * (H // 24) * (W // 24)

    conv_defs = [
        ("ec0", (c0, in_ch, 7, 7)), ("ec1", (c1, c0, 6, 6)),
        ("ec2", (c2, c1, 6, 6)),    ("ec3", (c3, c2, 6, 6)),
        ("dc0", (c3, c2, 6, 6)),    ("dc1", (c2, c1, 6, 6)),
        ("dc2", (c1, c0, 6, 6)),    ("dc3", (c0, in_ch, 7, 7)),
    ]
    lin_defs = [
        ("el0", (h0, flat)), ("el1", (h1, h0)), ("el2", (h2, h1)),
        ("dl0", (h1, h2)),   ("dl1", (h0, h1)), ("dl2", (flat, h0)),
    ]

    params = {}
    keys = jax.random.split(key, len(conv_defs) + len(lin_defs))
    ki = 0
    for name, wshape in conv_defs:
        out_ch = wshape[1] if name.startswith("dc") else wshape[0]  # ConvT: (Cin,Cout,..)
        k1, k2, k3 = jax.random.split(keys[ki], 3); ki += 1
        params[name + "_w"] = 0.1 * jax.random.normal(k1, wshape, jnp.float32)
        params[name + "_g"] = 1.0 + 0.1 * jax.random.normal(k2, (out_ch,), jnp.float32)
        params[name + "_be"] = 0.1 * jax.random.normal(k3, (out_ch,), jnp.float32)
    for name, wshape in lin_defs:
        out_f = wshape[0]
        k1, k2, k3 = jax.random.split(keys[ki], 3); ki += 1
        params[name + "_w"] = 0.1 * jax.random.normal(k1, wshape, jnp.float32)
        params[name + "_g"] = 1.0 + 0.1 * jax.random.normal(k2, (out_f,), jnp.float32)
        params[name + "_be"] = 0.1 * jax.random.normal(k3, (out_f,), jnp.float32)
    return params


# ----------------------------------------------------------------------------
# Full forward:  (h, x_hat) = CAE_2ims_all2d(x)   (x, x_hat in NCHW)
# ----------------------------------------------------------------------------
def cae_forward(x_nchw, params):
    p = params
    # ---------------- encoder conv ----------------
    x = conv2d_bn_relu(x_nchw, p["ec0_w"], p["ec0_g"], p["ec0_be"], 3, 2)
    x = conv2d_bn_relu(x, p["ec1_w"], p["ec1_g"], p["ec1_be"], 2, 2)
    x = conv2d_bn_relu(x, p["ec2_w"], p["ec2_g"], p["ec2_be"], 2, 2)
    x = conv2d_bn_relu(x, p["ec3_w"], p["ec3_g"], p["ec3_be"], 2, 2)
    N, C, OH, OW = x.shape
    size_nchw = (N, C, OH, OW)             # self.size in the PyTorch module
    flat = C * OH * OW
    h_in = x.reshape(N, flat)              # nn.Flatten on NCHW
    # ---------------- fused encoder + decoder linear stack ----------------
    layers = [
        (jnp.transpose(p["el0_w"]), p["el0_g"], p["el0_be"]),
        (jnp.transpose(p["el1_w"]), p["el1_g"], p["el1_be"]),
        (jnp.transpose(p["el2_w"]), p["el2_g"], p["el2_be"]),
        (jnp.transpose(p["dl0_w"]), p["dl0_g"], p["dl0_be"]),
        (jnp.transpose(p["dl1_w"]), p["dl1_g"], p["dl1_be"]),
        (jnp.transpose(p["dl2_w"]), p["dl2_g"], p["dl2_be"]),
    ]
    h_dim2 = p["el2_w"].shape[0]
    h, d = mlp_fused(h_in, layers, h_dim2, flat)
    # ---------------- decoder conv-transpose ----------------
    d = d.reshape(size_nchw)               # like h.reshape(self.size)
    d = convtranspose2d_bn_relu(d, p["dc0_w"], p["dc0_g"], p["dc0_be"], 2, 2)
    d = convtranspose2d_bn_relu(d, p["dc1_w"], p["dc1_g"], p["dc1_be"], 2, 2)
    d = convtranspose2d_bn_relu(d, p["dc2_w"], p["dc2_g"], p["dc2_be"], 2, 2)
    x_hat = convtranspose2d_bn_relu(d, p["dc3_w"], p["dc3_g"], p["dc3_be"], 3, 2)
    return h, x_hat
# TODO(synk): BatchNorm running-stat buffer updates (running_mean/var,
#             num_batches_tracked) are not modeled; the forward uses
#             training-mode batch statistics, matching a fresh module.


# ----------------------------------------------------------------------------
if __name__ == "__main__":
    # Small shapes consistent with the module: H, W must be divisible by 24.
    N = 2
    color_ch = 3                 # -> 2 * color_ch = 6 input channels (two stacked images)
    H = W = 48
    cnn = (8, 8, 16, 16)         # cnn_ch0..3
    hdims = (32, 16, 8)          # h_dim0..2

    key = jax.random.PRNGKey(0)
    kp, kx = jax.random.split(key)
    params = init_params(kp, color_ch, cnn, hdims, H, W)
    x = jax.random.normal(kx, (N, color_ch * 2, H, W), jnp.float32)

    fwd = jax.jit(functools.partial(cae_forward, params=params))
    h, x_hat = fwd(x)
    jax.block_until_ready((h, x_hat))

    assert h.shape == (N, hdims[2]), h.shape
    assert x_hat.shape == (N, color_ch * 2, H, W), x_hat.shape
    assert bool(jnp.all(jnp.isfinite(h))) and bool(jnp.all(jnp.isfinite(x_hat)))
    print("KERNEL_OK")
</pallas_src>

<mosaic_0001>
module attributes {stable_mosaic.version = 11 : i64} {
  func.func @_conv_bn_act_kernel(%arg0: i32, %arg1: memref<1x42x512xbf16, #tpu.memory_space<vmem>>, %arg2: memref<1x8x42xbf16, #tpu.memory_space<vmem>>, %arg3: memref<8x1xf32, #tpu.memory_space<vmem>>, %arg4: memref<8x1xf32, #tpu.memory_space<vmem>>, %arg5: memref<8x512xf32, #tpu.memory_space<vmem>>, %arg6: memref<8x512xf32, #tpu.memory_space<vmem>>) attributes {dimension_semantics = [#tpu.dimension_semantics<arbitrary>], iteration_bounds = array<i64: 7>, scalar_prefetch = 0 : i64, scratch_operands = 1 : i64, tpu.core_type = #tpu.core_type<tc>, window_params = [{transform_indices = @transform_0, window_bounds = array<i64: 1, 42, 512>}, {transform_indices = @transform_1, window_bounds = array<i64: 1, 8, 42>}, {pipeline_mode = #tpu.pipeline_mode<synchronous>, transform_indices = @transform_2, window_bounds = array<i64: 8, 1>}, {pipeline_mode = #tpu.pipeline_mode<synchronous>, transform_indices = @transform_3, window_bounds = array<i64: 8, 1>}, {pipeline_mode = #tpu.pipeline_mode<synchronous>, transform_indices = @transform_4, window_bounds = array<i64: 8, 512>}]} {
    %c0_i32 = arith.constant 0 : i32
    %0 = arith.cmpi eq, %arg0, %c0_i32 : i32
    %1 = arith.extui %0 : i1 to i32
    %c0_i32_0 = arith.constant 0 : i32
    %2 = arith.cmpi ne, %1, %c0_i32_0 : i32
    scf.if %2 {
      %cst_11 = arith.constant 0.000000e+00 : f32
      %14 = vector.broadcast %cst_11 : f32 to vector<8x512xf32>
      %c0_12 = arith.constant 0 : index
      %c0_13 = arith.constant 0 : index
      %15 = vector.load %arg6[%c0_12, %c0_13] : memref<8x512xf32, #tpu.memory_space<vmem>>, vector<8x512xf32>
      tpu.vector_store %arg6[%c0_12, %c0_13], %14 {strides = array<i32>} : memref<8x512xf32, #tpu.memory_space<vmem>>, vector<8x512xf32>,
    } else {
    }
    %c0 = arith.constant 0 : index
    %c0_1 = arith.constant 0 : index
    %3 = vector.load %arg6[%c0, %c0_1] : memref<8x512xf32, #tpu.memory_space<vmem>>, vector<8x512xf32>
    %c0_2 = arith.constant 0 : index
    %c0_3 = arith.constant 0 : index
    %c0_4 = arith.constant 0 : index
    %4 = vector.load %arg2[%c0_2, %c0_3, %c0_4] : memref<1x8x42xbf16, #tpu.memory_space<vmem>>, vector<1x8x42xbf16>
    %5 = vector.shape_cast %4 : vector<1x8x42xbf16> to vector<8x42xbf16>
    %c0_5 = arith.constant 0 : index
    %c0_6 = arith.constant 0 : index
    %c0_7 = arith.constant 0 : index
    %6 = vector.load %arg1[%c0_5, %c0_6, %c0_7] : memref<1x42x512xbf16, #tpu.memory_space<vmem>>, vector<1x42x512xbf16>
    %7 = vector.shape_cast %6 : vector<1x42x512xbf16> to vector<42x512xbf16>
    %cst = arith.constant dense<0.000000e+00> : vector<8x512xf32>
    %8 = tpu.matmul %5, %7, %cst {dimension_numbers = #tpu.dot_dimension_numbers<[1], [0], [0], [1], [0, 0, 1, 1], [], []>} : vector<8x42xbf16>, vector<42x512xbf16>, vector<8x512xf32> -> vector<8x512xf32>
    %9 = arith.addf %3, %8 : vector<8x512xf32>
    %c0_8 = arith.constant 0 : index
    %c0_9 = arith.constant 0 : index
    %10 = vector.load %arg6[%c0_8, %c0_9] : memref<8x512xf32, #tpu.memory_space<vmem>>, vector<8x512xf32>
    tpu.vector_store %arg6[%c0_8, %c0_9], %9 {strides = array<i32>} : memref<8x512xf32, #tpu.memory_space<vmem>>, vector<8x512xf32>,
    %c6_i32 = arith.constant 6 : i32
    %11 = arith.cmpi eq, %arg0, %c6_i32 : i32
    %12 = arith.extui %11 : i1 to i32
    %c0_i32_10 = arith.constant 0 : i32
    %13 = arith.cmpi ne, %12, %c0_i32_10 : i32
    scf.if %13 {
      %c0_11 = arith.constant 0 : index
      %c0_12 = arith.constant 0 : index
      %14 = vector.load %arg6[%c0_11, %c0_12] : memref<8x512xf32, #tpu.memory_space<vmem>>, vector<8x512xf32>
      %cst_13 = arith.constant dense<0.000000e+00> : vector<8xf32>
      %15 = vector.multi_reduction <add>, %14, %cst_13 [1] : vector<8x512xf32> to vector<8xf32>
      %16 = vector.shape_cast %15 : vector<8xf32> to vector<8x1xf32>
      %cst_14 = arith.constant 5.120000e+02 : f32
      %17 = vector.broadcast %cst_14 : f32 to vector<8x1xf32>
      %18 = arith.divf %16, %17 : vector<8x1xf32>
      %19 = vector.broadcast %18 : vector<8x1xf32> to vector<8x512xf32>
      %20 = arith.subf %14, %19 : vector<8x512xf32>
      %21 = arith.mulf %20, %20 : vector<8x512xf32>
      %cst_15 = arith.constant dense<0.000000e+00> : vector<8xf32>
      %22 = vector.multi_reduction <add>, %21, %cst_15 [1] : vector<8x512xf32> to vector<8xf32>
      %23 = vector.shape_cast %22 : vector<8xf32> to vector<8x1xf32>
      %cst_16 = arith.constant 5.120000e+02 : f32
      %24 = vector.broadcast %cst_16 : f32 to vector<8x1xf32>
      %25 = arith.divf %23, %24 : vector<8x1xf32>
      %26 = vector.broadcast %18 : vector<8x1xf32> to vector<8x512xf32>
      %27 = arith.subf %14, %26 : vector<8x512xf32>
      %cst_17 = arith.constant 9.99999974E-6 : f32
      %28 = vector.broadcast %cst_17 : f32 to vector<8x1xf32>
      %29 = arith.addf %25, %28 : vector<8x1xf32>
      %30 = math.rsqrt %29 : vector<8x1xf32>
      %31 = vector.broadcast %30 : vector<8x1xf32> to vector<8x512xf32>
      %32 = arith.mulf %27, %31 : vector<8x512xf32>
      %c0_18 = arith.constant 0 : index
      %c0_19 = arith.constant 0 : index
      %33 = vector.load %arg3[%c0_18, %c0_19] : memref<8x1xf32, #tpu.memory_space<vmem>>, vector<8x1xf32>
      %34 = vector.broadcast %33 : vector<8x1xf32> to vector<8x512xf32>
      %35 = arith.mulf %32, %34 : vector<8x512xf32>
      %c0_20 = arith.constant 0 : index
      %c0_21 = arith.constant 0 : index
      %36 = vector.load %arg4[%c0_20, %c0_21] : memref<8x1xf32, #tpu.memory_space<vmem>>, vector<8x1xf32>
      %37 = vector.broadcast %36 : vector<8x1xf32> to vector<8x512xf32>
      %38 = arith.addf %35, %37 : vector<8x512xf32>
      %cst_22 = arith.constant 0.000000e+00 : f32
      %39 = vector.broadcast %cst_22 : f32 to vector<8x512xf32>
      %40 = arith.maximumf %38, %39 : vector<8x512xf32>
      %c0_23 = arith.constant 0 : index
      %c0_24 = arith.constant 0 : index
      %41 = vector.load %arg5[%c0_23, %c0_24] : memref<8x512xf32, #tpu.memory_space<vmem>>, vector<8x512xf32>
      tpu.vector_store %arg5[%c0_23, %c0_24], %40 {strides = array<i32>} : memref<8x512xf32, #tpu.memory_space<vmem>>, vector<8x512xf32>,
    } else {
    }
    return
  }
  func.func @transform_0(%arg0: i32) -> (i32, i32, i32) {
    %c0_i32 = arith.constant 0 : i32
    %c0_i32_0 = arith.constant 0 : i32
    %c0_i32_1 = arith.constant 0 : i32
    return %arg0, %c0_i32, %c0_i32_0 : i32, i32, i32
  }
  func.func @transform_1(%arg0: i32) -> (i32, i32, i32) {
    %c0_i32 = arith.constant 0 : i32
    %c0_i32_0 = arith.constant 0 : i32
    %c0_i32_1 = arith.constant 0 : i32
    return %arg0, %c0_i32, %c0_i32_0 : i32, i32, i32
  }
  func.func @transform_2(%arg0: i32) -> (i32, i32) {
    %c0_i32 = arith.constant 0 : i32
    %c0_i32_0 = arith.constant 0 : i32
    %c0_i32_1 = arith.constant 0 : i32
    return %c0_i32, %c0_i32_0 : i32, i32
  }
  func.func @transform_3(%arg0: i32) -> (i32, i32) {
    %c0_i32 = arith.constant 0 : i32
    %c0_i32_0 = arith.constant 0 : i32
    %c0_i32_1 = arith.constant 0 : i32
    return %c0_i32, %c0_i32_0 : i32, i32
  }
  func.func @transform_4(%arg0: i32) -> (i32, i32) {
    %c0_i32 = arith.constant 0 : i32
    %c0_i32_0 = arith.constant 0 : i32
    %c0_i32_1 = arith.constant 0 : i32
    return %c0_i32, %c0_i32_0 : i32, i32
  }
}

module attributes {stable_mosaic.version = 11 : i64} {
  func.func @_conv_bn_act_kernel(%arg0: i32, %arg1: memref<1x48x128xbf16, #tpu.memory_space<vmem>>, %arg2: memref<1x8x48xbf16, #tpu.memory_space<vmem>>, %arg3: memref<8x1xf32, #tpu.memory_space<vmem>>, %arg4: memref<8x1xf32, #tpu.memory_space<vmem>>, %arg5: memref<8x128xf32, #tpu.memory_space<vmem>>, %arg6: memref<8x128xf32, #tpu.memory_space<vmem>>) attributes {dimension_semantics = [#tpu.dimension_semantics<arbitrary>], iteration_bounds = array<i64: 6>, scalar_prefetch = 0 : i64, scratch_operands = 1 : i64, tpu.core_type = #tpu.core_type<tc>, window_params = [{transform_indices = @transform_0, window_bounds = array<i64: 1, 48, 128>}, {transform_indices = @transform_1, window_bounds = array<i64: 1, 8, 48>}, {pipeline_mode = #tpu.pipeline_mode<synchronous>, transform_indices = @transform_2, window_bounds = array<i64: 8, 1>}, {pipeline_mode = #tpu.pipeline_mode<synchronous>, transform_indices = @transform_3, window_bounds = array<i64: 8, 1>}, {pipeline_mode = #tpu.pipeline_mode<synchronous>, transform_indices = @transform_4, window_bounds = array<i64: 8, 128>}]} {
    %c0_i32 = arith.constant 0 : i32
    %0 = arith.cmpi eq, %arg0, %c0_i32 : i32
    %1 = arith.extui %0 : i1 to i32
    %c0_i32_0 = arith.constant 0 : i32
    %2 = arith.cmpi ne, %1, %c0_i32_0 : i32
    scf.if %2 {
      %cst_11 = arith.constant 0.000000e+00 : f32
      %14 = vector.broadcast %cst_11 : f32 to vector<8x128xf32>
      %c0_12 = arith.constant 0 : index
      %c0_13 = arith.constant 0 : index
      %15 = vector.load %arg6[%c0_12, %c0_13] : memref<8x128xf32, #tpu.memory_space<vmem>>, vector<8x128xf32>
      tpu.vector_store %arg6[%c0_12, %c0_13], %14 {strides = array<i32>} : memref<8x128xf32, #tpu.memory_space<vmem>>, vector<8x128xf32>,
    } else {
    }
    %c0 = arith.constant 0 : index
    %c0_1 = arith.constant 0 : index
    %3 = vector.load %arg6[%c0, %c0_1] : memref<8x128xf32, #tpu.memory_space<vmem>>, vector<8x128xf32>
    %c0_2 = arith.constant 0 : index
    %c0_3 = arith.constant 0 : index
    %c0_4 = arith.constant 0 : index
    %4 = vector.load %arg2[%c0_2, %c0_3, %c0_4] : memref<1x8x48xbf16, #tpu.memory_space<vmem>>, vector<1x8x48xbf16>
    %5 = vector.shape_cast %4 : vector<1x8x48xbf16> to vector<8x48xbf16>
    %c0_5 = arith.constant 0 : index
    %c0_6 = arith.constant 0 : index
    %c0_7 = arith.constant 0 : index
    %6 = vector.load %arg1[%c0_5, %c0_6, %c0_7] : memref<1x48x128xbf16, #tpu.memory_space<vmem>>, vector<1x48x128xbf16>
    %7 = vector.shape_cast %6 : vector<1x48x128xbf16> to vector<48x128xbf16>
    %cst = arith.constant dense<0.000000e+00> : vector<8x128xf32>
    %8 = tpu.matmul %5, %7, %cst {dimension_numbers = #tpu.dot_dimension_numbers<[1], [0], [0], [1], [0, 0, 1, 1], [], []>} : vector<8x48xbf16>, vector<48x128xbf16>, vector<8x128xf32> -> vector<8x128xf32>
    %9 = arith.addf %3, %8 : vector<8x128xf32>
    %c0_8 = arith.constant 0 : index
    %c0_9 = arith.constant 0 : index
    %10 = vector.load %arg6[%c0_8, %c0_9] : memref<8x128xf32, #tpu.memory_space<vmem>>, vector<8x128xf32>
    tpu.vector_store %arg6[%c0_8, %c0_9], %9 {strides = array<i32>} : memref<8x128xf32, #tpu.memory_space<vmem>>, vector<8x128xf32>,
    %c5_i32 = arith.constant 5 : i32
    %11 = arith.cmpi eq, %arg0, %c5_i32 : i32
    %12 = arith.extui %11 : i1 to i32
    %c0_i32_10 = arith.constant 0 : i32
    %13 = arith.cmpi ne, %12, %c0_i32_10 : i32
    scf.if %13 {
      %c0_11 = arith.constant 0 : index
      %c0_12 = arith.constant 0 : index
      %14 = vector.load %arg6[%c0_11, %c0_12] : memref<8x128xf32, #tpu.memory_space<vmem>>, vector<8x128xf32>
      %cst_13 = arith.constant dense<0.000000e+00> : vector<8xf32>
      %15 = vector.multi_reduction <add>, %14, %cst_13 [1] : vector<8x128xf32> to vector<8xf32>
      %16 = vector.shape_cast %15 : vector<8xf32> to vector<8x1xf32>
      %cst_14 = arith.constant 1.280000e+02 : f32
      %17 = vector.broadcast %cst_14 : f32 to vector<8x1xf32>
      %18 = arith.divf %16, %17 : vector<8x1xf32>
      %19 = vector.broadcast %18 : vector<8x1xf32> to vector<8x128xf32>
      %20 = arith.subf %14, %19 : vector<8x128xf32>
      %21 = arith.mulf %20, %20 : vector<8x128xf32>
      %cst_15 = arith.constant dense<0.000000e+00> : vector<8xf32>
      %22 = vector.multi_reduction <add>, %21, %cst_15 [1] : vector<8x128xf32> to vector<8xf32>
      %23 = vector.shape_cast %22 : vector<8xf32> to vector<8x1xf32>
      %cst_16 = arith.constant 1.280000e+02 : f32
      %24 = vector.broadcast %cst_16 : f32 to vector<8x1xf32>
      %25 = arith.divf %23, %24 : vector<8x1xf32>
      %26 = vector.broadcast %18 : vector<8x1xf32> to vector<8x128xf32>
      %27 = arith.subf %14, %26 : vector<8x128xf32>
      %cst_17 = arith.constant 9.99999974E-6 : f32
      %28 = vector.broadcast %cst_17 : f32 to vector<8x1xf32>
      %29 = arith.addf %25, %28 : vector<8x1xf32>
      %30 = math.rsqrt %29 : vector<8x1xf32>
      %31 = vector.broadcast %30 : vector<8x1xf32> to vector<8x128xf32>
      %32 = arith.mulf %27, %31 : vector<8x128xf32>
      %c0_18 = arith.constant 0 : index
      %c0_19 = arith.constant 0 : index
      %33 = vector.load %arg3[%c0_18, %c0_19] : memref<8x1xf32, #tpu.memory_space<vmem>>, vector<8x1xf32>
      %34 = vector.broadcast %33 : vector<8x1xf32> to vector<8x128xf32>
      %35 = arith.mulf %32, %34 : vector<8x128xf32>
      %c0_20 = arith.constant 0 : index
      %c0_21 = arith.constant 0 : index
      %36 = vector.load %arg4[%c0_20, %c0_21] : memref<8x1xf32, #tpu.memory_space<vmem>>, vector<8x1xf32>
      %37 = vector.broadcast %36 : vector<8x1xf32> to vector<8x128xf32>
      %38 = arith.addf %35, %37 : vector<8x128xf32>
      %cst_22 = arith.constant 0.000000e+00 : f32
      %39 = vector.broadcast %cst_22 : f32 to vector<8x128xf32>
      %40 = arith.maximumf %38, %39 : vector<8x128xf32>
      %c0_23 = arith.constant 0 : index
      %c0_24 = arith.constant 0 : index
      %41 = vector.load %arg5[%c0_23, %c0_24] : memref<8x128xf32, #tpu.memory_space<vmem>>, vector<8x128xf32>
      tpu.vector_store %arg5[%c0_23, %c0_24], %40 {strides = array<i32>} : memref<8x128xf32, #tpu.memory_space<vmem>>, vector<8x128xf32>,
    } else {
    }
    return
  }
  func.func @transform_0(%arg0: i32) -> (i32, i32, i32) {
    %c0_i32 = arith.constant 0 : i32
    %c0_i32_0 = arith.constant 0 : i32
    %c0_i32_1 = arith.constant 0 : i32
    return %arg0, %c0_i32, %c0_i32_0 : i32, i32, i32
  }
  func.func @transform_1(%arg0: i32) -> (i32, i32, i32) {
    %c0_i32 = arith.constant 0 : i32
    %c0_i32_0 = arith.constant 0 : i32
    %c0_i32_1 = arith.constant 0 : i32
    return %arg0, %c0_i32, %c0_i32_0 : i32, i32, i32
  }
  func.func @transform_2(%arg0: i32) -> (i32, i32) {
    %c0_i32 = arith.constant 0 : i32
    %c0_i32_0 = arith.constant 0 : i32
    %c0_i32_1 = arith.constant 0 : i32
    return %c0_i32, %c0_i32_0 : i32, i32
  }
  func.func @transform_3(%arg0: i32) -> (i32, i32) {
    %c0_i32 = arith.constant 0 : i32
    %c0_i32_0 = arith.constant 0 : i32
    %c0_i32_1 = arith.constant 0 : i32
    return %c0_i32, %c0_i32_0 : i32, i32
  }
  func.func @transform_4(%arg0: i32) -> (i32, i32) {
    %c0_i32 = arith.constant 0 : i32
    %c0_i32_0 = arith.constant 0 : i32
    %c0_i32_1 = arith.constant 0 : i32
    return %c0_i32, %c0_i32_0 : i32, i32
  }
}

module attributes {stable_mosaic.version = 11 : i64} {
  func.func @_conv_bn_act_kernel(%arg0: i32, %arg1: memref<1x48x32xbf16, #tpu.memory_space<vmem>>, %arg2: memref<1x16x48xbf16, #tpu.memory_space<vmem>>, %arg3: memref<16x1xf32, #tpu.memory_space<vmem>>, %arg4: memref<16x1xf32, #tpu.memory_space<vmem>>, %arg5: memref<16x32xf32, #tpu.memory_space<vmem>>, %arg6: memref<16x32xf32, #tpu.memory_space<vmem>>) attributes {dimension_semantics = [#tpu.dimension_semantics<arbitrary>], iteration_bounds = array<i64: 6>, scalar_prefetch = 0 : i64, scratch_operands = 1 : i64, tpu.core_type = #tpu.core_type<tc>, window_params = [{transform_indices = @transform_0, window_bounds = array<i64: 1, 48, 32>}, {transform_indices = @transform_1, window_bounds = array<i64: 1, 16, 48>}, {pipeline_mode = #tpu.pipeline_mode<synchronous>, transform_indices = @transform_2, window_bounds = array<i64: 16, 1>}, {pipeline_mode = #tpu.pipeline_mode<synchronous>, transform_indices = @transform_3, window_bounds = array<i64: 16, 1>}, {pipeline_mode = #tpu.pipeline_mode<synchronous>, transform_indices = @transform_4, window_bounds = array<i64: 16, 32>}]} {
    %c0_i32 = arith.constant 0 : i32
    %0 = arith.cmpi eq, %arg0, %c0_i32 : i32
    %1 = arith.extui %0 : i1 to i32
    %c0_i32_0 = arith.constant 0 : i32
    %2 = arith.cmpi ne, %1, %c0_i32_0 : i32
    scf.if %2 {
      %cst_11 = arith.constant 0.000000e+00 : f32
      %14 = vector.broadcast %cst_11 : f32 to vector<16x32xf32>
      %c0_12 = arith.constant 0 : index
      %c0_13 = arith.constant 0 : index
      %15 = vector.load %arg6[%c0_12, %c0_13] : memref<16x32xf32, #tpu.memory_space<vmem>>, vector<16x32xf32>
      tpu.vector_store %arg6[%c0_12, %c0_13], %14 {strides = array<i32>} : memref<16x32xf32, #tpu.memory_space<vmem>>, vector<16x32xf32>,
    } else {
    }
    %c0 = arith.constant 0 : index
    %c0_1 = arith.constant 0 : index
    %3 = vector.load %arg6[%c0, %c0_1] : memref<16x32xf32, #tpu.memory_space<vmem>>, vector<16x32xf32>
    %c0_2 = arith.constant 0 : index
    %c0_3 = arith.constant 0 : index
    %c0_4 = arith.constant 0 : index
    %4 = vector.load %arg2[%c0_2, %c0_3, %c0_4] : memref<1x16x48xbf16, #tpu.memory_space<vmem>>, vector<1x16x48xbf16>
    %5 = vector.shape_cast %4 : vector<1x16x48xbf16> to vector<16x48xbf16>
    %c0_5 = arith.constant 0 : index
    %c0_6 = arith.constant 0 : index
    %c0_7 = arith.constant 0 : index
    %6 = vector.load %arg1[%c0_5, %c0_6, %c0_7] : memref<1x48x32xbf16, #tpu.memory_space<vmem>>, vector<1x48x32xbf16>
    %7 = vector.shape_cast %6 : vector<1x48x32xbf16> to vector<48x32xbf16>
    %cst = arith.constant dense<0.000000e+00> : vector<16x32xf32>
    %8 = tpu.matmul %5, %7, %cst {dimension_numbers = #tpu.dot_dimension_numbers<[1], [0], [0], [1], [0, 0, 1, 1], [], []>} : vector<16x48xbf16>, vector<48x32xbf16>, vector<16x32xf32> -> vector<16x32xf32>
    %9 = arith.addf %3, %8 : vector<16x32xf32>
    %c0_8 = arith.constant 0 : index
    %c0_9 = arith.constant 0 : index
    %10 = vector.load %arg6[%c0_8, %c0_9] : memref<16x32xf32, #tpu.memory_space<vmem>>, vector<16x32xf32>
    tpu.vector_store %arg6[%c0_8, %c0_9], %9 {strides = array<i32>} : memref<16x32xf32, #tpu.memory_space<vmem>>, vector<16x32xf32>,
    %c5_i32 = arith.constant 5 : i32
    %11 = arith.cmpi eq, %arg0, %c5_i32 : i32
    %12 = arith.extui %11 : i1 to i32
    %c0_i32_10 = arith.constant 0 : i32
    %13 = arith.cmpi ne, %12, %c0_i32_10 : i32
    scf.if %13 {
      %c0_11 = arith.constant 0 : index
      %c0_12 = arith.constant 0 : index
      %14 = vector.load %arg6[%c0_11, %c0_12] : memref<16x32xf32, #tpu.memory_space<vmem>>, vector<16x32xf32>
      %cst_13 = arith.constant dense<0.000000e+00> : vector<16xf32>
      %15 = vector.multi_reduction <add>, %14, %cst_13 [1] : vector<16x32xf32> to vector<16xf32>
      %16 = vector.shape_cast %15 : vector<16xf32> to vector<16x1xf32>
      %cst_14 = arith.constant 3.200000e+01 : f32
      %17 = vector.broadcast %cst_14 : f32 to vector<16x1xf32>
      %18 = arith.divf %16, %17 : vector<16x1xf32>
      %19 = vector.broadcast %18 : vector<16x1xf32> to vector<16x32xf32>
      %20 = arith.subf %14, %19 : vector<16x32xf32>
      %21 = arith.mulf %20, %20 : vector<16x32xf32>
      %cst_15 = arith.constant dense<0.000000e+00> : vector<16xf32>
      %22 = vector.multi_reduction <add>, %21, %cst_15 [1] : vector<16x32xf32> to vector<16xf32>
      %23 = vector.shape_cast %22 : vector<16xf32> to vector<16x1xf32>
      %cst_16 = arith.constant 3.200000e+01 : f32
      %24 = vector.broadcast %cst_16 : f32 to vector<16x1xf32>
      %25 = arith.divf %23, %24 : vector<16x1xf32>
      %26 = vector.broadcast %18 : vector<16x1xf32> to vector<16x32xf32>
      %27 = arith.subf %14, %26 : vector<16x32xf32>
      %cst_17 = arith.constant 9.99999974E-6 : f32
      %28 = vector.broadcast %cst_17 : f32 to vector<16x1xf32>
      %29 = arith.addf %25, %28 : vector<16x1xf32>
      %30 = math.rsqrt %29 : vector<16x1xf32>
      %31 = vector.broadcast %30 : vector<16x1xf32> to vector<16x32xf32>
      %32 = arith.mulf %27, %31 : vector<16x32xf32>
      %c0_18 = arith.constant 0 : index
      %c0_19 = arith.constant 0 : index
      %33 = vector.load %arg3[%c0_18, %c0_19] : memref<16x1xf32, #tpu.memory_space<vmem>>, vector<16x1xf32>
      %34 = vector.broadcast %33 : vector<16x1xf32> to vector<16x32xf32>
      %35 = arith.mulf %32, %34 : vector<16x32xf32>
      %c0_20 = arith.constant 0 : index
      %c0_21 = arith.constant 0 : index
      %36 = vector.load %arg4[%c0_20, %c0_21] : memref<16x1xf32, #tpu.memory_space<vmem>>, vector<16x1xf32>
      %37 = vector.broadcast %36 : vector<16x1xf32> to vector<16x32xf32>
      %38 = arith.addf %35, %37 : vector<16x32xf32>
      %cst_22 = arith.constant 0.000000e+00 : f32
      %39 = vector.broadcast %cst_22 : f32 to vector<16x32xf32>
      %40 = arith.maximumf %38, %39 : vector<16x32xf32>
      %c0_23 = arith.constant 0 : index
      %c0_24 = arith.constant 0 : index
      %41 = vector.load %arg5[%c0_23, %c0_24] : memref<16x32xf32, #tpu.memory_space<vmem>>, vector<16x32xf32>
      tpu.vector_store %arg5[%c0_23, %c0_24], %40 {strides = array<i32>} : memref<16x32xf32, #tpu.memory_space<vmem>>, vector<16x32xf32>,
    } else {
    }
    return
  }
  func.func @transform_0(%arg0: i32) -> (i32, i32, i32) {
    %c0_i32 = arith.constant 0 : i32
    %c0_i32_0 = arith.constant 0 : i32
    %c0_i32_1 = arith.constant 0 : i32
    return %arg0, %c0_i32, %c0_i32_0 : i32, i32, i32
  }
  func.func @transform_1(%arg0: i32) -> (i32, i32, i32) {
    %c0_i32 = arith.constant 0 : i32
    %c0_i32_0 = arith.constant 0 : i32
    %c0_i32_1 = arith.constant 0 : i32
    return %arg0, %c0_i32, %c0_i32_0 : i32, i32, i32
  }
  func.func @transform_2(%arg0: i32) -> (i32, i32) {
    %c0_i32 = arith.constant 0 : i32
    %c0_i32_0 = arith.constant 0 : i32
    %c0_i32_1 = arith.constant 0 : i32
    return %c0_i32, %c0_i32_0 : i32, i32
  }
  func.func @transform_3(%arg0: i32) -> (i32, i32) {
    %c0_i32 = arith.constant 0 : i32
    %c0_i32_0 = arith.constant 0 : i32
    %c0_i32_1 = arith.constant 0 : i32
    return %c0_i32, %c0_i32_0 : i32, i32
  }
  func.func @transform_4(%arg0: i32) -> (i32, i32) {
    %c0_i32 = arith.constant 0 : i32
    %c0_i32_0 = arith.constant 0 : i32
    %c0_i32_1 = arith.constant 0 : i32
    return %c0_i32, %c0_i32_0 : i32, i32
  }
}

module attributes {stable_mosaic.version = 11 : i64} {
  func.func @_conv_bn_act_kernel(%arg0: i32, %arg1: memref<1x96x8xbf16, #tpu.memory_space<vmem>>, %arg2: memref<1x16x96xbf16, #tpu.memory_space<vmem>>, %arg3: memref<16x1xf32, #tpu.memory_space<vmem>>, %arg4: memref<16x1xf32, #tpu.memory_space<vmem>>, %arg5: memref<16x8xf32, #tpu.memory_space<vmem>>, %arg6: memref<16x8xf32, #tpu.memory_space<vmem>>) attributes {dimension_semantics = [#tpu.dimension_semantics<arbitrary>], iteration_bounds = array<i64: 6>, scalar_prefetch = 0 : i64, scratch_operands = 1 : i64, tpu.core_type = #tpu.core_type<tc>, window_params = [{transform_indices = @transform_0, window_bounds = array<i64: 1, 96, 8>}, {transform_indices = @transform_1, window_bounds = array<i64: 1, 16, 96>}, {pipeline_mode = #tpu.pipeline_mode<synchronous>, transform_indices = @transform_2, window_bounds = array<i64: 16, 1>}, {pipeline_mode = #tpu.pipeline_mode<synchronous>, transform_indices = @transform_3, window_bounds = array<i64: 16, 1>}, {pipeline_mode = #tpu.pipeline_mode<synchronous>, transform_indices = @transform_4, window_bounds = array<i64: 16, 8>}]} {
    %c0_i32 = arith.constant 0 : i32
    %0 = arith.cmpi eq, %arg0, %c0_i32 : i32
    %1 = arith.extui %0 : i1 to i32
    %c0_i32_0 = arith.constant 0 : i32
    %2 = arith.cmpi ne, %1, %c0_i32_0 : i32
    scf.if %2 {
      %cst_11 = arith.constant 0.000000e+00 : f32
      %14 = vector.broadcast %cst_11 : f32 to vector<16x8xf32>
      %c0_12 = arith.constant 0 : index
      %c0_13 = arith.constant 0 : index
      %15 = vector.load %arg6[%c0_12, %c0_13] : memref<16x8xf32, #tpu.memory_space<vmem>>, vector<16x8xf32>
      tpu.vector_store %arg6[%c0_12, %c0_13], %14 {strides = array<i32>} : memref<16x8xf32, #tpu.memory_space<vmem>>, vector<16x8xf32>,
    } else {
    }
    %c0 = arith.constant 0 : index
    %c0_1 = arith.constant 0 : index
    %3 = vector.load %arg6[%c0, %c0_1] : memref<16x8xf32, #tpu.memory_space<vmem>>, vector<16x8xf32>
    %c0_2 = arith.constant 0 : index
    %c0_3 = arith.constant 0 : index
    %c0_4 = arith.constant 0 : index
    %4 = vector.load %arg2[%c0_2, %c0_3, %c0_4] : memref<1x16x96xbf16, #tpu.memory_space<vmem>>, vector<1x16x96xbf16>
    %5 = vector.shape_cast %4 : vector<1x16x96xbf16> to vector<16x96xbf16>
    %c0_5 = arith.constant 0 : index
    %c0_6 = arith.constant 0 : index
    %c0_7 = arith.constant 0 : index
    %6 = vector.load %arg1[%c0_5, %c0_6, %c0_7] : memref<1x96x8xbf16, #tpu.memory_space<vmem>>, vector<1x96x8xbf16>
    %7 = vector.shape_cast %6 : vector<1x96x8xbf16> to vector<96x8xbf16>
    %cst = arith.constant dense<0.000000e+00> : vector<16x8xf32>
    %8 = tpu.matmul %5, %7, %cst {dimension_numbers = #tpu.dot_dimension_numbers<[1], [0], [0], [1], [0, 0, 1, 1], [], []>} : vector<16x96xbf16>, vector<96x8xbf16>, vector<16x8xf32> -> vector<16x8xf32>
    %9 = arith.addf %3, %8 : vector<16x8xf32>
    %c0_8 = arith.constant 0 : index
    %c0_9 = arith.constant 0 : index
    %10 = vector.load %arg6[%c0_8, %c0_9] : memref<16x8xf32, #tpu.memory_space<vmem>>, vector<16x8xf32>
    tpu.vector_store %arg6[%c0_8, %c0_9], %9 {strides = array<i32>} : memref<16x8xf32, #tpu.memory_space<vmem>>, vector<16x8xf32>,
    %c5_i32 = arith.constant 5 : i32
    %11 = arith.cmpi eq, %arg0, %c5_i32 : i32
    %12 = arith.extui %11 : i1 to i32
    %c0_i32_10 = arith.constant 0 : i32
    %13 = arith.cmpi ne, %12, %c0_i32_10 : i32
    scf.if %13 {
      %c0_11 = arith.constant 0 : index
      %c0_12 = arith.constant 0 : index
      %14 = vector.load %arg6[%c0_11, %c0_12] : memref<16x8xf32, #tpu.memory_space<vmem>>, vector<16x8xf32>
      %cst_13 = arith.constant dense<0.000000e+00> : vector<16xf32>
      %15 = vector.multi_reduction <add>, %14, %cst_13 [1] : vector<16x8xf32> to vector<16xf32>
      %16 = vector.shape_cast %15 : vector<16xf32> to vector<16x1xf32>
      %cst_14 = arith.constant 8.000000e+00 : f32
      %17 = vector.broadcast %cst_14 : f32 to vector<16x1xf32>
      %18 = arith.divf %16, %17 : vector<16x1xf32>
      %19 = vector.broadcast %18 : vector<16x1xf32> to vector<16x8xf32>
      %20 = arith.subf %14, %19 : vector<16x8xf32>
      %21 = arith.mulf %20, %20 : vector<16x8xf32>
      %cst_15 = arith.constant dense<0.000000e+00> : vector<16xf32>
      %22 = vector.multi_reduction <add>, %21, %cst_15 [1] : vector<16x8xf32> to vector<16xf32>
      %23 = vector.shape_cast %22 : vector<16xf32> to vector<16x1xf32>
      %cst_16 = arith.constant 8.000000e+00 : f32
      %24 = vector.broadcast %cst_16 : f32 to vector<16x1xf32>
      %25 = arith.divf %23, %24 : vector<16x1xf32>
      %26 = vector.broadcast %18 : vector<16x1xf32> to vector<16x8xf32>
      %27 = arith.subf %14, %26 : vector<16x8xf32>
      %cst_17 = arith.constant 9.99999974E-6 : f32
      %28 = vector.broadcast %cst_17 : f32 to vector<16x1xf32>
      %29 = arith.addf %25, %28 : vector<16x1xf32>
      %30 = math.rsqrt %29 : vector<16x1xf32>
      %31 = vector.broadcast %30 : vector<16x1xf32> to vector<16x8xf32>
      %32 = arith.mulf %27, %31 : vector<16x8xf32>
      %c0_18 = arith.constant 0 : index
      %c0_19 = arith.constant 0 : index
      %33 = vector.load %arg3[%c0_18, %c0_19] : memref<16x1xf32, #tpu.memory_space<vmem>>, vector<16x1xf32>
      %34 = vector.broadcast %33 : vector<16x1xf32> to vector<16x8xf32>
      %35 = arith.mulf %32, %34 : vector<16x8xf32>
      %c0_20 = arith.constant 0 : index
      %c0_21 = arith.constant 0 : index
      %36 = vector.load %arg4[%c0_20, %c0_21] : memref<16x1xf32, #tpu.memory_space<vmem>>, vector<16x1xf32>
      %37 = vector.broadcast %36 : vector<16x1xf32> to vector<16x8xf32>
      %38 = arith.addf %35, %37 : vector<16x8xf32>
      %cst_22 = arith.constant 0.000000e+00 : f32
      %39 = vector.broadcast %cst_22 : f32 to vector<16x8xf32>
      %40 = arith.maximumf %38, %39 : vector<16x8xf32>
      %c0_23 = arith.constant 0 : index
      %c0_24 = arith.constant 0 : index
      %41 = vector.load %arg5[%c0_23, %c0_24] : memref<16x8xf32, #tpu.memory_space<vmem>>, vector<16x8xf32>
      tpu.vector_store %arg5[%c0_23, %c0_24], %40 {strides = array<i32>} : memref<16x8xf32, #tpu.memory_space<vmem>>, vector<16x8xf32>,
    } else {
    }
    return
  }
  func.func @transform_0(%arg0: i32) -> (i32, i32, i32) {
    %c0_i32 = arith.constant 0 : i32
    %c0_i32_0 = arith.constant 0 : i32
    %c0_i32_1 = arith.constant 0 : i32
    return %arg0, %c0_i32, %c0_i32_0 : i32, i32, i32
  }
  func.func @transform_1(%arg0: i32) -> (i32, i32, i32) {
    %c0_i32 = arith.constant 0 : i32
    %c0_i32_0 = arith.constant 0 : i32
    %c0_i32_1 = arith.constant 0 : i32
    return %arg0, %c0_i32, %c0_i32_0 : i32, i32, i32
  }
  func.func @transform_2(%arg0: i32) -> (i32, i32) {
    %c0_i32 = arith.constant 0 : i32
    %c0_i32_0 = arith.constant 0 : i32
    %c0_i32_1 = arith.constant 0 : i32
    return %c0_i32, %c0_i32_0 : i32, i32
  }
  func.func @transform_3(%arg0: i32) -> (i32, i32) {
    %c0_i32 = arith.constant 0 : i32
    %c0_i32_0 = arith.constant 0 : i32
    %c0_i32_1 = arith.constant 0 : i32
    return %c0_i32, %c0_i32_0 : i32, i32
  }
  func.func @transform_4(%arg0: i32) -> (i32, i32) {
    %c0_i32 = arith.constant 0 : i32
    %c0_i32_0 = arith.constant 0 : i32
    %c0_i32_1 = arith.constant 0 : i32
    return %c0_i32, %c0_i32_0 : i32, i32
  }
}

module attributes {stable_mosaic.version = 11 : i64} {
  func.func @_mlp_kernel(%arg0: i32, %arg1: memref<2x64xf32, #tpu.memory_space<vmem>>, %arg2: memref<64x32xf32, #tpu.memory_space<vmem>>, %arg3: memref<1x32xf32, #tpu.memory_space<vmem>>, %arg4: memref<1x32xf32, #tpu.memory_space<vmem>>, %arg5: memref<32x16xf32, #tpu.memory_space<vmem>>, %arg6: memref<1x16xf32, #tpu.memory_space<vmem>>, %arg7: memref<1x16xf32, #tpu.memory_space<vmem>>, %arg8: memref<16x8xf32, #tpu.memory_space<vmem>>, %arg9: memref<1x8xf32, #tpu.memory_space<vmem>>, %arg10: memref<1x8xf32, #tpu.memory_space<vmem>>, %arg11: memref<8x16xf32, #tpu.memory_space<vmem>>, %arg12: memref<1x16xf32, #tpu.memory_space<vmem>>, %arg13: memref<1x16xf32, #tpu.memory_space<vmem>>, %arg14: memref<16x32xf32, #tpu.memory_space<vmem>>, %arg15: memref<1x32xf32, #tpu.memory_space<vmem>>, %arg16: memref<1x32xf32, #tpu.memory_space<vmem>>, %arg17: memref<32x64xf32, #tpu.memory_space<vmem>>, %arg18: memref<1x64xf32, #tpu.memory_space<vmem>>, %arg19: memref<1x64xf32, #tpu.memory_space<vmem>>, %arg20: memref<2x8xf32, #tpu.memory_space<vmem>>, %arg21: memref<2x64xf32, #tpu.memory_space<vmem>>) attributes {dimension_semantics = [#tpu.dimension_semantics<arbitrary>], iteration_bounds = array<i64: 1>, scalar_prefetch = 0 : i64, scratch_operands = 0 : i64, tpu.core_type = #tpu.core_type<tc>, window_params = [{pipeline_mode = #tpu.pipeline_mode<synchronous>, transform_indices = @transform_0, window_bounds = array<i64: 2, 64>}, {pipeline_mode = #tpu.pipeline_mode<synchronous>, transform_indices = @transform_1, window_bounds = array<i64: 64, 32>}, {pipeline_mode = #tpu.pipeline_mode<synchronous>, transform_indices = @transform_2, window_bounds = array<i64: 1, 32>}, {pipeline_mode = #tpu.pipeline_mode<synchronous>, transform_indices = @transform_3, window_bounds = array<i64: 1, 32>}, {pipeline_mode = #tpu.pipeline_mode<synchronous>, transform_indices = @transform_4, window_bounds = array<i64: 32, 16>}, {pipeline_mode = #tpu.pipeline_mode<synchronous>, transform_indices = @transform_5, window_bounds = array<i64: 1, 16>}, {pipeline_mode = #tpu.pipeline_mode<synchronous>, transform_indices = @transform_6, window_bounds = array<i64: 1, 16>}, {pipeline_mode = #tpu.pipeline_mode<synchronous>, transform_indices = @transform_7, window_bounds = array<i64: 16, 8>}, {pipeline_mode = #tpu.pipeline_mode<synchronous>, transform_indices = @transform_8, window_bounds = array<i64: 1, 8>}, {pipeline_mode = #tpu.pipeline_mode<synchronous>, transform_indices = @transform_9, window_bounds = array<i64: 1, 8>}, {pipeline_mode = #tpu.pipeline_mode<synchronous>, transform_indices = @transform_10, window_bounds = array<i64: 8, 16>}, {pipeline_mode = #tpu.pipeline_mode<synchronous>, transform_indices = @transform_11, window_bounds = array<i64: 1, 16>}, {pipeline_mode = #tpu.pipeline_mode<synchronous>, transform_indices = @transform_12, window_bounds = array<i64: 1, 16>}, {pipeline_mode = #tpu.pipeline_mode<synchronous>, transform_indices = @transform_13, window_bounds = array<i64: 16, 32>}, {pipeline_mode = #tpu.pipeline_mode<synchronous>, transform_indices = @transform_14, window_bounds = array<i64: 1, 32>}, {pipeline_mode = #tpu.pipeline_mode<synchronous>, transform_indices = @transform_15, window_bounds = array<i64: 1, 32>}, {pipeline_mode = #tpu.pipeline_mode<synchronous>, transform_indices = @transform_16, window_bounds = array<i64: 32, 64>}, {pipeline_mode = #tpu.pipeline_mode<synchronous>, transform_indices = @transform_17, window_bounds = array<i64: 1, 64>}, {pipeline_mode = #tpu.pipeline_mode<synchronous>, transform_indices = @transform_18, window_bounds = array<i64: 1, 64>}, {pipeline_mode = #tpu.pipeline_mode<synchronous>, transform_indices = @transform_19, window_bounds = array<i64: 2, 8>}, {pipeline_mode = #tpu.pipeline_mode<synchronous>, transform_indices = @transform_20, window_bounds = array<i64: 2, 64>}]} {
    %c0 = arith.constant 0 : index
    %c0_0 = arith.constant 0 : index
    %0 = vector.load %arg1[%c0, %c0_0] : memref<2x64xf32, #tpu.memory_space<vmem>>, vector<2x64xf32>
    %c0_1 = arith.constant 0 : index
    %c0_2 = arith.constant 0 : index
    %1 = vector.load %arg2[%c0_1, %c0_2] : memref<64x32xf32, #tpu.memory_space<vmem>>, vector<64x32xf32>
    %cst = arith.constant dense<0.000000e+00> : vector<2x32xf32>
    %2 = tpu.matmul %0, %1, %cst {dimension_numbers = #tpu.dot_dimension_numbers<[1], [0], [0], [1], [0, 0, 1, 1], [], []>} : vector<2x64xf32>, vector<64x32xf32>, vector<2x32xf32> -> vector<2x32xf32>
    %cst_3 = arith.constant dense<0.000000e+00> : vector<32xf32>
    %3 = vector.multi_reduction <add>, %2, %cst_3 [0] : vector<2x32xf32> to vector<32xf32>
    %4 = vector.shape_cast %3 : vector<32xf32> to vector<1x32xf32>
    %cst_4 = arith.constant 2.000000e+00 : f32
    %5 = vector.broadcast %cst_4 : f32 to vector<1x32xf32>
    %6 = arith.divf %4, %5 : vector<1x32xf32>
    %7 = vector.broadcast %6 : vector<1x32xf32> to vector<2x32xf32>
    %8 = arith.subf %2, %7 : vector<2x32xf32>
    %9 = arith.mulf %8, %8 : vector<2x32xf32>
    %cst_5 = arith.constant dense<0.000000e+00> : vector<32xf32>
    %10 = vector.multi_reduction <add>, %9, %cst_5 [0] : vector<2x32xf32> to vector<32xf32>
    %11 = vector.shape_cast %10 : vector<32xf32> to vector<1x32xf32>
    %cst_6 = arith.constant 2.000000e+00 : f32
    %12 = vector.broadcast %cst_6 : f32 to vector<1x32xf32>
    %13 = arith.divf %11, %12 : vector<1x32xf32>
    %14 = vector.broadcast %6 : vector<1x32xf32> to vector<2x32xf32>
    %15 = arith.subf %2, %14 : vector<2x32xf32>
    %cst_7 = arith.constant 9.99999974E-6 : f32
    %16 = vector.broadcast %cst_7 : f32 to vector<1x32xf32>
    %17 = arith.addf %13, %16 : vector<1x32xf32>
    %18 = math.rsqrt %17 : vector<1x32xf32>
    %19 = vector.broadcast %18 : vector<1x32xf32> to vector<2x32xf32>
    %20 = arith.mulf %15, %19 : vector<2x32xf32>
    %c0_8 = arith.constant 0 : index
    %c0_9 = arith.constant 0 : index
    %21 = vector.load %arg3[%c0_8, %c0_9] : memref<1x32xf32, #tpu.memory_space<vmem>>, vector<1x32xf32>
    %22 = vector.broadcast %21 : vector<1x32xf32> to vector<2x32xf32>
    %23 = arith.mulf %20, %22 : vector<2x32xf32>
    %c0_10 = arith.constant 0 : index
    %c0_11 = arith.constant 0 : index
    %24 = vector.load %arg4[%c0_10, %c0_11] : memref<1x32xf32, #tpu.memory_space<vmem>>, vector<1x32xf32>
    %25 = vector.broadcast %24 : vector<1x32xf32> to vector<2x32xf32>
    %26 = arith.addf %23, %25 : vector<2x32xf32>
    %cst_12 = arith.constant 0.000000e+00 : f32
    %27 = vector.broadcast %cst_12 : f32 to vector<2x32xf32>
    %28 = arith.maximumf %26, %27 : vector<2x32xf32>
    %c0_13 = arith.constant 0 : index
    %c0_14 = arith.constant 0 : index
    %29 = vector.load %arg5[%c0_13, %c0_14] : memref<32x16xf32, #tpu.memory_space<vmem>>, vector<32x16xf32>
    %cst_15 = arith.constant dense<0.000000e+00> : vector<2x16xf32>
    %30 = tpu.matmul %28, %29, %cst_15 {dimension_numbers = #tpu.dot_dimension_numbers<[1], [0], [0], [1], [0, 0, 1, 1], [], []>} : vector<2x32xf32>, vector<32x16xf32>, vector<2x16xf32> -> vector<2x16xf32>
    %cst_16 = arith.constant dense<0.000000e+00> : vector<16xf32>
    %31 = vector.multi_reduction <add>, %30, %cst_16 [0] : vector<2x16xf32> to vector<16xf32>
    %32 = vector.shape_cast %31 : vector<16xf32> to vector<1x16xf32>
    %cst_17 = arith.constant 2.000000e+00 : f32
    %33 = vector.broadcast %cst_17 : f32 to vector<1x16xf32>
    %34 = arith.divf %32, %33 : vector<1x16xf32>
    %35 = vector.broadcast %34 : vector<1x16xf32> to vector<2x16xf32>
    %36 = arith.subf %30, %35 : vector<2x16xf32>
    %37 = arith.mulf %36, %36 : vector<2x16xf32>
    %cst_18 = arith.constant dense<0.000000e+00> : vector<16xf32>
    %38 = vector.multi_reduction <add>, %37, %cst_18 [0] : vector<2x16xf32> to vector<16xf32>
    %39 = vector.shape_cast %38 : vector<16xf32> to vector<1x16xf32>
    %cst_19 = arith.constant 2.000000e+00 : f32
    %40 = vector.broadcast %cst_19 : f32 to vector<1x16xf32>
    %41 = arith.divf %39, %40 : vector<1x16xf32>
    %42 = vector.broadcast %34 : vector<1x16xf32> to vector<2x16xf32>
    %43 = arith.subf %30, %42 : vector<2x16xf32>
    %cst_20 = arith.constant 9.99999974E-6 : f32
    %44 = vector.broadcast %cst_20 : f32 to vector<1x16xf32>
    %45 = arith.addf %41, %44 : vector<1x16xf32>
    %46 = math.rsqrt %45 : vector<1x16xf32>
    %47 = vector.broadcast %46 : vector<1x16xf32> to vector<2x16xf32>
    %48 = arith.mulf %43, %47 : vector<2x16xf32>
    %c0_21 = arith.constant 0 : index
    %c0_22 = arith.constant 0 : index
    %49 = vector.load %arg6[%c0_21, %c0_22] : memref<1x16xf32, #tpu.memory_space<vmem>>, vector<1x16xf32>
    %50 = vector.broadcast %49 : vector<1x16xf32> to vector<2x16xf32>
    %51 = arith.mulf %48, %50 : vector<2x16xf32>
    %c0_23 = arith.constant 0 : index
    %c0_24 = arith.constant 0 : index
    %52 = vector.load %arg7[%c0_23, %c0_24] : memref<1x16xf32, #tpu.memory_space<vmem>>, vector<1x16xf32>
    %53 = vector.broadcast %52 : vector<1x16xf32> to vector<2x16xf32>
    %54 = arith.addf %51, %53 : vector<2x16xf32>
    %cst_25 = arith.constant 0.000000e+00 : f32
    %55 = vector.broadcast %cst_25 : f32 to vector<2x16xf32>
    %56 = arith.maximumf %54, %55 : vector<2x16xf32>
    %c0_26 = arith.constant 0 : index
    %c0_27 = arith.constant 0 : index
    %57 = vector.load %arg8[%c0_26, %c0_27] : memref<16x8xf32, #tpu.memory_space<vmem>>, vector<16x8xf32>
    %cst_28 = arith.constant dense<0.000000e+00> : vector<2x8xf32>
    %58 = tpu.matmul %56, %57, %cst_28 {dimension_numbers = #tpu.dot_dimension_numbers<[1], [0], [0], [1], [0, 0, 1, 1], [], []>} : vector<2x16xf32>, vector<16x8xf32>, vector<2x8xf32> -> vector<2x8xf32>
    %cst_29 = arith.constant dense<0.000000e+00> : vector<8xf32>
    %59 = vector.multi_reduction <add>, %58, %cst_29 [0] : vector<2x8xf32> to vector<8xf32>
    %60 = vector.shape_cast %59 : vector<8xf32> to vector<1x8xf32>
    %cst_30 = arith.constant 2.000000e+00 : f32
    %61 = vector.broadcast %cst_30 : f32 to vector<1x8xf32>
    %62 = arith.divf %60, %61 : vector<1x8xf32>
    %63 = vector.broadcast %62 : vector<1x8xf32> to vector<2x8xf32>
    %64 = arith.subf %58, %63 : vector<2x8xf32>
    %65 = arith.mulf %64, %64 : vector<2x8xf32>
    %cst_31 = arith.constant dense<0.000000e+00> : vector<8xf32>
    %66 = vector.multi_reduction <add>, %65, %cst_31 [0] : vector<2x8xf32> to vector<8xf32>
    %67 = vector.shape_cast %66 : vector<8xf32> to vector<1x8xf32>
    %cst_32 = arith.constant 2.000000e+00 : f32
    %68 = vector.broadcast %cst_32 : f32 to vector<1x8xf32>
    %69 = arith.divf %67, %68 : vector<1x8xf32>
    %70 = vector.broadcast %62 : vector<1x8xf32> to vector<2x8xf32>
    %71 = arith.subf %58, %70 : vector<2x8xf32>
    %cst_33 = arith.constant 9.99999974E-6 : f32
    %72 = vector.broadcast %cst_33 : f32 to vector<1x8xf32>
    %73 = arith.addf %69, %72 : vector<1x8xf32>
    %74 = math.rsqrt %73 : vector<1x8xf32>
    %75 = vector.broadcast %74 : vector<1x8xf32> to vector<2x8xf32>
    %76 = arith.mulf %71, %75 : vector<2x8xf32>
    %c0_34 = arith.constant 0 : index
    %c0_35 = arith.constant 0 : index
    %77 = vector.load %arg9[%c0_34, %c0_35] : memref<1x8xf32, #tpu.memory_space<vmem>>, vector<1x8xf32>
    %78 = vector.broadcast %77 : vector<1x8xf32> to vector<2x8xf32>
    %79 = arith.mulf %76, %78 : vector<2x8xf32>
    %c0_36 = arith.constant 0 : index
    %c0_37 = arith.constant 0 : index
    %80 = vector.load %arg10[%c0_36, %c0_37] : memref<1x8xf32, #tpu.memory_space<vmem>>, vector<1x8xf32>
    %81 = vector.broadcast %80 : vector<1x8xf32> to vector<2x8xf32>
    %82 = arith.addf %79, %81 : vector<2x8xf32>
    %cst_38 = arith.constant 0.000000e+00 : f32
    %83 = vector.broadcast %cst_38 : f32 to vector<2x8xf32>
    %84 = arith.subf %83, %82 : vector<2x8xf32>
    %85 = math.exp %84 : vector<2x8xf32>
    %cst_39 = arith.constant 1.000000e+00 : f32
    %86 = vector.broadcast %cst_39 : f32 to vector<2x8xf32>
    %87 = arith.addf %86, %85 : vector<2x8xf32>
    %cst_40 = arith.constant 1.000000e+00 : f32
    %88 = vector.broadcast %cst_40 : f32 to vector<2x8xf32>
    %89 = arith.divf %88, %87 : vector<2x8xf32>
    %c0_41 = arith.constant 0 : index
    %c0_42 = arith.constant 0 : index
    %90 = vector.load %arg20[%c0_41, %c0_42] : memref<2x8xf32, #tpu.memory_space<vmem>>, vector<2x8xf32>
    tpu.vector_store %arg20[%c0_41, %c0_42], %89 {strides = array<i32>} : memref<2x8xf32, #tpu.memory_space<vmem>>, vector<2x8xf32>,
    %c0_43 = arith.constant 0 : index
    %c0_44 = arith.constant 0 : index
    %91 = vector.load %arg11[%c0_43, %c0_44] : memref<8x16xf32, #tpu.memory_space<vmem>>, vector<8x16xf32>
    %cst_45 = arith.constant dense<0.000000e+00> : vector<2x16xf32>
    %92 = tpu.matmul %89, %91, %cst_45 {dimension_numbers = #tpu.dot_dimension_numbers<[1], [0], [0], [1], [0, 0, 1, 1], [], []>} : vector<2x8xf32>, vector<8x16xf32>, vector<2x16xf32> -> vector<2x16xf32>
    %cst_46 = arith.constant dense<0.000000e+00> : vector<16xf32>
    %93 = vector.multi_reduction <add>, %92, %cst_46 [0] : vector<2x16xf32> to vector<16xf32>
    %94 = vector.shape_cast %93 : vector<16xf32> to vector<1x16xf32>
    %cst_47 = arith.constant 2.000000e+00 : f32
    %95 = vector.broadcast %cst_47 : f32 to vector<1x16xf32>
    %96 = arith.divf %94, %95 : vector<1x16xf32>
    %97 = vector.broadcast %96 : vector<1x16xf32> to vector<2x16xf32>
    %98 = arith.subf %92, %97 : vector<2x16xf32>
    %99 = arith.mulf %98, %98 : vector<2x16xf32>
    %cst_48 = arith.constant dense<0.000000e+00> : vector<16xf32>
    %100 = vector.multi_reduction <add>, %99, %cst_48 [0] : vector<2x16xf32> to vector<16xf32>
    %101 = vector.shape_cast %100 : vector<16xf32> to vector<1x16xf32>
    %cst_49 = arith.constant 2.000000e+00 : f32
    %102 = vector.broadcast %cst_49 : f32 to vector<1x16xf32>
    %103 = arith.divf %101, %102 : vector<1x16xf32>
    %104 = vector.broadcast %96 : vector<1x16xf32> to vector<2x16xf32>
    %105 = arith.subf %92, %104 : vector<2x16xf32>
    %cst_50 = arith.constant 9.99999974E-6 : f32
    %106 = vector.broadcast %cst_50 : f32 to vector<1x16xf32>
    %107 = arith.addf %103, %106 : vector<1x16xf32>
    %108 = math.rsqrt %107 : vector<1x16xf32>
    %109 = vector.broadcast %108 : vector<1x16xf32> to vector<2x16xf32>
    %110 = arith.mulf %105, %109 : vector<2x16xf32>
    %c0_51 = arith.constant 0 : index
    %c0_52 = arith.constant 0 : index
    %111 = vector.load %arg12[%c0_51, %c0_52] : memref<1x16xf32, #tpu.memory_space<vmem>>, vector<1x16xf32>
    %112 = vector.broadcast %111 : vector<1x16xf32> to vector<2x16xf32>
    %113 = arith.mulf %110, %112 : vector<2x16xf32>
    %c0_53 = arith.constant 0 : index
    %c0_54 = arith.constant 0 : index
    %114 = vector.load %arg13[%c0_53, %c0_54] : memref<1x16xf32, #tpu.memory_space<vmem>>, vector<1x16xf32>
    %115 = vector.broadcast %114 : vector<1x16xf32> to vector<2x16xf32>
    %116 = arith.addf %113, %115 : vector<2x16xf32>
    %cst_55 = arith.constant 0.000000e+00 : f32
    %117 = vector.broadcast %cst_55 : f32 to vector<2x16xf32>
    %118 = arith.maximumf %116, %117 : vector<2x16xf32>
    %c0_56 = arith.constant 0 : index
    %c0_57 = arith.constant 0 : index
    %119 = vector.load %arg14[%c0_56, %c0_57] : memref<16x32xf32, #tpu.memory_space<vmem>>, vector<16x32xf32>
    %cst_58 = arith.constant dense<0.000000e+00> : vector<2x32xf32>
    %120 = tpu.matmul %118, %119, %cst_58 {dimension_numbers = #tpu.dot_dimension_numbers<[1], [0], [0], [1], [0, 0, 1, 1], [], []>} : vector<2x16xf32>, vector<16x32xf32>, vector<2x32xf32> -> vector<2x32xf32>
    %cst_59 = arith.constant dense<0.000000e+00> : vector<32xf32>
    %121 = vector.multi_reduction <add>, %120, %cst_59 [0] : vector<2x32xf32> to vector<32xf32>
    %122 = vector.shape_cast %121 : vector<32xf32> to vector<1x32xf32>
    %cst_60 = arith.constant 2.000000e+00 : f32
    %123 = vector.broadcast %cst_60 : f32 to vector<1x32xf32>
    %124 = arith.divf %122, %123 : vector<1x32xf32>
    %125 = vector.broadcast %124 : vector<1x32xf32> to vector<2x32xf32>
    %126 = arith.subf %120, %125 : vector<2x32xf32>
    %127 = arith.mulf %126, %126 : vector<2x32xf32>
    %cst_61 = arith.constant dense<0.000000e+00> : vector<32xf32>
    %128 = vector.multi_reduction <add>, %127, %cst_61 [0] : vector<2x32xf32> to vector<32xf32>
    %129 = vector.shape_cast %128 : vector<32xf32> to vector<1x32xf32>
    %cst_62 = arith.constant 2.000000e+00 : f32
    %130 = vector.broadcast %cst_62 : f32 to vector<1x32xf32>
    %131 = arith.divf %129, %130 : vector<1x32xf32>
    %132 = vector.broadcast %124 : vector<1x32xf32> to vector<2x32xf32>
    %133 = arith.subf %120, %132 : vector<2x32xf32>
    %cst_63 = arith.constant 9.99999974E-6 : f32
    %134 = vector.broadcast %cst_63 : f32 to vector<1x32xf32>
    %135 = arith.addf %131, %134 : vector<1x32xf32>
    %136 = math.rsqrt %135 : vector<1x32xf32>
    %137 = vector.broadcast %136 : vector<1x32xf32> to vector<2x32xf32>
    %138 = arith.mulf %133, %137 : vector<2x32xf32>
    %c0_64 = arith.constant 0 : index
    %c0_65 = arith.constant 0 : index
    %139 = vector.load %arg15[%c0_64, %c0_65] : memref<1x32xf32, #tpu.memory_space<vmem>>, vector<1x32xf32>
    %140 = vector.broadcast %139 : vector<1x32xf32> to vector<2x32xf32>
    %141 = arith.mulf %138, %140 : vector<2x32xf32>
    %c0_66 = arith.constant 0 : index
    %c0_67 = arith.constant 0 : index
    %142 = vector.load %arg16[%c0_66, %c0_67] : memref<1x32xf32, #tpu.memory_space<vmem>>, vector<1x32xf32>
    %143 = vector.broadcast %142 : vector<1x32xf32> to vector<2x32xf32>
    %144 = arith.addf %141, %143 : vector<2x32xf32>
    %cst_68 = arith.constant 0.000000e+00 : f32
    %145 = vector.broadcast %cst_68 : f32 to vector<2x32xf32>
    %146 = arith.maximumf %144, %145 : vector<2x32xf32>
    %c0_69 = arith.constant 0 : index
    %c0_70 = arith.constant 0 : index
    %147 = vector.load %arg17[%c0_69, %c0_70] : memref<32x64xf32, #tpu.memory_space<vmem>>, vector<32x64xf32>
    %cst_71 = arith.constant dense<0.000000e+00> : vector<2x64xf32>
    %148 = tpu.matmul %146, %147, %cst_71 {dimension_numbers = #tpu.dot_dimension_numbers<[1], [0], [0], [1], [0, 0, 1, 1], [], []>} : vector<2x32xf32>, vector<32x64xf32>, vector<2x64xf32> -> vector<2x64xf32>
    %cst_72 = arith.constant dense<0.000000e+00> : vector<64xf32>
    %149 = vector.multi_reduction <add>, %148, %cst_72 [0] : vector<2x64xf32> to vector<64xf32>
    %150 = vector.shape_cast %149 : vector<64xf32> to vector<1x64xf32>
    %cst_73 = arith.constant 2.000000e+00 : f32
    %151 = vector.broadcast %cst_73 : f32 to vector<1x64xf32>
    %152 = arith.divf %150, %151 : vector<1x64xf32>
    %153 = vector.broadcast %152 : vector<1x64xf32> to vector<2x64xf32>
    %154 = arith.subf %148, %153 : vector<2x64xf32>
    %155 = arith.mulf %154, %154 : vector<2x64xf32>
    %cst_74 = arith.constant dense<0.000000e+00> : vector<64xf32>
    %156 = vector.multi_reduction <add>, %155, %cst_74 [0] : vector<2x64xf32> to vector<64xf32>
    %157 = vector.shape_cast %156 : vector<64xf32> to vector<1x64xf32>
    %cst_75 = arith.constant 2.000000e+00 : f32
    %158 = vector.broadcast %cst_75 : f32 to vector<1x64xf32>
    %159 = arith.divf %157, %158 : vector<1x64xf32>
    %160 = vector.broadcast %152 : vector<1x64xf32> to vector<2x64xf32>
    %161 = arith.subf %148, %160 : vector<2x64xf32>
    %cst_76 = arith.constant 9.99999974E-6 : f32
    %162 = vector.broadcast %cst_76 : f32 to vector<1x64xf32>
    %163 = arith.addf %159, %162 : vector<1x64xf32>
    %164 = math.rsqrt %163 : vector<1x64xf32>
    %165 = vector.broadcast %164 : vector<1x64xf32> to vector<2x64xf32>
    %166 = arith.mulf %161, %165 : vector<2x64xf32>
    %c0_77 = arith.constant 0 : index
    %c0_78 = arith.constant 0 : index
    %167 = vector.load %arg18[%c0_77, %c0_78] : memref<1x64xf32, #tpu.memory_space<vmem>>, vector<1x64xf32>
    %168 = vector.broadcast %167 : vector<1x64xf32> to vector<2x64xf32>
    %169 = arith.mulf %166, %168 : vector<2x64xf32>
    %c0_79 = arith.constant 0 : index
    %c0_80 = arith.constant 0 : index
    %170 = vector.load %arg19[%c0_79, %c0_80] : memref<1x64xf32, #tpu.memory_space<vmem>>, vector<1x64xf32>
    %171 = vector.broadcast %170 : vector<1x64xf32> to vector<2x64xf32>
    %172 = arith.addf %169, %171 : vector<2x64xf32>
    %cst_81 = arith.constant 0.000000e+00 : f32
    %173 = vector.broadcast %cst_81 : f32 to vector<2x64xf32>
    %174 = arith.maximumf %172, %173 : vector<2x64xf32>
    %c0_82 = arith.constant 0 : index
    %c0_83 = arith.constant 0 : index
    %175 = vector.load %arg21[%c0_82, %c0_83] : memref<2x64xf32, #tpu.memory_space<vmem>>, vector<2x64xf32>
    tpu.vector_store %arg21[%c0_82, %c0_83], %174 {strides = array<i32>} : memref<2x64xf32, #tpu.memory_space<vmem>>, vector<2x64xf32>,
    return
  }
  func.func @transform_0(%arg0: i32) -> (i32, i32) {
    %c0_i32 = arith.constant 0 : i32
    %c0_i32_0 = arith.constant 0 : i32
    %c0_i32_1 = arith.constant 0 : i32
    return %c0_i32, %c0_i32_0 : i32, i32
  }
  func.func @transform_1(%arg0: i32) -> (i32, i32) {
    %c0_i32 = arith.constant 0 : i32
    %c0_i32_0 = arith.constant 0 : i32
    %c0_i32_1 = arith.constant 0 : i32
    return %c0_i32, %c0_i32_0 : i32, i32
  }
  func.func @transform_2(%arg0: i32) -> (i32, i32) {
    %c0_i32 = arith.constant 0 : i32
    %c0_i32_0 = arith.constant 0 : i32
    %c0_i32_1 = arith.constant 0 : i32
    return %c0_i32, %c0_i32_0 : i32, i32
  }
  func.func @transform_3(%arg0: i32) -> (i32, i32) {
    %c0_i32 = arith.constant 0 : i32
    %c0_i32_0 = arith.constant 0 : i32
    %c0_i32_1 = arith.constant 0 : i32
    return %c0_i32, %c0_i32_0 : i32, i32
  }
  func.func @transform_4(%arg0: i32) -> (i32, i32) {
    %c0_i32 = arith.constant 0 : i32
    %c0_i32_0 = arith.constant 0 : i32
    %c0_i32_1 = arith.constant 0 : i32
    return %c0_i32, %c0_i32_0 : i32, i32
  }
  func.func @transform_5(%arg0: i32) -> (i32, i32) {
    %c0_i32 = arith.constant 0 : i32
    %c0_i32_0 = arith.constant 0 : i32
    %c0_i32_1 = arith.constant 0 : i32
    return %c0_i32, %c0_i32_0 : i32, i32
  }
  func.func @transform_6(%arg0: i32) -> (i32, i32) {
    %c0_i32 = arith.constant 0 : i32
    %c0_i32_0 = arith.constant 0 : i32
    %c0_i32_1 = arith.constant 0 : i32
    return %c0_i32, %c0_i32_0 : i32, i32
  }
  func.func @transform_7(%arg0: i32) -> (i32, i32) {
    %c0_i32 = arith.constant 0 : i32
    %c0_i32_0 = arith.constant 0 : i32
    %c0_i32_1 = arith.constant 0 : i32
    return %c0_i32, %c0_i32_0 : i32, i32
  }
  func.func @transform_8(%arg0: i32) -> (i32, i32) {
    %c0_i32 = arith.constant 0 : i32
    %c0_i32_0 = arith.constant 0 : i32
    %c0_i32_1 = arith.constant 0 : i32
    return %c0_i32, %c0_i32_0 : i32, i32
  }
  func.func @transform_9(%arg0: i32) -> (i32, i32) {
    %c0_i32 = arith.constant 0 : i32
    %c0_i32_0 = arith.constant 0 : i32
    %c0_i32_1 = arith.constant 0 : i32
    return %c0_i32, %c0_i32_0 : i32, i32
  }
  func.func @transform_10(%arg0: i32) -> (i32, i32) {
    %c0_i32 = arith.constant 0 : i32
    %c0_i32_0 = arith.constant 0 : i32
    %c0_i32_1 = arith.constant 0 : i32
    return %c0_i32, %c0_i32_0 : i32, i32
  }
  func.func @transform_11(%arg0: i32) -> (i32, i32) {
    %c0_i32 = arith.constant 0 : i32
    %c0_i32_0 = arith.constant 0 : i32
    %c0_i32_1 = arith.constant 0 : i32
    return %c0_i32, %c0_i32_0 : i32, i32
  }
  func.func @transform_12(%arg0: i32) -> (i32, i32) {
    %c0_i32 = arith.constant 0 : i32
    %c0_i32_0 = arith.constant 0 : i32
    %c0_i32_1 = arith.constant 0 : i32
    return %c0_i32, %c0_i32_0 : i32, i32
  }
  func.func @transform_13(%arg0: i32) -> (i32, i32) {
    %c0_i32 = arith.constant 0 : i32
    %c0_i32_0 = arith.constant 0 : i32
    %c0_i32_1 = arith.constant 0 : i32
    return %c0_i32, %c0_i32_0 : i32, i32
  }
  func.func @transform_14(%arg0: i32) -> (i32, i32) {
    %c0_i32 = arith.constant 0 : i32
    %c0_i32_0 = arith.constant 0 : i32
    %c0_i32_1 = arith.constant 0 : i32
    return %c0_i32, %c0_i32_0 : i32, i32
  }
  func.func @transform_15(%arg0: i32) -> (i32, i32) {
    %c0_i32 = arith.constant 0 : i32
    %c0_i32_0 = arith.constant 0 : i32
    %c0_i32_1 = arith.constant 0 : i32
    return %c0_i32, %c0_i32_0 : i32, i32
  }
  func.func @transform_16(%arg0: i32) -> (i32, i32) {
    %c0_i32 = arith.constant 0 : i32
    %c0_i32_0 = arith.constant 0 : i32
    %c0_i32_1 = arith.constant 0 : i32
    return %c0_i32, %c0_i32_0 : i32, i32
  }
  func.func @transform_17(%arg0: i32) -> (i32, i32) {
    %c0_i32 = arith.constant 0 : i32
    %c0_i32_0 = arith.constant 0 : i32
    %c0_i32_1 = arith.constant 0 : i32
    return %c0_i32, %c0_i32_0 : i32, i32
  }
  func.func @transform_18(%arg0: i32) -> (i32, i32) {
    %c0_i32 = arith.constant 0 : i32
    %c0_i32_0 = arith.constant 0 : i32
    %c0_i32_1 = arith.constant 0 : i32
    return %c0_i32, %c0_i32_0 : i32, i32
  }
  func.func @transform_19(%arg0: i32) -> (i32, i32) {
    %c0_i32 = arith.constant 0 : i32
    %c0_i32_0 = arith.constant 0 : i32
    %c0_i32_1 = arith.constant 0 : i32
    return %c0_i32, %c0_i32_0 : i32, i32
  }
  func.func @transform_20(%arg0: i32) -> (i32, i32) {
    %c0_i32 = arith.constant 0 : i32
    %c0_i32_0 = arith.constant 0 : i32
    %c0_i32_1 = arith.constant 0 : i32
    return %c0_i32, %c0_i32_0 : i32, i32
  }
}

module attributes {stable_mosaic.version = 11 : i64} {
  func.func @_conv_bn_act_kernel(%arg0: i32, %arg1: memref<1x96x32xbf16, #tpu.memory_space<vmem>>, %arg2: memref<1x16x96xbf16, #tpu.memory_space<vmem>>, %arg3: memref<16x1xf32, #tpu.memory_space<vmem>>, %arg4: memref<16x1xf32, #tpu.memory_space<vmem>>, %arg5: memref<16x32xf32, #tpu.memory_space<vmem>>, %arg6: memref<16x32xf32, #tpu.memory_space<vmem>>) attributes {dimension_semantics = [#tpu.dimension_semantics<arbitrary>], iteration_bounds = array<i64: 6>, scalar_prefetch = 0 : i64, scratch_operands = 1 : i64, tpu.core_type = #tpu.core_type<tc>, window_params = [{transform_indices = @transform_0, window_bounds = array<i64: 1, 96, 32>}, {transform_indices = @transform_1, window_bounds = array<i64: 1, 16, 96>}, {pipeline_mode = #tpu.pipeline_mode<synchronous>, transform_indices = @transform_2, window_bounds = array<i64: 16, 1>}, {pipeline_mode = #tpu.pipeline_mode<synchronous>, transform_indices = @transform_3, window_bounds = array<i64: 16, 1>}, {pipeline_mode = #tpu.pipeline_mode<synchronous>, transform_indices = @transform_4, window_bounds = array<i64: 16, 32>}]} {
    %c0_i32 = arith.constant 0 : i32
    %0 = arith.cmpi eq, %arg0, %c0_i32 : i32
    %1 = arith.extui %0 : i1 to i32
    %c0_i32_0 = arith.constant 0 : i32
    %2 = arith.cmpi ne, %1, %c0_i32_0 : i32
    scf.if %2 {
      %cst_11 = arith.constant 0.000000e+00 : f32
      %14 = vector.broadcast %cst_11 : f32 to vector<16x32xf32>
      %c0_12 = arith.constant 0 : index
      %c0_13 = arith.constant 0 : index
      %15 = vector.load %arg6[%c0_12, %c0_13] : memref<16x32xf32, #tpu.memory_space<vmem>>, vector<16x32xf32>
      tpu.vector_store %arg6[%c0_12, %c0_13], %14 {strides = array<i32>} : memref<16x32xf32, #tpu.memory_space<vmem>>, vector<16x32xf32>,
    } else {
    }
    %c0 = arith.constant 0 : index
    %c0_1 = arith.constant 0 : index
    %3 = vector.load %arg6[%c0, %c0_1] : memref<16x32xf32, #tpu.memory_space<vmem>>, vector<16x32xf32>
    %c0_2 = arith.constant 0 : index
    %c0_3 = arith.constant 0 : index
    %c0_4 = arith.constant 0 : index
    %4 = vector.load %arg2[%c0_2, %c0_3, %c0_4] : memref<1x16x96xbf16, #tpu.memory_space<vmem>>, vector<1x16x96xbf16>
    %5 = vector.shape_cast %4 : vector<1x16x96xbf16> to vector<16x96xbf16>
    %c0_5 = arith.constant 0 : index
    %c0_6 = arith.constant 0 : index
    %c0_7 = arith.constant 0 : index
    %6 = vector.load %arg1[%c0_5, %c0_6, %c0_7] : memref<1x96x32xbf16, #tpu.memory_space<vmem>>, vector<1x96x32xbf16>
    %7 = vector.shape_cast %6 : vector<1x96x32xbf16> to vector<96x32xbf16>
    %cst = arith.constant dense<0.000000e+00> : vector<16x32xf32>
    %8 = tpu.matmul %5, %7, %cst {dimension_numbers = #tpu.dot_dimension_numbers<[1], [0], [0], [1], [0, 0, 1, 1], [], []>} : vector<16x96xbf16>, vector<96x32xbf16>, vector<16x32xf32> -> vector<16x32xf32>
    %9 = arith.addf %3, %8 : vector<16x32xf32>
    %c0_8 = arith.constant 0 : index
    %c0_9 = arith.constant 0 : index
    %10 = vector.load %arg6[%c0_8, %c0_9] : memref<16x32xf32, #tpu.memory_space<vmem>>, vector<16x32xf32>
    tpu.vector_store %arg6[%c0_8, %c0_9], %9 {strides = array<i32>} : memref<16x32xf32, #tpu.memory_space<vmem>>, vector<16x32xf32>,
    %c5_i32 = arith.constant 5 : i32
    %11 = arith.cmpi eq, %arg0, %c5_i32 : i32
    %12 = arith.extui %11 : i1 to i32
    %c0_i32_10 = arith.constant 0 : i32
    %13 = arith.cmpi ne, %12, %c0_i32_10 : i32
    scf.if %13 {
      %c0_11 = arith.constant 0 : index
      %c0_12 = arith.constant 0 : index
      %14 = vector.load %arg6[%c0_11, %c0_12] : memref<16x32xf32, #tpu.memory_space<vmem>>, vector<16x32xf32>
      %cst_13 = arith.constant dense<0.000000e+00> : vector<16xf32>
      %15 = vector.multi_reduction <add>, %14, %cst_13 [1] : vector<16x32xf32> to vector<16xf32>
      %16 = vector.shape_cast %15 : vector<16xf32> to vector<16x1xf32>
      %cst_14 = arith.constant 3.200000e+01 : f32
      %17 = vector.broadcast %cst_14 : f32 to vector<16x1xf32>
      %18 = arith.divf %16, %17 : vector<16x1xf32>
      %19 = vector.broadcast %18 : vector<16x1xf32> to vector<16x32xf32>
      %20 = arith.subf %14, %19 : vector<16x32xf32>
      %21 = arith.mulf %20, %20 : vector<16x32xf32>
      %cst_15 = arith.constant dense<0.000000e+00> : vector<16xf32>
      %22 = vector.multi_reduction <add>, %21, %cst_15 [1] : vector<16x32xf32> to vector<16xf32>
      %23 = vector.shape_cast %22 : vector<16xf32> to vector<16x1xf32>
      %cst_16 = arith.constant 3.200000e+01 : f32
      %24 = vector.broadcast %cst_16 : f32 to vector<16x1xf32>
      %25 = arith.divf %23, %24 : vector<16x1xf32>
      %26 = vector.broadcast %18 : vector<16x1xf32> to vector<16x32xf32>
      %27 = arith.subf %14, %26 : vector<16x32xf32>
      %cst_17 = arith.constant 9.99999974E-6 : f32
      %28 = vector.broadcast %cst_17 : f32 to vector<16x1xf32>
      %29 = arith.addf %25, %28 : vector<16x1xf32>
      %30 = math.rsqrt %29 : vector<16x1xf32>
      %31 = vector.broadcast %30 : vector<16x1xf32> to vector<16x32xf32>
      %32 = arith.mulf %27, %31 : vector<16x32xf32>
      %c0_18 = arith.constant 0 : index
      %c0_19 = arith.constant 0 : index
      %33 = vector.load %arg3[%c0_18, %c0_19] : memref<16x1xf32, #tpu.memory_space<vmem>>, vector<16x1xf32>
      %34 = vector.broadcast %33 : vector<16x1xf32> to vector<16x32xf32>
      %35 = arith.mulf %32, %34 : vector<16x32xf32>
      %c0_20 = arith.constant 0 : index
      %c0_21 = arith.constant 0 : index
      %36 = vector.load %arg4[%c0_20, %c0_21] : memref<16x1xf32, #tpu.memory_space<vmem>>, vector<16x1xf32>
      %37 = vector.broadcast %36 : vector<16x1xf32> to vector<16x32xf32>
      %38 = arith.addf %35, %37 : vector<16x32xf32>
      %cst_22 = arith.constant 0.000000e+00 : f32
      %39 = vector.broadcast %cst_22 : f32 to vector<16x32xf32>
      %40 = arith.maximumf %38, %39 : vector<16x32xf32>
      %c0_23 = arith.constant 0 : index
      %c0_24 = arith.constant 0 : index
      %41 = vector.load %arg5[%c0_23, %c0_24] : memref<16x32xf32, #tpu.memory_space<vmem>>, vector<16x32xf32>
      tpu.vector_store %arg5[%c0_23, %c0_24], %40 {strides = array<i32>} : memref<16x32xf32, #tpu.memory_space<vmem>>, vector<16x32xf32>,
    } else {
    }
    return
  }
  func.func @transform_0(%arg0: i32) -> (i32, i32, i32) {
    %c0_i32 = arith.constant 0 : i32
    %c0_i32_0 = arith.constant 0 : i32
    %c0_i32_1 = arith.constant 0 : i32
    return %arg0, %c0_i32, %c0_i32_0 : i32, i32, i32
  }
  func.func @transform_1(%arg0: i32) -> (i32, i32, i32) {
    %c0_i32 = arith.constant 0 : i32
    %c0_i32_0 = arith.constant 0 : i32
    %c0_i32_1 = arith.constant 0 : i32
    return %arg0, %c0_i32, %c0_i32_0 : i32, i32, i32
  }
  func.func @transform_2(%arg0: i32) -> (i32, i32) {
    %c0_i32 = arith.constant 0 : i32
    %c0_i32_0 = arith.constant 0 : i32
    %c0_i32_1 = arith.constant 0 : i32
    return %c0_i32, %c0_i32_0 : i32, i32
  }
  func.func @transform_3(%arg0: i32) -> (i32, i32) {
    %c0_i32 = arith.constant 0 : i32
    %c0_i32_0 = arith.constant 0 : i32
    %c0_i32_1 = arith.constant 0 : i32
    return %c0_i32, %c0_i32_0 : i32, i32
  }
  func.func @transform_4(%arg0: i32) -> (i32, i32) {
    %c0_i32 = arith.constant 0 : i32
    %c0_i32_0 = arith.constant 0 : i32
    %c0_i32_1 = arith.constant 0 : i32
    return %c0_i32, %c0_i32_0 : i32, i32
  }
}

module attributes {stable_mosaic.version = 11 : i64} {
  func.func @_conv_bn_act_kernel(%arg0: i32, %arg1: memref<1x96x128xbf16, #tpu.memory_space<vmem>>, %arg2: memref<1x8x96xbf16, #tpu.memory_space<vmem>>, %arg3: memref<8x1xf32, #tpu.memory_space<vmem>>, %arg4: memref<8x1xf32, #tpu.memory_space<vmem>>, %arg5: memref<8x128xf32, #tpu.memory_space<vmem>>, %arg6: memref<8x128xf32, #tpu.memory_space<vmem>>) attributes {dimension_semantics = [#tpu.dimension_semantics<arbitrary>], iteration_bounds = array<i64: 6>, scalar_prefetch = 0 : i64, scratch_operands = 1 : i64, tpu.core_type = #tpu.core_type<tc>, window_params = [{transform_indices = @transform_0, window_bounds = array<i64: 1, 96, 128>}, {transform_indices = @transform_1, window_bounds = array<i64: 1, 8, 96>}, {pipeline_mode = #tpu.pipeline_mode<synchronous>, transform_indices = @transform_2, window_bounds = array<i64: 8, 1>}, {pipeline_mode = #tpu.pipeline_mode<synchronous>, transform_indices = @transform_3, window_bounds = array<i64: 8, 1>}, {pipeline_mode = #tpu.pipeline_mode<synchronous>, transform_indices = @transform_4, window_bounds = array<i64: 8, 128>}]} {
    %c0_i32 = arith.constant 0 : i32
    %0 = arith.cmpi eq, %arg0, %c0_i32 : i32
    %1 = arith.extui %0 : i1 to i32
    %c0_i32_0 = arith.constant 0 : i32
    %2 = arith.cmpi ne, %1, %c0_i32_0 : i32
    scf.if %2 {
      %cst_11 = arith.constant 0.000000e+00 : f32
      %14 = vector.broadcast %cst_11 : f32 to vector<8x128xf32>
      %c0_12 = arith.constant 0 : index
      %c0_13 = arith.constant 0 : index
      %15 = vector.load %arg6[%c0_12, %c0_13] : memref<8x128xf32, #tpu.memory_space<vmem>>, vector<8x128xf32>
      tpu.vector_store %arg6[%c0_12, %c0_13], %14 {strides = array<i32>} : memref<8x128xf32, #tpu.memory_space<vmem>>, vector<8x128xf32>,
    } else {
    }
    %c0 = arith.constant 0 : index
    %c0_1 = arith.constant 0 : index
    %3 = vector.load %arg6[%c0, %c0_1] : memref<8x128xf32, #tpu.memory_space<vmem>>, vector<8x128xf32>
    %c0_2 = arith.constant 0 : index
    %c0_3 = arith.constant 0 : index
    %c0_4 = arith.constant 0 : index
    %4 = vector.load %arg2[%c0_2, %c0_3, %c0_4] : memref<1x8x96xbf16, #tpu.memory_space<vmem>>, vector<1x8x96xbf16>
    %5 = vector.shape_cast %4 : vector<1x8x96xbf16> to vector<8x96xbf16>
    %c0_5 = arith.constant 0 : index
    %c0_6 = arith.constant 0 : index
    %c0_7 = arith.constant 0 : index
    %6 = vector.load %arg1[%c0_5, %c0_6, %c0_7] : memref<1x96x128xbf16, #tpu.memory_space<vmem>>, vector<1x96x128xbf16>
    %7 = vector.shape_cast %6 : vector<1x96x128xbf16> to vector<96x128xbf16>
    %cst = arith.constant dense<0.000000e+00> : vector<8x128xf32>
    %8 = tpu.matmul %5, %7, %cst {dimension_numbers = #tpu.dot_dimension_numbers<[1], [0], [0], [1], [0, 0, 1, 1], [], []>} : vector<8x96xbf16>, vector<96x128xbf16>, vector<8x128xf32> -> vector<8x128xf32>
    %9 = arith.addf %3, %8 : vector<8x128xf32>
    %c0_8 = arith.constant 0 : index
    %c0_9 = arith.constant 0 : index
    %10 = vector.load %arg6[%c0_8, %c0_9] : memref<8x128xf32, #tpu.memory_space<vmem>>, vector<8x128xf32>
    tpu.vector_store %arg6[%c0_8, %c0_9], %9 {strides = array<i32>} : memref<8x128xf32, #tpu.memory_space<vmem>>, vector<8x128xf32>,
    %c5_i32 = arith.constant 5 : i32
    %11 = arith.cmpi eq, %arg0, %c5_i32 : i32
    %12 = arith.extui %11 : i1 to i32
    %c0_i32_10 = arith.constant 0 : i32
    %13 = arith.cmpi ne, %12, %c0_i32_10 : i32
    scf.if %13 {
      %c0_11 = arith.constant 0 : index
      %c0_12 = arith.constant 0 : index
      %14 = vector.load %arg6[%c0_11, %c0_12] : memref<8x128xf32, #tpu.memory_space<vmem>>, vector<8x128xf32>
      %cst_13 = arith.constant dense<0.000000e+00> : vector<8xf32>
      %15 = vector.multi_reduction <add>, %14, %cst_13 [1] : vector<8x128xf32> to vector<8xf32>
      %16 = vector.shape_cast %15 : vector<8xf32> to vector<8x1xf32>
      %cst_14 = arith.constant 1.280000e+02 : f32
      %17 = vector.broadcast %cst_14 : f32 to vector<8x1xf32>
      %18 = arith.divf %16, %17 : vector<8x1xf32>
      %19 = vector.broadcast %18 : vector<8x1xf32> to vector<8x128xf32>
      %20 = arith.subf %14, %19 : vector<8x128xf32>
      %21 = arith.mulf %20, %20 : vector<8x128xf32>
      %cst_15 = arith.constant dense<0.000000e+00> : vector<8xf32>
      %22 = vector.multi_reduction <add>, %21, %cst_15 [1] : vector<8x128xf32> to vector<8xf32>
      %23 = vector.shape_cast %22 : vector<8xf32> to vector<8x1xf32>
      %cst_16 = arith.constant 1.280000e+02 : f32
      %24 = vector.broadcast %cst_16 : f32 to vector<8x1xf32>
      %25 = arith.divf %23, %24 : vector<8x1xf32>
      %26 = vector.broadcast %18 : vector<8x1xf32> to vector<8x128xf32>
      %27 = arith.subf %14, %26 : vector<8x128xf32>
      %cst_17 = arith.constant 9.99999974E-6 : f32
      %28 = vector.broadcast %cst_17 : f32 to vector<8x1xf32>
      %29 = arith.addf %25, %28 : vector<8x1xf32>
      %30 = math.rsqrt %29 : vector<8x1xf32>
      %31 = vector.broadcast %30 : vector<8x1xf32> to vector<8x128xf32>
      %32 = arith.mulf %27, %31 : vector<8x128xf32>
      %c0_18 = arith.constant 0 : index
      %c0_19 = arith.constant 0 : index
      %33 = vector.load %arg3[%c0_18, %c0_19] : memref<8x1xf32, #tpu.memory_space<vmem>>, vector<8x1xf32>
      %34 = vector.broadcast %33 : vector<8x1xf32> to vector<8x128xf32>
      %35 = arith.mulf %32, %34 : vector<8x128xf32>
      %c0_20 = arith.constant 0 : index
      %c0_21 = arith.constant 0 : index
      %36 = vector.load %arg4[%c0_20, %c0_21] : memref<8x1xf32, #tpu.memory_space<vmem>>, vector<8x1xf32>
      %37 = vector.broadcast %36 : vector<8x1xf32> to vector<8x128xf32>
      %38 = arith.addf %35, %37 : vector<8x128xf32>
      %cst_22 = arith.constant 0.000000e+00 : f32
      %39 = vector.broadcast %cst_22 : f32 to vector<8x128xf32>
      %40 = arith.maximumf %38, %39 : vector<8x128xf32>
      %c0_23 = arith.constant 0 : index
      %c0_24 = arith.constant 0 : index
      %41 = vector.load %arg5[%c0_23, %c0_24] : memref<8x128xf32, #tpu.memory_space<vmem>>, vector<8x128xf32>
      tpu.vector_store %arg5[%c0_23, %c0_24], %40 {strides = array<i32>} : memref<8x128xf32, #tpu.memory_space<vmem>>, vector<8x128xf32>,
    } else {
    }
    return
  }
  func.func @transform_0(%arg0: i32) -> (i32, i32, i32) {
    %c0_i32 = arith.constant 0 : i32
    %c0_i32_0 = arith.constant 0 : i32
    %c0_i32_1 = arith.constant 0 : i32
    return %arg0, %c0_i32, %c0_i32_0 : i32, i32, i32
  }
  func.func @transform_1(%arg0: i32) -> (i32, i32, i32) {
    %c0_i32 = arith.constant 0 : i32
    %c0_i32_0 = arith.constant 0 : i32
    %c0_i32_1 = arith.constant 0 : i32
    return %arg0, %c0_i32, %c0_i32_0 : i32, i32, i32
  }
  func.func @transform_2(%arg0: i32) -> (i32, i32) {
    %c0_i32 = arith.constant 0 : i32
    %c0_i32_0 = arith.constant 0 : i32
    %c0_i32_1 = arith.constant 0 : i32
    return %c0_i32, %c0_i32_0 : i32, i32
  }
  func.func @transform_3(%arg0: i32) -> (i32, i32) {
    %c0_i32 = arith.constant 0 : i32
    %c0_i32_0 = arith.constant 0 : i32
    %c0_i32_1 = arith.constant 0 : i32
    return %c0_i32, %c0_i32_0 : i32, i32
  }
  func.func @transform_4(%arg0: i32) -> (i32, i32) {
    %c0_i32 = arith.constant 0 : i32
    %c0_i32_0 = arith.constant 0 : i32
    %c0_i32_1 = arith.constant 0 : i32
    return %c0_i32, %c0_i32_0 : i32, i32
  }
}

module attributes {stable_mosaic.version = 11 : i64} {
  func.func @_conv_bn_act_kernel(%arg0: i32, %arg1: memref<1x48x512xbf16, #tpu.memory_space<vmem>>, %arg2: memref<1x8x48xbf16, #tpu.memory_space<vmem>>, %arg3: memref<8x1xf32, #tpu.memory_space<vmem>>, %arg4: memref<8x1xf32, #tpu.memory_space<vmem>>, %arg5: memref<8x512xf32, #tpu.memory_space<vmem>>, %arg6: memref<8x512xf32, #tpu.memory_space<vmem>>) attributes {dimension_semantics = [#tpu.dimension_semantics<arbitrary>], iteration_bounds = array<i64: 6>, scalar_prefetch = 0 : i64, scratch_operands = 1 : i64, tpu.core_type = #tpu.core_type<tc>, window_params = [{transform_indices = @transform_0, window_bounds = array<i64: 1, 48, 512>}, {transform_indices = @transform_1, window_bounds = array<i64: 1, 8, 48>}, {pipeline_mode = #tpu.pipeline_mode<synchronous>, transform_indices = @transform_2, window_bounds = array<i64: 8, 1>}, {pipeline_mode = #tpu.pipeline_mode<synchronous>, transform_indices = @transform_3, window_bounds = array<i64: 8, 1>}, {pipeline_mode = #tpu.pipeline_mode<synchronous>, transform_indices = @transform_4, window_bounds = array<i64: 8, 512>}]} {
    %c0_i32 = arith.constant 0 : i32
    %0 = arith.cmpi eq, %arg0, %c0_i32 : i32
    %1 = arith.extui %0 : i1 to i32
    %c0_i32_0 = arith.constant 0 : i32
    %2 = arith.cmpi ne, %1, %c0_i32_0 : i32
    scf.if %2 {
      %cst_11 = arith.constant 0.000000e+00 : f32
      %14 = vector.broadcast %cst_11 : f32 to vector<8x512xf32>
      %c0_12 = arith.constant 0 : index
      %c0_13 = arith.constant 0 : index
      %15 = vector.load %arg6[%c0_12, %c0_13] : memref<8x512xf32, #tpu.memory_space<vmem>>, vector<8x512xf32>
      tpu.vector_store %arg6[%c0_12, %c0_13], %14 {strides = array<i32>} : memref<8x512xf32, #tpu.memory_space<vmem>>, vector<8x512xf32>,
    } else {
    }
    %c0 = arith.constant 0 : index
    %c0_1 = arith.constant 0 : index
    %3 = vector.load %arg6[%c0, %c0_1] : memref<8x512xf32, #tpu.memory_space<vmem>>, vector<8x512xf32>
    %c0_2 = arith.constant 0 : index
    %c0_3 = arith.constant 0 : index
    %c0_4 = arith.constant 0 : index
    %4 = vector.load %arg2[%c0_2, %c0_3, %c0_4] : memref<1x8x48xbf16, #tpu.memory_space<vmem>>, vector<1x8x48xbf16>
    %5 = vector.shape_cast %4 : vector<1x8x48xbf16> to vector<8x48xbf16>
    %c0_5 = arith.constant 0 : index
    %c0_6 = arith.constant 0 : index
    %c0_7 = arith.constant 0 : index
    %6 = vector.load %arg1[%c0_5, %c0_6, %c0_7] : memref<1x48x512xbf16, #tpu.memory_space<vmem>>, vector<1x48x512xbf16>
    %7 = vector.shape_cast %6 : vector<1x48x512xbf16> to vector<48x512xbf16>
    %cst = arith.constant dense<0.000000e+00> : vector<8x512xf32>
    %8 = tpu.matmul %5, %7, %cst {dimension_numbers = #tpu.dot_dimension_numbers<[1], [0], [0], [1], [0, 0, 1, 1], [], []>} : vector<8x48xbf16>, vector<48x512xbf16>, vector<8x512xf32> -> vector<8x512xf32>
    %9 = arith.addf %3, %8 : vector<8x512xf32>
    %c0_8 = arith.constant 0 : index
    %c0_9 = arith.constant 0 : index
    %10 = vector.load %arg6[%c0_8, %c0_9] : memref<8x512xf32, #tpu.memory_space<vmem>>, vector<8x512xf32>
    tpu.vector_store %arg6[%c0_8, %c0_9], %9 {strides = array<i32>} : memref<8x512xf32, #tpu.memory_space<vmem>>, vector<8x512xf32>,
    %c5_i32 = arith.constant 5 : i32
    %11 = arith.cmpi eq, %arg0, %c5_i32 : i32
    %12 = arith.extui %11 : i1 to i32
    %c0_i32_10 = arith.constant 0 : i32
    %13 = arith.cmpi ne, %12, %c0_i32_10 : i32
    scf.if %13 {
      %c0_11 = arith.constant 0 : index
      %c0_12 = arith.constant 0 : index
      %14 = vector.load %arg6[%c0_11, %c0_12] : memref<8x512xf32, #tpu.memory_space<vmem>>, vector<8x512xf32>
      %cst_13 = arith.constant dense<0.000000e+00> : vector<8xf32>
      %15 = vector.multi_reduction <add>, %14, %cst_13 [1] : vector<8x512xf32> to vector<8xf32>
      %16 = vector.shape_cast %15 : vector<8xf32> to vector<8x1xf32>
      %cst_14 = arith.constant 5.120000e+02 : f32
      %17 = vector.broadcast %cst_14 : f32 to vector<8x1xf32>
      %18 = arith.divf %16, %17 : vector<8x1xf32>
      %19 = vector.broadcast %18 : vector<8x1xf32> to vector<8x512xf32>
      %20 = arith.subf %14, %19 : vector<8x512xf32>
      %21 = arith.mulf %20, %20 : vector<8x512xf32>
      %cst_15 = arith.constant dense<0.000000e+00> : vector<8xf32>
      %22 = vector.multi_reduction <add>, %21, %cst_15 [1] : vector<8x512xf32> to vector<8xf32>
      %23 = vector.shape_cast %22 : vector<8xf32> to vector<8x1xf32>
      %cst_16 = arith.constant 5.120000e+02 : f32
      %24 = vector.broadcast %cst_16 : f32 to vector<8x1xf32>
      %25 = arith.divf %23, %24 : vector<8x1xf32>
      %26 = vector.broadcast %18 : vector<8x1xf32> to vector<8x512xf32>
      %27 = arith.subf %14, %26 : vector<8x512xf32>
      %cst_17 = arith.constant 9.99999974E-6 : f32
      %28 = vector.broadcast %cst_17 : f32 to vector<8x1xf32>
      %29 = arith.addf %25, %28 : vector<8x1xf32>
      %30 = math.rsqrt %29 : vector<8x1xf32>
      %31 = vector.broadcast %30 : vector<8x1xf32> to vector<8x512xf32>
      %32 = arith.mulf %27, %31 : vector<8x512xf32>
      %c0_18 = arith.constant 0 : index
      %c0_19 = arith.constant 0 : index
      %33 = vector.load %arg3[%c0_18, %c0_19] : memref<8x1xf32, #tpu.memory_space<vmem>>, vector<8x1xf32>
      %34 = vector.broadcast %33 : vector<8x1xf32> to vector<8x512xf32>
      %35 = arith.mulf %32, %34 : vector<8x512xf32>
      %c0_20 = arith.constant 0 : index
      %c0_21 = arith.constant 0 : index
      %36 = vector.load %arg4[%c0_20, %c0_21] : memref<8x1xf32, #tpu.memory_space<vmem>>, vector<8x1xf32>
      %37 = vector.broadcast %36 : vector<8x1xf32> to vector<8x512xf32>
      %38 = arith.addf %35, %37 : vector<8x512xf32>
      %cst_22 = arith.constant 0.000000e+00 : f32
      %39 = vector.broadcast %cst_22 : f32 to vector<8x512xf32>
      %40 = arith.maximumf %38, %39 : vector<8x512xf32>
      %c0_23 = arith.constant 0 : index
      %c0_24 = arith.constant 0 : index
      %41 = vector.load %arg5[%c0_23, %c0_24] : memref<8x512xf32, #tpu.memory_space<vmem>>, vector<8x512xf32>
      tpu.vector_store %arg5[%c0_23, %c0_24], %40 {strides = array<i32>} : memref<8x512xf32, #tpu.memory_space<vmem>>, vector<8x512xf32>,
    } else {
    }
    return
  }
  func.func @transform_0(%arg0: i32) -> (i32, i32, i32) {
    %c0_i32 = arith.constant 0 : i32
    %c0_i32_0 = arith.constant 0 : i32
    %c0_i32_1 = arith.constant 0 : i32
    return %arg0, %c0_i32, %c0_i32_0 : i32, i32, i32
  }
  func.func @transform_1(%arg0: i32) -> (i32, i32, i32) {
    %c0_i32 = arith.constant 0 : i32
    %c0_i32_0 = arith.constant 0 : i32
    %c0_i32_1 = arith.constant 0 : i32
    return %arg0, %c0_i32, %c0_i32_0 : i32, i32, i32
  }
  func.func @transform_2(%arg0: i32) -> (i32, i32) {
    %c0_i32 = arith.constant 0 : i32
    %c0_i32_0 = arith.constant 0 : i32
    %c0_i32_1 = arith.constant 0 : i32
    return %c0_i32, %c0_i32_0 : i32, i32
  }
  func.func @transform_3(%arg0: i32) -> (i32, i32) {
    %c0_i32 = arith.constant 0 : i32
    %c0_i32_0 = arith.constant 0 : i32
    %c0_i32_1 = arith.constant 0 : i32
    return %c0_i32, %c0_i32_0 : i32, i32
  }
  func.func @transform_4(%arg0: i32) -> (i32, i32) {
    %c0_i32 = arith.constant 0 : i32
    %c0_i32_0 = arith.constant 0 : i32
    %c0_i32_1 = arith.constant 0 : i32
    return %c0_i32, %c0_i32_0 : i32, i32
  }
}

module attributes {stable_mosaic.version = 11 : i64} {
  func.func @_conv_bn_act_kernel(%arg0: i32, %arg1: memref<1x56x4608xbf16, #tpu.memory_space<vmem>>, %arg2: memref<1x6x56xbf16, #tpu.memory_space<vmem>>, %arg3: memref<6x1xf32, #tpu.memory_space<vmem>>, %arg4: memref<6x1xf32, #tpu.memory_space<vmem>>, %arg5: memref<6x4608xf32, #tpu.memory_space<vmem>>, %arg6: memref<6x4608xf32, #tpu.memory_space<vmem>>) attributes {dimension_semantics = [#tpu.dimension_semantics<arbitrary>], iteration_bounds = array<i64: 7>, scalar_prefetch = 0 : i64, scratch_operands = 1 : i64, tpu.core_type = #tpu.core_type<tc>, window_params = [{transform_indices = @transform_0, window_bounds = array<i64: 1, 56, 4608>}, {transform_indices = @transform_1, window_bounds = array<i64: 1, 6, 56>}, {pipeline_mode = #tpu.pipeline_mode<synchronous>, transform_indices = @transform_2, window_bounds = array<i64: 6, 1>}, {pipeline_mode = #tpu.pipeline_mode<synchronous>, transform_indices = @transform_3, window_bounds = array<i64: 6, 1>}, {pipeline_mode = #tpu.pipeline_mode<synchronous>, transform_indices = @transform_4, window_bounds = array<i64: 6, 4608>}]} {
    %c0_i32 = arith.constant 0 : i32
    %0 = arith.cmpi eq, %arg0, %c0_i32 : i32
    %1 = arith.extui %0 : i1 to i32
    %c0_i32_0 = arith.constant 0 : i32
    %2 = arith.cmpi ne, %1, %c0_i32_0 : i32
    scf.if %2 {
      %cst_11 = arith.constant 0.000000e+00 : f32
      %14 = vector.broadcast %cst_11 : f32 to vector<6x4608xf32>
      %c0_12 = arith.constant 0 : index
      %c0_13 = arith.constant 0 : index
      %15 = vector.load %arg6[%c0_12, %c0_13] : memref<6x4608xf32, #tpu.memory_space<vmem>>, vector<6x4608xf32>
      tpu.vector_store %arg6[%c0_12, %c0_13], %14 {strides = array<i32>} : memref<6x4608xf32, #tpu.memory_space<vmem>>, vector<6x4608xf32>,
    } else {
    }
    %c0 = arith.constant 0 : index
    %c0_1 = arith.constant 0 : index
    %3 = vector.load %arg6[%c0, %c0_1] : memref<6x4608xf32, #tpu.memory_space<vmem>>, vector<6x4608xf32>
    %c0_2 = arith.constant 0 : index
    %c0_3 = arith.constant 0 : index
    %c0_4 = arith.constant 0 : index
    %4 = vector.load %arg2[%c0_2, %c0_3, %c0_4] : memref<1x6x56xbf16, #tpu.memory_space<vmem>>, vector<1x6x56xbf16>
    %5 = vector.shape_cast %4 : vector<1x6x56xbf16> to vector<6x56xbf16>
    %c0_5 = arith.constant 0 : index
    %c0_6 = arith.constant 0 : index
    %c0_7 = arith.constant 0 : index
    %6 = vector.load %arg1[%c0_5, %c0_6, %c0_7] : memref<1x56x4608xbf16, #tpu.memory_space<vmem>>, vector<1x56x4608xbf16>
    %7 = vector.shape_cast %6 : vector<1x56x4608xbf16> to vector<56x4608xbf16>
    %cst = arith.constant dense<0.000000e+00> : vector<6x4608xf32>
    %8 = tpu.matmul %5, %7, %cst {dimension_numbers = #tpu.dot_dimension_numbers<[1], [0], [0], [1], [0, 0, 1, 1], [], []>} : vector<6x56xbf16>, vector<56x4608xbf16>, vector<6x4608xf32> -> vector<6x4608xf32>
    %9 = arith.addf %3, %8 : vector<6x4608xf32>
    %c0_8 = arith.constant 0 : index
    %c0_9 = arith.constant 0 : index
    %10 = vector.load %arg6[%c0_8, %c0_9] : memref<6x4608xf32, #tpu.memory_space<vmem>>, vector<6x4608xf32>
    tpu.vector_store %arg6[%c0_8, %c0_9], %9 {strides = array<i32>} : memref<6x4608xf32, #tpu.memory_space<vmem>>, vector<6x4608xf32>,
    %c6_i32 = arith.constant 6 : i32
    %11 = arith.cmpi eq, %arg0, %c6_i32 : i32
    %12 = arith.extui %11 : i1 to i32
    %c0_i32_10 = arith.constant 0 : i32
    %13 = arith.cmpi ne, %12, %c0_i32_10 : i32
    scf.if %13 {
      %c0_11 = arith.constant 0 : index
      %c0_12 = arith.constant 0 : index
      %14 = vector.load %arg6[%c0_11, %c0_12] : memref<6x4608xf32, #tpu.memory_space<vmem>>, vector<6x4608xf32>
      %cst_13 = arith.constant dense<0.000000e+00> : vector<6xf32>
      %15 = vector.multi_reduction <add>, %14, %cst_13 [1] : vector<6x4608xf32> to vector<6xf32>
      %16 = vector.shape_cast %15 : vector<6xf32> to vector<6x1xf32>
      %cst_14 = arith.constant 4.608000e+03 : f32
      %17 = vector.broadcast %cst_14 : f32 to vector<6x1xf32>
      %18 = arith.divf %16, %17 : vector<6x1xf32>
      %19 = vector.broadcast %18 : vector<6x1xf32> to vector<6x4608xf32>
      %20 = arith.subf %14, %19 : vector<6x4608xf32>
      %21 = arith.mulf %20, %20 : vector<6x4608xf32>
      %cst_15 = arith.constant dense<0.000000e+00> : vector<6xf32>
      %22 = vector.multi_reduction <add>, %21, %cst_15 [1] : vector<6x4608xf32> to vector<6xf32>
      %23 = vector.shape_cast %22 : vector<6xf32> to vector<6x1xf32>
      %cst_16 = arith.constant 4.608000e+03 : f32
      %24 = vector.broadcast %cst_16 : f32 to vector<6x1xf32>
      %25 = arith.divf %23, %24 : vector<6x1xf32>
      %26 = vector.broadcast %18 : vector<6x1xf32> to vector<6x4608xf32>
      %27 = arith.subf %14, %26 : vector<6x4608xf32>
      %cst_17 = arith.constant 9.99999974E-6 : f32
      %28 = vector.broadcast %cst_17 : f32 to vector<6x1xf32>
      %29 = arith.addf %25, %28 : vector<6x1xf32>
      %30 = math.rsqrt %29 : vector<6x1xf32>
      %31 = vector.broadcast %30 : vector<6x1xf32> to vector<6x4608xf32>
      %32 = arith.mulf %27, %31 : vector<6x4608xf32>
      %c0_18 = arith.constant 0 : index
      %c0_19 = arith.constant 0 : index
      %33 = vector.load %arg3[%c0_18, %c0_19] : memref<6x1xf32, #tpu.memory_space<vmem>>, vector<6x1xf32>
      %34 = vector.broadcast %33 : vector<6x1xf32> to vector<6x4608xf32>
      %35 = arith.mulf %32, %34 : vector<6x4608xf32>
      %c0_20 = arith.constant 0 : index
      %c0_21 = arith.constant 0 : index
      %36 = vector.load %arg4[%c0_20, %c0_21] : memref<6x1xf32, #tpu.memory_space<vmem>>, vector<6x1xf32>
      %37 = vector.broadcast %36 : vector<6x1xf32> to vector<6x4608xf32>
      %38 = arith.addf %35, %37 : vector<6x4608xf32>
      %cst_22 = arith.constant 0.000000e+00 : f32
      %39 = vector.broadcast %cst_22 : f32 to vector<6x4608xf32>
      %40 = arith.maximumf %38, %39 : vector<6x4608xf32>
      %c0_23 = arith.constant 0 : index
      %c0_24 = arith.constant 0 : index
      %41 = vector.load %arg5[%c0_23, %c0_24] : memref<6x4608xf32, #tpu.memory_space<vmem>>, vector<6x4608xf32>
      tpu.vector_store %arg5[%c0_23, %c0_24], %40 {strides = array<i32>} : memref<6x4608xf32, #tpu.memory_space<vmem>>, vector<6x4608xf32>,
    } else {
    }
    return
  }
  func.func @transform_0(%arg0: i32) -> (i32, i32, i32) {
    %c0_i32 = arith.constant 0 : i32
    %c0_i32_0 = arith.constant 0 : i32
    %c0_i32_1 = arith.constant 0 : i32
    return %arg0, %c0_i32, %c0_i32_0 : i32, i32, i32
  }
  func.func @transform_1(%arg0: i32) -> (i32, i32, i32) {
    %c0_i32 = arith.constant 0 : i32
    %c0_i32_0 = arith.constant 0 : i32
    %c0_i32_1 = arith.constant 0 : i32
    return %arg0, %c0_i32, %c0_i32_0 : i32, i32, i32
  }
  func.func @transform_2(%arg0: i32) -> (i32, i32) {
    %c0_i32 = arith.constant 0 : i32
    %c0_i32_0 = arith.constant 0 : i32
    %c0_i32_1 = arith.constant 0 : i32
    return %c0_i32, %c0_i32_0 : i32, i32
  }
  func.func @transform_3(%arg0: i32) -> (i32, i32) {
    %c0_i32 = arith.constant 0 : i32
    %c0_i32_0 = arith.constant 0 : i32
    %c0_i32_1 = arith.constant 0 : i32
    return %c0_i32, %c0_i32_0 : i32, i32
  }
  func.func @transform_4(%arg0: i32) -> (i32, i32) {
    %c0_i32 = arith.constant 0 : i32
    %c0_i32_0 = arith.constant 0 : i32
    %c0_i32_1 = arith.constant 0 : i32
    return %c0_i32, %c0_i32_0 : i32, i32
  }
}

</mosaic_0001>

<llo_original>
// kernel: cae_forward.9
$region0: #{cae_forward.9}
  #allocation0 [shape = 'u32[]', space=smem, size = 0x4, offset = 0x4, fixed_abs, tag = 'smem constant byte address 0x4 - core index']
  #allocation1 [shape = 'u32[144,128]{1,0:T(1,128)}', space=vmem, size = 0x12000, scoped, tag = 'internal scratch']
  #allocation2 [shape = 'f32[8,512]{1,0:T(8,128)}', space=vmem, size = 0x4000, scoped, tag = 'scratch operand']
  %s0 = inlined_call_operand.vmem [shape: bf16[7,42,512], index: 0, kind: input, shape index: {}]
  %s1 = inlined_call_operand.vmem [shape: bf16[7,8,42], index: 1, kind: input, shape index: {}]
  %s2 = inlined_call_operand.vmem [shape: f32[8,1], index: 2, kind: input, shape index: {}]
  %s3 = inlined_call_operand.vmem [shape: f32[8,1], index: 3, kind: input, shape index: {}]
  %s4 = inlined_call_operand.vmem [shape: f32[8,512], index: 4, kind: output, shape index: {}]
  %s5 = sld [smem:[#allocation0]]
  $region57: #{cae_forward.9} parent=0
    _
  %s7 = ssub.s32 1, %s5
  %s8 = scalar_select 0, %s7, %s5
  loop: start=0, step=1, limit=9
  $region2: #{cae_forward.9} parent=0 // loop_pre_header
    _
  $region3: #{cae_forward.9} parent=0 // loop_header
    %s10 = sphi 0, %s14
    %p11 = scmp.ge.s32.totalorder %s10, 9
    %s20 = sphi 0, %s22
    %s23 = sphi 0, %s20
    %s24 = sphi 0, %s23
    %s40 = sphi 0, %s24
    %s46 = sphi 0, %s48
    %s49 = sphi 0, %s46
    %s50 = sphi 0, %s49
    %s66 = sphi 0, %s50
    %s70 = sphi 0, %s70
    %s72 = sphi 0, %s70
    %s73 = sphi 0, %s72
    %s87 = sphi 0, %s73
    %s91 = sphi 0, %s91
    %s93 = sphi 0, %s91
    %s94 = sphi 0, %s93
    %s108 = sphi 0, %s94
    %s112 = sphi 0, %s112
    %s114 = sphi 0, %s112
    %s115 = sphi 0, %s114
    %s129 = sphi 0, %s115
  $region4: #{cae_forward.9} parent=0 // loop_header_branch
    %13 = sbr.rel (%p11) target = $region8
  $region5: #{cae_forward.9} parent=0 // loop_body
    %s15 = ssub.s32 %s10, 1
    %s16 = ssub.s32 %s10, 2
    %s17 = sadd.s32 %s10, 1
    %s18 = ssub.s32 %s10, %s17
    %p19 = scmp.eq.s32.totalorder %s18, 0
    %s21 = sadd.s32 %s20, 1
    %s22 = scalar_select %p19, %s20, %s21
    %p25 = pneg %p19
    %p26 = scmp.eq.s32.totalorder %s10, 6
    %p27 = por %p25, %p26
    %p28 = scmp.ne.s32.totalorder %s20, %s23
    %p29 = scmp.eq.s32.totalorder %s10, 0
    %p30 = por %p28, %p29
    %p31 = scmp.ne.s32.totalorder %s20, %s23
    %p32 = scmp.eq.s32.totalorder %s15, 6
    %p33 = por %p31, %p32
    %p34 = scmp.ne.s32.totalorder %s23, %s24
    %p35 = scmp.eq.s32.totalorder %s15, 0
    %p36 = por %p34, %p35
    %p37 = scmp.ne.s32.totalorder %s23, %s24
    %p38 = scmp.eq.s32.totalorder %s16, 6
    %p39 = por %p37, %p38
    %p41 = scmp.ne.s32.totalorder %s24, %s40
    %p42 = scmp.eq.s32.totalorder %s16, 0
    %p43 = por %p41, %p42
    %s44 = ssub.s32 %s10, %s17
    %p45 = scmp.eq.s32.totalorder %s44, 0
    %s47 = sadd.s32 %s46, 1
    %s48 = scalar_select %p45, %s46, %s47
    %p51 = pneg %p45
    %p52 = scmp.eq.s32.totalorder %s10, 6
    %p53 = por %p51, %p52
    %p54 = scmp.ne.s32.totalorder %s46, %s49
    %p55 = scmp.eq.s32.totalorder %s10, 0
    %p56 = por %p54, %p55
    %p57 = scmp.ne.s32.totalorder %s46, %s49
    %p58 = scmp.eq.s32.totalorder %s15, 6
    %p59 = por %p57, %p58
    %p60 = scmp.ne.s32.totalorder %s49, %s50
    %p61 = scmp.eq.s32.totalorder %s15, 0
    %p62 = por %p60, %p61
    %p63 = scmp.ne.s32.totalorder %s49, %s50
    %p64 = scmp.eq.s32.totalorder %s16, 6
    %p65 = por %p63, %p64
    %p67 = scmp.ne.s32.totalorder %s50, %s66
    %p68 = scmp.eq.s32.totalorder %s16, 0
    %p69 = por %p67, %p68
    %s71 = sadd.s32 %s70, 1
    %p74 = scmp.eq.s32.totalorder %s10, 6
    %p75 = scmp.ne.s32.totalorder %s70, %s72
    %p76 = scmp.eq.s32.totalorder %s10, 0
    %p77 = por %p75, %p76
    %p78 = scmp.ne.s32.totalorder %s70, %s72
    %p79 = scmp.eq.s32.totalorder %s15, 6
    %p80 = por %p78, %p79
    %p81 = scmp.ne.s32.totalorder %s72, %s73
    %p82 = scmp.eq.s32.totalorder %s15, 0
    %p83 = por %p81, %p82
    %p84 = scmp.ne.s32.totalorder %s72, %s73
    %p85 = scmp.eq.s32.totalorder %s16, 6
    %p86 = por %p84, %p85
    %p88 = scmp.ne.s32.totalorder %s73, %s87
    %p89 = scmp.eq.s32.totalorder %s16, 0
    %p90 = por %p88, %p89
    %s92 = sadd.s32 %s91, 1
    %p95 = scmp.eq.s32.totalorder %s10, 6
    %p96 = scmp.ne.s32.totalorder %s91, %s93
    %p97 = scmp.eq.s32.totalorder %s10, 0
    %p98 = por %p96, %p97
    %p99 = scmp.ne.s32.totalorder %s91, %s93
    %p100 = scmp.eq.s32.totalorder %s15, 6
    %p101 = por %p99, %p100
    %p102 = scmp.ne.s32.totalorder %s93, %s94
    %p103 = scmp.eq.s32.totalorder %s15, 0
    %p104 = por %p102, %p103
    %p105 = scmp.ne.s32.totalorder %s93, %s94
    %p106 = scmp.eq.s32.totalorder %s16, 6
    %p107 = por %p105, %p106
    %p109 = scmp.ne.s32.totalorder %s94, %s108
    %p110 = scmp.eq.s32.totalorder %s16, 0
    %p111 = por %p109, %p110
    %s113 = sadd.s32 %s112, 1
    %p116 = scmp.eq.s32.totalorder %s10, 6
    %p117 = scmp.ne.s32.totalorder %s112, %s114
    %p118 = scmp.eq.s32.totalorder %s10, 0
    %p119 = por %p117, %p118
    %p120 = scmp.ne.s32.totalorder %s112, %s114
    %p121 = scmp.eq.s32.totalorder %s15, 6
    %p122 = por %p120, %p121
    %p123 = scmp.ne.s32.totalorder %s114, %s115
    %p124 = scmp.eq.s32.totalorder %s15, 0
    %p125 = por %p123, %p124
    %p126 = scmp.ne.s32.totalorder %s114, %s115
    %p127 = scmp.eq.s32.totalorder %s16, 6
    %p128 = por %p126, %p127
    %p130 = scmp.ne.s32.totalorder %s115, %s129
    %p131 = scmp.eq.s32.totalorder %s16, 0
    %p132 = por %p130, %p131
    %p133 = scmp.le.s32.totalorder 1, %s10
    %p134 = scmp.lt.s32.totalorder %s10, 8
    %p135 = pnand %p133, %p134
    %p136 = pneg %p135
    // Predicated region
    $region9: #{cae_forward.9} parent=5 // pred_check
      _
    $region10: #{cae_forward.9} parent=5 // pred_check_branch
      %138 = sbr.rel (%p135) target = $region12
    $region11: #{cae_forward.9} parent=5 // pred_region
      %s139 = ssub.s32 %s10, 1
      // Predicated region
      $region13: #{cae_forward.9} parent=11 // pred_check
        %p140 = pneg %p83
      $region14: #{cae_forward.9} parent=11 // pred_check_branch
        %142 = sbr.rel (%p140) target = $region16
      $region15: #{cae_forward.9} parent=11 // pred_region
        _
      $region16: #{cae_forward.9} parent=11 // pred_fallthru
        _
      // Predicated region
      $region17: #{cae_forward.9} parent=11 // pred_check
        %p143 = pneg %p104
      $region18: #{cae_forward.9} parent=11 // pred_check_branch
        %145 = sbr.rel (%p143) target = $region20
      $region19: #{cae_forward.9} parent=11 // pred_region
        _
      $region20: #{cae_forward.9} parent=11 // pred_fallthru
        _
    $region12: #{cae_forward.9} parent=5 // pred_fallthru
      _
    %p146 = scmp.lt.s32.totalorder %s10, 7
    // Predicated region
    $region21: #{cae_forward.9} parent=5 // pred_check
      %p147 = pneg %p146
    $region22: #{cae_forward.9} parent=5 // pred_check_branch
      %149 = sbr.rel (%p147) target = $region24
    $region23: #{cae_forward.9} parent=5 // pred_region
      // Predicated region
      $region25: #{cae_forward.9} parent=23 // pred_check
        %p150 = pneg %p30
      $region26: #{cae_forward.9} parent=23 // pred_check_branch
        %152 = sbr.rel (%p150) target = $region28
      $region27: #{cae_forward.9} parent=23 // pred_region
        %p153 = scmp.lt.s32.totalorder %s10, 6
        %s154 = scalar_select %p153, %s10, 6
        %s155 = smul.addr %s154, 24
        %s156 = smul.addr %s155, 4
        %s157 = scalar_lea.vmem %s0, %s156
      $region28: #{cae_forward.9} parent=23 // pred_fallthru
        _
      // Predicated region
      $region29: #{cae_forward.9} parent=23 // pred_check
        %p158 = pneg %p56
      $region30: #{cae_forward.9} parent=23 // pred_check_branch
        %160 = sbr.rel (%p158) target = $region32
      $region31: #{cae_forward.9} parent=23 // pred_region
        %p161 = scmp.lt.s32.totalorder %s10, 6
        %s162 = scalar_select %p161, %s10, 6
        %s163 = smul.addr %s162, 4
        %s164 = scalar_lea.vmem %s1, %s163
      $region32: #{cae_forward.9} parent=23 // pred_fallthru
        _
    $region24: #{cae_forward.9} parent=5 // pred_fallthru
      _
    %p165 = scmp.le.s32.totalorder 1, %s10
    %p166 = scmp.lt.s32.totalorder %s10, 8
    %p167 = pnand %p165, %p166
    %p168 = pneg %p167
    // Predicated region
    $region33: #{cae_forward.9} parent=5 // pred_check
      _
    $region34: #{cae_forward.9} parent=5 // pred_check_branch
      %170 = sbr.rel (%p167) target = $region36
    $region35: #{cae_forward.9} parent=5 // pred_region
      %s171 = ssub.s32 %s10, 1
      %p172 = scmp.lt.s32.totalorder %s15, 6
      %s173 = scalar_select %p172, %s15, 6
      %s174 = smul.addr %s173, 24
      %s175 = smul.addr %s174, 4
      %s176 = scalar_lea.vmem %s0, %s175
      %p177 = pneg %p36
      %p178 = pneg %p33
      %p179 = scmp.lt.s32.totalorder %s15, 6
      %s180 = scalar_select %p179, %s15, 6
      %s181 = smul.addr %s180, 4
      %s182 = scalar_lea.vmem %s1, %s181
      %p183 = pneg %p62
      %p184 = pneg %p59
      %p185 = pneg %p83
      %p186 = pneg %p80
      %p187 = pneg %p104
      %p188 = pneg %p101
      %p189 = pneg %p125
      %p190 = pneg %p122
      %p191 = scmp.lt.s32.totalorder %s15, 6
      %s192 = scalar_select %p191, %s15, 6
      %s193 = smul.addr %s192, 24
      %s194 = smul.addr %s193, 4
      %s195 = scalar_lea.vmem %s0, %s194
      %p196 = scmp.lt.s32.totalorder %s15, 6
      %s197 = scalar_select %p196, %s15, 6
      %s198 = smul.addr %s197, 4
      %s199 = scalar_lea.vmem %s1, %s198
      %p201 = scmp.eq.s32.totalorder %s15, 0
      // Predicated region
      $region37: #{cae_forward.9} parent=35 // pred_check
        %p202 = pneg %p201
      $region38: #{cae_forward.9} parent=35 // pred_check_branch
        %204 = sbr.rel (%p202) target = $region40
      $region39: #{cae_forward.9} parent=35 // pred_region
        %205 = vst [vmem:[#allocation2] sm:$0xff] 0.0
        %206 = vst [vmem:[#allocation2 + $0x8] sm:$0xff] 0.0
        %207 = vst [vmem:[#allocation2 + $0x10] sm:$0xff] 0.0
        %208 = vst [vmem:[#allocation2 + $0x18] sm:$0xff] 0.0
      $region40: #{cae_forward.9} parent=35 // pred_fallthru
        _
      %v209 = vld [vmem:[#allocation2] sm:$0xff]
      %v210 = vld [vmem:[#allocation2 + $0x8] sm:$0xff]
      %v211 = vld [vmem:[#allocation2 + $0x10] sm:$0xff]
      %v212 = vld [vmem:[#allocation2 + $0x18] sm:$0xff]
      %v213 = vld [vmem:[%s199] sm:$0xf]
      %v214 = vld [vmem:[%s195] sm:$0xff]
      %v215 = vld [vmem:[%s195 + $0x8] sm:$0xff]
      %v216 = vld [vmem:[%s195 + $0x10] sm:$0xff]
      %v217 = vld [vmem:[%s195 + $0x18] sm:$0xff]
      %v218 = vld [vmem:[%s195 + $0x20] sm:$0xff]
      %v219 = vld [vmem:[%s195 + $0x28] sm:$0xff]
      %v220 = vld [vmem:[%s195 + $0x30] sm:$0xff]
      %v221 = vld [vmem:[%s195 + $0x38] sm:$0xff]
      %v222 = vld [vmem:[%s195 + $0x40] sm:$0xff]
      %v223 = vld [vmem:[%s195 + $0x48] sm:$0xff]
      %v224 = vld [vmem:[%s195 + $0x50] sm:$0x11]
      %v225 = vld [vmem:[%s195 + $0x58] sm:$0x11]
      %v238 = vunpack.c.l.b16 %v214
      %v239 = vunpack.c.h.b16 %v214
      %v240 = vunpack.c.l.b16 %v215
      %v241 = vunpack.c.h.b16 %v215
      %v242 = vunpack.c.l.b16 %v216
      %v243 = vunpack.c.h.b16 %v216
      %v244 = vunpack.c.l.b16 %v217
      %v245 = vunpack.c.h.b16 %v217
      %v246 = vunpack.c.l.b16 %v218
      %v247 = vunpack.c.h.b16 %v218
      %v248 = vunpack.c.l.b16 %v219
      %v249 = vunpack.c.h.b16 %v219
      %v250 = vunpack.c.l.b16 %v220
      %v251 = vunpack.c.h.b16 %v220
      %v252 = vunpack.c.l.b16 %v221
      %v253 = vunpack.c.h.b16 %v221
      %v254 = vunpack.c.l.b16 %v222
      %v255 = vunpack.c.h.b16 %v222
      %v256 = vunpack.c.l.b16 %v223
      %v257 = vunpack.c.h.b16 %v223
      %v258 = vunpack.c.l.b16 %v224
      %v259 = vunpack.c.h.b16 %v224
      %v260 = vunpack.c.l.b16 %v225
      %v261 = vunpack.c.h.b16 %v225
      %v262 = vpack.c.b16 %v242, %v238
      %v263 = vpack.c.b16 %v243, %v239
      %v264 = vpack.c.b16 %v244, %v240
      %v265 = vpack.c.b16 %v245, %v241
      %v266 = vpack.c.b16 %v250, %v246
      %v267 = vpack.c.b16 %v251, %v247
      %v268 = vpack.c.b16 %v252, %v248
      %v269 = vpack.c.b16 %v253, %v249
      %v270 = vpack.c.b16 %v258, %v254
      %v271 = vpack.c.b16 %v259, %v255
      %v272 = vpack.c.b16 %v260, %v256
      %v273 = vpack.c.b16 %v261, %v257
      %vm282 = vcmask 343040
      %v284 = vsel %vm282, %v213, 0
      %vm286 = vcmask 1044480
      %v288 = vsel %vm286, %v270, 0
      %v291 = vsel %vm286, %v271, 0
      %v294 = vsel %vm286, %v272, 0
      %v297 = vsel %vm286, %v273, 0
      %299 = vmatprep.subr.bf16.mxu0 0
      %300 = vmatpush1.bf16.msra.mxu0 0
      %301 = vmatprep.subr.bf16.mxu0 0
      %302 = vmatpush1.bf16.msra.mxu0 0
      %303 = vmatprep.subr.bf16.mxu0 0
      %304 = vmatpush1.bf16.msra.mxu0 0
      %305 = vmatprep.subr.bf16.mxu0 0
      %306 = vmatpush1.bf16.msra.mxu0 0
      %307 = vmatprep.subr.bf16.mxu0 0
      %308 = vmatpush1.bf16.msra.mxu0 0
      %309 = vmatprep.subr.bf16.mxu0 %v291
      %310 = vmatpush1.bf16.msra.mxu0 %v288
      %311 = vmatprep.subr.bf16.mxu0 %v267
      %312 = vmatpush1.bf16.msra.mxu0 %v266
      %313 = vmatprep.subr.bf16.mxu0 %v263
      %314 = vmatpush1.bf16.msra.mxu0 %v262
      %315 = vmatprep.subr.bf16.mxu0 0
      %316 = vmatpush2.bf16.msra.mxu0 0
      %317 = vmatprep.subr.bf16.mxu0 0
      %318 = vmatpush2.bf16.msra.mxu0 0
      %319 = vmatprep.subr.bf16.mxu0 0
      %320 = vmatpush2.bf16.msra.mxu0 0
      %321 = vmatprep.subr.bf16.mxu0 0
      %322 = vmatpush2.bf16.msra.mxu0 0
      %323 = vmatprep.subr.bf16.mxu0 0
      %324 = vmatpush2.bf16.msra.mxu0 0
      %325 = vmatprep.subr.bf16.mxu0 0
      %326 = vmatpush2.bf16.msra.mxu0 0
      %327 = vmatprep.subr.bf16.mxu0 0
      %328 = vmatpush2.bf16.msra.mxu0 0
      %329 = vmatprep.subr.bf16.mxu0 0
      %330 = vmatpush2.bf16.msra.mxu0 0
      %331 = vmatprep.mubr.bf16.mxu0 0
      %332 = vmatmul.mubr.bf16.gmra.mxu0 %v284
      %v333 = vpop.f32.mrf.mxu0
      %v334 = vadd.f32 0.0, %v333
      %v335 = vpop.f32.mrf.mxu0
      %v336 = vadd.f32 0.0, %v335
      %v337 = vpop.f32.mrf.mxu0
      %v338 = vpop.f32.mrf.mxu0
      %339 = vdwg.mxu0
      %340 = vmatprep.subr.bf16.mxu0 0
      %341 = vmatpush1.bf16.msra.mxu0 0
      %342 = vmatprep.subr.bf16.mxu0 0
      %343 = vmatpush1.bf16.msra.mxu0 0
      %344 = vmatprep.subr.bf16.mxu0 0
      %345 = vmatpush1.bf16.msra.mxu0 0
      %346 = vmatprep.subr.bf16.mxu0 0
      %347 = vmatpush1.bf16.msra.mxu0 0
      %348 = vmatprep.subr.bf16.mxu0 0
      %349 = vmatpush1.bf16.msra.mxu0 0
      %350 = vmatprep.subr.bf16.mxu0 %v297
      %351 = vmatpush1.bf16.msra.mxu0 %v294
      %352 = vmatprep.subr.bf16.mxu0 %v269
      %353 = vmatpush1.bf16.msra.mxu0 %v268
      %354 = vmatprep.subr.bf16.mxu0 %v265
      %355 = vmatpush1.bf16.msra.mxu0 %v264
      %356 = vmatprep.subr.bf16.mxu0 0
      %357 = vmatpush2.bf16.msra.mxu0 0
      %358 = vmatprep.subr.bf16.mxu0 0
      %359 = vmatpush2.bf16.msra.mxu0 0
      %360 = vmatprep.subr.bf16.mxu0 0
      %361 = vmatpush2.bf16.msra.mxu0 0
      %362 = vmatprep.subr.bf16.mxu0 0
      %363 = vmatpush2.bf16.msra.mxu0 0
      %364 = vmatprep.subr.bf16.mxu0 0
      %365 = vmatpush2.bf16.msra.mxu0 0
      %366 = vmatprep.subr.bf16.mxu0 0
      %367 = vmatpush2.bf16.msra.mxu0 0
      %368 = vmatprep.subr.bf16.mxu0 0
      %369 = vmatpush2.bf16.msra.mxu0 0
      %370 = vmatprep.subr.bf16.mxu0 0
      %371 = vmatpush2.bf16.msra.mxu0 0
      %372 = vmatprep.mubr.bf16.mxu0 0
      %373 = vmatmul.mubr.bf16.gmra.mxu0 %v284
      %v374 = vpop.f32.mrf.mxu0
      %v375 = vadd.f32 0.0, %v374
      %v376 = vpop.f32.mrf.mxu0
      %v377 = vadd.f32 0.0, %v376
      %v378 = vpop.f32.mrf.mxu0
      %v379 = vpop.f32.mrf.mxu0
      %380 = vdwg.mxu0
      %v381 = vadd.f32 %v209, %v334
      %v382 = vadd.f32 %v210, %v336
      %v383 = vadd.f32 %v211, %v375
      %v384 = vadd.f32 %v212, %v377
      %385 = vst [vmem:[#allocation2] sm:$0xff] %v381
      %386 = vst [vmem:[#allocation2 + $0x8] sm:$0xff] %v382
      %387 = vst [vmem:[#allocation2 + $0x10] sm:$0xff] %v383
      %388 = vst [vmem:[#allocation2 + $0x18] sm:$0xff] %v384
      %p389 = scmp.eq.s32.totalorder %s15, 6
      // Predicated region
      $region41: #{cae_forward.9} parent=35 // pred_check
        %p390 = pneg %p389
      $region42: #{cae_forward.9} parent=35 // pred_check_branch
        %392 = sbr.rel (%p390) target = $region44
      $region43: #{cae_forward.9} parent=35 // pred_region
        %v393 = vld [vmem:[#allocation2] sm:$0xff]
        %v394 = vld [vmem:[#allocation2 + $0x8] sm:$0xff]
        %v395 = vld [vmem:[#allocation2 + $0x10] sm:$0xff]
        %v396 = vld [vmem:[#allocation2 + $0x18] sm:$0xff]
        %v397 = vadd.f32 %v393, %v394
        %v398 = vadd.f32 %v397, %v395
        %v399 = vadd.f32 %v398, %v396
        %400 = vadd.xlane.f32.xlu0 %v399
        %v401 = vpop.xlane.xlu0 %400
        %v402 = vrcp.pop 512.0
        %v403 = vmul.f32 %v401, %v402
        %v404 = vsub.f32 %v393, %v403
        %v405 = vsub.f32 %v394, %v403
        %v406 = vsub.f32 %v395, %v403
        %v407 = vsub.f32 %v396, %v403
        %v408 = vmul.f32 %v404, %v404
        %v409 = vmul.f32 %v405, %v405
        %v410 = vmul.f32 %v406, %v406
        %v411 = vmul.f32 %v407, %v407
        %v412 = vadd.f32 %v408, %v409
        %v413 = vadd.f32 %v412, %v410
        %v414 = vadd.f32 %v413, %v411
        %415 = vadd.xlane.f32.xlu0 %v414
        %v416 = vpop.xlane.xlu0 %415
        %v417 = vmul.f32 %v416, %v402
        %v418 = vadd.f32 %v417, 1e-05
        %v419 = vrsqrt.pop %v418
        %v420 = vmul.f32 %v404, %v419
        %v421 = vmul.f32 %v405, %v419
        %v422 = vmul.f32 %v406, %v419
        %v423 = vmul.f32 %v407, %v419
        %v424 = vld [vmem:[%s2] sm:$0xff]
        %426 = vset.pattern.permute.xlu0 0
        %427 = vperm.xlu0 %426, %v424
        %v428 = vpop.permute.xlu0 %427
        %v430 = vmul.f32 %v420, %v428
        %v431 = vmul.f32 %v421, %v428
        %v432 = vmul.f32 %v422, %v428
        %v433 = vmul.f32 %v423, %v428
        %v434 = vld [vmem:[%s3] sm:$0xff]
        %436 = vset.pattern.permute.xlu0 0
        %437 = vperm.xlu0 %436, %v434
        %v438 = vpop.permute.xlu0 %437
        %v440 = vadd.f32 %v430, %v438
        %v441 = vadd.f32 %v431, %v438
        %v442 = vadd.f32 %v432, %v438
        %v443 = vadd.f32 %v433, %v438
        %v444 = vmax.f32 %v440, 0.0
        %v445 = vmax.f32 %v441, 0.0
        %v446 = vmax.f32 %v442, 0.0
        %v447 = vmax.f32 %v443, 0.0
        %448 = vst [vmem:[%s4] sm:$0xff] %v444
        %449 = vst [vmem:[%s4 + $0x8] sm:$0xff] %v445
        %450 = vst [vmem:[%s4 + $0x10] sm:$0xff] %v446
        %451 = vst [vmem:[%s4 + $0x18] sm:$0xff] %v447
      $region44: #{cae_forward.9} parent=35 // pred_fallthru
        _
      // Predicated region
      $region45: #{cae_forward.9} parent=35 // pred_check
        %p452 = pneg %p122
      $region46: #{cae_forward.9} parent=35 // pred_check_branch
        %454 = sbr.rel (%p452) target = $region48
      $region47: #{cae_forward.9} parent=35 // pred_region
        _
      $region48: #{cae_forward.9} parent=35 // pred_fallthru
        _
      // Predicated region
      $region49: #{cae_forward.9} parent=35 // pred_check
        %p455 = pneg %p122
      $region50: #{cae_forward.9} parent=35 // pred_check_branch
        %457 = sbr.rel (%p455) target = $region52
      $region51: #{cae_forward.9} parent=35 // pred_region
        _
      $region52: #{cae_forward.9} parent=35 // pred_fallthru
        _
    $region36: #{cae_forward.9} parent=5 // pred_fallthru
      _
    %p458 = scmp.le.s32.totalorder 2, %s10
    // Predicated region
    $region53: #{cae_forward.9} parent=5 // pred_check
      %p459 = pneg %p458
    $region54: #{cae_forward.9} parent=5 // pred_check_branch
      %461 = sbr.rel (%p459) target = $region56
    $region55: #{cae_forward.9} parent=5 // pred_region
      %s462 = ssub.s32 %s10, 2
    $region56: #{cae_forward.9} parent=5 // pred_fallthru
      _
  $region6: #{cae_forward.9} parent=0 // loop_footer
    %s14 = sadd.s32 1, %s10
  $region7: #{cae_forward.9} parent=0 // loop_footer_branch
    %9 = sbr.rel target = $region3
  $region8: #{cae_forward.9} parent=0 // loop_exit
    _

// kernel: cae_forward.10
$region0: #{cae_forward.10}
  #allocation0 [shape = 'u32[]', space=smem, size = 0x4, offset = 0x4, fixed_abs, tag = 'smem constant byte address 0x4 - core index']
  #allocation1 [shape = 'u32[144,128]{1,0:T(1,128)}', space=vmem, size = 0x12000, scoped, tag = 'internal scratch']
  #allocation2 [shape = 'f32[8,128]{1,0:T(8,128)}', space=vmem, size = 0x1000, scoped, tag = 'scratch operand']
  %s0 = inlined_call_operand.vmem [shape: bf16[6,48,128], index: 0, kind: input, shape index: {}]
  %s1 = inlined_call_operand.vmem [shape: bf16[6,8,48], index: 1, kind: input, shape index: {}]
  %s2 = inlined_call_operand.vmem [shape: f32[8,1], index: 2, kind: input, shape index: {}]
  %s3 = inlined_call_operand.vmem [shape: f32[8,1], index: 3, kind: input, shape index: {}]
  %s4 = inlined_call_operand.vmem [shape: f32[8,128], index: 4, kind: output, shape index: {}]
  %s5 = sld [smem:[#allocation0]]
  $region57: #{cae_forward.10} parent=0
    _
  %s7 = ssub.s32 1, %s5
  %s8 = scalar_select 0, %s7, %s5
  loop: start=0, step=1, limit=8
  $region2: #{cae_forward.10} parent=0 // loop_pre_header
    _
  $region3: #{cae_forward.10} parent=0 // loop_header
    %s10 = sphi 0, %s14
    %p11 = scmp.ge.s32.totalorder %s10, 8
    %s20 = sphi 0, %s22
    %s23 = sphi 0, %s20
    %s24 = sphi 0, %s23
    %s40 = sphi 0, %s24
    %s46 = sphi 0, %s48
    %s49 = sphi 0, %s46
    %s50 = sphi 0, %s49
    %s66 = sphi 0, %s50
    %s70 = sphi 0, %s70
    %s72 = sphi 0, %s70
    %s73 = sphi 0, %s72
    %s87 = sphi 0, %s73
    %s91 = sphi 0, %s91
    %s93 = sphi 0, %s91
    %s94 = sphi 0, %s93
    %s108 = sphi 0, %s94
    %s112 = sphi 0, %s112
    %s114 = sphi 0, %s112
    %s115 = sphi 0, %s114
    %s129 = sphi 0, %s115
  $region4: #{cae_forward.10} parent=0 // loop_header_branch
    %13 = sbr.rel (%p11) target = $region8
  $region5: #{cae_forward.10} parent=0 // loop_body
    %s15 = ssub.s32 %s10, 1
    %s16 = ssub.s32 %s10, 2
    %s17 = sadd.s32 %s10, 1
    %s18 = ssub.s32 %s10, %s17
    %p19 = scmp.eq.s32.totalorder %s18, 0
    %s21 = sadd.s32 %s20, 1
    %s22 = scalar_select %p19, %s20, %s21
    %p25 = pneg %p19
    %p26 = scmp.eq.s32.totalorder %s10, 5
    %p27 = por %p25, %p26
    %p28 = scmp.ne.s32.totalorder %s20, %s23
    %p29 = scmp.eq.s32.totalorder %s10, 0
    %p30 = por %p28, %p29
    %p31 = scmp.ne.s32.totalorder %s20, %s23
    %p32 = scmp.eq.s32.totalorder %s15, 5
    %p33 = por %p31, %p32
    %p34 = scmp.ne.s32.totalorder %s23, %s24
    %p35 = scmp.eq.s32.totalorder %s15, 0
    %p36 = por %p34, %p35
    %p37 = scmp.ne.s32.totalorder %s23, %s24
    %p38 = scmp.eq.s32.totalorder %s16, 5
    %p39 = por %p37, %p38
    %p41 = scmp.ne.s32.totalorder %s24, %s40
    %p42 = scmp.eq.s32.totalorder %s16, 0
    %p43 = por %p41, %p42
    %s44 = ssub.s32 %s10, %s17
    %p45 = scmp.eq.s32.totalorder %s44, 0
    %s47 = sadd.s32 %s46, 1
    %s48 = scalar_select %p45, %s46, %s47
    %p51 = pneg %p45
    %p52 = scmp.eq.s32.totalorder %s10, 5
    %p53 = por %p51, %p52
    %p54 = scmp.ne.s32.totalorder %s46, %s49
    %p55 = scmp.eq.s32.totalorder %s10, 0
    %p56 = por %p54, %p55
    %p57 = scmp.ne.s32.totalorder %s46, %s49
    %p58 = scmp.eq.s32.totalorder %s15, 5
    %p59 = por %p57, %p58
    %p60 = scmp.ne.s32.totalorder %s49, %s50
    %p61 = scmp.eq.s32.totalorder %s15, 0
    %p62 = por %p60, %p61
    %p63 = scmp.ne.s32.totalorder %s49, %s50
    %p64 = scmp.eq.s32.totalorder %s16, 5
    %p65 = por %p63, %p64
    %p67 = scmp.ne.s32.totalorder %s50, %s66
    %p68 = scmp.eq.s32.totalorder %s16, 0
    %p69 = por %p67, %p68
    %s71 = sadd.s32 %s70, 1
    %p74 = scmp.eq.s32.totalorder %s10, 5
    %p75 = scmp.ne.s32.totalorder %s70, %s72
    %p76 = scmp.eq.s32.totalorder %s10, 0
    %p77 = por %p75, %p76
    %p78 = scmp.ne.s32.totalorder %s70, %s72
    %p79 = scmp.eq.s32.totalorder %s15, 5
    %p80 = por %p78, %p79
    %p81 = scmp.ne.s32.totalorder %s72, %s73
    %p82 = scmp.eq.s32.totalorder %s15, 0
    %p83 = por %p81, %p82
    %p84 = scmp.ne.s32.totalorder %s72, %s73
    %p85 = scmp.eq.s32.totalorder %s16, 5
    %p86 = por %p84, %p85
    %p88 = scmp.ne.s32.totalorder %s73, %s87
    %p89 = scmp.eq.s32.totalorder %s16, 0
    %p90 = por %p88, %p89
    %s92 = sadd.s32 %s91, 1
    %p95 = scmp.eq.s32.totalorder %s10, 5
    %p96 = scmp.ne.s32.totalorder %s91, %s93
    %p97 = scmp.eq.s32.totalorder %s10, 0
    %p98 = por %p96, %p97
    %p99 = scmp.ne.s32.totalorder %s91, %s93
    %p100 = scmp.eq.s32.totalorder %s15, 5
    %p101 = por %p99, %p100
    %p102 = scmp.ne.s32.totalorder %s93, %s94
    %p103 = scmp.eq.s32.totalorder %s15, 0
    %p104 = por %p102, %p103
    %p105 = scmp.ne.s32.totalorder %s93, %s94
    %p106 = scmp.eq.s32.totalorder %s16, 5
    %p107 = por %p105, %p106
    %p109 = scmp.ne.s32.totalorder %s94, %s108
    %p110 = scmp.eq.s32.totalorder %s16, 0
    %p111 = por %p109, %p110
    %s113 = sadd.s32 %s112, 1
    %p116 = scmp.eq.s32.totalorder %s10, 5
    %p117 = scmp.ne.s32.totalorder %s112, %s114
    %p118 = scmp.eq.s32.totalorder %s10, 0
    %p119 = por %p117, %p118
    %p120 = scmp.ne.s32.totalorder %s112, %s114
    %p121 = scmp.eq.s32.totalorder %s15, 5
    %p122 = por %p120, %p121
    %p123 = scmp.ne.s32.totalorder %s114, %s115
    %p124 = scmp.eq.s32.totalorder %s15, 0
    %p125 = por %p123, %p124
    %p126 = scmp.ne.s32.totalorder %s114, %s115
    %p127 = scmp.eq.s32.totalorder %s16, 5
    %p128 = por %p126, %p127
    %p130 = scmp.ne.s32.totalorder %s115, %s129
    %p131 = scmp.eq.s32.totalorder %s16, 0
    %p132 = por %p130, %p131
    %p133 = scmp.le.s32.totalorder 1, %s10
    %p134 = scmp.lt.s32.totalorder %s10, 7
    %p135 = pnand %p133, %p134
    %p136 = pneg %p135
    // Predicated region
    $region9: #{cae_forward.10} parent=5 // pred_check
      _
    $region10: #{cae_forward.10} parent=5 // pred_check_branch
      %138 = sbr.rel (%p135) target = $region12
    $region11: #{cae_forward.10} parent=5 // pred_region
      %s139 = ssub.s32 %s10, 1
      // Predicated region
      $region13: #{cae_forward.10} parent=11 // pred_check
        %p140 = pneg %p83
      $region14: #{cae_forward.10} parent=11 // pred_check_branch
        %142 = sbr.rel (%p140) target = $region16
      $region15: #{cae_forward.10} parent=11 // pred_region
        _
      $region16: #{cae_forward.10} parent=11 // pred_fallthru
        _
      // Predicated region
      $region17: #{cae_forward.10} parent=11 // pred_check
        %p143 = pneg %p104
      $region18: #{cae_forward.10} parent=11 // pred_check_branch
        %145 = sbr.rel (%p143) target = $region20
      $region19: #{cae_forward.10} parent=11 // pred_region
        _
      $region20: #{cae_forward.10} parent=11 // pred_fallthru
        _
    $region12: #{cae_forward.10} parent=5 // pred_fallthru
      _
    %p146 = scmp.lt.s32.totalorder %s10, 6
    // Predicated region
    $region21: #{cae_forward.10} parent=5 // pred_check
      %p147 = pneg %p146
    $region22: #{cae_forward.10} parent=5 // pred_check_branch
      %149 = sbr.rel (%p147) target = $region24
    $region23: #{cae_forward.10} parent=5 // pred_region
      // Predicated region
      $region25: #{cae_forward.10} parent=23 // pred_check
        %p150 = pneg %p30
      $region26: #{cae_forward.10} parent=23 // pred_check_branch
        %152 = sbr.rel (%p150) target = $region28
      $region27: #{cae_forward.10} parent=23 // pred_region
        %p153 = scmp.lt.s32.totalorder %s10, 5
        %s154 = scalar_select %p153, %s10, 5
        %s155 = smul.addr %s154, 6
        %s156 = smul.addr %s155, 4
        %s157 = scalar_lea.vmem %s0, %s156
      $region28: #{cae_forward.10} parent=23 // pred_fallthru
        _
      // Predicated region
      $region29: #{cae_forward.10} parent=23 // pred_check
        %p158 = pneg %p56
      $region30: #{cae_forward.10} parent=23 // pred_check_branch
        %160 = sbr.rel (%p158) target = $region32
      $region31: #{cae_forward.10} parent=23 // pred_region
        %p161 = scmp.lt.s32.totalorder %s10, 5
        %s162 = scalar_select %p161, %s10, 5
        %s163 = smul.addr %s162, 4
        %s164 = scalar_lea.vmem %s1, %s163
      $region32: #{cae_forward.10} parent=23 // pred_fallthru
        _
    $region24: #{cae_forward.10} parent=5 // pred_fallthru
      _
    %p165 = scmp.le.s32.totalorder 1, %s10
    %p166 = scmp.lt.s32.totalorder %s10, 7
    %p167 = pnand %p165, %p166
    %p168 = pneg %p167
    // Predicated region
    $region33: #{cae_forward.10} parent=5 // pred_check
      _
    $region34: #{cae_forward.10} parent=5 // pred_check_branch
      %170 = sbr.rel (%p167) target = $region36
    $region35: #{cae_forward.10} parent=5 // pred_region
      %s171 = ssub.s32 %s10, 1
      %p172 = scmp.lt.s32.totalorder %s15, 5
      %s173 = scalar_select %p172, %s15, 5
      %s174 = smul.addr %s173, 6
      %s175 = smul.addr %s174, 4
      %s176 = scalar_lea.vmem %s0, %s175
      %p177 = pneg %p36
      %p178 = pneg %p33
      %p179 = scmp.lt.s32.totalorder %s15, 5
      %s180 = scalar_select %p179, %s15, 5
      %s181 = smul.addr %s180, 4
      %s182 = scalar_lea.vmem %s1, %s181
      %p183 = pneg %p62
      %p184 = pneg %p59
      %p185 = pneg %p83
      %p186 = pneg %p80
      %p187 = pneg %p104
      %p188 = pneg %p101
      %p189 = pneg %p125
      %p190 = pneg %p122
      %p191 = scmp.lt.s32.totalorder %s15, 5
      %s192 = scalar_select %p191, %s15, 5
      %s193 = smul.addr %s192, 6
      %s194 = smul.addr %s193, 4
      %s195 = scalar_lea.vmem %s0, %s194
      %p196 = scmp.lt.s32.totalorder %s15, 5
      %s197 = scalar_select %p196, %s15, 5
      %s198 = smul.addr %s197, 4
      %s199 = scalar_lea.vmem %s1, %s198
      %p201 = scmp.eq.s32.totalorder %s15, 0
      // Predicated region
      $region37: #{cae_forward.10} parent=35 // pred_check
        %p202 = pneg %p201
      $region38: #{cae_forward.10} parent=35 // pred_check_branch
        %204 = sbr.rel (%p202) target = $region40
      $region39: #{cae_forward.10} parent=35 // pred_region
        %205 = vst [vmem:[#allocation2] sm:$0xff] 0.0
      $region40: #{cae_forward.10} parent=35 // pred_fallthru
        _
      %v206 = vld [vmem:[#allocation2] sm:$0xff]
      %v207 = vld [vmem:[%s199] sm:$0xf]
      %v208 = vld [vmem:[%s195] sm:$0xf]
      %v209 = vld [vmem:[%s195 + $0x4] sm:$0xf]
      %v210 = vld [vmem:[%s195 + $0x8] sm:$0xf]
      %v211 = vld [vmem:[%s195 + $0xc] sm:$0xf]
      %v212 = vld [vmem:[%s195 + $0x10] sm:$0xf]
      %v213 = vld [vmem:[%s195 + $0x14] sm:$0xf]
      %v220 = vunpack.c.l.b16 %v208
      %v221 = vunpack.c.l.b16 %v209
      %v222 = vunpack.c.l.b16 %v210
      %v223 = vunpack.c.l.b16 %v211
      %v224 = vunpack.c.l.b16 %v212
      %v225 = vunpack.c.l.b16 %v213
      %v226 = vpack.c.b16 %v221, %v220
      %v227 = vpack.c.b16 %v223, %v222
      %v228 = vpack.c.b16 %v225, %v224
      %vm232 = vcmask 392192
      %v234 = vsel %vm232, %v207, 0
      %236 = vmatprep.subr.bf16.mxu0 0
      %237 = vmatpush1.bf16.msra.mxu0 0
      %238 = vmatprep.subr.bf16.mxu0 0
      %239 = vmatpush1.bf16.msra.mxu0 0
      %240 = vmatprep.subr.bf16.mxu0 0
      %241 = vmatpush1.bf16.msra.mxu0 0
      %242 = vmatprep.subr.bf16.mxu0 0
      %243 = vmatpush1.bf16.msra.mxu0 0
      %244 = vmatprep.subr.bf16.mxu0 0
      %245 = vmatpush1.bf16.msra.mxu0 0
      %246 = vmatprep.subr.bf16.mxu0 0
      %247 = vmatpush1.bf16.msra.mxu0 %v228
      %248 = vmatprep.subr.bf16.mxu0 0
      %249 = vmatpush1.bf16.msra.mxu0 %v227
      %250 = vmatprep.subr.bf16.mxu0 0
      %251 = vmatpush1.bf16.msra.mxu0 %v226
      %252 = vmatprep.subr.bf16.mxu0 0
      %253 = vmatpush2.bf16.msra.mxu0 0
      %254 = vmatprep.subr.bf16.mxu0 0
      %255 = vmatpush2.bf16.msra.mxu0 0
      %256 = vmatprep.subr.bf16.mxu0 0
      %257 = vmatpush2.bf16.msra.mxu0 0
      %258 = vmatprep.subr.bf16.mxu0 0
      %259 = vmatpush2.bf16.msra.mxu0 0
      %260 = vmatprep.subr.bf16.mxu0 0
      %261 = vmatpush2.bf16.msra.mxu0 0
      %262 = vmatprep.subr.bf16.mxu0 0
      %263 = vmatpush2.bf16.msra.mxu0 0
      %264 = vmatprep.subr.bf16.mxu0 0
      %265 = vmatpush2.bf16.msra.mxu0 0
      %266 = vmatprep.subr.bf16.mxu0 0
      %267 = vmatpush2.bf16.msra.mxu0 0
      %268 = vmatprep.mubr.bf16.mxu0 0
      %269 = vmatmul.mubr.bf16.gmra.mxu0 %v234
      %v270 = vpop.f32.mrf.mxu0
      %v271 = vadd.f32 0.0, %v270
      %v272 = vpop.f32.mrf.mxu0
      %v273 = vpop.f32.mrf.mxu0
      %v274 = vpop.f32.mrf.mxu0
      %275 = vdwg.mxu0
      %v276 = vadd.f32 %v206, %v271
      %277 = vst [vmem:[#allocation2] sm:$0xff] %v276
      %p278 = scmp.eq.s32.totalorder %s15, 5
      // Predicated region
      $region41: #{cae_forward.10} parent=35 // pred_check
        %p279 = pneg %p278
      $region42: #{cae_forward.10} parent=35 // pred_check_branch
        %281 = sbr.rel (%p279) target = $region44
      $region43: #{cae_forward.10} parent=35 // pred_region
        %v282 = vld [vmem:[#allocation2] sm:$0xff]
        %283 = vadd.xlane.f32.xlu0 %v282
        %v284 = vpop.xlane.xlu0 %283
        %v285 = vrcp.pop 128.0
        %v286 = vmul.f32 %v284, %v285
        %v287 = vsub.f32 %v282, %v286
        %v288 = vmul.f32 %v287, %v287
        %289 = vadd.xlane.f32.xlu0 %v288
        %v290 = vpop.xlane.xlu0 %289
        %v291 = vmul.f32 %v290, %v285
        %v292 = vadd.f32 %v291, 1e-05
        %v293 = vrsqrt.pop %v292
        %v294 = vmul.f32 %v287, %v293
        %v295 = vld [vmem:[%s2] sm:$0xff]
        %297 = vset.pattern.permute.xlu0 0
        %298 = vperm.xlu0 %297, %v295
        %v299 = vpop.permute.xlu0 %298
        %v301 = vmul.f32 %v294, %v299
        %v302 = vld [vmem:[%s3] sm:$0xff]
        %304 = vset.pattern.permute.xlu0 0
        %305 = vperm.xlu0 %304, %v302
        %v306 = vpop.permute.xlu0 %305
        %v308 = vadd.f32 %v301, %v306
        %v309 = vmax.f32 %v308, 0.0
        %310 = vst [vmem:[%s4] sm:$0xff] %v309
      $region44: #{cae_forward.10} parent=35 // pred_fallthru
        _
      // Predicated region
      $region45: #{cae_forward.10} parent=35 // pred_check
        %p311 = pneg %p122
      $region46: #{cae_forward.10} parent=35 // pred_check_branch
        %313 = sbr.rel (%p311) target = $region48
      $region47: #{cae_forward.10} parent=35 // pred_region
        _
      $region48: #{cae_forward.10} parent=35 // pred_fallthru
        _
      // Predicated region
      $region49: #{cae_forward.10} parent=35 // pred_check
        %p314 = pneg %p122
      $region50: #{cae_forward.10} parent=35 // pred_check_branch
        %316 = sbr.rel (%p314) target = $region52
      $region51: #{cae_forward.10} parent=35 // pred_region
        _
      $region52: #{cae_forward.10} parent=35 // pred_fallthru
        _
    $region36: #{cae_forward.10} parent=5 // pred_fallthru
      _
    %p317 = scmp.le.s32.totalorder 2, %s10
    // Predicated region
    $region53: #{cae_forward.10} parent=5 // pred_check
      %p318 = pneg %p317
    $region54: #{cae_forward.10} parent=5 // pred_check_branch
      %320 = sbr.rel (%p318) target = $region56
    $region55: #{cae_forward.10} parent=5 // pred_region
      %s321 = ssub.s32 %s10, 2
    $region56: #{cae_forward.10} parent=5 // pred_fallthru
      _
  $region6: #{cae_forward.10} parent=0 // loop_footer
    %s14 = sadd.s32 1, %s10
  $region7: #{cae_forward.10} parent=0 // loop_footer_branch
    %9 = sbr.rel target = $region3
  $region8: #{cae_forward.10} parent=0 // loop_exit
    _

// kernel: cae_forward.11
$region0: #{cae_forward.11}
  #allocation0 [shape = 'u32[]', space=smem, size = 0x4, offset = 0x4, fixed_abs, tag = 'smem constant byte address 0x4 - core index']
  #allocation1 [shape = 'u32[144,128]{1,0:T(1,128)}', space=vmem, size = 0x12000, scoped, tag = 'internal scratch']
  #allocation2 [shape = 'f32[16,32]{1,0:T(8,128)}', space=vmem, size = 0x2000, scoped, tag = 'scratch operand']
  %s0 = inlined_call_operand.vmem [shape: bf16[6,48,32], index: 0, kind: input, shape index: {}]
  %s1 = inlined_call_operand.vmem [shape: bf16[6,16,48], index: 1, kind: input, shape index: {}]
  %s2 = inlined_call_operand.vmem [shape: f32[16,1], index: 2, kind: input, shape index: {}]
  %s3 = inlined_call_operand.vmem [shape: f32[16,1], index: 3, kind: input, shape index: {}]
  %s4 = inlined_call_operand.vmem [shape: f32[16,32], index: 4, kind: output, shape index: {}]
  %s5 = sld [smem:[#allocation0]]
  $region57: #{cae_forward.11} parent=0
    _
  %s7 = ssub.s32 1, %s5
  %s8 = scalar_select 0, %s7, %s5
  loop: start=0, step=1, limit=8
  $region2: #{cae_forward.11} parent=0 // loop_pre_header
    _
  $region3: #{cae_forward.11} parent=0 // loop_header
    %s10 = sphi 0, %s14
    %p11 = scmp.ge.s32.totalorder %s10, 8
    %s20 = sphi 0, %s22
    %s23 = sphi 0, %s20
    %s24 = sphi 0, %s23
    %s40 = sphi 0, %s24
    %s46 = sphi 0, %s48
    %s49 = sphi 0, %s46
    %s50 = sphi 0, %s49
    %s66 = sphi 0, %s50
    %s70 = sphi 0, %s70
    %s72 = sphi 0, %s70
    %s73 = sphi 0, %s72
    %s87 = sphi 0, %s73
    %s91 = sphi 0, %s91
    %s93 = sphi 0, %s91
    %s94 = sphi 0, %s93
    %s108 = sphi 0, %s94
    %s112 = sphi 0, %s112
    %s114 = sphi 0, %s112
    %s115 = sphi 0, %s114
    %s129 = sphi 0, %s115
  $region4: #{cae_forward.11} parent=0 // loop_header_branch
    %13 = sbr.rel (%p11) target = $region8
  $region5: #{cae_forward.11} parent=0 // loop_body
    %s15 = ssub.s32 %s10, 1
    %s16 = ssub.s32 %s10, 2
    %s17 = sadd.s32 %s10, 1
    %s18 = ssub.s32 %s10, %s17
    %p19 = scmp.eq.s32.totalorder %s18, 0
    %s21 = sadd.s32 %s20, 1
    %s22 = scalar_select %p19, %s20, %s21
    %p25 = pneg %p19
    %p26 = scmp.eq.s32.totalorder %s10, 5
    %p27 = por %p25, %p26
    %p28 = scmp.ne.s32.totalorder %s20, %s23
    %p29 = scmp.eq.s32.totalorder %s10, 0
    %p30 = por %p28, %p29
    %p31 = scmp.ne.s32.totalorder %s20, %s23
    %p32 = scmp.eq.s32.totalorder %s15, 5
    %p33 = por %p31, %p32
    %p34 = scmp.ne.s32.totalorder %s23, %s24
    %p35 = scmp.eq.s32.totalorder %s15, 0
    %p36 = por %p34, %p35
    %p37 = scmp.ne.s32.totalorder %s23, %s24
    %p38 = scmp.eq.s32.totalorder %s16, 5
    %p39 = por %p37, %p38
    %p41 = scmp.ne.s32.totalorder %s24, %s40
    %p42 = scmp.eq.s32.totalorder %s16, 0
    %p43 = por %p41, %p42
    %s44 = ssub.s32 %s10, %s17
    %p45 = scmp.eq.s32.totalorder %s44, 0
    %s47 = sadd.s32 %s46, 1
    %s48 = scalar_select %p45, %s46, %s47
    %p51 = pneg %p45
    %p52 = scmp.eq.s32.totalorder %s10, 5
    %p53 = por %p51, %p52
    %p54 = scmp.ne.s32.totalorder %s46, %s49
    %p55 = scmp.eq.s32.totalorder %s10, 0
    %p56 = por %p54, %p55
    %p57 = scmp.ne.s32.totalorder %s46, %s49
    %p58 = scmp.eq.s32.totalorder %s15, 5
    %p59 = por %p57, %p58
    %p60 = scmp.ne.s32.totalorder %s49, %s50
    %p61 = scmp.eq.s32.totalorder %s15, 0
    %p62 = por %p60, %p61
    %p63 = scmp.ne.s32.totalorder %s49, %s50
    %p64 = scmp.eq.s32.totalorder %s16, 5
    %p65 = por %p63, %p64
    %p67 = scmp.ne.s32.totalorder %s50, %s66
    %p68 = scmp.eq.s32.totalorder %s16, 0
    %p69 = por %p67, %p68
    %s71 = sadd.s32 %s70, 1
    %p74 = scmp.eq.s32.totalorder %s10, 5
    %p75 = scmp.ne.s32.totalorder %s70, %s72
    %p76 = scmp.eq.s32.totalorder %s10, 0
    %p77 = por %p75, %p76
    %p78 = scmp.ne.s32.totalorder %s70, %s72
    %p79 = scmp.eq.s32.totalorder %s15, 5
    %p80 = por %p78, %p79
    %p81 = scmp.ne.s32.totalorder %s72, %s73
    %p82 = scmp.eq.s32.totalorder %s15, 0
    %p83 = por %p81, %p82
    %p84 = scmp.ne.s32.totalorder %s72, %s73
    %p85 = scmp.eq.s32.totalorder %s16, 5
    %p86 = por %p84, %p85
    %p88 = scmp.ne.s32.totalorder %s73, %s87
    %p89 = scmp.eq.s32.totalorder %s16, 0
    %p90 = por %p88, %p89
    %s92 = sadd.s32 %s91, 1
    %p95 = scmp.eq.s32.totalorder %s10, 5
    %p96 = scmp.ne.s32.totalorder %s91, %s93
    %p97 = scmp.eq.s32.totalorder %s10, 0
    %p98 = por %p96, %p97
    %p99 = scmp.ne.s32.totalorder %s91, %s93
    %p100 = scmp.eq.s32.totalorder %s15, 5
    %p101 = por %p99, %p100
    %p102 = scmp.ne.s32.totalorder %s93, %s94
    %p103 = scmp.eq.s32.totalorder %s15, 0
    %p104 = por %p102, %p103
    %p105 = scmp.ne.s32.totalorder %s93, %s94
    %p106 = scmp.eq.s32.totalorder %s16, 5
    %p107 = por %p105, %p106
    %p109 = scmp.ne.s32.totalorder %s94, %s108
    %p110 = scmp.eq.s32.totalorder %s16, 0
    %p111 = por %p109, %p110
    %s113 = sadd.s32 %s112, 1
    %p116 = scmp.eq.s32.totalorder %s10, 5
    %p117 = scmp.ne.s32.totalorder %s112, %s114
    %p118 = scmp.eq.s32.totalorder %s10, 0
    %p119 = por %p117, %p118
    %p120 = scmp.ne.s32.totalorder %s112, %s114
    %p121 = scmp.eq.s32.totalorder %s15, 5
    %p122 = por %p120, %p121
    %p123 = scmp.ne.s32.totalorder %s114, %s115
    %p124 = scmp.eq.s32.totalorder %s15, 0
    %p125 = por %p123, %p124
    %p126 = scmp.ne.s32.totalorder %s114, %s115
    %p127 = scmp.eq.s32.totalorder %s16, 5
    %p128 = por %p126, %p127
    %p130 = scmp.ne.s32.totalorder %s115, %s129
    %p131 = scmp.eq.s32.totalorder %s16, 0
    %p132 = por %p130, %p131
    %p133 = scmp.le.s32.totalorder 1, %s10
    %p134 = scmp.lt.s32.totalorder %s10, 7
    %p135 = pnand %p133, %p134
    %p136 = pneg %p135
    // Predicated region
    $region9: #{cae_forward.11} parent=5 // pred_check
      _
    $region10: #{cae_forward.11} parent=5 // pred_check_branch
      %138 = sbr.rel (%p135) target = $region12
    $region11: #{cae_forward.11} parent=5 // pred_region
      %s139 = ssub.s32 %s10, 1
      // Predicated region
      $region13: #{cae_forward.11} parent=11 // pred_check
        %p140 = pneg %p83
      $region14: #{cae_forward.11} parent=11 // pred_check_branch
        %142 = sbr.rel (%p140) target = $region16
      $region15: #{cae_forward.11} parent=11 // pred_region
        _
      $region16: #{cae_forward.11} parent=11 // pred_fallthru
        _
      // Predicated region
      $region17: #{cae_forward.11} parent=11 // pred_check
        %p143 = pneg %p104
      $region18: #{cae_forward.11} parent=11 // pred_check_branch
        %145 = sbr.rel (%p143) target = $region20
      $region19: #{cae_forward.11} parent=11 // pred_region
        _
      $region20: #{cae_forward.11} parent=11 // pred_fallthru
        _
    $region12: #{cae_forward.11} parent=5 // pred_fallthru
      _
    %p146 = scmp.lt.s32.totalorder %s10, 6
    // Predicated region
    $region21: #{cae_forward.11} parent=5 // pred_check
      %p147 = pneg %p146
    $region22: #{cae_forward.11} parent=5 // pred_check_branch
      %149 = sbr.rel (%p147) target = $region24
    $region23: #{cae_forward.11} parent=5 // pred_region
      // Predicated region
      $region25: #{cae_forward.11} parent=23 // pred_check
        %p150 = pneg %p30
      $region26: #{cae_forward.11} parent=23 // pred_check_branch
        %152 = sbr.rel (%p150) target = $region28
      $region27: #{cae_forward.11} parent=23 // pred_region
        %p153 = scmp.lt.s32.totalorder %s10, 5
        %s154 = scalar_select %p153, %s10, 5
        %s155 = smul.addr %s154, 6
        %s156 = smul.addr %s155, 4
        %s157 = scalar_lea.vmem %s0, %s156
      $region28: #{cae_forward.11} parent=23 // pred_fallthru
        _
      // Predicated region
      $region29: #{cae_forward.11} parent=23 // pred_check
        %p158 = pneg %p56
      $region30: #{cae_forward.11} parent=23 // pred_check_branch
        %160 = sbr.rel (%p158) target = $region32
      $region31: #{cae_forward.11} parent=23 // pred_region
        %p161 = scmp.lt.s32.totalorder %s10, 5
        %s162 = scalar_select %p161, %s10, 5
        %s163 = smul.addr %s162, 2
        %s164 = smul.addr %s163, 4
        %s165 = scalar_lea.vmem %s1, %s164
      $region32: #{cae_forward.11} parent=23 // pred_fallthru
        _
    $region24: #{cae_forward.11} parent=5 // pred_fallthru
      _
    %p166 = scmp.le.s32.totalorder 1, %s10
    %p167 = scmp.lt.s32.totalorder %s10, 7
    %p168 = pnand %p166, %p167
    %p169 = pneg %p168
    // Predicated region
    $region33: #{cae_forward.11} parent=5 // pred_check
      _
    $region34: #{cae_forward.11} parent=5 // pred_check_branch
      %171 = sbr.rel (%p168) target = $region36
    $region35: #{cae_forward.11} parent=5 // pred_region
      %s172 = ssub.s32 %s10, 1
      %p173 = scmp.lt.s32.totalorder %s15, 5
      %s174 = scalar_select %p173, %s15, 5
      %s175 = smul.addr %s174, 6
      %s176 = smul.addr %s175, 4
      %s177 = scalar_lea.vmem %s0, %s176
      %p178 = pneg %p36
      %p179 = pneg %p33
      %p180 = scmp.lt.s32.totalorder %s15, 5
      %s181 = scalar_select %p180, %s15, 5
      %s182 = smul.addr %s181, 2
      %s183 = smul.addr %s182, 4
      %s184 = scalar_lea.vmem %s1, %s183
      %p185 = pneg %p62
      %p186 = pneg %p59
      %p187 = pneg %p83
      %p188 = pneg %p80
      %p189 = pneg %p104
      %p190 = pneg %p101
      %p191 = pneg %p125
      %p192 = pneg %p122
      %p193 = scmp.lt.s32.totalorder %s15, 5
      %s194 = scalar_select %p193, %s15, 5
      %s195 = smul.addr %s194, 6
      %s196 = smul.addr %s195, 4
      %s197 = scalar_lea.vmem %s0, %s196
      %p198 = scmp.lt.s32.totalorder %s15, 5
      %s199 = scalar_select %p198, %s15, 5
      %s200 = smul.addr %s199, 2
      %s201 = smul.addr %s200, 4
      %s202 = scalar_lea.vmem %s1, %s201
      %p204 = scmp.eq.s32.totalorder %s15, 0
      // Predicated region
      $region37: #{cae_forward.11} parent=35 // pred_check
        %p205 = pneg %p204
      $region38: #{cae_forward.11} parent=35 // pred_check_branch
        %207 = sbr.rel (%p205) target = $region40
      $region39: #{cae_forward.11} parent=35 // pred_region
        %vm208 = vcmask 261120
        %209 = vst.msk [vmem:[#allocation2] sm:$0xff] %vm208, 0.0
        %210 = vst.msk [vmem:[#allocation2 + $0x8] sm:$0xff] %vm208, 0.0
      $region40: #{cae_forward.11} parent=35 // pred_fallthru
        _
      %v211 = vld [vmem:[#allocation2] sm:$0xff]
      %v212 = vld [vmem:[#allocation2 + $0x8] sm:$0xff]
      %v213 = vld [vmem:[%s202] sm:$0xf]
      %v214 = vld [vmem:[%s202 + $0x4] sm:$0xf]
      %v215 = vld [vmem:[%s197] sm:$0xf]
      %v216 = vld [vmem:[%s197 + $0x4] sm:$0xf]
      %v217 = vld [vmem:[%s197 + $0x8] sm:$0xf]
      %v218 = vld [vmem:[%s197 + $0xc] sm:$0xf]
      %v219 = vld [vmem:[%s197 + $0x10] sm:$0xf]
      %v220 = vld [vmem:[%s197 + $0x14] sm:$0xf]
      %v223 = vunpack.c.l.b16 %v213
      %v224 = vunpack.c.l.b16 %v214
      %v225 = vpack.c.b16 %v224, %v223
      %v232 = vunpack.c.l.b16 %v215
      %v233 = vunpack.c.l.b16 %v216
      %v234 = vunpack.c.l.b16 %v217
      %v235 = vunpack.c.l.b16 %v218
      %v236 = vunpack.c.l.b16 %v219
      %v237 = vunpack.c.l.b16 %v220
      %v238 = vpack.c.b16 %v233, %v232
      %v239 = vpack.c.b16 %v235, %v234
      %v240 = vpack.c.b16 %v237, %v236
      %vm244 = vcmask 392192
      %v246 = vsel %vm244, %v225, 0
      %248 = vmatprep.subr.bf16.mxu0 0
      %249 = vmatpush1.bf16.msra.mxu0 0
      %250 = vmatprep.subr.bf16.mxu0 0
      %251 = vmatpush1.bf16.msra.mxu0 0
      %252 = vmatprep.subr.bf16.mxu0 0
      %253 = vmatpush1.bf16.msra.mxu0 0
      %254 = vmatprep.subr.bf16.mxu0 0
      %255 = vmatpush1.bf16.msra.mxu0 0
      %256 = vmatprep.subr.bf16.mxu0 0
      %257 = vmatpush1.bf16.msra.mxu0 0
      %258 = vmatprep.subr.bf16.mxu0 0
      %259 = vmatpush1.bf16.msra.mxu0 %v240
      %260 = vmatprep.subr.bf16.mxu0 0
      %261 = vmatpush1.bf16.msra.mxu0 %v239
      %262 = vmatprep.subr.bf16.mxu0 0
      %263 = vmatpush1.bf16.msra.mxu0 %v238
      %264 = vmatprep.subr.bf16.mxu0 0
      %265 = vmatpush2.bf16.msra.mxu0 0
      %266 = vmatprep.subr.bf16.mxu0 0
      %267 = vmatpush2.bf16.msra.mxu0 0
      %268 = vmatprep.subr.bf16.mxu0 0
      %269 = vmatpush2.bf16.msra.mxu0 0
      %270 = vmatprep.subr.bf16.mxu0 0
      %271 = vmatpush2.bf16.msra.mxu0 0
      %272 = vmatprep.subr.bf16.mxu0 0
      %273 = vmatpush2.bf16.msra.mxu0 0
      %274 = vmatprep.subr.bf16.mxu0 0
      %275 = vmatpush2.bf16.msra.mxu0 0
      %276 = vmatprep.subr.bf16.mxu0 0
      %277 = vmatpush2.bf16.msra.mxu0 0
      %278 = vmatprep.subr.bf16.mxu0 0
      %279 = vmatpush2.bf16.msra.mxu0 0
      %280 = vmatprep.mubr.bf16.mxu0 0
      %281 = vmatmul.mubr.bf16.gmra.mxu0 %v246
      %v282 = vpop.f32.mrf.mxu0
      %v283 = vadd.f32 0.0, %v282
      %v284 = vpop.f32.mrf.mxu0
      %v285 = vpop.f32.mrf.mxu0
      %v286 = vadd.f32 0.0, %v285
      %v287 = vpop.f32.mrf.mxu0
      %288 = vdwg.mxu0
      %v289 = vadd.f32 %v211, %v283
      %v290 = vadd.f32 %v212, %v286
      %vm291 = vcmask 261120
      %292 = vst.msk [vmem:[#allocation2] sm:$0xff] %vm291, %v289
      %293 = vst.msk [vmem:[#allocation2 + $0x8] sm:$0xff] %vm291, %v290
      %p294 = scmp.eq.s32.totalorder %s15, 5
      // Predicated region
      $region41: #{cae_forward.11} parent=35 // pred_check
        %p295 = pneg %p294
      $region42: #{cae_forward.11} parent=35 // pred_check_branch
        %297 = sbr.rel (%p295) target = $region44
      $region43: #{cae_forward.11} parent=35 // pred_region
        %v298 = vld [vmem:[#allocation2] sm:$0xff]
        %v299 = vld [vmem:[#allocation2 + $0x8] sm:$0xff]
        %v300 = vsel %vm291, %v298, 0.0
        %301 = vadd.xlane.f32.xlu0 %v300
        %v302 = vpop.xlane.xlu0 %301
        %v303 = vsel %vm291, %v299, 0.0
        %304 = vadd.xlane.f32.xlu0 %v303
        %v305 = vpop.xlane.xlu0 %304
        %v306 = vrcp.pop 32.0
        %v307 = vmul.f32 %v302, %v306
        %v308 = vmul.f32 %v305, %v306
        %v309 = vsub.f32 %v298, %v307
        %v310 = vsub.f32 %v299, %v308
        %v311 = vmul.f32 %v309, %v309
        %v312 = vmul.f32 %v310, %v310
        %v313 = vsel %vm291, %v311, 0.0
        %314 = vadd.xlane.f32.xlu0 %v313
        %v315 = vpop.xlane.xlu0 %314
        %v316 = vsel %vm291, %v312, 0.0
        %317 = vadd.xlane.f32.xlu0 %v316
        %v318 = vpop.xlane.xlu0 %317
        %v319 = vmul.f32 %v315, %v306
        %v320 = vmul.f32 %v318, %v306
        %v321 = vadd.f32 %v319, 1e-05
        %v322 = vadd.f32 %v320, 1e-05
        %v323 = vrsqrt.pop %v321
        %v324 = vrsqrt.pop %v322
        %v325 = vmul.f32 %v309, %v323
        %v326 = vmul.f32 %v310, %v324
        %v327 = vld [vmem:[%s2] sm:$0xff]
        %v328 = vld [vmem:[%s2 + $0x8] sm:$0xff]
        %330 = vset.pattern.permute.xlu0 0
        %331 = vperm.xlu0 %330, %v327
        %v332 = vpop.permute.xlu0 %331
        %335 = vset.pattern.permute.xlu0 0
        %336 = vperm.xlu0 %335, %v328
        %v337 = vpop.permute.xlu0 %336
        %v339 = vmul.f32 %v325, %v332
        %v340 = vmul.f32 %v326, %v337
        %v341 = vld [vmem:[%s3] sm:$0xff]
        %v342 = vld [vmem:[%s3 + $0x8] sm:$0xff]
        %344 = vset.pattern.permute.xlu0 0
        %345 = vperm.xlu0 %344, %v341
        %v346 = vpop.permute.xlu0 %345
        %349 = vset.pattern.permute.xlu0 0
        %350 = vperm.xlu0 %349, %v342
        %v351 = vpop.permute.xlu0 %350
        %v353 = vadd.f32 %v339, %v346
        %v354 = vadd.f32 %v340, %v351
        %v355 = vmax.f32 %v353, 0.0
        %v356 = vmax.f32 %v354, 0.0
        %357 = vst.msk [vmem:[%s4] sm:$0xff] %vm291, %v355
        %358 = vst.msk [vmem:[%s4 + $0x8] sm:$0xff] %vm291, %v356
      $region44: #{cae_forward.11} parent=35 // pred_fallthru
        _
      // Predicated region
      $region45: #{cae_forward.11} parent=35 // pred_check
        %p359 = pneg %p122
      $region46: #{cae_forward.11} parent=35 // pred_check_branch
        %361 = sbr.rel (%p359) target = $region48
      $region47: #{cae_forward.11} parent=35 // pred_region
        _
      $region48: #{cae_forward.11} parent=35 // pred_fallthru
        _
      // Predicated region
      $region49: #{cae_forward.11} parent=35 // pred_check
        %p362 = pneg %p122
      $region50: #{cae_forward.11} parent=35 // pred_check_branch
        %364 = sbr.rel (%p362) target = $region52
      $region51: #{cae_forward.11} parent=35 // pred_region
        _
      $region52: #{cae_forward.11} parent=35 // pred_fallthru
        _
    $region36: #{cae_forward.11} parent=5 // pred_fallthru
      _
    %p365 = scmp.le.s32.totalorder 2, %s10
    // Predicated region
    $region53: #{cae_forward.11} parent=5 // pred_check
      %p366 = pneg %p365
    $region54: #{cae_forward.11} parent=5 // pred_check_branch
      %368 = sbr.rel (%p366) target = $region56
    $region55: #{cae_forward.11} parent=5 // pred_region
      %s369 = ssub.s32 %s10, 2
    $region56: #{cae_forward.11} parent=5 // pred_fallthru
      _
  $region6: #{cae_forward.11} parent=0 // loop_footer
    %s14 = sadd.s32 1, %s10
  $region7: #{cae_forward.11} parent=0 // loop_footer_branch
    %9 = sbr.rel target = $region3
  $region8: #{cae_forward.11} parent=0 // loop_exit
    _

// kernel: cae_forward.12
$region0: #{cae_forward.12}
  #allocation0 [shape = 'u32[]', space=smem, size = 0x4, offset = 0x4, fixed_abs, tag = 'smem constant byte address 0x4 - core index']
  #allocation1 [shape = 'u32[144,128]{1,0:T(1,128)}', space=vmem, size = 0x12000, scoped, tag = 'internal scratch']
  #allocation2 [shape = 'f32[16,8]{1,0:T(8,128)}', space=vmem, size = 0x2000, scoped, tag = 'scratch operand']
  %s0 = inlined_call_operand.vmem [shape: bf16[6,96,8], index: 0, kind: input, shape index: {}]
  %s1 = inlined_call_operand.vmem [shape: bf16[6,16,96], index: 1, kind: input, shape index: {}]
  %s2 = inlined_call_operand.vmem [shape: f32[16,1], index: 2, kind: input, shape index: {}]
  %s3 = inlined_call_operand.vmem [shape: f32[16,1], index: 3, kind: input, shape index: {}]
  %s4 = inlined_call_operand.vmem [shape: f32[16,8], index: 4, kind: output, shape index: {}]
  %s5 = sld [smem:[#allocation0]]
  $region57: #{cae_forward.12} parent=0
    _
  %s7 = ssub.s32 1, %s5
  %s8 = scalar_select 0, %s7, %s5
  loop: start=0, step=1, limit=8
  $region2: #{cae_forward.12} parent=0 // loop_pre_header
    _
  $region3: #{cae_forward.12} parent=0 // loop_header
    %s10 = sphi 0, %s14
    %p11 = scmp.ge.s32.totalorder %s10, 8
    %s20 = sphi 0, %s22
    %s23 = sphi 0, %s20
    %s24 = sphi 0, %s23
    %s40 = sphi 0, %s24
    %s46 = sphi 0, %s48
    %s49 = sphi 0, %s46
    %s50 = sphi 0, %s49
    %s66 = sphi 0, %s50
    %s70 = sphi 0, %s70
    %s72 = sphi 0, %s70
    %s73 = sphi 0, %s72
    %s87 = sphi 0, %s73
    %s91 = sphi 0, %s91
    %s93 = sphi 0, %s91
    %s94 = sphi 0, %s93
    %s108 = sphi 0, %s94
    %s112 = sphi 0, %s112
    %s114 = sphi 0, %s112
    %s115 = sphi 0, %s114
    %s129 = sphi 0, %s115
  $region4: #{cae_forward.12} parent=0 // loop_header_branch
    %13 = sbr.rel (%p11) target = $region8
  $region5: #{cae_forward.12} parent=0 // loop_body
    %s15 = ssub.s32 %s10, 1
    %s16 = ssub.s32 %s10, 2
    %s17 = sadd.s32 %s10, 1
    %s18 = ssub.s32 %s10, %s17
    %p19 = scmp.eq.s32.totalorder %s18, 0
    %s21 = sadd.s32 %s20, 1
    %s22 = scalar_select %p19, %s20, %s21
    %p25 = pneg %p19
    %p26 = scmp.eq.s32.totalorder %s10, 5
    %p27 = por %p25, %p26
    %p28 = scmp.ne.s32.totalorder %s20, %s23
    %p29 = scmp.eq.s32.totalorder %s10, 0
    %p30 = por %p28, %p29
    %p31 = scmp.ne.s32.totalorder %s20, %s23
    %p32 = scmp.eq.s32.totalorder %s15, 5
    %p33 = por %p31, %p32
    %p34 = scmp.ne.s32.totalorder %s23, %s24
    %p35 = scmp.eq.s32.totalorder %s15, 0
    %p36 = por %p34, %p35
    %p37 = scmp.ne.s32.totalorder %s23, %s24
    %p38 = scmp.eq.s32.totalorder %s16, 5
    %p39 = por %p37, %p38
    %p41 = scmp.ne.s32.totalorder %s24, %s40
    %p42 = scmp.eq.s32.totalorder %s16, 0
    %p43 = por %p41, %p42
    %s44 = ssub.s32 %s10, %s17
    %p45 = scmp.eq.s32.totalorder %s44, 0
    %s47 = sadd.s32 %s46, 1
    %s48 = scalar_select %p45, %s46, %s47
    %p51 = pneg %p45
    %p52 = scmp.eq.s32.totalorder %s10, 5
    %p53 = por %p51, %p52
    %p54 = scmp.ne.s32.totalorder %s46, %s49
    %p55 = scmp.eq.s32.totalorder %s10, 0
    %p56 = por %p54, %p55
    %p57 = scmp.ne.s32.totalorder %s46, %s49
    %p58 = scmp.eq.s32.totalorder %s15, 5
    %p59 = por %p57, %p58
    %p60 = scmp.ne.s32.totalorder %s49, %s50
    %p61 = scmp.eq.s32.totalorder %s15, 0
    %p62 = por %p60, %p61
    %p63 = scmp.ne.s32.totalorder %s49, %s50
    %p64 = scmp.eq.s32.totalorder %s16, 5
    %p65 = por %p63, %p64
    %p67 = scmp.ne.s32.totalorder %s50, %s66
    %p68 = scmp.eq.s32.totalorder %s16, 0
    %p69 = por %p67, %p68
    %s71 = sadd.s32 %s70, 1
    %p74 = scmp.eq.s32.totalorder %s10, 5
    %p75 = scmp.ne.s32.totalorder %s70, %s72
    %p76 = scmp.eq.s32.totalorder %s10, 0
    %p77 = por %p75, %p76
    %p78 = scmp.ne.s32.totalorder %s70, %s72
    %p79 = scmp.eq.s32.totalorder %s15, 5
    %p80 = por %p78, %p79
    %p81 = scmp.ne.s32.totalorder %s72, %s73
    %p82 = scmp.eq.s32.totalorder %s15, 0
    %p83 = por %p81, %p82
    %p84 = scmp.ne.s32.totalorder %s72, %s73
    %p85 = scmp.eq.s32.totalorder %s16, 5
    %p86 = por %p84, %p85
    %p88 = scmp.ne.s32.totalorder %s73, %s87
    %p89 = scmp.eq.s32.totalorder %s16, 0
    %p90 = por %p88, %p89
    %s92 = sadd.s32 %s91, 1
    %p95 = scmp.eq.s32.totalorder %s10, 5
    %p96 = scmp.ne.s32.totalorder %s91, %s93
    %p97 = scmp.eq.s32.totalorder %s10, 0
    %p98 = por %p96, %p97
    %p99 = scmp.ne.s32.totalorder %s91, %s93
    %p100 = scmp.eq.s32.totalorder %s15, 5
    %p101 = por %p99, %p100
    %p102 = scmp.ne.s32.totalorder %s93, %s94
    %p103 = scmp.eq.s32.totalorder %s15, 0
    %p104 = por %p102, %p103
    %p105 = scmp.ne.s32.totalorder %s93, %s94
    %p106 = scmp.eq.s32.totalorder %s16, 5
    %p107 = por %p105, %p106
    %p109 = scmp.ne.s32.totalorder %s94, %s108
    %p110 = scmp.eq.s32.totalorder %s16, 0
    %p111 = por %p109, %p110
    %s113 = sadd.s32 %s112, 1
    %p116 = scmp.eq.s32.totalorder %s10, 5
    %p117 = scmp.ne.s32.totalorder %s112, %s114
    %p118 = scmp.eq.s32.totalorder %s10, 0
    %p119 = por %p117, %p118
    %p120 = scmp.ne.s32.totalorder %s112, %s114
    %p121 = scmp.eq.s32.totalorder %s15, 5
    %p122 = por %p120, %p121
    %p123 = scmp.ne.s32.totalorder %s114, %s115
    %p124 = scmp.eq.s32.totalorder %s15, 0
    %p125 = por %p123, %p124
    %p126 = scmp.ne.s32.totalorder %s114, %s115
    %p127 = scmp.eq.s32.totalorder %s16, 5
    %p128 = por %p126, %p127
    %p130 = scmp.ne.s32.totalorder %s115, %s129
    %p131 = scmp.eq.s32.totalorder %s16, 0
    %p132 = por %p130, %p131
    %p133 = scmp.le.s32.totalorder 1, %s10
    %p134 = scmp.lt.s32.totalorder %s10, 7
    %p135 = pnand %p133, %p134
    %p136 = pneg %p135
    // Predicated region
    $region9: #{cae_forward.12} parent=5 // pred_check
      _
    $region10: #{cae_forward.12} parent=5 // pred_check_branch
      %138 = sbr.rel (%p135) target = $region12
    $region11: #{cae_forward.12} parent=5 // pred_region
      %s139 = ssub.s32 %s10, 1
      // Predicated region
      $region13: #{cae_forward.12} parent=11 // pred_check
        %p140 = pneg %p83
      $region14: #{cae_forward.12} parent=11 // pred_check_branch
        %142 = sbr.rel (%p140) target = $region16
      $region15: #{cae_forward.12} parent=11 // pred_region
        _
      $region16: #{cae_forward.12} parent=11 // pred_fallthru
        _
      // Predicated region
      $region17: #{cae_forward.12} parent=11 // pred_check
        %p143 = pneg %p104
      $region18: #{cae_forward.12} parent=11 // pred_check_branch
        %145 = sbr.rel (%p143) target = $region20
      $region19: #{cae_forward.12} parent=11 // pred_region
        _
      $region20: #{cae_forward.12} parent=11 // pred_fallthru
        _
    $region12: #{cae_forward.12} parent=5 // pred_fallthru
      _
    %p146 = scmp.lt.s32.totalorder %s10, 6
    // Predicated region
    $region21: #{cae_forward.12} parent=5 // pred_check
      %p147 = pneg %p146
    $region22: #{cae_forward.12} parent=5 // pred_check_branch
      %149 = sbr.rel (%p147) target = $region24
    $region23: #{cae_forward.12} parent=5 // pred_region
      // Predicated region
      $region25: #{cae_forward.12} parent=23 // pred_check
        %p150 = pneg %p30
      $region26: #{cae_forward.12} parent=23 // pred_check_branch
        %152 = sbr.rel (%p150) target = $region28
      $region27: #{cae_forward.12} parent=23 // pred_region
        %p153 = scmp.lt.s32.totalorder %s10, 5
        %s154 = scalar_select %p153, %s10, 5
        %s155 = smul.addr %s154, 12
        %s156 = smul.addr %s155, 4
        %s157 = scalar_lea.vmem %s0, %s156
      $region28: #{cae_forward.12} parent=23 // pred_fallthru
        _
      // Predicated region
      $region29: #{cae_forward.12} parent=23 // pred_check
        %p158 = pneg %p56
      $region30: #{cae_forward.12} parent=23 // pred_check_branch
        %160 = sbr.rel (%p158) target = $region32
      $region31: #{cae_forward.12} parent=23 // pred_region
        %p161 = scmp.lt.s32.totalorder %s10, 5
        %s162 = scalar_select %p161, %s10, 5
        %s163 = smul.addr %s162, 2
        %s164 = smul.addr %s163, 4
        %s165 = scalar_lea.vmem %s1, %s164
      $region32: #{cae_forward.12} parent=23 // pred_fallthru
        _
    $region24: #{cae_forward.12} parent=5 // pred_fallthru
      _
    %p166 = scmp.le.s32.totalorder 1, %s10
    %p167 = scmp.lt.s32.totalorder %s10, 7
    %p168 = pnand %p166, %p167
    %p169 = pneg %p168
    // Predicated region
    $region33: #{cae_forward.12} parent=5 // pred_check
      _
    $region34: #{cae_forward.12} parent=5 // pred_check_branch
      %171 = sbr.rel (%p168) target = $region36
    $region35: #{cae_forward.12} parent=5 // pred_region
      %s172 = ssub.s32 %s10, 1
      %p173 = scmp.lt.s32.totalorder %s15, 5
      %s174 = scalar_select %p173, %s15, 5
      %s175 = smul.addr %s174, 12
      %s176 = smul.addr %s175, 4
      %s177 = scalar_lea.vmem %s0, %s176
      %p178 = pneg %p36
      %p179 = pneg %p33
      %p180 = scmp.lt.s32.totalorder %s15, 5
      %s181 = scalar_select %p180, %s15, 5
      %s182 = smul.addr %s181, 2
      %s183 = smul.addr %s182, 4
      %s184 = scalar_lea.vmem %s1, %s183
      %p185 = pneg %p62
      %p186 = pneg %p59
      %p187 = pneg %p83
      %p188 = pneg %p80
      %p189 = pneg %p104
      %p190 = pneg %p101
      %p191 = pneg %p125
      %p192 = pneg %p122
      %p193 = scmp.lt.s32.totalorder %s15, 5
      %s194 = scalar_select %p193, %s15, 5
      %s195 = smul.addr %s194, 12
      %s196 = smul.addr %s195, 4
      %s197 = scalar_lea.vmem %s0, %s196
      %p198 = scmp.lt.s32.totalorder %s15, 5
      %s199 = scalar_select %p198, %s15, 5
      %s200 = smul.addr %s199, 2
      %s201 = smul.addr %s200, 4
      %s202 = scalar_lea.vmem %s1, %s201
      %p204 = scmp.eq.s32.totalorder %s15, 0
      // Predicated region
      $region37: #{cae_forward.12} parent=35 // pred_check
        %p205 = pneg %p204
      $region38: #{cae_forward.12} parent=35 // pred_check_branch
        %207 = sbr.rel (%p205) target = $region40
      $region39: #{cae_forward.12} parent=35 // pred_region
        %vm208 = vcmask 64512
        %209 = vst.msk [vmem:[#allocation2] sm:$0xff] %vm208, 0.0
        %210 = vst.msk [vmem:[#allocation2 + $0x8] sm:$0xff] %vm208, 0.0
      $region40: #{cae_forward.12} parent=35 // pred_fallthru
        _
      %v211 = vld [vmem:[#allocation2] sm:$0xff]
      %v212 = vld [vmem:[#allocation2 + $0x8] sm:$0xff]
      %v213 = vld [vmem:[%s202] sm:$0xf]
      %v214 = vld [vmem:[%s202 + $0x4] sm:$0xf]
      %v215 = vld [vmem:[%s197] sm:$0xf]
      %v216 = vld [vmem:[%s197 + $0x4] sm:$0xf]
      %v217 = vld [vmem:[%s197 + $0x8] sm:$0xf]
      %v218 = vld [vmem:[%s197 + $0xc] sm:$0xf]
      %v219 = vld [vmem:[%s197 + $0x10] sm:$0xf]
      %v220 = vld [vmem:[%s197 + $0x14] sm:$0xf]
      %v221 = vld [vmem:[%s197 + $0x18] sm:$0xf]
      %v222 = vld [vmem:[%s197 + $0x1c] sm:$0xf]
      %v223 = vld [vmem:[%s197 + $0x20] sm:$0xf]
      %v224 = vld [vmem:[%s197 + $0x24] sm:$0xf]
      %v225 = vld [vmem:[%s197 + $0x28] sm:$0xf]
      %v226 = vld [vmem:[%s197 + $0x2c] sm:$0xf]
      %v229 = vunpack.c.l.b16 %v213
      %v230 = vunpack.c.l.b16 %v214
      %v231 = vpack.c.b16 %v230, %v229
      %v244 = vunpack.c.l.b16 %v215
      %v245 = vunpack.c.l.b16 %v216
      %v246 = vunpack.c.l.b16 %v217
      %v247 = vunpack.c.l.b16 %v218
      %v248 = vunpack.c.l.b16 %v219
      %v249 = vunpack.c.l.b16 %v220
      %v250 = vunpack.c.l.b16 %v221
      %v251 = vunpack.c.l.b16 %v222
      %v252 = vunpack.c.l.b16 %v223
      %v253 = vunpack.c.l.b16 %v224
      %v254 = vunpack.c.l.b16 %v225
      %v255 = vunpack.c.l.b16 %v226
      %v256 = vpack.c.b16 %v245, %v244
      %v257 = vpack.c.b16 %v247, %v246
      %v258 = vpack.c.b16 %v249, %v248
      %v259 = vpack.c.b16 %v251, %v250
      %v260 = vpack.c.b16 %v253, %v252
      %v261 = vpack.c.b16 %v255, %v254
      %vm268 = vcmask 785408
      %v270 = vsel %vm268, %v231, 0
      %272 = vmatprep.subr.bf16.mxu0 0
      %273 = vmatpush1.bf16.msra.mxu0 0
      %274 = vmatprep.subr.bf16.mxu0 0
      %275 = vmatpush1.bf16.msra.mxu0 0
      %276 = vmatprep.subr.bf16.mxu0 0
      %277 = vmatpush1.bf16.msra.mxu0 %v261
      %278 = vmatprep.subr.bf16.mxu0 0
      %279 = vmatpush1.bf16.msra.mxu0 %v260
      %280 = vmatprep.subr.bf16.mxu0 0
      %281 = vmatpush1.bf16.msra.mxu0 %v259
      %282 = vmatprep.subr.bf16.mxu0 0
      %283 = vmatpush1.bf16.msra.mxu0 %v258
      %284 = vmatprep.subr.bf16.mxu0 0
      %285 = vmatpush1.bf16.msra.mxu0 %v257
      %286 = vmatprep.subr.bf16.mxu0 0
      %287 = vmatpush1.bf16.msra.mxu0 %v256
      %288 = vmatprep.subr.bf16.mxu0 0
      %289 = vmatpush2.bf16.msra.mxu0 0
      %290 = vmatprep.subr.bf16.mxu0 0
      %291 = vmatpush2.bf16.msra.mxu0 0
      %292 = vmatprep.subr.bf16.mxu0 0
      %293 = vmatpush2.bf16.msra.mxu0 0
      %294 = vmatprep.subr.bf16.mxu0 0
      %295 = vmatpush2.bf16.msra.mxu0 0
      %296 = vmatprep.subr.bf16.mxu0 0
      %297 = vmatpush2.bf16.msra.mxu0 0
      %298 = vmatprep.subr.bf16.mxu0 0
      %299 = vmatpush2.bf16.msra.mxu0 0
      %300 = vmatprep.subr.bf16.mxu0 0
      %301 = vmatpush2.bf16.msra.mxu0 0
      %302 = vmatprep.subr.bf16.mxu0 0
      %303 = vmatpush2.bf16.msra.mxu0 0
      %304 = vmatprep.mubr.bf16.mxu0 0
      %305 = vmatmul.mubr.bf16.gmra.mxu0 %v270
      %v306 = vpop.f32.mrf.mxu0
      %v307 = vadd.f32 0.0, %v306
      %v308 = vpop.f32.mrf.mxu0
      %v309 = vpop.f32.mrf.mxu0
      %v310 = vadd.f32 0.0, %v309
      %v311 = vpop.f32.mrf.mxu0
      %312 = vdwg.mxu0
      %v313 = vadd.f32 %v211, %v307
      %v314 = vadd.f32 %v212, %v310
      %vm315 = vcmask 64512
      %316 = vst.msk [vmem:[#allocation2] sm:$0xff] %vm315, %v313
      %317 = vst.msk [vmem:[#allocation2 + $0x8] sm:$0xff] %vm315, %v314
      %p318 = scmp.eq.s32.totalorder %s15, 5
      // Predicated region
      $region41: #{cae_forward.12} parent=35 // pred_check
        %p319 = pneg %p318
      $region42: #{cae_forward.12} parent=35 // pred_check_branch
        %321 = sbr.rel (%p319) target = $region44
      $region43: #{cae_forward.12} parent=35 // pred_region
        %v322 = vld [vmem:[#allocation2] sm:$0xff]
        %v323 = vld [vmem:[#allocation2 + $0x8] sm:$0xff]
        %v324 = vsel %vm315, %v322, 0.0
        %325 = vadd.xlane.f32.xlu0 %v324
        %v326 = vpop.xlane.xlu0 %325
        %v327 = vsel %vm315, %v323, 0.0
        %328 = vadd.xlane.f32.xlu0 %v327
        %v329 = vpop.xlane.xlu0 %328
        %v330 = vrcp.pop 8.0
        %v331 = vmul.f32 %v326, %v330
        %v332 = vmul.f32 %v329, %v330
        %v333 = vsub.f32 %v322, %v331
        %v334 = vsub.f32 %v323, %v332
        %v335 = vmul.f32 %v333, %v333
        %v336 = vmul.f32 %v334, %v334
        %v337 = vsel %vm315, %v335, 0.0
        %338 = vadd.xlane.f32.xlu0 %v337
        %v339 = vpop.xlane.xlu0 %338
        %v340 = vsel %vm315, %v336, 0.0
        %341 = vadd.xlane.f32.xlu0 %v340
        %v342 = vpop.xlane.xlu0 %341
        %v343 = vmul.f32 %v339, %v330
        %v344 = vmul.f32 %v342, %v330
        %v345 = vadd.f32 %v343, 1e-05
        %v346 = vadd.f32 %v344, 1e-05
        %v347 = vrsqrt.pop %v345
        %v348 = vrsqrt.pop %v346
        %v349 = vmul.f32 %v333, %v347
        %v350 = vmul.f32 %v334, %v348
        %v351 = vld [vmem:[%s2] sm:$0xff]
        %v352 = vld [vmem:[%s2 + $0x8] sm:$0xff]
        %354 = vset.pattern.permute.xlu0 0
        %355 = vperm.xlu0 %354, %v351
        %v356 = vpop.permute.xlu0 %355
        %359 = vset.pattern.permute.xlu0 0
        %360 = vperm.xlu0 %359, %v352
        %v361 = vpop.permute.xlu0 %360
        %v363 = vmul.f32 %v349, %v356
        %v364 = vmul.f32 %v350, %v361
        %v365 = vld [vmem:[%s3] sm:$0xff]
        %v366 = vld [vmem:[%s3 + $0x8] sm:$0xff]
        %368 = vset.pattern.permute.xlu0 0
        %369 = vperm.xlu0 %368, %v365
        %v370 = vpop.permute.xlu0 %369
        %373 = vset.pattern.permute.xlu0 0
        %374 = vperm.xlu0 %373, %v366
        %v375 = vpop.permute.xlu0 %374
        %v377 = vadd.f32 %v363, %v370
        %v378 = vadd.f32 %v364, %v375
        %v379 = vmax.f32 %v377, 0.0
        %v380 = vmax.f32 %v378, 0.0
        %381 = vst.msk [vmem:[%s4] sm:$0xff] %vm315, %v379
        %382 = vst.msk [vmem:[%s4 + $0x8] sm:$0xff] %vm315, %v380
      $region44: #{cae_forward.12} parent=35 // pred_fallthru
        _
      // Predicated region
      $region45: #{cae_forward.12} parent=35 // pred_check
        %p383 = pneg %p122
      $region46: #{cae_forward.12} parent=35 // pred_check_branch
        %385 = sbr.rel (%p383) target = $region48
      $region47: #{cae_forward.12} parent=35 // pred_region
        _
      $region48: #{cae_forward.12} parent=35 // pred_fallthru
        _
      // Predicated region
      $region49: #{cae_forward.12} parent=35 // pred_check
        %p386 = pneg %p122
      $region50: #{cae_forward.12} parent=35 // pred_check_branch
        %388 = sbr.rel (%p386) target = $region52
      $region51: #{cae_forward.12} parent=35 // pred_region
        _
      $region52: #{cae_forward.12} parent=35 // pred_fallthru
        _
    $region36: #{cae_forward.12} parent=5 // pred_fallthru
      _
    %p389 = scmp.le.s32.totalorder 2, %s10
    // Predicated region
    $region53: #{cae_forward.12} parent=5 // pred_check
      %p390 = pneg %p389
    $region54: #{cae_forward.12} parent=5 // pred_check_branch
      %392 = sbr.rel (%p390) target = $region56
    $region55: #{cae_forward.12} parent=5 // pred_region
      %s393 = ssub.s32 %s10, 2
    $region56: #{cae_forward.12} parent=5 // pred_fallthru
      _
  $region6: #{cae_forward.12} parent=0 // loop_footer
    %s14 = sadd.s32 1, %s10
  $region7: #{cae_forward.12} parent=0 // loop_footer_branch
    %9 = sbr.rel target = $region3
  $region8: #{cae_forward.12} parent=0 // loop_exit
    _

// kernel: cae_forward.13
$region0: #{cae_forward.13}
  #allocation0 [shape = 'u32[]', space=smem, size = 0x4, offset = 0x4, fixed_abs, tag = 'smem constant byte address 0x4 - core index']
  #allocation1 [shape = 'u32[144,128]{1,0:T(1,128)}', space=vmem, size = 0x12000, scoped, tag = 'internal scratch']
  %s0 = inlined_call_operand.vmem [shape: f32[2,64], index: 0, kind: input, shape index: {}]
  %s1 = inlined_call_operand.vmem [shape: f32[64,32], index: 1, kind: input, shape index: {}]
  %s2 = inlined_call_operand.vmem [shape: f32[1,32], index: 2, kind: input, shape index: {}]
  %s3 = inlined_call_operand.vmem [shape: f32[1,32], index: 3, kind: input, shape index: {}]
  %s4 = inlined_call_operand.vmem [shape: f32[32,16], index: 4, kind: input, shape index: {}]
  %s5 = inlined_call_operand.vmem [shape: f32[1,16], index: 5, kind: input, shape index: {}]
  %s6 = inlined_call_operand.vmem [shape: f32[1,16], index: 6, kind: input, shape index: {}]
  %s7 = inlined_call_operand.vmem [shape: f32[16,8], index: 7, kind: input, shape index: {}]
  %s8 = inlined_call_operand.vmem [shape: f32[1,8], index: 8, kind: input, shape index: {}]
  %s9 = inlined_call_operand.vmem [shape: f32[1,8], index: 9, kind: input, shape index: {}]
  %s10 = inlined_call_operand.vmem [shape: f32[8,16], index: 10, kind: input, shape index: {}]
  %s11 = inlined_call_operand.vmem [shape: f32[1,16], index: 11, kind: input, shape index: {}]
  %s12 = inlined_call_operand.vmem [shape: f32[1,16], index: 12, kind: input, shape index: {}]
  %s13 = inlined_call_operand.vmem [shape: f32[16,32], index: 13, kind: input, shape index: {}]
  %s14 = inlined_call_operand.vmem [shape: f32[1,32], index: 14, kind: input, shape index: {}]
  %s15 = inlined_call_operand.vmem [shape: f32[1,32], index: 15, kind: input, shape index: {}]
  %s16 = inlined_call_operand.vmem [shape: f32[32,64], index: 16, kind: input, shape index: {}]
  %s17 = inlined_call_operand.vmem [shape: f32[1,64], index: 17, kind: input, shape index: {}]
  %s18 = inlined_call_operand.vmem [shape: f32[1,64], index: 18, kind: input, shape index: {}]
  %s19 = inlined_call_operand.hbm [shape: f32[2,8], index: 19, kind: output, shape index: {0}]
  %s20 = inlined_call_operand.vmem [shape: f32[2,64], index: 20, kind: output, shape index: {1}]
  %21 = xla_tuple %s19, %s20
  %s22 = sld [smem:[#allocation0]]
  $region94: #{cae_forward.13} parent=0
    _
  %s24 = ssub.s32 1, %s22
  %s25 = scalar_select 0, %s24, %s22
  $region1: #{cae_forward.13} parent=0
    #allocation2 [shape = 'u8[1024]{0}', space=vmem, size = 0x400, scoped, tag = 'output window, operand 0, single buffered']
    #allocation3 [shape = 's32[1]{0}', space=sflag, size = 0x4, scoped, tag = 'scoped memory for cae_forward.13']
    %26 = vsyncpa [#allocation3], 0
    // Predicated region
    $region2: #{cae_forward.13} parent=1 // pred_check
      _
    $region3: #{cae_forward.13} parent=1 // pred_check_branch
      %28 = sbr.rel (0) target = $region5
    $region4: #{cae_forward.13} parent=1 // pred_region
      _
    $region5: #{cae_forward.13} parent=1 // pred_fallthru
      _
    // Predicated region
    $region6: #{cae_forward.13} parent=1 // pred_check
      _
    $region7: #{cae_forward.13} parent=1 // pred_check_branch
      %30 = sbr.rel (0) target = $region9
    $region8: #{cae_forward.13} parent=1 // pred_region
      _
    $region9: #{cae_forward.13} parent=1 // pred_fallthru
      _
    // Predicated region
    $region10: #{cae_forward.13} parent=1 // pred_check
      _
    $region11: #{cae_forward.13} parent=1 // pred_check_branch
      %32 = sbr.rel (0) target = $region13
    $region12: #{cae_forward.13} parent=1 // pred_region
      _
    $region13: #{cae_forward.13} parent=1 // pred_fallthru
      _
    // Predicated region
    $region14: #{cae_forward.13} parent=1 // pred_check
      _
    $region15: #{cae_forward.13} parent=1 // pred_check_branch
      %34 = sbr.rel (0) target = $region17
    $region16: #{cae_forward.13} parent=1 // pred_region
      _
    $region17: #{cae_forward.13} parent=1 // pred_fallthru
      _
    // Predicated region
    $region18: #{cae_forward.13} parent=1 // pred_check
      _
    $region19: #{cae_forward.13} parent=1 // pred_check_branch
      %36 = sbr.rel (0) target = $region21
    $region20: #{cae_forward.13} parent=1 // pred_region
      _
    $region21: #{cae_forward.13} parent=1 // pred_fallthru
      _
    // Predicated region
    $region22: #{cae_forward.13} parent=1 // pred_check
      _
    $region23: #{cae_forward.13} parent=1 // pred_check_branch
      %38 = sbr.rel (0) target = $region25
    $region24: #{cae_forward.13} parent=1 // pred_region
      _
    $region25: #{cae_forward.13} parent=1 // pred_fallthru
      _
    // Predicated region
    $region26: #{cae_forward.13} parent=1 // pred_check
      _
    $region27: #{cae_forward.13} parent=1 // pred_check_branch
      %40 = sbr.rel (0) target = $region29
    $region28: #{cae_forward.13} parent=1 // pred_region
      _
    $region29: #{cae_forward.13} parent=1 // pred_fallthru
      _
    // Predicated region
    $region30: #{cae_forward.13} parent=1 // pred_check
      _
    $region31: #{cae_forward.13} parent=1 // pred_check_branch
      %42 = sbr.rel (0) target = $region33
    $region32: #{cae_forward.13} parent=1 // pred_region
      _
    $region33: #{cae_forward.13} parent=1 // pred_fallthru
      _
    // Predicated region
    $region34: #{cae_forward.13} parent=1 // pred_check
      _
    $region35: #{cae_forward.13} parent=1 // pred_check_branch
      %44 = sbr.rel (0) target = $region37
    $region36: #{cae_forward.13} parent=1 // pred_region
      _
    $region37: #{cae_forward.13} parent=1 // pred_fallthru
      _
    // Predicated region
    $region38: #{cae_forward.13} parent=1 // pred_check
      _
    $region39: #{cae_forward.13} parent=1 // pred_check_branch
      %46 = sbr.rel (0) target = $region41
    $region40: #{cae_forward.13} parent=1 // pred_region
      _
    $region41: #{cae_forward.13} parent=1 // pred_fallthru
      _
    // Predicated region
    $region42: #{cae_forward.13} parent=1 // pred_check
      _
    $region43: #{cae_forward.13} parent=1 // pred_check_branch
      %48 = sbr.rel (0) target = $region45
    $region44: #{cae_forward.13} parent=1 // pred_region
      _
    $region45: #{cae_forward.13} parent=1 // pred_fallthru
      _
    // Predicated region
    $region46: #{cae_forward.13} parent=1 // pred_check
      _
    $region47: #{cae_forward.13} parent=1 // pred_check_branch
      %50 = sbr.rel (0) target = $region49
    $region48: #{cae_forward.13} parent=1 // pred_region
      _
    $region49: #{cae_forward.13} parent=1 // pred_fallthru
      _
    // Predicated region
    $region50: #{cae_forward.13} parent=1 // pred_check
      _
    $region51: #{cae_forward.13} parent=1 // pred_check_branch
      %52 = sbr.rel (0) target = $region53
    $region52: #{cae_forward.13} parent=1 // pred_region
      _
    $region53: #{cae_forward.13} parent=1 // pred_fallthru
      _
    // Predicated region
    $region54: #{cae_forward.13} parent=1 // pred_check
      _
    $region55: #{cae_forward.13} parent=1 // pred_check_branch
      %54 = sbr.rel (0) target = $region57
    $region56: #{cae_forward.13} parent=1 // pred_region
      _
    $region57: #{cae_forward.13} parent=1 // pred_fallthru
      _
    // Predicated region
    $region58: #{cae_forward.13} parent=1 // pred_check
      _
    $region59: #{cae_forward.13} parent=1 // pred_check_branch
      %56 = sbr.rel (0) target = $region61
    $region60: #{cae_forward.13} parent=1 // pred_region
      _
    $region61: #{cae_forward.13} parent=1 // pred_fallthru
      _
    // Predicated region
    $region62: #{cae_forward.13} parent=1 // pred_check
      _
    $region63: #{cae_forward.13} parent=1 // pred_check_branch
      %58 = sbr.rel (0) target = $region65
    $region64: #{cae_forward.13} parent=1 // pred_region
      _
    $region65: #{cae_forward.13} parent=1 // pred_fallthru
      _
    // Predicated region
    $region66: #{cae_forward.13} parent=1 // pred_check
      _
    $region67: #{cae_forward.13} parent=1 // pred_check_branch
      %60 = sbr.rel (0) target = $region69
    $region68: #{cae_forward.13} parent=1 // pred_region
      _
    $region69: #{cae_forward.13} parent=1 // pred_fallthru
      _
    // Predicated region
    $region70: #{cae_forward.13} parent=1 // pred_check
      _
    $region71: #{cae_forward.13} parent=1 // pred_check_branch
      %62 = sbr.rel (0) target = $region73
    $region72: #{cae_forward.13} parent=1 // pred_region
      _
    $region73: #{cae_forward.13} parent=1 // pred_fallthru
      _
    // Predicated region
    $region74: #{cae_forward.13} parent=1 // pred_check
      _
    $region75: #{cae_forward.13} parent=1 // pred_check_branch
      %64 = sbr.rel (0) target = $region77
    $region76: #{cae_forward.13} parent=1 // pred_region
      _
    $region77: #{cae_forward.13} parent=1 // pred_fallthru
      _
    %v65 = vld [vmem:[%s0] sm:$0x3]
    %v66 = vld [vmem:[%s1] sm:$0xff]
    %v67 = vld [vmem:[%s1 + $0x8] sm:$0xff]
    %v68 = vld [vmem:[%s1 + $0x10] sm:$0xff]
    %v69 = vld [vmem:[%s1 + $0x18] sm:$0xff]
    %v70 = vld [vmem:[%s1 + $0x20] sm:$0xff]
    %v71 = vld [vmem:[%s1 + $0x28] sm:$0xff]
    %v72 = vld [vmem:[%s1 + $0x30] sm:$0xff]
    %v73 = vld [vmem:[%s1 + $0x38] sm:$0xff]
    %vm74 = vcmask 523264
    %v76 = vsel %vm74, %v65, 0
    %78 = vmatprep.subr.mxu0 0.0
    %79 = vmatpush1.msra.mxu0 0.0
    %80 = vmatprep.subr.mxu0 0.0
    %81 = vmatpush1.msra.mxu0 0.0
    %82 = vmatprep.subr.mxu0 0.0
    %83 = vmatpush1.msra.mxu0 0.0
    %84 = vmatprep.subr.mxu0 0.0
    %85 = vmatpush1.msra.mxu0 0.0
    %86 = vmatprep.subr.mxu0 0.0
    %87 = vmatpush1.msra.mxu0 0.0
    %88 = vmatprep.subr.mxu0 0.0
    %89 = vmatpush1.msra.mxu0 0.0
    %90 = vmatprep.subr.mxu0 0.0
    %91 = vmatpush1.msra.mxu0 0.0
    %92 = vmatprep.subr.mxu0 0.0
    %93 = vmatpush1.msra.mxu0 0.0
    %94 = vmatprep.subr.mxu0 0.0
    %95 = vmatpush1.msra.mxu0 %v73
    %96 = vmatprep.subr.mxu0 0.0
    %97 = vmatpush1.msra.mxu0 %v72
    %98 = vmatprep.subr.mxu0 0.0
    %99 = vmatpush1.msra.mxu0 %v71
    %100 = vmatprep.subr.mxu0 0.0
    %101 = vmatpush1.msra.mxu0 %v70
    %102 = vmatprep.subr.mxu0 0.0
    %103 = vmatpush1.msra.mxu0 %v69
    %104 = vmatprep.subr.mxu0 0.0
    %105 = vmatpush1.msra.mxu0 %v68
    %106 = vmatprep.subr.mxu0 0.0
    %107 = vmatpush1.msra.mxu0 %v67
    %108 = vmatprep.subr.mxu0 0.0
    %109 = vmatpush1.msra.mxu0 %v66
    %110 = vmatprep.subr.mxu0 0.0
    %111 = vmatpush2.msra.mxu0 0.0
    %112 = vmatprep.subr.mxu0 0.0
    %113 = vmatpush2.msra.mxu0 0.0
    %114 = vmatprep.subr.mxu0 0.0
    %115 = vmatpush2.msra.mxu0 0.0
    %116 = vmatprep.subr.mxu0 0.0
    %117 = vmatpush2.msra.mxu0 0.0
    %118 = vmatprep.subr.mxu0 0.0
    %119 = vmatpush2.msra.mxu0 0.0
    %120 = vmatprep.subr.mxu0 0.0
    %121 = vmatpush2.msra.mxu0 0.0
    %122 = vmatprep.subr.mxu0 0.0
    %123 = vmatpush2.msra.mxu0 0.0
    %124 = vmatprep.subr.mxu0 0.0
    %125 = vmatpush2.msra.mxu0 0.0
    %126 = vmatprep.subr.mxu0 0.0
    %127 = vmatpush2.msra.mxu0 0.0
    %128 = vmatprep.subr.mxu0 0.0
    %129 = vmatpush2.msra.mxu0 0.0
    %130 = vmatprep.subr.mxu0 0.0
    %131 = vmatpush2.msra.mxu0 0.0
    %132 = vmatprep.subr.mxu0 0.0
    %133 = vmatpush2.msra.mxu0 0.0
    %134 = vmatprep.subr.mxu0 0.0
    %135 = vmatpush2.msra.mxu0 0.0
    %136 = vmatprep.subr.mxu0 0.0
    %137 = vmatpush2.msra.mxu0 0.0
    %138 = vmatprep.subr.mxu0 0.0
    %139 = vmatpush2.msra.mxu0 0.0
    %140 = vmatprep.subr.mxu0 0.0
    %141 = vmatpush2.msra.mxu0 0.0
    %142 = vmatprep.mubr.f32.mxu0 0.0
    %143 = vmatmul.mubr.f32.gmra.mxu0 %v76
    %v144 = vpop.f32.mrf.mxu0
    %v145 = vadd.f32 0.0, %v144
    %v146 = vpop.f32.mrf.mxu0
    %147 = vdwg.mxu0
    %vm148 = vcmask 254976
    %v149 = vsel %vm148, %v145, 0.0
    %v150 = vrot.slane %v149, 4
    %v151 = vadd.f32 %v149, %v150
    %v152 = vrot.slane %v151, 2
    %v153 = vadd.f32 %v151, %v152
    %v154 = vrot.slane %v153, 1
    %v155 = vadd.f32 %v153, %v154
    %v156 = vrcp.pop 2.0
    %v157 = vmul.f32 %v155, %v156
    %v158 = vsub.f32 %v145, %v157
    %v159 = vmul.f32 %v158, %v158
    %v160 = vsel %vm148, %v159, 0.0
    %v161 = vrot.slane %v160, 4
    %v162 = vadd.f32 %v160, %v161
    %v163 = vrot.slane %v162, 2
    %v164 = vadd.f32 %v162, %v163
    %v165 = vrot.slane %v164, 1
    %v166 = vadd.f32 %v164, %v165
    %v167 = vmul.f32 %v166, %v156
    %v168 = vadd.f32 %v167, 1e-05
    %v169 = vrsqrt.pop %v168
    %v170 = vmul.f32 %v158, %v169
    %v171 = vld [vmem:[%s2] sm:$0x1]
    %v173 = vlaneseq
    %v174 = vshrl.u32 %v173, 7
    %v175 = vsub.s32 0, %v174
    %v176 = vrot.slane %v171, %v175
    %v178 = vmul.f32 %v170, %v176
    %v179 = vld [vmem:[%s3] sm:$0x1]
    %v181 = vlaneseq
    %v182 = vshrl.u32 %v181, 7
    %v183 = vsub.s32 0, %v182
    %v184 = vrot.slane %v179, %v183
    %v186 = vadd.f32 %v178, %v184
    %v187 = vmax.f32 %v186, 0.0
    %v188 = vld [vmem:[%s4] sm:$0xff]
    %v189 = vld [vmem:[%s4 + $0x8] sm:$0xff]
    %v190 = vld [vmem:[%s4 + $0x10] sm:$0xff]
    %v191 = vld [vmem:[%s4 + $0x18] sm:$0xff]
    %vm192 = vcmask 261120
    %v194 = vsel %vm192, %v187, 0
    %196 = vmatprep.subr.mxu0 0.0
    %197 = vmatpush1.msra.mxu0 0.0
    %198 = vmatprep.subr.mxu0 0.0
    %199 = vmatpush1.msra.mxu0 0.0
    %200 = vmatprep.subr.mxu0 0.0
    %201 = vmatpush1.msra.mxu0 0.0
    %202 = vmatprep.subr.mxu0 0.0
    %203 = vmatpush1.msra.mxu0 0.0
    %204 = vmatprep.subr.mxu0 0.0
    %205 = vmatpush1.msra.mxu0 0.0
    %206 = vmatprep.subr.mxu0 0.0
    %207 = vmatpush1.msra.mxu0 0.0
    %208 = vmatprep.subr.mxu0 0.0
    %209 = vmatpush1.msra.mxu0 0.0
    %210 = vmatprep.subr.mxu0 0.0
    %211 = vmatpush1.msra.mxu0 0.0
    %212 = vmatprep.subr.mxu0 0.0
    %213 = vmatpush1.msra.mxu0 0.0
    %214 = vmatprep.subr.mxu0 0.0
    %215 = vmatpush1.msra.mxu0 0.0
    %216 = vmatprep.subr.mxu0 0.0
    %217 = vmatpush1.msra.mxu0 0.0
    %218 = vmatprep.subr.mxu0 0.0
    %219 = vmatpush1.msra.mxu0 0.0
    %220 = vmatprep.subr.mxu0 0.0
    %221 = vmatpush1.msra.mxu0 %v191
    %222 = vmatprep.subr.mxu0 0.0
    %223 = vmatpush1.msra.mxu0 %v190
    %224 = vmatprep.subr.mxu0 0.0
    %225 = vmatpush1.msra.mxu0 %v189
    %226 = vmatprep.subr.mxu0 0.0
    %227 = vmatpush1.msra.mxu0 %v188
    %228 = vmatprep.subr.mxu0 0.0
    %229 = vmatpush2.msra.mxu0 0.0
    %230 = vmatprep.subr.mxu0 0.0
    %231 = vmatpush2.msra.mxu0 0.0
    %232 = vmatprep.subr.mxu0 0.0
    %233 = vmatpush2.msra.mxu0 0.0
    %234 = vmatprep.subr.mxu0 0.0
    %235 = vmatpush2.msra.mxu0 0.0
    %236 = vmatprep.subr.mxu0 0.0
    %237 = vmatpush2.msra.mxu0 0.0
    %238 = vmatprep.subr.mxu0 0.0
    %239 = vmatpush2.msra.mxu0 0.0
    %240 = vmatprep.subr.mxu0 0.0
    %241 = vmatpush2.msra.mxu0 0.0
    %242 = vmatprep.subr.mxu0 0.0
    %243 = vmatpush2.msra.mxu0 0.0
    %244 = vmatprep.subr.mxu0 0.0
    %245 = vmatpush2.msra.mxu0 0.0
    %246 = vmatprep.subr.mxu0 0.0
    %247 = vmatpush2.msra.mxu0 0.0
    %248 = vmatprep.subr.mxu0 0.0
    %249 = vmatpush2.msra.mxu0 0.0
    %250 = vmatprep.subr.mxu0 0.0
    %251 = vmatpush2.msra.mxu0 0.0
    %252 = vmatprep.subr.mxu0 0.0
    %253 = vmatpush2.msra.mxu0 0.0
    %254 = vmatprep.subr.mxu0 0.0
    %255 = vmatpush2.msra.mxu0 0.0
    %256 = vmatprep.subr.mxu0 0.0
    %257 = vmatpush2.msra.mxu0 0.0
    %258 = vmatprep.subr.mxu0 0.0
    %259 = vmatpush2.msra.mxu0 0.0
    %260 = vmatprep.mubr.f32.mxu0 0.0
    %261 = vmatmul.mubr.f32.gmra.mxu0 %v194
    %v262 = vpop.f32.mrf.mxu0
    %v263 = vadd.f32 0.0, %v262
    %v264 = vpop.f32.mrf.mxu0
    %265 = vdwg.mxu0
    %vm266 = vcmask 123904
    %v267 = vsel %vm266, %v263, 0.0
    %v268 = vrot.slane %v267, 4
    %v269 = vadd.f32 %v267, %v268
    %v270 = vrot.slane %v269, 2
    %v271 = vadd.f32 %v269, %v270
    %v272 = vrot.slane %v271, 1
    %v273 = vadd.f32 %v271, %v272
    %v274 = vmul.f32 %v273, %v156
    %v275 = vsub.f32 %v263, %v274
    %v276 = vmul.f32 %v275, %v275
    %v277 = vsel %vm266, %v276, 0.0
    %v278 = vrot.slane %v277, 4
    %v279 = vadd.f32 %v277, %v278
    %v280 = vrot.slane %v279, 2
    %v281 = vadd.f32 %v279, %v280
    %v282 = vrot.slane %v281, 1
    %v283 = vadd.f32 %v281, %v282
    %v284 = vmul.f32 %v283, %v156
    %v285 = vadd.f32 %v284, 1e-05
    %v286 = vrsqrt.pop %v285
    %v287 = vmul.f32 %v275, %v286
    %v288 = vld [vmem:[%s5] sm:$0x1]
    %v290 = vlaneseq
    %v291 = vshrl.u32 %v290, 7
    %v292 = vsub.s32 0, %v291
    %v293 = vrot.slane %v288, %v292
    %v295 = vmul.f32 %v287, %v293
    %v296 = vld [vmem:[%s6] sm:$0x1]
    %v298 = vlaneseq
    %v299 = vshrl.u32 %v298, 7
    %v300 = vsub.s32 0, %v299
    %v301 = vrot.slane %v296, %v300
    %v303 = vadd.f32 %v295, %v301
    %v304 = vmax.f32 %v303, 0.0
    %v305 = vld [vmem:[%s7] sm:$0xff]
    %v306 = vld [vmem:[%s7 + $0x8] sm:$0xff]
    %vm307 = vcmask 130048
    %v309 = vsel %vm307, %v304, 0
    %311 = vmatprep.subr.mxu0 0.0
    %312 = vmatpush1.msra.mxu0 0.0
    %313 = vmatprep.subr.mxu0 0.0
    %314 = vmatpush1.msra.mxu0 0.0
    %315 = vmatprep.subr.mxu0 0.0
    %316 = vmatpush1.msra.mxu0 0.0
    %317 = vmatprep.subr.mxu0 0.0
    %318 = vmatpush1.msra.mxu0 0.0
    %319 = vmatprep.subr.mxu0 0.0
    %320 = vmatpush1.msra.mxu0 0.0
    %321 = vmatprep.subr.mxu0 0.0
    %322 = vmatpush1.msra.mxu0 0.0
    %323 = vmatprep.subr.mxu0 0.0
    %324 = vmatpush1.msra.mxu0 0.0
    %325 = vmatprep.subr.mxu0 0.0
    %326 = vmatpush1.msra.mxu0 0.0
    %327 = vmatprep.subr.mxu0 0.0
    %328 = vmatpush1.msra.mxu0 0.0
    %329 = vmatprep.subr.mxu0 0.0
    %330 = vmatpush1.msra.mxu0 0.0
    %331 = vmatprep.subr.mxu0 0.0
    %332 = vmatpush1.msra.mxu0 0.0
    %333 = vmatprep.subr.mxu0 0.0
    %334 = vmatpush1.msra.mxu0 0.0
    %335 = vmatprep.subr.mxu0 0.0
    %336 = vmatpush1.msra.mxu0 0.0
    %337 = vmatprep.subr.mxu0 0.0
    %338 = vmatpush1.msra.mxu0 0.0
    %339 = vmatprep.subr.mxu0 0.0
    %340 = vmatpush1.msra.mxu0 %v306
    %341 = vmatprep.subr.mxu0 0.0
    %342 = vmatpush1.msra.mxu0 %v305
    %343 = vmatprep.subr.mxu0 0.0
    %344 = vmatpush2.msra.mxu0 0.0
    %345 = vmatprep.subr.mxu0 0.0
    %346 = vmatpush2.msra.mxu0 0.0
    %347 = vmatprep.subr.mxu0 0.0
    %348 = vmatpush2.msra.mxu0 0.0
    %349 = vmatprep.subr.mxu0 0.0
    %350 = vmatpush2.msra.mxu0 0.0
    %351 = vmatprep.subr.mxu0 0.0
    %352 = vmatpush2.msra.mxu0 0.0
    %353 = vmatprep.subr.mxu0 0.0
    %354 = vmatpush2.msra.mxu0 0.0
    %355 = vmatprep.subr.mxu0 0.0
    %356 = vmatpush2.msra.mxu0 0.0
    %357 = vmatprep.subr.mxu0 0.0
    %358 = vmatpush2.msra.mxu0 0.0
    %359 = vmatprep.subr.mxu0 0.0
    %360 = vmatpush2.msra.mxu0 0.0
    %361 = vmatprep.subr.mxu0 0.0
    %362 = vmatpush2.msra.mxu0 0.0
    %363 = vmatprep.subr.mxu0 0.0
    %364 = vmatpush2.msra.mxu0 0.0
    %365 = vmatprep.subr.mxu0 0.0
    %366 = vmatpush2.msra.mxu0 0.0
    %367 = vmatprep.subr.mxu0 0.0
    %368 = vmatpush2.msra.mxu0 0.0
    %369 = vmatprep.subr.mxu0 0.0
    %370 = vmatpush2.msra.mxu0 0.0
    %371 = vmatprep.subr.mxu0 0.0
    %372 = vmatpush2.msra.mxu0 0.0
    %373 = vmatprep.subr.mxu0 0.0
    %374 = vmatpush2.msra.mxu0 0.0
    %375 = vmatprep.mubr.f32.mxu0 0.0
    %376 = vmatmul.mubr.f32.gmra.mxu0 %v309
    %v377 = vpop.f32.mrf.mxu0
    %v378 = vadd.f32 0.0, %v377
    %v379 = vpop.f32.mrf.mxu0
    %380 = vdwg.mxu0
    %vm381 = vcmask 58368
    %v382 = vsel %vm381, %v378, 0.0
    %v383 = vrot.slane %v382, 4
    %v384 = vadd.f32 %v382, %v383
    %v385 = vrot.slane %v384, 2
    %v386 = vadd.f32 %v384, %v385
    %v387 = vrot.slane %v386, 1
    %v388 = vadd.f32 %v386, %v387
    %v389 = vmul.f32 %v388, %v156
    %v390 = vsub.f32 %v378, %v389
    %v391 = vmul.f32 %v390, %v390
    %v392 = vsel %vm381, %v391, 0.0
    %v393 = vrot.slane %v392, 4
    %v394 = vadd.f32 %v392, %v393
    %v395 = vrot.slane %v394, 2
    %v396 = vadd.f32 %v394, %v395
    %v397 = vrot.slane %v396, 1
    %v398 = vadd.f32 %v396, %v397
    %v399 = vmul.f32 %v398, %v156
    %v400 = vadd.f32 %v399, 1e-05
    %v401 = vrsqrt.pop %v400
    %v402 = vmul.f32 %v390, %v401
    %v403 = vld [vmem:[%s8] sm:$0x1]
    %v405 = vlaneseq
    %v406 = vshrl.u32 %v405, 7
    %v407 = vsub.s32 0, %v406
    %v408 = vrot.slane %v403, %v407
    %v410 = vmul.f32 %v402, %v408
    %v411 = vld [vmem:[%s9] sm:$0x1]
    %v413 = vlaneseq
    %v414 = vshrl.u32 %v413, 7
    %v415 = vsub.s32 0, %v414
    %v416 = vrot.slane %v411, %v415
    %v418 = vadd.f32 %v410, %v416
    %v419 = vsub.f32 0.0, %v418
    %v420 = vmul.f32 %v419, 1.442695
    %v421 = vpow.pop %v420
    %v422 = vadd.f32 %v421, 1.0
    %v423 = vrcp.pop %v422
    %v424 = vmul.f32 1.0, %v423
    %425 = vst.msk [vmem:[#allocation2] sm:$0x3] %vm381, %v424
    %v426 = vld [vmem:[%s10] sm:$0xff]
    %vm427 = vcmask 64512
    %v429 = vsel %vm427, %v424, 0
    %431 = vmatprep.subr.mxu0 0.0
    %432 = vmatpush1.msra.mxu0 0.0
    %433 = vmatprep.subr.mxu0 0.0
    %434 = vmatpush1.msra.mxu0 0.0
    %435 = vmatprep.subr.mxu0 0.0
    %436 = vmatpush1.msra.mxu0 0.0
    %437 = vmatprep.subr.mxu0 0.0
    %438 = vmatpush1.msra.mxu0 0.0
    %439 = vmatprep.subr.mxu0 0.0
    %440 = vmatpush1.msra.mxu0 0.0
    %441 = vmatprep.subr.mxu0 0.0
    %442 = vmatpush1.msra.mxu0 0.0
    %443 = vmatprep.subr.mxu0 0.0
    %444 = vmatpush1.msra.mxu0 0.0
    %445 = vmatprep.subr.mxu0 0.0
    %446 = vmatpush1.msra.mxu0 0.0
    %447 = vmatprep.subr.mxu0 0.0
    %448 = vmatpush1.msra.mxu0 0.0
    %449 = vmatprep.subr.mxu0 0.0
    %450 = vmatpush1.msra.mxu0 0.0
    %451 = vmatprep.subr.mxu0 0.0
    %452 = vmatpush1.msra.mxu0 0.0
    %453 = vmatprep.subr.mxu0 0.0
    %454 = vmatpush1.msra.mxu0 0.0
    %455 = vmatprep.subr.mxu0 0.0
    %456 = vmatpush1.msra.mxu0 0.0
    %457 = vmatprep.subr.mxu0 0.0
    %458 = vmatpush1.msra.mxu0 0.0
    %459 = vmatprep.subr.mxu0 0.0
    %460 = vmatpush1.msra.mxu0 0.0
    %461 = vmatprep.subr.mxu0 0.0
    %462 = vmatpush1.msra.mxu0 %v426
    %463 = vmatprep.subr.mxu0 0.0
    %464 = vmatpush2.msra.mxu0 0.0
    %465 = vmatprep.subr.mxu0 0.0
    %466 = vmatpush2.msra.mxu0 0.0
    %467 = vmatprep.subr.mxu0 0.0
    %468 = vmatpush2.msra.mxu0 0.0
    %469 = vmatprep.subr.mxu0 0.0
    %470 = vmatpush2.msra.mxu0 0.0
    %471 = vmatprep.subr.mxu0 0.0
    %472 = vmatpush2.msra.mxu0 0.0
    %473 = vmatprep.subr.mxu0 0.0
    %474 = vmatpush2.msra.mxu0 0.0
    %475 = vmatprep.subr.mxu0 0.0
    %476 = vmatpush2.msra.mxu0 0.0
    %477 = vmatprep.subr.mxu0 0.0
    %478 = vmatpush2.msra.mxu0 0.0
    %479 = vmatprep.subr.mxu0 0.0
    %480 = vmatpush2.msra.mxu0 0.0
    %481 = vmatprep.subr.mxu0 0.0
    %482 = vmatpush2.msra.mxu0 0.0
    %483 = vmatprep.subr.mxu0 0.0
    %484 = vmatpush2.msra.mxu0 0.0
    %485 = vmatprep.subr.mxu0 0.0
    %486 = vmatpush2.msra.mxu0 0.0
    %487 = vmatprep.subr.mxu0 0.0
    %488 = vmatpush2.msra.mxu0 0.0
    %489 = vmatprep.subr.mxu0 0.0
    %490 = vmatpush2.msra.mxu0 0.0
    %491 = vmatprep.subr.mxu0 0.0
    %492 = vmatpush2.msra.mxu0 0.0
    %493 = vmatprep.subr.mxu0 0.0
    %494 = vmatpush2.msra.mxu0 0.0
    %495 = vmatprep.mubr.f32.mxu0 0.0
    %496 = vmatmul.mubr.f32.gmra.mxu0 %v429
    %v497 = vpop.f32.mrf.mxu0
    %v498 = vadd.f32 0.0, %v497
    %v499 = vpop.f32.mrf.mxu0
    %500 = vdwg.mxu0
    %v501 = vsel %vm266, %v498, 0.0
    %v502 = vrot.slane %v501, 4
    %v503 = vadd.f32 %v501, %v502
    %v504 = vrot.slane %v503, 2
    %v505 = vadd.f32 %v503, %v504
    %v506 = vrot.slane %v505, 1
    %v507 = vadd.f32 %v505, %v506
    %v508 = vmul.f32 %v507, %v156
    %v509 = vsub.f32 %v498, %v508
    %v510 = vmul.f32 %v509, %v509
    %v511 = vsel %vm266, %v510, 0.0
    %v512 = vrot.slane %v511, 4
    %v513 = vadd.f32 %v511, %v512
    %v514 = vrot.slane %v513, 2
    %v515 = vadd.f32 %v513, %v514
    %v516 = vrot.slane %v515, 1
    %v517 = vadd.f32 %v515, %v516
    %v518 = vmul.f32 %v517, %v156
    %v519 = vadd.f32 %v518, 1e-05
    %v520 = vrsqrt.pop %v519
    %v521 = vmul.f32 %v509, %v520
    %v522 = vld [vmem:[%s11] sm:$0x1]
    %v524 = vlaneseq
    %v525 = vshrl.u32 %v524, 7
    %v526 = vsub.s32 0, %v525
    %v527 = vrot.slane %v522, %v526
    %v529 = vmul.f32 %v521, %v527
    %v530 = vld [vmem:[%s12] sm:$0x1]
    %v532 = vlaneseq
    %v533 = vshrl.u32 %v532, 7
    %v534 = vsub.s32 0, %v533
    %v535 = vrot.slane %v530, %v534
    %v537 = vadd.f32 %v529, %v535
    %v538 = vmax.f32 %v537, 0.0
    %v539 = vld [vmem:[%s13] sm:$0xff]
    %v540 = vld [vmem:[%s13 + $0x8] sm:$0xff]
    %v542 = vsel %vm307, %v538, 0
    %544 = vmatprep.subr.mxu0 0.0
    %545 = vmatpush1.msra.mxu0 0.0
    %546 = vmatprep.subr.mxu0 0.0
    %547 = vmatpush1.msra.mxu0 0.0
    %548 = vmatprep.subr.mxu0 0.0
    %549 = vmatpush1.msra.mxu0 0.0
    %550 = vmatprep.subr.mxu0 0.0
    %551 = vmatpush1.msra.mxu0 0.0
    %552 = vmatprep.subr.mxu0 0.0
    %553 = vmatpush1.msra.mxu0 0.0
    %554 = vmatprep.subr.mxu0 0.0
    %555 = vmatpush1.msra.mxu0 0.0
    %556 = vmatprep.subr.mxu0 0.0
    %557 = vmatpush1.msra.mxu0 0.0
    %558 = vmatprep.subr.mxu0 0.0
    %559 = vmatpush1.msra.mxu0 0.0
    %560 = vmatprep.subr.mxu0 0.0
    %561 = vmatpush1.msra.mxu0 0.0
    %562 = vmatprep.subr.mxu0 0.0
    %563 = vmatpush1.msra.mxu0 0.0
    %564 = vmatprep.subr.mxu0 0.0
    %565 = vmatpush1.msra.mxu0 0.0
    %566 = vmatprep.subr.mxu0 0.0
    %567 = vmatpush1.msra.mxu0 0.0
    %568 = vmatprep.subr.mxu0 0.0
    %569 = vmatpush1.msra.mxu0 0.0
    %570 = vmatprep.subr.mxu0 0.0
    %571 = vmatpush1.msra.mxu0 0.0
    %572 = vmatprep.subr.mxu0 0.0
    %573 = vmatpush1.msra.mxu0 %v540
    %574 = vmatprep.subr.mxu0 0.0
    %575 = vmatpush1.msra.mxu0 %v539
    %576 = vmatprep.subr.mxu0 0.0
    %577 = vmatpush2.msra.mxu0 0.0
    %578 = vmatprep.subr.mxu0 0.0
    %579 = vmatpush2.msra.mxu0 0.0
    %580 = vmatprep.subr.mxu0 0.0
    %581 = vmatpush2.msra.mxu0 0.0
    %582 = vmatprep.subr.mxu0 0.0
    %583 = vmatpush2.msra.mxu0 0.0
    %584 = vmatprep.subr.mxu0 0.0
    %585 = vmatpush2.msra.mxu0 0.0
    %586 = vmatprep.subr.mxu0 0.0
    %587 = vmatpush2.msra.mxu0 0.0
    %588 = vmatprep.subr.mxu0 0.0
    %589 = vmatpush2.msra.mxu0 0.0
    %590 = vmatprep.subr.mxu0 0.0
    %591 = vmatpush2.msra.mxu0 0.0
    %592 = vmatprep.subr.mxu0 0.0
    %593 = vmatpush2.msra.mxu0 0.0
    %594 = vmatprep.subr.mxu0 0.0
    %595 = vmatpush2.msra.mxu0 0.0
    %596 = vmatprep.subr.mxu0 0.0
    %597 = vmatpush2.msra.mxu0 0.0
    %598 = vmatprep.subr.mxu0 0.0
    %599 = vmatpush2.msra.mxu0 0.0
    %600 = vmatprep.subr.mxu0 0.0
    %601 = vmatpush2.msra.mxu0 0.0
    %602 = vmatprep.subr.mxu0 0.0
    %603 = vmatpush2.msra.mxu0 0.0
    %604 = vmatprep.subr.mxu0 0.0
    %605 = vmatpush2.msra.mxu0 0.0
    %606 = vmatprep.subr.mxu0 0.0
    %607 = vmatpush2.msra.mxu0 0.0
    %608 = vmatprep.mubr.f32.mxu0 0.0
    %609 = vmatmul.mubr.f32.gmra.mxu0 %v542
    %v610 = vpop.f32.mrf.mxu0
    %v611 = vadd.f32 0.0, %v610
    %v612 = vpop.f32.mrf.mxu0
    %613 = vdwg.mxu0
    %v614 = vsel %vm148, %v611, 0.0
    %v615 = vrot.slane %v614, 4
    %v616 = vadd.f32 %v614, %v615
    %v617 = vrot.slane %v616, 2
    %v618 = vadd.f32 %v616, %v617
    %v619 = vrot.slane %v618, 1
    %v620 = vadd.f32 %v618, %v619
    %v621 = vmul.f32 %v620, %v156
    %v622 = vsub.f32 %v611, %v621
    %v623 = vmul.f32 %v622, %v622
    %v624 = vsel %vm148, %v623, 0.0
    %v625 = vrot.slane %v624, 4
    %v626 = vadd.f32 %v624, %v625
    %v627 = vrot.slane %v626, 2
    %v628 = vadd.f32 %v626, %v627
    %v629 = vrot.slane %v628, 1
    %v630 = vadd.f32 %v628, %v629
    %v631 = vmul.f32 %v630, %v156
    %v632 = vadd.f32 %v631, 1e-05
    %v633 = vrsqrt.pop %v632
    %v634 = vmul.f32 %v622, %v633
    %v635 = vld [vmem:[%s14] sm:$0x1]
    %v637 = vlaneseq
    %v638 = vshrl.u32 %v637, 7
    %v639 = vsub.s32 0, %v638
    %v640 = vrot.slane %v635, %v639
    %v642 = vmul.f32 %v634, %v640
    %v643 = vld [vmem:[%s15] sm:$0x1]
    %v645 = vlaneseq
    %v646 = vshrl.u32 %v645, 7
    %v647 = vsub.s32 0, %v646
    %v648 = vrot.slane %v643, %v647
    %v650 = vadd.f32 %v642, %v648
    %v651 = vmax.f32 %v650, 0.0
    %v652 = vld [vmem:[%s16] sm:$0xff]
    %v653 = vld [vmem:[%s16 + $0x8] sm:$0xff]
    %v654 = vld [vmem:[%s16 + $0x10] sm:$0xff]
    %v655 = vld [vmem:[%s16 + $0x18] sm:$0xff]
    %v657 = vsel %vm192, %v651, 0
    %659 = vmatprep.subr.mxu0 0.0
    %660 = vmatpush1.msra.mxu0 0.0
    %661 = vmatprep.subr.mxu0 0.0
    %662 = vmatpush1.msra.mxu0 0.0
    %663 = vmatprep.subr.mxu0 0.0
    %664 = vmatpush1.msra.mxu0 0.0
    %665 = vmatprep.subr.mxu0 0.0
    %666 = vmatpush1.msra.mxu0 0.0
    %667 = vmatprep.subr.mxu0 0.0
    %668 = vmatpush1.msra.mxu0 0.0
    %669 = vmatprep.subr.mxu0 0.0
    %670 = vmatpush1.msra.mxu0 0.0
    %671 = vmatprep.subr.mxu0 0.0
    %672 = vmatpush1.msra.mxu0 0.0
    %673 = vmatprep.subr.mxu0 0.0
    %674 = vmatpush1.msra.mxu0 0.0
    %675 = vmatprep.subr.mxu0 0.0
    %676 = vmatpush1.msra.mxu0 0.0
    %677 = vmatprep.subr.mxu0 0.0
    %678 = vmatpush1.msra.mxu0 0.0
    %679 = vmatprep.subr.mxu0 0.0
    %680 = vmatpush1.msra.mxu0 0.0
    %681 = vmatprep.subr.mxu0 0.0
    %682 = vmatpush1.msra.mxu0 0.0
    %683 = vmatprep.subr.mxu0 0.0
    %684 = vmatpush1.msra.mxu0 %v655
    %685 = vmatprep.subr.mxu0 0.0
    %686 = vmatpush1.msra.mxu0 %v654
    %687 = vmatprep.subr.mxu0 0.0
    %688 = vmatpush1.msra.mxu0 %v653
    %689 = vmatprep.subr.mxu0 0.0
    %690 = vmatpush1.msra.mxu0 %v652
    %691 = vmatprep.subr.mxu0 0.0
    %692 = vmatpush2.msra.mxu0 0.0
    %693 = vmatprep.subr.mxu0 0.0
    %694 = vmatpush2.msra.mxu0 0.0
    %695 = vmatprep.subr.mxu0 0.0
    %696 = vmatpush2.msra.mxu0 0.0
    %697 = vmatprep.subr.mxu0 0.0
    %698 = vmatpush2.msra.mxu0 0.0
    %699 = vmatprep.subr.mxu0 0.0
    %700 = vmatpush2.msra.mxu0 0.0
    %701 = vmatprep.subr.mxu0 0.0
    %702 = vmatpush2.msra.mxu0 0.0
    %703 = vmatprep.subr.mxu0 0.0
    %704 = vmatpush2.msra.mxu0 0.0
    %705 = vmatprep.subr.mxu0 0.0
    %706 = vmatpush2.msra.mxu0 0.0
    %707 = vmatprep.subr.mxu0 0.0
    %708 = vmatpush2.msra.mxu0 0.0
    %709 = vmatprep.subr.mxu0 0.0
    %710 = vmatpush2.msra.mxu0 0.0
    %711 = vmatprep.subr.mxu0 0.0
    %712 = vmatpush2.msra.mxu0 0.0
    %713 = vmatprep.subr.mxu0 0.0
    %714 = vmatpush2.msra.mxu0 0.0
    %715 = vmatprep.subr.mxu0 0.0
    %716 = vmatpush2.msra.mxu0 0.0
    %717 = vmatprep.subr.mxu0 0.0
    %718 = vmatpush2.msra.mxu0 0.0
    %719 = vmatprep.subr.mxu0 0.0
    %720 = vmatpush2.msra.mxu0 0.0
    %721 = vmatprep.subr.mxu0 0.0
    %722 = vmatpush2.msra.mxu0 0.0
    %723 = vmatprep.mubr.f32.mxu0 0.0
    %724 = vmatmul.mubr.f32.gmra.mxu0 %v657
    %v725 = vpop.f32.mrf.mxu0
    %v726 = vadd.f32 0.0, %v725
    %v727 = vpop.f32.mrf.mxu0
    %728 = vdwg.mxu0
    %vm729 = vcmask 517120
    %v730 = vsel %vm729, %v726, 0.0
    %v731 = vrot.slane %v730, 4
    %v732 = vadd.f32 %v730, %v731
    %v733 = vrot.slane %v732, 2
    %v734 = vadd.f32 %v732, %v733
    %v735 = vrot.slane %v734, 1
    %v736 = vadd.f32 %v734, %v735
    %v737 = vmul.f32 %v736, %v156
    %v738 = vsub.f32 %v726, %v737
    %v739 = vmul.f32 %v738, %v738
    %v740 = vsel %vm729, %v739, 0.0
    %v741 = vrot.slane %v740, 4
    %v742 = vadd.f32 %v740, %v741
    %v743 = vrot.slane %v742, 2
    %v744 = vadd.f32 %v742, %v743
    %v745 = vrot.slane %v744, 1
    %v746 = vadd.f32 %v744, %v745
    %v747 = vmul.f32 %v746, %v156
    %v748 = vadd.f32 %v747, 1e-05
    %v749 = vrsqrt.pop %v748
    %v750 = vmul.f32 %v738, %v749
    %v751 = vld [vmem:[%s17] sm:$0x1]
    %v753 = vlaneseq
    %v754 = vshrl.u32 %v753, 7
    %v755 = vsub.s32 0, %v754
    %v756 = vrot.slane %v751, %v755
    %v758 = vmul.f32 %v750, %v756
    %v759 = vld [vmem:[%s18] sm:$0x1]
    %v761 = vlaneseq
    %v762 = vshrl.u32 %v761, 7
    %v763 = vsub.s32 0, %v762
    %v764 = vrot.slane %v759, %v763
    %v766 = vadd.f32 %v758, %v764
    %v767 = vmax.f32 %v766, 0.0
    %768 = vst.msk [vmem:[%s20] sm:$0x3] %vm729, %v767
    // Predicated region
    $region78: #{cae_forward.13} parent=1 // pred_check
      _
    $region79: #{cae_forward.13} parent=1 // pred_check_branch
      %770 = sbr.rel (0) target = $region81
    $region80: #{cae_forward.13} parent=1 // pred_region
      %s772 = ssub.s32 32, 32
      %773 = vsyncadd [#allocation3], %s772
      %s775 = sshll.u32 [#allocation2], 4
      %s776 = int_to_ptr.vmem [resolvable:$true] %s775
      %778 = dma.vmem_to_hbm [thread:$0]  %s776, 32, %s19, [#allocation3]
    $region81: #{cae_forward.13} parent=1 // pred_fallthru
      _
    // Predicated region
    $region82: #{cae_forward.13} parent=1 // pred_check
      _
    $region83: #{cae_forward.13} parent=1 // pred_check_branch
      %780 = sbr.rel (0) target = $region85
    $region84: #{cae_forward.13} parent=1 // pred_region
      _
    $region85: #{cae_forward.13} parent=1 // pred_fallthru
      _
    // Predicated region
    $region86: #{cae_forward.13} parent=1 // pred_check
      _
    $region87: #{cae_forward.13} parent=1 // pred_check_branch
      %782 = sbr.rel (0) target = $region89
    $region88: #{cae_forward.13} parent=1 // pred_region
      %783 = dma.done [#allocation3], 32
    $region89: #{cae_forward.13} parent=1 // pred_fallthru
      _
    // Predicated region
    $region90: #{cae_forward.13} parent=1 // pred_check
      _
    $region91: #{cae_forward.13} parent=1 // pred_check_branch
      %785 = sbr.rel (0) target = $region93
    $region92: #{cae_forward.13} parent=1 // pred_region
      _
    $region93: #{cae_forward.13} parent=1 // pred_fallthru
      _
    %786 = vsyncpa [#allocation3], 1

// kernel: cae_forward.14
$region0: #{cae_forward.14}
  #allocation0 [shape = 'u32[]', space=smem, size = 0x4, offset = 0x4, fixed_abs, tag = 'smem constant byte address 0x4 - core index']
  #allocation1 [shape = 'u32[144,128]{1,0:T(1,128)}', space=vmem, size = 0x12000, scoped, tag = 'internal scratch']
  #allocation2 [shape = 'f32[16,32]{1,0:T(8,128)}', space=vmem, size = 0x2000, scoped, tag = 'scratch operand']
  %s0 = inlined_call_operand.vmem [shape: bf16[6,96,32], index: 0, kind: input, shape index: {}]
  %s1 = inlined_call_operand.vmem [shape: bf16[6,16,96], index: 1, kind: input, shape index: {}]
  %s2 = inlined_call_operand.vmem [shape: f32[16,1], index: 2, kind: input, shape index: {}]
  %s3 = inlined_call_operand.vmem [shape: f32[16,1], index: 3, kind: input, shape index: {}]
  %s4 = inlined_call_operand.vmem [shape: f32[16,32], index: 4, kind: output, shape index: {}]
  %s5 = sld [smem:[#allocation0]]
  $region57: #{cae_forward.14} parent=0
    _
  %s7 = ssub.s32 1, %s5
  %s8 = scalar_select 0, %s7, %s5
  loop: start=0, step=1, limit=8
  $region2: #{cae_forward.14} parent=0 // loop_pre_header
    _
  $region3: #{cae_forward.14} parent=0 // loop_header
    %s10 = sphi 0, %s14
    %p11 = scmp.ge.s32.totalorder %s10, 8
    %s20 = sphi 0, %s22
    %s23 = sphi 0, %s20
    %s24 = sphi 0, %s23
    %s40 = sphi 0, %s24
    %s46 = sphi 0, %s48
    %s49 = sphi 0, %s46
    %s50 = sphi 0, %s49
    %s66 = sphi 0, %s50
    %s70 = sphi 0, %s70
    %s72 = sphi 0, %s70
    %s73 = sphi 0, %s72
    %s87 = sphi 0, %s73
    %s91 = sphi 0, %s91
    %s93 = sphi 0, %s91
    %s94 = sphi 0, %s93
    %s108 = sphi 0, %s94
    %s112 = sphi 0, %s112
    %s114 = sphi 0, %s112
    %s115 = sphi 0, %s114
    %s129 = sphi 0, %s115
  $region4: #{cae_forward.14} parent=0 // loop_header_branch
    %13 = sbr.rel (%p11) target = $region8
  $region5: #{cae_forward.14} parent=0 // loop_body
    %s15 = ssub.s32 %s10, 1
    %s16 = ssub.s32 %s10, 2
    %s17 = sadd.s32 %s10, 1
    %s18 = ssub.s32 %s10, %s17
    %p19 = scmp.eq.s32.totalorder %s18, 0
    %s21 = sadd.s32 %s20, 1
    %s22 = scalar_select %p19, %s20, %s21
    %p25 = pneg %p19
    %p26 = scmp.eq.s32.totalorder %s10, 5
    %p27 = por %p25, %p26
    %p28 = scmp.ne.s32.totalorder %s20, %s23
    %p29 = scmp.eq.s32.totalorder %s10, 0
    %p30 = por %p28, %p29
    %p31 = scmp.ne.s32.totalorder %s20, %s23
    %p32 = scmp.eq.s32.totalorder %s15, 5
    %p33 = por %p31, %p32
    %p34 = scmp.ne.s32.totalorder %s23, %s24
    %p35 = scmp.eq.s32.totalorder %s15, 0
    %p36 = por %p34, %p35
    %p37 = scmp.ne.s32.totalorder %s23, %s24
    %p38 = scmp.eq.s32.totalorder %s16, 5
    %p39 = por %p37, %p38
    %p41 = scmp.ne.s32.totalorder %s24, %s40
    %p42 = scmp.eq.s32.totalorder %s16, 0
    %p43 = por %p41, %p42
    %s44 = ssub.s32 %s10, %s17
    %p45 = scmp.eq.s32.totalorder %s44, 0
    %s47 = sadd.s32 %s46, 1
    %s48 = scalar_select %p45, %s46, %s47
    %p51 = pneg %p45
    %p52 = scmp.eq.s32.totalorder %s10, 5
    %p53 = por %p51, %p52
    %p54 = scmp.ne.s32.totalorder %s46, %s49
    %p55 = scmp.eq.s32.totalorder %s10, 0
    %p56 = por %p54, %p55
    %p57 = scmp.ne.s32.totalorder %s46, %s49
    %p58 = scmp.eq.s32.totalorder %s15, 5
    %p59 = por %p57, %p58
    %p60 = scmp.ne.s32.totalorder %s49, %s50
    %p61 = scmp.eq.s32.totalorder %s15, 0
    %p62 = por %p60, %p61
    %p63 = scmp.ne.s32.totalorder %s49, %s50
    %p64 = scmp.eq.s32.totalorder %s16, 5
    %p65 = por %p63, %p64
    %p67 = scmp.ne.s32.totalorder %s50, %s66
    %p68 = scmp.eq.s32.totalorder %s16, 0
    %p69 = por %p67, %p68
    %s71 = sadd.s32 %s70, 1
    %p74 = scmp.eq.s32.totalorder %s10, 5
    %p75 = scmp.ne.s32.totalorder %s70, %s72
    %p76 = scmp.eq.s32.totalorder %s10, 0
    %p77 = por %p75, %p76
    %p78 = scmp.ne.s32.totalorder %s70, %s72
    %p79 = scmp.eq.s32.totalorder %s15, 5
    %p80 = por %p78, %p79
    %p81 = scmp.ne.s32.totalorder %s72, %s73
    %p82 = scmp.eq.s32.totalorder %s15, 0
    %p83 = por %p81, %p82
    %p84 = scmp.ne.s32.totalorder %s72, %s73
    %p85 = scmp.eq.s32.totalorder %s16, 5
    %p86 = por %p84, %p85
    %p88 = scmp.ne.s32.totalorder %s73, %s87
    %p89 = scmp.eq.s32.totalorder %s16, 0
    %p90 = por %p88, %p89
    %s92 = sadd.s32 %s91, 1
    %p95 = scmp.eq.s32.totalorder %s10, 5
    %p96 = scmp.ne.s32.totalorder %s91, %s93
    %p97 = scmp.eq.s32.totalorder %s10, 0
    %p98 = por %p96, %p97
    %p99 = scmp.ne.s32.totalorder %s91, %s93
    %p100 = scmp.eq.s32.totalorder %s15, 5
    %p101 = por %p99, %p100
    %p102 = scmp.ne.s32.totalorder %s93, %s94
    %p103 = scmp.eq.s32.totalorder %s15, 0
    %p104 = por %p102, %p103
    %p105 = scmp.ne.s32.totalorder %s93, %s94
    %p106 = scmp.eq.s32.totalorder %s16, 5
    %p107 = por %p105, %p106
    %p109 = scmp.ne.s32.totalorder %s94, %s108
    %p110 = scmp.eq.s32.totalorder %s16, 0
    %p111 = por %p109, %p110
    %s113 = sadd.s32 %s112, 1
    %p116 = scmp.eq.s32.totalorder %s10, 5
    %p117 = scmp.ne.s32.totalorder %s112, %s114
    %p118 = scmp.eq.s32.totalorder %s10, 0
    %p119 = por %p117, %p118
    %p120 = scmp.ne.s32.totalorder %s112, %s114
    %p121 = scmp.eq.s32.totalorder %s15, 5
    %p122 = por %p120, %p121
    %p123 = scmp.ne.s32.totalorder %s114, %s115
    %p124 = scmp.eq.s32.totalorder %s15, 0
    %p125 = por %p123, %p124
    %p126 = scmp.ne.s32.totalorder %s114, %s115
    %p127 = scmp.eq.s32.totalorder %s16, 5
    %p128 = por %p126, %p127
    %p130 = scmp.ne.s32.totalorder %s115, %s129
    %p131 = scmp.eq.s32.totalorder %s16, 0
    %p132 = por %p130, %p131
    %p133 = scmp.le.s32.totalorder 1, %s10
    %p134 = scmp.lt.s32.totalorder %s10, 7
    %p135 = pnand %p133, %p134
    %p136 = pneg %p135
    // Predicated region
    $region9: #{cae_forward.14} parent=5 // pred_check
      _
    $region10: #{cae_forward.14} parent=5 // pred_check_branch
      %138 = sbr.rel (%p135) target = $region12
    $region11: #{cae_forward.14} parent=5 // pred_region
      %s139 = ssub.s32 %s10, 1
      // Predicated region
      $region13: #{cae_forward.14} parent=11 // pred_check
        %p140 = pneg %p83
      $region14: #{cae_forward.14} parent=11 // pred_check_branch
        %142 = sbr.rel (%p140) target = $region16
      $region15: #{cae_forward.14} parent=11 // pred_region
        _
      $region16: #{cae_forward.14} parent=11 // pred_fallthru
        _
      // Predicated region
      $region17: #{cae_forward.14} parent=11 // pred_check
        %p143 = pneg %p104
      $region18: #{cae_forward.14} parent=11 // pred_check_branch
        %145 = sbr.rel (%p143) target = $region20
      $region19: #{cae_forward.14} parent=11 // pred_region
        _
      $region20: #{cae_forward.14} parent=11 // pred_fallthru
        _
    $region12: #{cae_forward.14} parent=5 // pred_fallthru
      _
    %p146 = scmp.lt.s32.totalorder %s10, 6
    // Predicated region
    $region21: #{cae_forward.14} parent=5 // pred_check
      %p147 = pneg %p146
    $region22: #{cae_forward.14} parent=5 // pred_check_branch
      %149 = sbr.rel (%p147) target = $region24
    $region23: #{cae_forward.14} parent=5 // pred_region
      // Predicated region
      $region25: #{cae_forward.14} parent=23 // pred_check
        %p150 = pneg %p30
      $region26: #{cae_forward.14} parent=23 // pred_check_branch
        %152 = sbr.rel (%p150) target = $region28
      $region27: #{cae_forward.14} parent=23 // pred_region
        %p153 = scmp.lt.s32.totalorder %s10, 5
        %s154 = scalar_select %p153, %s10, 5
        %s155 = smul.addr %s154, 12
        %s156 = smul.addr %s155, 4
        %s157 = scalar_lea.vmem %s0, %s156
      $region28: #{cae_forward.14} parent=23 // pred_fallthru
        _
      // Predicated region
      $region29: #{cae_forward.14} parent=23 // pred_check
        %p158 = pneg %p56
      $region30: #{cae_forward.14} parent=23 // pred_check_branch
        %160 = sbr.rel (%p158) target = $region32
      $region31: #{cae_forward.14} parent=23 // pred_region
        %p161 = scmp.lt.s32.totalorder %s10, 5
        %s162 = scalar_select %p161, %s10, 5
        %s163 = smul.addr %s162, 2
        %s164 = smul.addr %s163, 4
        %s165 = scalar_lea.vmem %s1, %s164
      $region32: #{cae_forward.14} parent=23 // pred_fallthru
        _
    $region24: #{cae_forward.14} parent=5 // pred_fallthru
      _
    %p166 = scmp.le.s32.totalorder 1, %s10
    %p167 = scmp.lt.s32.totalorder %s10, 7
    %p168 = pnand %p166, %p167
    %p169 = pneg %p168
    // Predicated region
    $region33: #{cae_forward.14} parent=5 // pred_check
      _
    $region34: #{cae_forward.14} parent=5 // pred_check_branch
      %171 = sbr.rel (%p168) target = $region36
    $region35: #{cae_forward.14} parent=5 // pred_region
      %s172 = ssub.s32 %s10, 1
      %p173 = scmp.lt.s32.totalorder %s15, 5
      %s174 = scalar_select %p173, %s15, 5
      %s175 = smul.addr %s174, 12
      %s176 = smul.addr %s175, 4
      %s177 = scalar_lea.vmem %s0, %s176
      %p178 = pneg %p36
      %p179 = pneg %p33
      %p180 = scmp.lt.s32.totalorder %s15, 5
      %s181 = scalar_select %p180, %s15, 5
      %s182 = smul.addr %s181, 2
      %s183 = smul.addr %s182, 4
      %s184 = scalar_lea.vmem %s1, %s183
      %p185 = pneg %p62
      %p186 = pneg %p59
      %p187 = pneg %p83
      %p188 = pneg %p80
      %p189 = pneg %p104
      %p190 = pneg %p101
      %p191 = pneg %p125
      %p192 = pneg %p122
      %p193 = scmp.lt.s32.totalorder %s15, 5
      %s194 = scalar_select %p193, %s15, 5
      %s195 = smul.addr %s194, 12
      %s196 = smul.addr %s195, 4
      %s197 = scalar_lea.vmem %s0, %s196
      %p198 = scmp.lt.s32.totalorder %s15, 5
      %s199 = scalar_select %p198, %s15, 5
      %s200 = smul.addr %s199, 2
      %s201 = smul.addr %s200, 4
      %s202 = scalar_lea.vmem %s1, %s201
      %p204 = scmp.eq.s32.totalorder %s15, 0
      // Predicated region
      $region37: #{cae_forward.14} parent=35 // pred_check
        %p205 = pneg %p204
      $region38: #{cae_forward.14} parent=35 // pred_check_branch
        %207 = sbr.rel (%p205) target = $region40
      $region39: #{cae_forward.14} parent=35 // pred_region
        %vm208 = vcmask 261120
        %209 = vst.msk [vmem:[#allocation2] sm:$0xff] %vm208, 0.0
        %210 = vst.msk [vmem:[#allocation2 + $0x8] sm:$0xff] %vm208, 0.0
      $region40: #{cae_forward.14} parent=35 // pred_fallthru
        _
      %v211 = vld [vmem:[#allocation2] sm:$0xff]
      %v212 = vld [vmem:[#allocation2 + $0x8] sm:$0xff]
      %v213 = vld [vmem:[%s202] sm:$0xf]
      %v214 = vld [vmem:[%s202 + $0x4] sm:$0xf]
      %v215 = vld [vmem:[%s197] sm:$0xf]
      %v216 = vld [vmem:[%s197 + $0x4] sm:$0xf]
      %v217 = vld [vmem:[%s197 + $0x8] sm:$0xf]
      %v218 = vld [vmem:[%s197 + $0xc] sm:$0xf]
      %v219 = vld [vmem:[%s197 + $0x10] sm:$0xf]
      %v220 = vld [vmem:[%s197 + $0x14] sm:$0xf]
      %v221 = vld [vmem:[%s197 + $0x18] sm:$0xf]
      %v222 = vld [vmem:[%s197 + $0x1c] sm:$0xf]
      %v223 = vld [vmem:[%s197 + $0x20] sm:$0xf]
      %v224 = vld [vmem:[%s197 + $0x24] sm:$0xf]
      %v225 = vld [vmem:[%s197 + $0x28] sm:$0xf]
      %v226 = vld [vmem:[%s197 + $0x2c] sm:$0xf]
      %v229 = vunpack.c.l.b16 %v213
      %v230 = vunpack.c.l.b16 %v214
      %v231 = vpack.c.b16 %v230, %v229
      %v244 = vunpack.c.l.b16 %v215
      %v245 = vunpack.c.l.b16 %v216
      %v246 = vunpack.c.l.b16 %v217
      %v247 = vunpack.c.l.b16 %v218
      %v248 = vunpack.c.l.b16 %v219
      %v249 = vunpack.c.l.b16 %v220
      %v250 = vunpack.c.l.b16 %v221
      %v251 = vunpack.c.l.b16 %v222
      %v252 = vunpack.c.l.b16 %v223
      %v253 = vunpack.c.l.b16 %v224
      %v254 = vunpack.c.l.b16 %v225
      %v255 = vunpack.c.l.b16 %v226
      %v256 = vpack.c.b16 %v245, %v244
      %v257 = vpack.c.b16 %v247, %v246
      %v258 = vpack.c.b16 %v249, %v248
      %v259 = vpack.c.b16 %v251, %v250
      %v260 = vpack.c.b16 %v253, %v252
      %v261 = vpack.c.b16 %v255, %v254
      %vm268 = vcmask 785408
      %v270 = vsel %vm268, %v231, 0
      %272 = vmatprep.subr.bf16.mxu0 0
      %273 = vmatpush1.bf16.msra.mxu0 0
      %274 = vmatprep.subr.bf16.mxu0 0
      %275 = vmatpush1.bf16.msra.mxu0 0
      %276 = vmatprep.subr.bf16.mxu0 0
      %277 = vmatpush1.bf16.msra.mxu0 %v261
      %278 = vmatprep.subr.bf16.mxu0 0
      %279 = vmatpush1.bf16.msra.mxu0 %v260
      %280 = vmatprep.subr.bf16.mxu0 0
      %281 = vmatpush1.bf16.msra.mxu0 %v259
      %282 = vmatprep.subr.bf16.mxu0 0
      %283 = vmatpush1.bf16.msra.mxu0 %v258
      %284 = vmatprep.subr.bf16.mxu0 0
      %285 = vmatpush1.bf16.msra.mxu0 %v257
      %286 = vmatprep.subr.bf16.mxu0 0
      %287 = vmatpush1.bf16.msra.mxu0 %v256
      %288 = vmatprep.subr.bf16.mxu0 0
      %289 = vmatpush2.bf16.msra.mxu0 0
      %290 = vmatprep.subr.bf16.mxu0 0
      %291 = vmatpush2.bf16.msra.mxu0 0
      %292 = vmatprep.subr.bf16.mxu0 0
      %293 = vmatpush2.bf16.msra.mxu0 0
      %294 = vmatprep.subr.bf16.mxu0 0
      %295 = vmatpush2.bf16.msra.mxu0 0
      %296 = vmatprep.subr.bf16.mxu0 0
      %297 = vmatpush2.bf16.msra.mxu0 0
      %298 = vmatprep.subr.bf16.mxu0 0
      %299 = vmatpush2.bf16.msra.mxu0 0
      %300 = vmatprep.subr.bf16.mxu0 0
      %301 = vmatpush2.bf16.msra.mxu0 0
      %302 = vmatprep.subr.bf16.mxu0 0
      %303 = vmatpush2.bf16.msra.mxu0 0
      %304 = vmatprep.mubr.bf16.mxu0 0
      %305 = vmatmul.mubr.bf16.gmra.mxu0 %v270
      %v306 = vpop.f32.mrf.mxu0
      %v307 = vadd.f32 0.0, %v306
      %v308 = vpop.f32.mrf.mxu0
      %v309 = vpop.f32.mrf.mxu0
      %v310 = vadd.f32 0.0, %v309
      %v311 = vpop.f32.mrf.mxu0
      %312 = vdwg.mxu0
      %v313 = vadd.f32 %v211, %v307
      %v314 = vadd.f32 %v212, %v310
      %vm315 = vcmask 261120
      %316 = vst.msk [vmem:[#allocation2] sm:$0xff] %vm315, %v313
      %317 = vst.msk [vmem:[#allocation2 + $0x8] sm:$0xff] %vm315, %v314
      %p318 = scmp.eq.s32.totalorder %s15, 5
      // Predicated region
      $region41: #{cae_forward.14} parent=35 // pred_check
        %p319 = pneg %p318
      $region42: #{cae_forward.14} parent=35 // pred_check_branch
        %321 = sbr.rel (%p319) target = $region44
      $region43: #{cae_forward.14} parent=35 // pred_region
        %v322 = vld [vmem:[#allocation2] sm:$0xff]
        %v323 = vld [vmem:[#allocation2 + $0x8] sm:$0xff]
        %v324 = vsel %vm315, %v322, 0.0
        %325 = vadd.xlane.f32.xlu0 %v324
        %v326 = vpop.xlane.xlu0 %325
        %v327 = vsel %vm315, %v323, 0.0
        %328 = vadd.xlane.f32.xlu0 %v327
        %v329 = vpop.xlane.xlu0 %328
        %v330 = vrcp.pop 32.0
        %v331 = vmul.f32 %v326, %v330
        %v332 = vmul.f32 %v329, %v330
        %v333 = vsub.f32 %v322, %v331
        %v334 = vsub.f32 %v323, %v332
        %v335 = vmul.f32 %v333, %v333
        %v336 = vmul.f32 %v334, %v334
        %v337 = vsel %vm315, %v335, 0.0
        %338 = vadd.xlane.f32.xlu0 %v337
        %v339 = vpop.xlane.xlu0 %338
        %v340 = vsel %vm315, %v336, 0.0
        %341 = vadd.xlane.f32.xlu0 %v340
        %v342 = vpop.xlane.xlu0 %341
        %v343 = vmul.f32 %v339, %v330
        %v344 = vmul.f32 %v342, %v330
        %v345 = vadd.f32 %v343, 1e-05
        %v346 = vadd.f32 %v344, 1e-05
        %v347 = vrsqrt.pop %v345
        %v348 = vrsqrt.pop %v346
        %v349 = vmul.f32 %v333, %v347
        %v350 = vmul.f32 %v334, %v348
        %v351 = vld [vmem:[%s2] sm:$0xff]
        %v352 = vld [vmem:[%s2 + $0x8] sm:$0xff]
        %354 = vset.pattern.permute.xlu0 0
        %355 = vperm.xlu0 %354, %v351
        %v356 = vpop.permute.xlu0 %355
        %359 = vset.pattern.permute.xlu0 0
        %360 = vperm.xlu0 %359, %v352
        %v361 = vpop.permute.xlu0 %360
        %v363 = vmul.f32 %v349, %v356
        %v364 = vmul.f32 %v350, %v361
        %v365 = vld [vmem:[%s3] sm:$0xff]
        %v366 = vld [vmem:[%s3 + $0x8] sm:$0xff]
        %368 = vset.pattern.permute.xlu0 0
        %369 = vperm.xlu0 %368, %v365
        %v370 = vpop.permute.xlu0 %369
        %373 = vset.pattern.permute.xlu0 0
        %374 = vperm.xlu0 %373, %v366
        %v375 = vpop.permute.xlu0 %374
        %v377 = vadd.f32 %v363, %v370
        %v378 = vadd.f32 %v364, %v375
        %v379 = vmax.f32 %v377, 0.0
        %v380 = vmax.f32 %v378, 0.0
        %381 = vst.msk [vmem:[%s4] sm:$0xff] %vm315, %v379
        %382 = vst.msk [vmem:[%s4 + $0x8] sm:$0xff] %vm315, %v380
      $region44: #{cae_forward.14} parent=35 // pred_fallthru
        _
      // Predicated region
      $region45: #{cae_forward.14} parent=35 // pred_check
        %p383 = pneg %p122
      $region46: #{cae_forward.14} parent=35 // pred_check_branch
        %385 = sbr.rel (%p383) target = $region48
      $region47: #{cae_forward.14} parent=35 // pred_region
        _
      $region48: #{cae_forward.14} parent=35 // pred_fallthru
        _
      // Predicated region
      $region49: #{cae_forward.14} parent=35 // pred_check
        %p386 = pneg %p122
      $region50: #{cae_forward.14} parent=35 // pred_check_branch
        %388 = sbr.rel (%p386) target = $region52
      $region51: #{cae_forward.14} parent=35 // pred_region
        _
      $region52: #{cae_forward.14} parent=35 // pred_fallthru
        _
    $region36: #{cae_forward.14} parent=5 // pred_fallthru
      _
    %p389 = scmp.le.s32.totalorder 2, %s10
    // Predicated region
    $region53: #{cae_forward.14} parent=5 // pred_check
      %p390 = pneg %p389
    $region54: #{cae_forward.14} parent=5 // pred_check_branch
      %392 = sbr.rel (%p390) target = $region56
    $region55: #{cae_forward.14} parent=5 // pred_region
      %s393 = ssub.s32 %s10, 2
    $region56: #{cae_forward.14} parent=5 // pred_fallthru
      _
  $region6: #{cae_forward.14} parent=0 // loop_footer
    %s14 = sadd.s32 1, %s10
  $region7: #{cae_forward.14} parent=0 // loop_footer_branch
    %9 = sbr.rel target = $region3
  $region8: #{cae_forward.14} parent=0 // loop_exit
    _

// kernel: cae_forward.15
$region0: #{cae_forward.15}
  #allocation0 [shape = 'u32[]', space=smem, size = 0x4, offset = 0x4, fixed_abs, tag = 'smem constant byte address 0x4 - core index']
  #allocation1 [shape = 'u32[144,128]{1,0:T(1,128)}', space=vmem, size = 0x12000, scoped, tag = 'internal scratch']
  #allocation2 [shape = 'f32[8,128]{1,0:T(8,128)}', space=vmem, size = 0x1000, scoped, tag = 'scratch operand']
  %s0 = inlined_call_operand.vmem [shape: bf16[6,96,128], index: 0, kind: input, shape index: {}]
  %s1 = inlined_call_operand.vmem [shape: bf16[6,8,96], index: 1, kind: input, shape index: {}]
  %s2 = inlined_call_operand.vmem [shape: f32[8,1], index: 2, kind: input, shape index: {}]
  %s3 = inlined_call_operand.vmem [shape: f32[8,1], index: 3, kind: input, shape index: {}]
  %s4 = inlined_call_operand.vmem [shape: f32[8,128], index: 4, kind: output, shape index: {}]
  %s5 = sld [smem:[#allocation0]]
  $region57: #{cae_forward.15} parent=0
    _
  %s7 = ssub.s32 1, %s5
  %s8 = scalar_select 0, %s7, %s5
  loop: start=0, step=1, limit=8
  $region2: #{cae_forward.15} parent=0 // loop_pre_header
    _
  $region3: #{cae_forward.15} parent=0 // loop_header
    %s10 = sphi 0, %s14
    %p11 = scmp.ge.s32.totalorder %s10, 8
    %s20 = sphi 0, %s22
    %s23 = sphi 0, %s20
    %s24 = sphi 0, %s23
    %s40 = sphi 0, %s24
    %s46 = sphi 0, %s48
    %s49 = sphi 0, %s46
    %s50 = sphi 0, %s49
    %s66 = sphi 0, %s50
    %s70 = sphi 0, %s70
    %s72 = sphi 0, %s70
    %s73 = sphi 0, %s72
    %s87 = sphi 0, %s73
    %s91 = sphi 0, %s91
    %s93 = sphi 0, %s91
    %s94 = sphi 0, %s93
    %s108 = sphi 0, %s94
    %s112 = sphi 0, %s112
    %s114 = sphi 0, %s112
    %s115 = sphi 0, %s114
    %s129 = sphi 0, %s115
  $region4: #{cae_forward.15} parent=0 // loop_header_branch
    %13 = sbr.rel (%p11) target = $region8
  $region5: #{cae_forward.15} parent=0 // loop_body
    %s15 = ssub.s32 %s10, 1
    %s16 = ssub.s32 %s10, 2
    %s17 = sadd.s32 %s10, 1
    %s18 = ssub.s32 %s10, %s17
    %p19 = scmp.eq.s32.totalorder %s18, 0
    %s21 = sadd.s32 %s20, 1
    %s22 = scalar_select %p19, %s20, %s21
    %p25 = pneg %p19
    %p26 = scmp.eq.s32.totalorder %s10, 5
    %p27 = por %p25, %p26
    %p28 = scmp.ne.s32.totalorder %s20, %s23
    %p29 = scmp.eq.s32.totalorder %s10, 0
    %p30 = por %p28, %p29
    %p31 = scmp.ne.s32.totalorder %s20, %s23
    %p32 = scmp.eq.s32.totalorder %s15, 5
    %p33 = por %p31, %p32
    %p34 = scmp.ne.s32.totalorder %s23, %s24
    %p35 = scmp.eq.s32.totalorder %s15, 0
    %p36 = por %p34, %p35
    %p37 = scmp.ne.s32.totalorder %s23, %s24
    %p38 = scmp.eq.s32.totalorder %s16, 5
    %p39 = por %p37, %p38
    %p41 = scmp.ne.s32.totalorder %s24, %s40
    %p42 = scmp.eq.s32.totalorder %s16, 0
    %p43 = por %p41, %p42
    %s44 = ssub.s32 %s10, %s17
    %p45 = scmp.eq.s32.totalorder %s44, 0
    %s47 = sadd.s32 %s46, 1
    %s48 = scalar_select %p45, %s46, %s47
    %p51 = pneg %p45
    %p52 = scmp.eq.s32.totalorder %s10, 5
    %p53 = por %p51, %p52
    %p54 = scmp.ne.s32.totalorder %s46, %s49
    %p55 = scmp.eq.s32.totalorder %s10, 0
    %p56 = por %p54, %p55
    %p57 = scmp.ne.s32.totalorder %s46, %s49
    %p58 = scmp.eq.s32.totalorder %s15, 5
    %p59 = por %p57, %p58
    %p60 = scmp.ne.s32.totalorder %s49, %s50
    %p61 = scmp.eq.s32.totalorder %s15, 0
    %p62 = por %p60, %p61
    %p63 = scmp.ne.s32.totalorder %s49, %s50
    %p64 = scmp.eq.s32.totalorder %s16, 5
    %p65 = por %p63, %p64
    %p67 = scmp.ne.s32.totalorder %s50, %s66
    %p68 = scmp.eq.s32.totalorder %s16, 0
    %p69 = por %p67, %p68
    %s71 = sadd.s32 %s70, 1
    %p74 = scmp.eq.s32.totalorder %s10, 5
    %p75 = scmp.ne.s32.totalorder %s70, %s72
    %p76 = scmp.eq.s32.totalorder %s10, 0
    %p77 = por %p75, %p76
    %p78 = scmp.ne.s32.totalorder %s70, %s72
    %p79 = scmp.eq.s32.totalorder %s15, 5
    %p80 = por %p78, %p79
    %p81 = scmp.ne.s32.totalorder %s72, %s73
    %p82 = scmp.eq.s32.totalorder %s15, 0
    %p83 = por %p81, %p82
    %p84 = scmp.ne.s32.totalorder %s72, %s73
    %p85 = scmp.eq.s32.totalorder %s16, 5
    %p86 = por %p84, %p85
    %p88 = scmp.ne.s32.totalorder %s73, %s87
    %p89 = scmp.eq.s32.totalorder %s16, 0
    %p90 = por %p88, %p89
    %s92 = sadd.s32 %s91, 1
    %p95 = scmp.eq.s32.totalorder %s10, 5
    %p96 = scmp.ne.s32.totalorder %s91, %s93
    %p97 = scmp.eq.s32.totalorder %s10, 0
    %p98 = por %p96, %p97
    %p99 = scmp.ne.s32.totalorder %s91, %s93
    %p100 = scmp.eq.s32.totalorder %s15, 5
    %p101 = por %p99, %p100
    %p102 = scmp.ne.s32.totalorder %s93, %s94
    %p103 = scmp.eq.s32.totalorder %s15, 0
    %p104 = por %p102, %p103
    %p105 = scmp.ne.s32.totalorder %s93, %s94
    %p106 = scmp.eq.s32.totalorder %s16, 5
    %p107 = por %p105, %p106
    %p109 = scmp.ne.s32.totalorder %s94, %s108
    %p110 = scmp.eq.s32.totalorder %s16, 0
    %p111 = por %p109, %p110
    %s113 = sadd.s32 %s112, 1
    %p116 = scmp.eq.s32.totalorder %s10, 5
    %p117 = scmp.ne.s32.totalorder %s112, %s114
    %p118 = scmp.eq.s32.totalorder %s10, 0
    %p119 = por %p117, %p118
    %p120 = scmp.ne.s32.totalorder %s112, %s114
    %p121 = scmp.eq.s32.totalorder %s15, 5
    %p122 = por %p120, %p121
    %p123 = scmp.ne.s32.totalorder %s114, %s115
    %p124 = scmp.eq.s32.totalorder %s15, 0
    %p125 = por %p123, %p124
    %p126 = scmp.ne.s32.totalorder %s114, %s115
    %p127 = scmp.eq.s32.totalorder %s16, 5
    %p128 = por %p126, %p127
    %p130 = scmp.ne.s32.totalorder %s115, %s129
    %p131 = scmp.eq.s32.totalorder %s16, 0
    %p132 = por %p130, %p131
    %p133 = scmp.le.s32.totalorder 1, %s10
    %p134 = scmp.lt.s32.totalorder %s10, 7
    %p135 = pnand %p133, %p134
    %p136 = pneg %p135
    // Predicated region
    $region9: #{cae_forward.15} parent=5 // pred_check
      _
    $region10: #{cae_forward.15} parent=5 // pred_check_branch
      %138 = sbr.rel (%p135) target = $region12
    $region11: #{cae_forward.15} parent=5 // pred_region
      %s139 = ssub.s32 %s10, 1
      // Predicated region
      $region13: #{cae_forward.15} parent=11 // pred_check
        %p140 = pneg %p83
      $region14: #{cae_forward.15} parent=11 // pred_check_branch
        %142 = sbr.rel (%p140) target = $region16
      $region15: #{cae_forward.15} parent=11 // pred_region
        _
      $region16: #{cae_forward.15} parent=11 // pred_fallthru
        _
      // Predicated region
      $region17: #{cae_forward.15} parent=11 // pred_check
        %p143 = pneg %p104
      $region18: #{cae_forward.15} parent=11 // pred_check_branch
        %145 = sbr.rel (%p143) target = $region20
      $region19: #{cae_forward.15} parent=11 // pred_region
        _
      $region20: #{cae_forward.15} parent=11 // pred_fallthru
        _
    $region12: #{cae_forward.15} parent=5 // pred_fallthru
      _
    %p146 = scmp.lt.s32.totalorder %s10, 6
    // Predicated region
    $region21: #{cae_forward.15} parent=5 // pred_check
      %p147 = pneg %p146
    $region22: #{cae_forward.15} parent=5 // pred_check_branch
      %149 = sbr.rel (%p147) target = $region24
    $region23: #{cae_forward.15} parent=5 // pred_region
      // Predicated region
      $region25: #{cae_forward.15} parent=23 // pred_check
        %p150 = pneg %p30
      $region26: #{cae_forward.15} parent=23 // pred_check_branch
        %152 = sbr.rel (%p150) target = $region28
      $region27: #{cae_forward.15} parent=23 // pred_region
        %p153 = scmp.lt.s32.totalorder %s10, 5
        %s154 = scalar_select %p153, %s10, 5
        %s155 = smul.addr %s154, 12
        %s156 = smul.addr %s155, 4
        %s157 = scalar_lea.vmem %s0, %s156
      $region28: #{cae_forward.15} parent=23 // pred_fallthru
        _
      // Predicated region
      $region29: #{cae_forward.15} parent=23 // pred_check
        %p158 = pneg %p56
      $region30: #{cae_forward.15} parent=23 // pred_check_branch
        %160 = sbr.rel (%p158) target = $region32
      $region31: #{cae_forward.15} parent=23 // pred_region
        %p161 = scmp.lt.s32.totalorder %s10, 5
        %s162 = scalar_select %p161, %s10, 5
        %s163 = smul.addr %s162, 4
        %s164 = scalar_lea.vmem %s1, %s163
      $region32: #{cae_forward.15} parent=23 // pred_fallthru
        _
    $region24: #{cae_forward.15} parent=5 // pred_fallthru
      _
    %p165 = scmp.le.s32.totalorder 1, %s10
    %p166 = scmp.lt.s32.totalorder %s10, 7
    %p167 = pnand %p165, %p166
    %p168 = pneg %p167
    // Predicated region
    $region33: #{cae_forward.15} parent=5 // pred_check
      _
    $region34: #{cae_forward.15} parent=5 // pred_check_branch
      %170 = sbr.rel (%p167) target = $region36
    $region35: #{cae_forward.15} parent=5 // pred_region
      %s171 = ssub.s32 %s10, 1
      %p172 = scmp.lt.s32.totalorder %s15, 5
      %s173 = scalar_select %p172, %s15, 5
      %s174 = smul.addr %s173, 12
      %s175 = smul.addr %s174, 4
      %s176 = scalar_lea.vmem %s0, %s175
      %p177 = pneg %p36
      %p178 = pneg %p33
      %p179 = scmp.lt.s32.totalorder %s15, 5
      %s180 = scalar_select %p179, %s15, 5
      %s181 = smul.addr %s180, 4
      %s182 = scalar_lea.vmem %s1, %s181
      %p183 = pneg %p62
      %p184 = pneg %p59
      %p185 = pneg %p83
      %p186 = pneg %p80
      %p187 = pneg %p104
      %p188 = pneg %p101
      %p189 = pneg %p125
      %p190 = pneg %p122
      %p191 = scmp.lt.s32.totalorder %s15, 5
      %s192 = scalar_select %p191, %s15, 5
      %s193 = smul.addr %s192, 12
      %s194 = smul.addr %s193, 4
      %s195 = scalar_lea.vmem %s0, %s194
      %p196 = scmp.lt.s32.totalorder %s15, 5
      %s197 = scalar_select %p196, %s15, 5
      %s198 = smul.addr %s197, 4
      %s199 = scalar_lea.vmem %s1, %s198
      %p201 = scmp.eq.s32.totalorder %s15, 0
      // Predicated region
      $region37: #{cae_forward.15} parent=35 // pred_check
        %p202 = pneg %p201
      $region38: #{cae_forward.15} parent=35 // pred_check_branch
        %204 = sbr.rel (%p202) target = $region40
      $region39: #{cae_forward.15} parent=35 // pred_region
        %205 = vst [vmem:[#allocation2] sm:$0xff] 0.0
      $region40: #{cae_forward.15} parent=35 // pred_fallthru
        _
      %v206 = vld [vmem:[#allocation2] sm:$0xff]
      %v207 = vld [vmem:[%s199] sm:$0xf]
      %v208 = vld [vmem:[%s195] sm:$0xf]
      %v209 = vld [vmem:[%s195 + $0x4] sm:$0xf]
      %v210 = vld [vmem:[%s195 + $0x8] sm:$0xf]
      %v211 = vld [vmem:[%s195 + $0xc] sm:$0xf]
      %v212 = vld [vmem:[%s195 + $0x10] sm:$0xf]
      %v213 = vld [vmem:[%s195 + $0x14] sm:$0xf]
      %v214 = vld [vmem:[%s195 + $0x18] sm:$0xf]
      %v215 = vld [vmem:[%s195 + $0x1c] sm:$0xf]
      %v216 = vld [vmem:[%s195 + $0x20] sm:$0xf]
      %v217 = vld [vmem:[%s195 + $0x24] sm:$0xf]
      %v218 = vld [vmem:[%s195 + $0x28] sm:$0xf]
      %v219 = vld [vmem:[%s195 + $0x2c] sm:$0xf]
      %v232 = vunpack.c.l.b16 %v208
      %v233 = vunpack.c.l.b16 %v209
      %v234 = vunpack.c.l.b16 %v210
      %v235 = vunpack.c.l.b16 %v211
      %v236 = vunpack.c.l.b16 %v212
      %v237 = vunpack.c.l.b16 %v213
      %v238 = vunpack.c.l.b16 %v214
      %v239 = vunpack.c.l.b16 %v215
      %v240 = vunpack.c.l.b16 %v216
      %v241 = vunpack.c.l.b16 %v217
      %v242 = vunpack.c.l.b16 %v218
      %v243 = vunpack.c.l.b16 %v219
      %v244 = vpack.c.b16 %v233, %v232
      %v245 = vpack.c.b16 %v235, %v234
      %v246 = vpack.c.b16 %v237, %v236
      %v247 = vpack.c.b16 %v239, %v238
      %v248 = vpack.c.b16 %v241, %v240
      %v249 = vpack.c.b16 %v243, %v242
      %vm256 = vcmask 785408
      %v258 = vsel %vm256, %v207, 0
      %260 = vmatprep.subr.bf16.mxu0 0
      %261 = vmatpush1.bf16.msra.mxu0 0
      %262 = vmatprep.subr.bf16.mxu0 0
      %263 = vmatpush1.bf16.msra.mxu0 0
      %264 = vmatprep.subr.bf16.mxu0 0
      %265 = vmatpush1.bf16.msra.mxu0 %v249
      %266 = vmatprep.subr.bf16.mxu0 0
      %267 = vmatpush1.bf16.msra.mxu0 %v248
      %268 = vmatprep.subr.bf16.mxu0 0
      %269 = vmatpush1.bf16.msra.mxu0 %v247
      %270 = vmatprep.subr.bf16.mxu0 0
      %271 = vmatpush1.bf16.msra.mxu0 %v246
      %272 = vmatprep.subr.bf16.mxu0 0
      %273 = vmatpush1.bf16.msra.mxu0 %v245
      %274 = vmatprep.subr.bf16.mxu0 0
      %275 = vmatpush1.bf16.msra.mxu0 %v244
      %276 = vmatprep.subr.bf16.mxu0 0
      %277 = vmatpush2.bf16.msra.mxu0 0
      %278 = vmatprep.subr.bf16.mxu0 0
      %279 = vmatpush2.bf16.msra.mxu0 0
      %280 = vmatprep.subr.bf16.mxu0 0
      %281 = vmatpush2.bf16.msra.mxu0 0
      %282 = vmatprep.subr.bf16.mxu0 0
      %283 = vmatpush2.bf16.msra.mxu0 0
      %284 = vmatprep.subr.bf16.mxu0 0
      %285 = vmatpush2.bf16.msra.mxu0 0
      %286 = vmatprep.subr.bf16.mxu0 0
      %287 = vmatpush2.bf16.msra.mxu0 0
      %288 = vmatprep.subr.bf16.mxu0 0
      %289 = vmatpush2.bf16.msra.mxu0 0
      %290 = vmatprep.subr.bf16.mxu0 0
      %291 = vmatpush2.bf16.msra.mxu0 0
      %292 = vmatprep.mubr.bf16.mxu0 0
      %293 = vmatmul.mubr.bf16.gmra.mxu0 %v258
      %v294 = vpop.f32.mrf.mxu0
      %v295 = vadd.f32 0.0, %v294
      %v296 = vpop.f32.mrf.mxu0
      %v297 = vpop.f32.mrf.mxu0
      %v298 = vpop.f32.mrf.mxu0
      %299 = vdwg.mxu0
      %v300 = vadd.f32 %v206, %v295
      %301 = vst [vmem:[#allocation2] sm:$0xff] %v300
      %p302 = scmp.eq.s32.totalorder %s15, 5
      // Predicated region
      $region41: #{cae_forward.15} parent=35 // pred_check
        %p303 = pneg %p302
      $region42: #{cae_forward.15} parent=35 // pred_check_branch
        %305 = sbr.rel (%p303) target = $region44
      $region43: #{cae_forward.15} parent=35 // pred_region
        %v306 = vld [vmem:[#allocation2] sm:$0xff]
        %307 = vadd.xlane.f32.xlu0 %v306
        %v308 = vpop.xlane.xlu0 %307
        %v309 = vrcp.pop 128.0
        %v310 = vmul.f32 %v308, %v309
        %v311 = vsub.f32 %v306, %v310
        %v312 = vmul.f32 %v311, %v311
        %313 = vadd.xlane.f32.xlu0 %v312
        %v314 = vpop.xlane.xlu0 %313
        %v315 = vmul.f32 %v314, %v309
        %v316 = vadd.f32 %v315, 1e-05
        %v317 = vrsqrt.pop %v316
        %v318 = vmul.f32 %v311, %v317
        %v319 = vld [vmem:[%s2] sm:$0xff]
        %321 = vset.pattern.permute.xlu0 0
        %322 = vperm.xlu0 %321, %v319
        %v323 = vpop.permute.xlu0 %322
        %v325 = vmul.f32 %v318, %v323
        %v326 = vld [vmem:[%s3] sm:$0xff]
        %328 = vset.pattern.permute.xlu0 0
        %329 = vperm.xlu0 %328, %v326
        %v330 = vpop.permute.xlu0 %329
        %v332 = vadd.f32 %v325, %v330
        %v333 = vmax.f32 %v332, 0.0
        %334 = vst [vmem:[%s4] sm:$0xff] %v333
      $region44: #{cae_forward.15} parent=35 // pred_fallthru
        _
      // Predicated region
      $region45: #{cae_forward.15} parent=35 // pred_check
        %p335 = pneg %p122
      $region46: #{cae_forward.15} parent=35 // pred_check_branch
        %337 = sbr.rel (%p335) target = $region48
      $region47: #{cae_forward.15} parent=35 // pred_region
        _
      $region48: #{cae_forward.15} parent=35 // pred_fallthru
        _
      // Predicated region
      $region49: #{cae_forward.15} parent=35 // pred_check
        %p338 = pneg %p122
      $region50: #{cae_forward.15} parent=35 // pred_check_branch
        %340 = sbr.rel (%p338) target = $region52
      $region51: #{cae_forward.15} parent=35 // pred_region
        _
      $region52: #{cae_forward.15} parent=35 // pred_fallthru
        _
    $region36: #{cae_forward.15} parent=5 // pred_fallthru
      _
    %p341 = scmp.le.s32.totalorder 2, %s10
    // Predicated region
    $region53: #{cae_forward.15} parent=5 // pred_check
      %p342 = pneg %p341
    $region54: #{cae_forward.15} parent=5 // pred_check_branch
      %344 = sbr.rel (%p342) target = $region56
    $region55: #{cae_forward.15} parent=5 // pred_region
      %s345 = ssub.s32 %s10, 2
    $region56: #{cae_forward.15} parent=5 // pred_fallthru
      _
  $region6: #{cae_forward.15} parent=0 // loop_footer
    %s14 = sadd.s32 1, %s10
  $region7: #{cae_forward.15} parent=0 // loop_footer_branch
    %9 = sbr.rel target = $region3
  $region8: #{cae_forward.15} parent=0 // loop_exit
    _

// kernel: cae_forward.16
$region0: #{cae_forward.16}
  #allocation0 [shape = 'u32[]', space=smem, size = 0x4, offset = 0x4, fixed_abs, tag = 'smem constant byte address 0x4 - core index']
  #allocation1 [shape = 'u32[144,128]{1,0:T(1,128)}', space=vmem, size = 0x12000, scoped, tag = 'internal scratch']
  #allocation2 [shape = 'f32[8,512]{1,0:T(8,128)}', space=vmem, size = 0x4000, scoped, tag = 'scratch operand']
  %s0 = inlined_call_operand.vmem [shape: bf16[6,48,512], index: 0, kind: input, shape index: {}]
  %s1 = inlined_call_operand.vmem [shape: bf16[6,8,48], index: 1, kind: input, shape index: {}]
  %s2 = inlined_call_operand.vmem [shape: f32[8,1], index: 2, kind: input, shape index: {}]
  %s3 = inlined_call_operand.vmem [shape: f32[8,1], index: 3, kind: input, shape index: {}]
  %s4 = inlined_call_operand.vmem [shape: f32[8,512], index: 4, kind: output, shape index: {}]
  %s5 = sld [smem:[#allocation0]]
  $region57: #{cae_forward.16} parent=0
    _
  %s7 = ssub.s32 1, %s5
  %s8 = scalar_select 0, %s7, %s5
  loop: start=0, step=1, limit=8
  $region2: #{cae_forward.16} parent=0 // loop_pre_header
    _
  $region3: #{cae_forward.16} parent=0 // loop_header
    %s10 = sphi 0, %s14
    %p11 = scmp.ge.s32.totalorder %s10, 8
    %s20 = sphi 0, %s22
    %s23 = sphi 0, %s20
    %s24 = sphi 0, %s23
    %s40 = sphi 0, %s24
    %s46 = sphi 0, %s48
    %s49 = sphi 0, %s46
    %s50 = sphi 0, %s49
    %s66 = sphi 0, %s50
    %s70 = sphi 0, %s70
    %s72 = sphi 0, %s70
    %s73 = sphi 0, %s72
    %s87 = sphi 0, %s73
    %s91 = sphi 0, %s91
    %s93 = sphi 0, %s91
    %s94 = sphi 0, %s93
    %s108 = sphi 0, %s94
    %s112 = sphi 0, %s112
    %s114 = sphi 0, %s112
    %s115 = sphi 0, %s114
    %s129 = sphi 0, %s115
  $region4: #{cae_forward.16} parent=0 // loop_header_branch
    %13 = sbr.rel (%p11) target = $region8
  $region5: #{cae_forward.16} parent=0 // loop_body
    %s15 = ssub.s32 %s10, 1
    %s16 = ssub.s32 %s10, 2
    %s17 = sadd.s32 %s10, 1
    %s18 = ssub.s32 %s10, %s17
    %p19 = scmp.eq.s32.totalorder %s18, 0
    %s21 = sadd.s32 %s20, 1
    %s22 = scalar_select %p19, %s20, %s21
    %p25 = pneg %p19
    %p26 = scmp.eq.s32.totalorder %s10, 5
    %p27 = por %p25, %p26
    %p28 = scmp.ne.s32.totalorder %s20, %s23
    %p29 = scmp.eq.s32.totalorder %s10, 0
    %p30 = por %p28, %p29
    %p31 = scmp.ne.s32.totalorder %s20, %s23
    %p32 = scmp.eq.s32.totalorder %s15, 5
    %p33 = por %p31, %p32
    %p34 = scmp.ne.s32.totalorder %s23, %s24
    %p35 = scmp.eq.s32.totalorder %s15, 0
    %p36 = por %p34, %p35
    %p37 = scmp.ne.s32.totalorder %s23, %s24
    %p38 = scmp.eq.s32.totalorder %s16, 5
    %p39 = por %p37, %p38
    %p41 = scmp.ne.s32.totalorder %s24, %s40
    %p42 = scmp.eq.s32.totalorder %s16, 0
    %p43 = por %p41, %p42
    %s44 = ssub.s32 %s10, %s17
    %p45 = scmp.eq.s32.totalorder %s44, 0
    %s47 = sadd.s32 %s46, 1
    %s48 = scalar_select %p45, %s46, %s47
    %p51 = pneg %p45
    %p52 = scmp.eq.s32.totalorder %s10, 5
    %p53 = por %p51, %p52
    %p54 = scmp.ne.s32.totalorder %s46, %s49
    %p55 = scmp.eq.s32.totalorder %s10, 0
    %p56 = por %p54, %p55
    %p57 = scmp.ne.s32.totalorder %s46, %s49
    %p58 = scmp.eq.s32.totalorder %s15, 5
    %p59 = por %p57, %p58
    %p60 = scmp.ne.s32.totalorder %s49, %s50
    %p61 = scmp.eq.s32.totalorder %s15, 0
    %p62 = por %p60, %p61
    %p63 = scmp.ne.s32.totalorder %s49, %s50
    %p64 = scmp.eq.s32.totalorder %s16, 5
    %p65 = por %p63, %p64
    %p67 = scmp.ne.s32.totalorder %s50, %s66
    %p68 = scmp.eq.s32.totalorder %s16, 0
    %p69 = por %p67, %p68
    %s71 = sadd.s32 %s70, 1
    %p74 = scmp.eq.s32.totalorder %s10, 5
    %p75 = scmp.ne.s32.totalorder %s70, %s72
    %p76 = scmp.eq.s32.totalorder %s10, 0
    %p77 = por %p75, %p76
    %p78 = scmp.ne.s32.totalorder %s70, %s72
    %p79 = scmp.eq.s32.totalorder %s15, 5
    %p80 = por %p78, %p79
    %p81 = scmp.ne.s32.totalorder %s72, %s73
    %p82 = scmp.eq.s32.totalorder %s15, 0
    %p83 = por %p81, %p82
    %p84 = scmp.ne.s32.totalorder %s72, %s73
    %p85 = scmp.eq.s32.totalorder %s16, 5
    %p86 = por %p84, %p85
    %p88 = scmp.ne.s32.totalorder %s73, %s87
    %p89 = scmp.eq.s32.totalorder %s16, 0
    %p90 = por %p88, %p89
    %s92 = sadd.s32 %s91, 1
    %p95 = scmp.eq.s32.totalorder %s10, 5
    %p96 = scmp.ne.s32.totalorder %s91, %s93
    %p97 = scmp.eq.s32.totalorder %s10, 0
    %p98 = por %p96, %p97
    %p99 = scmp.ne.s32.totalorder %s91, %s93
    %p100 = scmp.eq.s32.totalorder %s15, 5
    %p101 = por %p99, %p100
    %p102 = scmp.ne.s32.totalorder %s93, %s94
    %p103 = scmp.eq.s32.totalorder %s15, 0
    %p104 = por %p102, %p103
    %p105 = scmp.ne.s32.totalorder %s93, %s94
    %p106 = scmp.eq.s32.totalorder %s16, 5
    %p107 = por %p105, %p106
    %p109 = scmp.ne.s32.totalorder %s94, %s108
    %p110 = scmp.eq.s32.totalorder %s16, 0
    %p111 = por %p109, %p110
    %s113 = sadd.s32 %s112, 1
    %p116 = scmp.eq.s32.totalorder %s10, 5
    %p117 = scmp.ne.s32.totalorder %s112, %s114
    %p118 = scmp.eq.s32.totalorder %s10, 0
    %p119 = por %p117, %p118
    %p120 = scmp.ne.s32.totalorder %s112, %s114
    %p121 = scmp.eq.s32.totalorder %s15, 5
    %p122 = por %p120, %p121
    %p123 = scmp.ne.s32.totalorder %s114, %s115
    %p124 = scmp.eq.s32.totalorder %s15, 0
    %p125 = por %p123, %p124
    %p126 = scmp.ne.s32.totalorder %s114, %s115
    %p127 = scmp.eq.s32.totalorder %s16, 5
    %p128 = por %p126, %p127
    %p130 = scmp.ne.s32.totalorder %s115, %s129
    %p131 = scmp.eq.s32.totalorder %s16, 0
    %p132 = por %p130, %p131
    %p133 = scmp.le.s32.totalorder 1, %s10
    %p134 = scmp.lt.s32.totalorder %s10, 7
    %p135 = pnand %p133, %p134
    %p136 = pneg %p135
    // Predicated region
    $region9: #{cae_forward.16} parent=5 // pred_check
      _
    $region10: #{cae_forward.16} parent=5 // pred_check_branch
      %138 = sbr.rel (%p135) target = $region12
    $region11: #{cae_forward.16} parent=5 // pred_region
      %s139 = ssub.s32 %s10, 1
      // Predicated region
      $region13: #{cae_forward.16} parent=11 // pred_check
        %p140 = pneg %p83
      $region14: #{cae_forward.16} parent=11 // pred_check_branch
        %142 = sbr.rel (%p140) target = $region16
      $region15: #{cae_forward.16} parent=11 // pred_region
        _
      $region16: #{cae_forward.16} parent=11 // pred_fallthru
        _
      // Predicated region
      $region17: #{cae_forward.16} parent=11 // pred_check
        %p143 = pneg %p104
      $region18: #{cae_forward.16} parent=11 // pred_check_branch
        %145 = sbr.rel (%p143) target = $region20
      $region19: #{cae_forward.16} parent=11 // pred_region
        _
      $region20: #{cae_forward.16} parent=11 // pred_fallthru
        _
    $region12: #{cae_forward.16} parent=5 // pred_fallthru
      _
    %p146 = scmp.lt.s32.totalorder %s10, 6
    // Predicated region
    $region21: #{cae_forward.16} parent=5 // pred_check
      %p147 = pneg %p146
    $region22: #{cae_forward.16} parent=5 // pred_check_branch
      %149 = sbr.rel (%p147) target = $region24
    $region23: #{cae_forward.16} parent=5 // pred_region
      // Predicated region
      $region25: #{cae_forward.16} parent=23 // pred_check
        %p150 = pneg %p30
      $region26: #{cae_forward.16} parent=23 // pred_check_branch
        %152 = sbr.rel (%p150) target = $region28
      $region27: #{cae_forward.16} parent=23 // pred_region
        %p153 = scmp.lt.s32.totalorder %s10, 5
        %s154 = scalar_select %p153, %s10, 5
        %s155 = smul.addr %s154, 24
        %s156 = smul.addr %s155, 4
        %s157 = scalar_lea.vmem %s0, %s156
      $region28: #{cae_forward.16} parent=23 // pred_fallthru
        _
      // Predicated region
      $region29: #{cae_forward.16} parent=23 // pred_check
        %p158 = pneg %p56
      $region30: #{cae_forward.16} parent=23 // pred_check_branch
        %160 = sbr.rel (%p158) target = $region32
      $region31: #{cae_forward.16} parent=23 // pred_region
        %p161 = scmp.lt.s32.totalorder %s10, 5
        %s162 = scalar_select %p161, %s10, 5
        %s163 = smul.addr %s162, 4
        %s164 = scalar_lea.vmem %s1, %s163
      $region32: #{cae_forward.16} parent=23 // pred_fallthru
        _
    $region24: #{cae_forward.16} parent=5 // pred_fallthru
      _
    %p165 = scmp.le.s32.totalorder 1, %s10
    %p166 = scmp.lt.s32.totalorder %s10, 7
    %p167 = pnand %p165, %p166
    %p168 = pneg %p167
    // Predicated region
    $region33: #{cae_forward.16} parent=5 // pred_check
      _
    $region34: #{cae_forward.16} parent=5 // pred_check_branch
      %170 = sbr.rel (%p167) target = $region36
    $region35: #{cae_forward.16} parent=5 // pred_region
      %s171 = ssub.s32 %s10, 1
      %p172 = scmp.lt.s32.totalorder %s15, 5
      %s173 = scalar_select %p172, %s15, 5
      %s174 = smul.addr %s173, 24
      %s175 = smul.addr %s174, 4
      %s176 = scalar_lea.vmem %s0, %s175
      %p177 = pneg %p36
      %p178 = pneg %p33
      %p179 = scmp.lt.s32.totalorder %s15, 5
      %s180 = scalar_select %p179, %s15, 5
      %s181 = smul.addr %s180, 4
      %s182 = scalar_lea.vmem %s1, %s181
      %p183 = pneg %p62
      %p184 = pneg %p59
      %p185 = pneg %p83
      %p186 = pneg %p80
      %p187 = pneg %p104
      %p188 = pneg %p101
      %p189 = pneg %p125
      %p190 = pneg %p122
      %p191 = scmp.lt.s32.totalorder %s15, 5
      %s192 = scalar_select %p191, %s15, 5
      %s193 = smul.addr %s192, 24
      %s194 = smul.addr %s193, 4
      %s195 = scalar_lea.vmem %s0, %s194
      %p196 = scmp.lt.s32.totalorder %s15, 5
      %s197 = scalar_select %p196, %s15, 5
      %s198 = smul.addr %s197, 4
      %s199 = scalar_lea.vmem %s1, %s198
      %p201 = scmp.eq.s32.totalorder %s15, 0
      // Predicated region
      $region37: #{cae_forward.16} parent=35 // pred_check
        %p202 = pneg %p201
      $region38: #{cae_forward.16} parent=35 // pred_check_branch
        %204 = sbr.rel (%p202) target = $region40
      $region39: #{cae_forward.16} parent=35 // pred_region
        %205 = vst [vmem:[#allocation2] sm:$0xff] 0.0
        %206 = vst [vmem:[#allocation2 + $0x8] sm:$0xff] 0.0
        %207 = vst [vmem:[#allocation2 + $0x10] sm:$0xff] 0.0
        %208 = vst [vmem:[#allocation2 + $0x18] sm:$0xff] 0.0
      $region40: #{cae_forward.16} parent=35 // pred_fallthru
        _
      %v209 = vld [vmem:[#allocation2] sm:$0xff]
      %v210 = vld [vmem:[#allocation2 + $0x8] sm:$0xff]
      %v211 = vld [vmem:[#allocation2 + $0x10] sm:$0xff]
      %v212 = vld [vmem:[#allocation2 + $0x18] sm:$0xff]
      %v213 = vld [vmem:[%s199] sm:$0xf]
      %v214 = vld [vmem:[%s195] sm:$0xff]
      %v215 = vld [vmem:[%s195 + $0x8] sm:$0xff]
      %v216 = vld [vmem:[%s195 + $0x10] sm:$0xff]
      %v217 = vld [vmem:[%s195 + $0x18] sm:$0xff]
      %v218 = vld [vmem:[%s195 + $0x20] sm:$0xff]
      %v219 = vld [vmem:[%s195 + $0x28] sm:$0xff]
      %v220 = vld [vmem:[%s195 + $0x30] sm:$0xff]
      %v221 = vld [vmem:[%s195 + $0x38] sm:$0xff]
      %v222 = vld [vmem:[%s195 + $0x40] sm:$0xff]
      %v223 = vld [vmem:[%s195 + $0x48] sm:$0xff]
      %v224 = vld [vmem:[%s195 + $0x50] sm:$0xff]
      %v225 = vld [vmem:[%s195 + $0x58] sm:$0xff]
      %v238 = vunpack.c.l.b16 %v214
      %v239 = vunpack.c.h.b16 %v214
      %v240 = vunpack.c.l.b16 %v215
      %v241 = vunpack.c.h.b16 %v215
      %v242 = vunpack.c.l.b16 %v216
      %v243 = vunpack.c.h.b16 %v216
      %v244 = vunpack.c.l.b16 %v217
      %v245 = vunpack.c.h.b16 %v217
      %v246 = vunpack.c.l.b16 %v218
      %v247 = vunpack.c.h.b16 %v218
      %v248 = vunpack.c.l.b16 %v219
      %v249 = vunpack.c.h.b16 %v219
      %v250 = vunpack.c.l.b16 %v220
      %v251 = vunpack.c.h.b16 %v220
      %v252 = vunpack.c.l.b16 %v221
      %v253 = vunpack.c.h.b16 %v221
      %v254 = vunpack.c.l.b16 %v222
      %v255 = vunpack.c.h.b16 %v222
      %v256 = vunpack.c.l.b16 %v223
      %v257 = vunpack.c.h.b16 %v223
      %v258 = vunpack.c.l.b16 %v224
      %v259 = vunpack.c.h.b16 %v224
      %v260 = vunpack.c.l.b16 %v225
      %v261 = vunpack.c.h.b16 %v225
      %v262 = vpack.c.b16 %v242, %v238
      %v263 = vpack.c.b16 %v243, %v239
      %v264 = vpack.c.b16 %v244, %v240
      %v265 = vpack.c.b16 %v245, %v241
      %v266 = vpack.c.b16 %v250, %v246
      %v267 = vpack.c.b16 %v251, %v247
      %v268 = vpack.c.b16 %v252, %v248
      %v269 = vpack.c.b16 %v253, %v249
      %v270 = vpack.c.b16 %v258, %v254
      %v271 = vpack.c.b16 %v259, %v255
      %v272 = vpack.c.b16 %v260, %v256
      %v273 = vpack.c.b16 %v261, %v257
      %vm286 = vcmask 392192
      %v288 = vsel %vm286, %v213, 0
      %290 = vmatprep.subr.bf16.mxu0 0
      %291 = vmatpush1.bf16.msra.mxu0 0
      %292 = vmatprep.subr.bf16.mxu0 0
      %293 = vmatpush1.bf16.msra.mxu0 0
      %294 = vmatprep.subr.bf16.mxu0 0
      %295 = vmatpush1.bf16.msra.mxu0 0
      %296 = vmatprep.subr.bf16.mxu0 0
      %297 = vmatpush1.bf16.msra.mxu0 0
      %298 = vmatprep.subr.bf16.mxu0 0
      %299 = vmatpush1.bf16.msra.mxu0 0
      %300 = vmatprep.subr.bf16.mxu0 %v271
      %301 = vmatpush1.bf16.msra.mxu0 %v270
      %302 = vmatprep.subr.bf16.mxu0 %v267
      %303 = vmatpush1.bf16.msra.mxu0 %v266
      %304 = vmatprep.subr.bf16.mxu0 %v263
      %305 = vmatpush1.bf16.msra.mxu0 %v262
      %306 = vmatprep.subr.bf16.mxu0 0
      %307 = vmatpush2.bf16.msra.mxu0 0
      %308 = vmatprep.subr.bf16.mxu0 0
      %309 = vmatpush2.bf16.msra.mxu0 0
      %310 = vmatprep.subr.bf16.mxu0 0
      %311 = vmatpush2.bf16.msra.mxu0 0
      %312 = vmatprep.subr.bf16.mxu0 0
      %313 = vmatpush2.bf16.msra.mxu0 0
      %314 = vmatprep.subr.bf16.mxu0 0
      %315 = vmatpush2.bf16.msra.mxu0 0
      %316 = vmatprep.subr.bf16.mxu0 0
      %317 = vmatpush2.bf16.msra.mxu0 0
      %318 = vmatprep.subr.bf16.mxu0 0
      %319 = vmatpush2.bf16.msra.mxu0 0
      %320 = vmatprep.subr.bf16.mxu0 0
      %321 = vmatpush2.bf16.msra.mxu0 0
      %322 = vmatprep.mubr.bf16.mxu0 0
      %323 = vmatmul.mubr.bf16.gmra.mxu0 %v288
      %v324 = vpop.f32.mrf.mxu0
      %v325 = vadd.f32 0.0, %v324
      %v326 = vpop.f32.mrf.mxu0
      %v327 = vadd.f32 0.0, %v326
      %v328 = vpop.f32.mrf.mxu0
      %v329 = vpop.f32.mrf.mxu0
      %330 = vdwg.mxu0
      %331 = vmatprep.subr.bf16.mxu0 0
      %332 = vmatpush1.bf16.msra.mxu0 0
      %333 = vmatprep.subr.bf16.mxu0 0
      %334 = vmatpush1.bf16.msra.mxu0 0
      %335 = vmatprep.subr.bf16.mxu0 0
      %336 = vmatpush1.bf16.msra.mxu0 0
      %337 = vmatprep.subr.bf16.mxu0 0
      %338 = vmatpush1.bf16.msra.mxu0 0
      %339 = vmatprep.subr.bf16.mxu0 0
      %340 = vmatpush1.bf16.msra.mxu0 0
      %341 = vmatprep.subr.bf16.mxu0 %v273
      %342 = vmatpush1.bf16.msra.mxu0 %v272
      %343 = vmatprep.subr.bf16.mxu0 %v269
      %344 = vmatpush1.bf16.msra.mxu0 %v268
      %345 = vmatprep.subr.bf16.mxu0 %v265
      %346 = vmatpush1.bf16.msra.mxu0 %v264
      %347 = vmatprep.subr.bf16.mxu0 0
      %348 = vmatpush2.bf16.msra.mxu0 0
      %349 = vmatprep.subr.bf16.mxu0 0
      %350 = vmatpush2.bf16.msra.mxu0 0
      %351 = vmatprep.subr.bf16.mxu0 0
      %352 = vmatpush2.bf16.msra.mxu0 0
      %353 = vmatprep.subr.bf16.mxu0 0
      %354 = vmatpush2.bf16.msra.mxu0 0
      %355 = vmatprep.subr.bf16.mxu0 0
      %356 = vmatpush2.bf16.msra.mxu0 0
      %357 = vmatprep.subr.bf16.mxu0 0
      %358 = vmatpush2.bf16.msra.mxu0 0
      %359 = vmatprep.subr.bf16.mxu0 0
      %360 = vmatpush2.bf16.msra.mxu0 0
      %361 = vmatprep.subr.bf16.mxu0 0
      %362 = vmatpush2.bf16.msra.mxu0 0
      %363 = vmatprep.mubr.bf16.mxu0 0
      %364 = vmatmul.mubr.bf16.gmra.mxu0 %v288
      %v365 = vpop.f32.mrf.mxu0
      %v366 = vadd.f32 0.0, %v365
      %v367 = vpop.f32.mrf.mxu0
      %v368 = vadd.f32 0.0, %v367
      %v369 = vpop.f32.mrf.mxu0
      %v370 = vpop.f32.mrf.mxu0
      %371 = vdwg.mxu0
      %v372 = vadd.f32 %v209, %v325
      %v373 = vadd.f32 %v210, %v327
      %v374 = vadd.f32 %v211, %v366
      %v375 = vadd.f32 %v212, %v368
      %376 = vst [vmem:[#allocation2] sm:$0xff] %v372
      %377 = vst [vmem:[#allocation2 + $0x8] sm:$0xff] %v373
      %378 = vst [vmem:[#allocation2 + $0x10] sm:$0xff] %v374
      %379 = vst [vmem:[#allocation2 + $0x18] sm:$0xff] %v375
      %p380 = scmp.eq.s32.totalorder %s15, 5
      // Predicated region
      $region41: #{cae_forward.16} parent=35 // pred_check
        %p381 = pneg %p380
      $region42: #{cae_forward.16} parent=35 // pred_check_branch
        %383 = sbr.rel (%p381) target = $region44
      $region43: #{cae_forward.16} parent=35 // pred_region
        %v384 = vld [vmem:[#allocation2] sm:$0xff]
        %v385 = vld [vmem:[#allocation2 + $0x8] sm:$0xff]
        %v386 = vld [vmem:[#allocation2 + $0x10] sm:$0xff]
        %v387 = vld [vmem:[#allocation2 + $0x18] sm:$0xff]
        %v388 = vadd.f32 %v384, %v385
        %v389 = vadd.f32 %v388, %v386
        %v390 = vadd.f32 %v389, %v387
        %391 = vadd.xlane.f32.xlu0 %v390
        %v392 = vpop.xlane.xlu0 %391
        %v393 = vrcp.pop 512.0
        %v394 = vmul.f32 %v392, %v393
        %v395 = vsub.f32 %v384, %v394
        %v396 = vsub.f32 %v385, %v394
        %v397 = vsub.f32 %v386, %v394
        %v398 = vsub.f32 %v387, %v394
        %v399 = vmul.f32 %v395, %v395
        %v400 = vmul.f32 %v396, %v396
        %v401 = vmul.f32 %v397, %v397
        %v402 = vmul.f32 %v398, %v398
        %v403 = vadd.f32 %v399, %v400
        %v404 = vadd.f32 %v403, %v401
        %v405 = vadd.f32 %v404, %v402
        %406 = vadd.xlane.f32.xlu0 %v405
        %v407 = vpop.xlane.xlu0 %406
        %v408 = vmul.f32 %v407, %v393
        %v409 = vadd.f32 %v408, 1e-05
        %v410 = vrsqrt.pop %v409
        %v411 = vmul.f32 %v395, %v410
        %v412 = vmul.f32 %v396, %v410
        %v413 = vmul.f32 %v397, %v410
        %v414 = vmul.f32 %v398, %v410
        %v415 = vld [vmem:[%s2] sm:$0xff]
        %417 = vset.pattern.permute.xlu0 0
        %418 = vperm.xlu0 %417, %v415
        %v419 = vpop.permute.xlu0 %418
        %v421 = vmul.f32 %v411, %v419
        %v422 = vmul.f32 %v412, %v419
        %v423 = vmul.f32 %v413, %v419
        %v424 = vmul.f32 %v414, %v419
        %v425 = vld [vmem:[%s3] sm:$0xff]
        %427 = vset.pattern.permute.xlu0 0
        %428 = vperm.xlu0 %427, %v425
        %v429 = vpop.permute.xlu0 %428
        %v431 = vadd.f32 %v421, %v429
        %v432 = vadd.f32 %v422, %v429
        %v433 = vadd.f32 %v423, %v429
        %v434 = vadd.f32 %v424, %v429
        %v435 = vmax.f32 %v431, 0.0
        %v436 = vmax.f32 %v432, 0.0
        %v437 = vmax.f32 %v433, 0.0
        %v438 = vmax.f32 %v434, 0.0
        %439 = vst [vmem:[%s4] sm:$0xff] %v435
        %440 = vst [vmem:[%s4 + $0x8] sm:$0xff] %v436
        %441 = vst [vmem:[%s4 + $0x10] sm:$0xff] %v437
        %442 = vst [vmem:[%s4 + $0x18] sm:$0xff] %v438
      $region44: #{cae_forward.16} parent=35 // pred_fallthru
        _
      // Predicated region
      $region45: #{cae_forward.16} parent=35 // pred_check
        %p443 = pneg %p122
      $region46: #{cae_forward.16} parent=35 // pred_check_branch
        %445 = sbr.rel (%p443) target = $region48
      $region47: #{cae_forward.16} parent=35 // pred_region
        _
      $region48: #{cae_forward.16} parent=35 // pred_fallthru
        _
      // Predicated region
      $region49: #{cae_forward.16} parent=35 // pred_check
        %p446 = pneg %p122
      $region50: #{cae_forward.16} parent=35 // pred_check_branch
        %448 = sbr.rel (%p446) target = $region52
      $region51: #{cae_forward.16} parent=35 // pred_region
        _
      $region52: #{cae_forward.16} parent=35 // pred_fallthru
        _
    $region36: #{cae_forward.16} parent=5 // pred_fallthru
      _
    %p449 = scmp.le.s32.totalorder 2, %s10
    // Predicated region
    $region53: #{cae_forward.16} parent=5 // pred_check
      %p450 = pneg %p449
    $region54: #{cae_forward.16} parent=5 // pred_check_branch
      %452 = sbr.rel (%p450) target = $region56
    $region55: #{cae_forward.16} parent=5 // pred_region
      %s453 = ssub.s32 %s10, 2
    $region56: #{cae_forward.16} parent=5 // pred_fallthru
      _
  $region6: #{cae_forward.16} parent=0 // loop_footer
    %s14 = sadd.s32 1, %s10
  $region7: #{cae_forward.16} parent=0 // loop_footer_branch
    %9 = sbr.rel target = $region3
  $region8: #{cae_forward.16} parent=0 // loop_exit
    _

// kernel: cae_forward.17
$region0: #{cae_forward.17}
  #allocation0 [shape = 'u32[]', space=smem, size = 0x4, offset = 0x4, fixed_abs, tag = 'smem constant byte address 0x4 - core index']
  #allocation1 [shape = 'u32[144,128]{1,0:T(1,128)}', space=vmem, size = 0x12000, scoped, tag = 'internal scratch']
  #allocation2 [shape = 'f32[6,4608]{1,0:T(8,128)}', space=vmem, size = 0x24000, scoped, tag = 'scratch operand']
  %s0 = inlined_call_operand.vmem [shape: bf16[7,56,4608], index: 0, kind: input, shape index: {}]
  %s1 = inlined_call_operand.vmem [shape: bf16[7,6,56], index: 1, kind: input, shape index: {}]
  %s2 = inlined_call_operand.vmem [shape: f32[6,1], index: 2, kind: input, shape index: {}]
  %s3 = inlined_call_operand.vmem [shape: f32[6,1], index: 3, kind: input, shape index: {}]
  %s4 = inlined_call_operand.vmem [shape: f32[6,4608], index: 4, kind: output, shape index: {}]
  %s5 = sld [smem:[#allocation0]]
  $region57: #{cae_forward.17} parent=0
    _
  %s7 = ssub.s32 1, %s5
  %s8 = scalar_select 0, %s7, %s5
  loop: start=0, step=1, limit=9
  $region2: #{cae_forward.17} parent=0 // loop_pre_header
    _
  $region3: #{cae_forward.17} parent=0 // loop_header
    %s10 = sphi 0, %s14
    %p11 = scmp.ge.s32.totalorder %s10, 9
    %s20 = sphi 0, %s22
    %s23 = sphi 0, %s20
    %s24 = sphi 0, %s23
    %s40 = sphi 0, %s24
    %s46 = sphi 0, %s48
    %s49 = sphi 0, %s46
    %s50 = sphi 0, %s49
    %s66 = sphi 0, %s50
    %s70 = sphi 0, %s70
    %s72 = sphi 0, %s70
    %s73 = sphi 0, %s72
    %s87 = sphi 0, %s73
    %s91 = sphi 0, %s91
    %s93 = sphi 0, %s91
    %s94 = sphi 0, %s93
    %s108 = sphi 0, %s94
    %s112 = sphi 0, %s112
    %s114 = sphi 0, %s112
    %s115 = sphi 0, %s114
    %s129 = sphi 0, %s115
  $region4: #{cae_forward.17} parent=0 // loop_header_branch
    %13 = sbr.rel (%p11) target = $region8
  $region5: #{cae_forward.17} parent=0 // loop_body
    %s15 = ssub.s32 %s10, 1
    %s16 = ssub.s32 %s10, 2
    %s17 = sadd.s32 %s10, 1
    %s18 = ssub.s32 %s10, %s17
    %p19 = scmp.eq.s32.totalorder %s18, 0
    %s21 = sadd.s32 %s20, 1
    %s22 = scalar_select %p19, %s20, %s21
    %p25 = pneg %p19
    %p26 = scmp.eq.s32.totalorder %s10, 6
    %p27 = por %p25, %p26
    %p28 = scmp.ne.s32.totalorder %s20, %s23
    %p29 = scmp.eq.s32.totalorder %s10, 0
    %p30 = por %p28, %p29
    %p31 = scmp.ne.s32.totalorder %s20, %s23
    %p32 = scmp.eq.s32.totalorder %s15, 6
    %p33 = por %p31, %p32
    %p34 = scmp.ne.s32.totalorder %s23, %s24
    %p35 = scmp.eq.s32.totalorder %s15, 0
    %p36 = por %p34, %p35
    %p37 = scmp.ne.s32.totalorder %s23, %s24
    %p38 = scmp.eq.s32.totalorder %s16, 6
    %p39 = por %p37, %p38
    %p41 = scmp.ne.s32.totalorder %s24, %s40
    %p42 = scmp.eq.s32.totalorder %s16, 0
    %p43 = por %p41, %p42
    %s44 = ssub.s32 %s10, %s17
    %p45 = scmp.eq.s32.totalorder %s44, 0
    %s47 = sadd.s32 %s46, 1
    %s48 = scalar_select %p45, %s46, %s47
    %p51 = pneg %p45
    %p52 = scmp.eq.s32.totalorder %s10, 6
    %p53 = por %p51, %p52
    %p54 = scmp.ne.s32.totalorder %s46, %s49
    %p55 = scmp.eq.s32.totalorder %s10, 0
    %p56 = por %p54, %p55
    %p57 = scmp.ne.s32.totalorder %s46, %s49
    %p58 = scmp.eq.s32.totalorder %s15, 6
    %p59 = por %p57, %p58
    %p60 = scmp.ne.s32.totalorder %s49, %s50
    %p61 = scmp.eq.s32.totalorder %s15, 0
    %p62 = por %p60, %p61
    %p63 = scmp.ne.s32.totalorder %s49, %s50
    %p64 = scmp.eq.s32.totalorder %s16, 6
    %p65 = por %p63, %p64
    %p67 = scmp.ne.s32.totalorder %s50, %s66
    %p68 = scmp.eq.s32.totalorder %s16, 0
    %p69 = por %p67, %p68
    %s71 = sadd.s32 %s70, 1
    %p74 = scmp.eq.s32.totalorder %s10, 6
    %p75 = scmp.ne.s32.totalorder %s70, %s72
    %p76 = scmp.eq.s32.totalorder %s10, 0
    %p77 = por %p75, %p76
    %p78 = scmp.ne.s32.totalorder %s70, %s72
    %p79 = scmp.eq.s32.totalorder %s15, 6
    %p80 = por %p78, %p79
    %p81 = scmp.ne.s32.totalorder %s72, %s73
    %p82 = scmp.eq.s32.totalorder %s15, 0
    %p83 = por %p81, %p82
    %p84 = scmp.ne.s32.totalorder %s72, %s73
    %p85 = scmp.eq.s32.totalorder %s16, 6
    %p86 = por %p84, %p85
    %p88 = scmp.ne.s32.totalorder %s73, %s87
    %p89 = scmp.eq.s32.totalorder %s16, 0
    %p90 = por %p88, %p89
    %s92 = sadd.s32 %s91, 1
    %p95 = scmp.eq.s32.totalorder %s10, 6
    %p96 = scmp.ne.s32.totalorder %s91, %s93
    %p97 = scmp.eq.s32.totalorder %s10, 0
    %p98 = por %p96, %p97
    %p99 = scmp.ne.s32.totalorder %s91, %s93
    %p100 = scmp.eq.s32.totalorder %s15, 6
    %p101 = por %p99, %p100
    %p102 = scmp.ne.s32.totalorder %s93, %s94
    %p103 = scmp.eq.s32.totalorder %s15, 0
    %p104 = por %p102, %p103
    %p105 = scmp.ne.s32.totalorder %s93, %s94
    %p106 = scmp.eq.s32.totalorder %s16, 6
    %p107 = por %p105, %p106
    %p109 = scmp.ne.s32.totalorder %s94, %s108
    %p110 = scmp.eq.s32.totalorder %s16, 0
    %p111 = por %p109, %p110
    %s113 = sadd.s32 %s112, 1
    %p116 = scmp.eq.s32.totalorder %s10, 6
    %p117 = scmp.ne.s32.totalorder %s112, %s114
    %p118 = scmp.eq.s32.totalorder %s10, 0
    %p119 = por %p117, %p118
    %p120 = scmp.ne.s32.totalorder %s112, %s114
    %p121 = scmp.eq.s32.totalorder %s15, 6
    %p122 = por %p120, %p121
    %p123 = scmp.ne.s32.totalorder %s114, %s115
    %p124 = scmp.eq.s32.totalorder %s15, 0
    %p125 = por %p123, %p124
    %p126 = scmp.ne.s32.totalorder %s114, %s115
    %p127 = scmp.eq.s32.totalorder %s16, 6
    %p128 = por %p126, %p127
    %p130 = scmp.ne.s32.totalorder %s115, %s129
    %p131 = scmp.eq.s32.totalorder %s16, 0
    %p132 = por %p130, %p131
    %p133 = scmp.le.s32.totalorder 1, %s10
    %p134 = scmp.lt.s32.totalorder %s10, 8
    %p135 = pnand %p133, %p134
    %p136 = pneg %p135
    // Predicated region
    $region9: #{cae_forward.17} parent=5 // pred_check
      _
    $region10: #{cae_forward.17} parent=5 // pred_check_branch
      %138 = sbr.rel (%p135) target = $region12
    $region11: #{cae_forward.17} parent=5 // pred_region
      %s139 = ssub.s32 %s10, 1
      // Predicated region
      $region13: #{cae_forward.17} parent=11 // pred_check
        %p140 = pneg %p83
      $region14: #{cae_forward.17} parent=11 // pred_check_branch
        %142 = sbr.rel (%p140) target = $region16
      $region15: #{cae_forward.17} parent=11 // pred_region
        _
      $region16: #{cae_forward.17} parent=11 // pred_fallthru
        _
      // Predicated region
      $region17: #{cae_forward.17} parent=11 // pred_check
        %p143 = pneg %p104
      $region18: #{cae_forward.17} parent=11 // pred_check_branch
        %145 = sbr.rel (%p143) target = $region20
      $region19: #{cae_forward.17} parent=11 // pred_region
        _
      $region20: #{cae_forward.17} parent=11 // pred_fallthru
        _
    $region12: #{cae_forward.17} parent=5 // pred_fallthru
      _
    %p146 = scmp.lt.s32.totalorder %s10, 7
    // Predicated region
    $region21: #{cae_forward.17} parent=5 // pred_check
      %p147 = pneg %p146
    $region22: #{cae_forward.17} parent=5 // pred_check_branch
      %149 = sbr.rel (%p147) target = $region24
    $region23: #{cae_forward.17} parent=5 // pred_region
      // Predicated region
      $region25: #{cae_forward.17} parent=23 // pred_check
        %p150 = pneg %p30
      $region26: #{cae_forward.17} parent=23 // pred_check_branch
        %152 = sbr.rel (%p150) target = $region28
      $region27: #{cae_forward.17} parent=23 // pred_region
        %p153 = scmp.lt.s32.totalorder %s10, 6
        %s154 = scalar_select %p153, %s10, 6
        %s155 = smul.addr %s154, 252
        %s156 = smul.addr %s155, 4
        %s157 = scalar_lea.vmem %s0, %s156
      $region28: #{cae_forward.17} parent=23 // pred_fallthru
        _
      // Predicated region
      $region29: #{cae_forward.17} parent=23 // pred_check
        %p158 = pneg %p56
      $region30: #{cae_forward.17} parent=23 // pred_check_branch
        %160 = sbr.rel (%p158) target = $region32
      $region31: #{cae_forward.17} parent=23 // pred_region
        %p161 = scmp.lt.s32.totalorder %s10, 6
        %s162 = scalar_select %p161, %s10, 6
        %s163 = smul.addr %s162, 4
        %s164 = scalar_lea.vmem %s1, %s163
      $region32: #{cae_forward.17} parent=23 // pred_fallthru
        _
    $region24: #{cae_forward.17} parent=5 // pred_fallthru
      _
    %p165 = scmp.le.s32.totalorder 1, %s10
    %p166 = scmp.lt.s32.totalorder %s10, 8
    %p167 = pnand %p165, %p166
    %p168 = pneg %p167
    // Predicated region
    $region33: #{cae_forward.17} parent=5 // pred_check
      _
    $region34: #{cae_forward.17} parent=5 // pred_check_branch
      %170 = sbr.rel (%p167) target = $region36
    $region35: #{cae_forward.17} parent=5 // pred_region
      %s171 = ssub.s32 %s10, 1
      %p172 = scmp.lt.s32.totalorder %s15, 6
      %s173 = scalar_select %p172, %s15, 6
      %s174 = smul.addr %s173, 252
      %s175 = smul.addr %s174, 4
      %s176 = scalar_lea.vmem %s0, %s175
      %p177 = pneg %p36
      %p178 = pneg %p33
      %p179 = scmp.lt.s32.totalorder %s15, 6
      %s180 = scalar_select %p179, %s15, 6
      %s181 = smul.addr %s180, 4
      %s182 = scalar_lea.vmem %s1, %s181
      %p183 = pneg %p62
      %p184 = pneg %p59
      %p185 = pneg %p83
      %p186 = pneg %p80
      %p187 = pneg %p104
      %p188 = pneg %p101
      %p189 = pneg %p125
      %p190 = pneg %p122
      %p191 = scmp.lt.s32.totalorder %s15, 6
      %s192 = scalar_select %p191, %s15, 6
      %s193 = smul.addr %s192, 252
      %s194 = smul.addr %s193, 4
      %s195 = scalar_lea.vmem %s0, %s194
      %p196 = scmp.lt.s32.totalorder %s15, 6
      %s197 = scalar_select %p196, %s15, 6
      %s198 = smul.addr %s197, 4
      %s199 = scalar_lea.vmem %s1, %s198
      %p201 = scmp.eq.s32.totalorder %s15, 0
      // Predicated region
      $region37: #{cae_forward.17} parent=35 // pred_check
        %p202 = pneg %p201
      $region38: #{cae_forward.17} parent=35 // pred_check_branch
        %204 = sbr.rel (%p202) target = $region40
      $region39: #{cae_forward.17} parent=35 // pred_region
        %205 = vst [vmem:[#allocation2] sm:$0x3f] 0.0
        %206 = vst [vmem:[#allocation2 + $0x8] sm:$0x3f] 0.0
        %207 = vst [vmem:[#allocation2 + $0x10] sm:$0x3f] 0.0
        %208 = vst [vmem:[#allocation2 + $0x18] sm:$0x3f] 0.0
        %209 = vst [vmem:[#allocation2 + $0x20] sm:$0x3f] 0.0
        %210 = vst [vmem:[#allocation2 + $0x28] sm:$0x3f] 0.0
        %211 = vst [vmem:[#allocation2 + $0x30] sm:$0x3f] 0.0
        %212 = vst [vmem:[#allocation2 + $0x38] sm:$0x3f] 0.0
        %213 = vst [vmem:[#allocation2 + $0x40] sm:$0x3f] 0.0
        %214 = vst [vmem:[#allocation2 + $0x48] sm:$0x3f] 0.0
        %215 = vst [vmem:[#allocation2 + $0x50] sm:$0x3f] 0.0
        %216 = vst [vmem:[#allocation2 + $0x58] sm:$0x3f] 0.0
        %217 = vst [vmem:[#allocation2 + $0x60] sm:$0x3f] 0.0
        %218 = vst [vmem:[#allocation2 + $0x68] sm:$0x3f] 0.0
        %219 = vst [vmem:[#allocation2 + $0x70] sm:$0x3f] 0.0
        %220 = vst [vmem:[#allocation2 + $0x78] sm:$0x3f] 0.0
        %221 = vst [vmem:[#allocation2 + $0x80] sm:$0x3f] 0.0
        %222 = vst [vmem:[#allocation2 + $0x88] sm:$0x3f] 0.0
        %223 = vst [vmem:[#allocation2 + $0x90] sm:$0x3f] 0.0
        %224 = vst [vmem:[#allocation2 + $0x98] sm:$0x3f] 0.0
        %225 = vst [vmem:[#allocation2 + $0xa0] sm:$0x3f] 0.0
        %226 = vst [vmem:[#allocation2 + $0xa8] sm:$0x3f] 0.0
        %227 = vst [vmem:[#allocation2 + $0xb0] sm:$0x3f] 0.0
        %228 = vst [vmem:[#allocation2 + $0xb8] sm:$0x3f] 0.0
        %229 = vst [vmem:[#allocation2 + $0xc0] sm:$0x3f] 0.0
        %230 = vst [vmem:[#allocation2 + $0xc8] sm:$0x3f] 0.0
        %231 = vst [vmem:[#allocation2 + $0xd0] sm:$0x3f] 0.0
        %232 = vst [vmem:[#allocation2 + $0xd8] sm:$0x3f] 0.0
        %233 = vst [vmem:[#allocation2 + $0xe0] sm:$0x3f] 0.0
        %234 = vst [vmem:[#allocation2 + $0xe8] sm:$0x3f] 0.0
        %235 = vst [vmem:[#allocation2 + $0xf0] sm:$0x3f] 0.0
        %236 = vst [vmem:[#allocation2 + $0xf8] sm:$0x3f] 0.0
        %237 = vst [vmem:[#allocation2 + $0x100] sm:$0x3f] 0.0
        %238 = vst [vmem:[#allocation2 + $0x108] sm:$0x3f] 0.0
        %239 = vst [vmem:[#allocation2 + $0x110] sm:$0x3f] 0.0
        %240 = vst [vmem:[#allocation2 + $0x118] sm:$0x3f] 0.0
      $region40: #{cae_forward.17} parent=35 // pred_fallthru
        _
      %v241 = vld [vmem:[#allocation2] sm:$0x3f]
      %v242 = vld [vmem:[#allocation2 + $0x8] sm:$0x3f]
      %v243 = vld [vmem:[#allocation2 + $0x10] sm:$0x3f]
      %v244 = vld [vmem:[#allocation2 + $0x18] sm:$0x3f]
      %v245 = vld [vmem:[#allocation2 + $0x20] sm:$0x3f]
      %v246 = vld [vmem:[#allocation2 + $0x28] sm:$0x3f]
      %v247 = vld [vmem:[#allocation2 + $0x30] sm:$0x3f]
      %v248 = vld [vmem:[#allocation2 + $0x38] sm:$0x3f]
      %v249 = vld [vmem:[#allocation2 + $0x40] sm:$0x3f]
      %v250 = vld [vmem:[#allocation2 + $0x48] sm:$0x3f]
      %v251 = vld [vmem:[#allocation2 + $0x50] sm:$0x3f]
      %v252 = vld [vmem:[#allocation2 + $0x58] sm:$0x3f]
      %v253 = vld [vmem:[#allocation2 + $0x60] sm:$0x3f]
      %v254 = vld [vmem:[#allocation2 + $0x68] sm:$0x3f]
      %v255 = vld [vmem:[#allocation2 + $0x70] sm:$0x3f]
      %v256 = vld [vmem:[#allocation2 + $0x78] sm:$0x3f]
      %v257 = vld [vmem:[#allocation2 + $0x80] sm:$0x3f]
      %v258 = vld [vmem:[#allocation2 + $0x88] sm:$0x3f]
      %v259 = vld [vmem:[#allocation2 + $0x90] sm:$0x3f]
      %v260 = vld [vmem:[#allocation2 + $0x98] sm:$0x3f]
      %v261 = vld [vmem:[#allocation2 + $0xa0] sm:$0x3f]
      %v262 = vld [vmem:[#allocation2 + $0xa8] sm:$0x3f]
      %v263 = vld [vmem:[#allocation2 + $0xb0] sm:$0x3f]
      %v264 = vld [vmem:[#allocation2 + $0xb8] sm:$0x3f]
      %v265 = vld [vmem:[#allocation2 + $0xc0] sm:$0x3f]
      %v266 = vld [vmem:[#allocation2 + $0xc8] sm:$0x3f]
      %v267 = vld [vmem:[#allocation2 + $0xd0] sm:$0x3f]
      %v268 = vld [vmem:[#allocation2 + $0xd8] sm:$0x3f]
      %v269 = vld [vmem:[#allocation2 + $0xe0] sm:$0x3f]
      %v270 = vld [vmem:[#allocation2 + $0xe8] sm:$0x3f]
      %v271 = vld [vmem:[#allocation2 + $0xf0] sm:$0x3f]
      %v272 = vld [vmem:[#allocation2 + $0xf8] sm:$0x3f]
      %v273 = vld [vmem:[#allocation2 + $0x100] sm:$0x3f]
      %v274 = vld [vmem:[#allocation2 + $0x108] sm:$0x3f]
      %v275 = vld [vmem:[#allocation2 + $0x110] sm:$0x3f]
      %v276 = vld [vmem:[#allocation2 + $0x118] sm:$0x3f]
      %v277 = vld [vmem:[%s199] sm:$0x7]
      %v278 = vld [vmem:[%s195] sm:$0xff]
      %v279 = vld [vmem:[%s195 + $0x8] sm:$0xff]
      %v280 = vld [vmem:[%s195 + $0x10] sm:$0xff]
      %v281 = vld [vmem:[%s195 + $0x18] sm:$0xff]
      %v282 = vld [vmem:[%s195 + $0x20] sm:$0xff]
      %v283 = vld [vmem:[%s195 + $0x28] sm:$0xff]
      %v284 = vld [vmem:[%s195 + $0x30] sm:$0xff]
      %v285 = vld [vmem:[%s195 + $0x38] sm:$0xff]
      %v286 = vld [vmem:[%s195 + $0x40] sm:$0xff]
      %v287 = vld [vmem:[%s195 + $0x48] sm:$0xff]
      %v288 = vld [vmem:[%s195 + $0x50] sm:$0xff]
      %v289 = vld [vmem:[%s195 + $0x58] sm:$0xff]
      %v290 = vld [vmem:[%s195 + $0x60] sm:$0xff]
      %v291 = vld [vmem:[%s195 + $0x68] sm:$0xff]
      %v292 = vld [vmem:[%s195 + $0x70] sm:$0xff]
      %v293 = vld [vmem:[%s195 + $0x78] sm:$0xff]
      %v294 = vld [vmem:[%s195 + $0x80] sm:$0xff]
      %v295 = vld [vmem:[%s195 + $0x88] sm:$0xff]
      %v296 = vld [vmem:[%s195 + $0x90] sm:$0xff]
      %v297 = vld [vmem:[%s195 + $0x98] sm:$0xff]
      %v298 = vld [vmem:[%s195 + $0xa0] sm:$0xff]
      %v299 = vld [vmem:[%s195 + $0xa8] sm:$0xff]
      %v300 = vld [vmem:[%s195 + $0xb0] sm:$0xff]
      %v301 = vld [vmem:[%s195 + $0xb8] sm:$0xff]
      %v302 = vld [vmem:[%s195 + $0xc0] sm:$0xff]
      %v303 = vld [vmem:[%s195 + $0xc8] sm:$0xff]
      %v304 = vld [vmem:[%s195 + $0xd0] sm:$0xff]
      %v305 = vld [vmem:[%s195 + $0xd8] sm:$0xff]
      %v306 = vld [vmem:[%s195 + $0xe0] sm:$0xff]
      %v307 = vld [vmem:[%s195 + $0xe8] sm:$0xff]
      %v308 = vld [vmem:[%s195 + $0xf0] sm:$0xff]
      %v309 = vld [vmem:[%s195 + $0xf8] sm:$0xff]
      %v310 = vld [vmem:[%s195 + $0x100] sm:$0xff]
      %v311 = vld [vmem:[%s195 + $0x108] sm:$0xff]
      %v312 = vld [vmem:[%s195 + $0x110] sm:$0xff]
      %v313 = vld [vmem:[%s195 + $0x118] sm:$0xff]
      %v314 = vld [vmem:[%s195 + $0x120] sm:$0xff]
      %v315 = vld [vmem:[%s195 + $0x128] sm:$0xff]
      %v316 = vld [vmem:[%s195 + $0x130] sm:$0xff]
      %v317 = vld [vmem:[%s195 + $0x138] sm:$0xff]
      %v318 = vld [vmem:[%s195 + $0x140] sm:$0xff]
      %v319 = vld [vmem:[%s195 + $0x148] sm:$0xff]
      %v320 = vld [vmem:[%s195 + $0x150] sm:$0xff]
      %v321 = vld [vmem:[%s195 + $0x158] sm:$0xff]
      %v322 = vld [vmem:[%s195 + $0x160] sm:$0xff]
      %v323 = vld [vmem:[%s195 + $0x168] sm:$0xff]
      %v324 = vld [vmem:[%s195 + $0x170] sm:$0xff]
      %v325 = vld [vmem:[%s195 + $0x178] sm:$0xff]
      %v326 = vld [vmem:[%s195 + $0x180] sm:$0xff]
      %v327 = vld [vmem:[%s195 + $0x188] sm:$0xff]
      %v328 = vld [vmem:[%s195 + $0x190] sm:$0xff]
      %v329 = vld [vmem:[%s195 + $0x198] sm:$0xff]
      %v330 = vld [vmem:[%s195 + $0x1a0] sm:$0xff]
      %v331 = vld [vmem:[%s195 + $0x1a8] sm:$0xff]
      %v332 = vld [vmem:[%s195 + $0x1b0] sm:$0xff]
      %v333 = vld [vmem:[%s195 + $0x1b8] sm:$0xff]
      %v334 = vld [vmem:[%s195 + $0x1c0] sm:$0xff]
      %v335 = vld [vmem:[%s195 + $0x1c8] sm:$0xff]
      %v336 = vld [vmem:[%s195 + $0x1d0] sm:$0xff]
      %v337 = vld [vmem:[%s195 + $0x1d8] sm:$0xff]
      %v338 = vld [vmem:[%s195 + $0x1e0] sm:$0xff]
      %v339 = vld [vmem:[%s195 + $0x1e8] sm:$0xff]
      %v340 = vld [vmem:[%s195 + $0x1f0] sm:$0xff]
      %v341 = vld [vmem:[%s195 + $0x1f8] sm:$0xff]
      %v342 = vld [vmem:[%s195 + $0x200] sm:$0xff]
      %v343 = vld [vmem:[%s195 + $0x208] sm:$0xff]
      %v344 = vld [vmem:[%s195 + $0x210] sm:$0xff]
      %v345 = vld [vmem:[%s195 + $0x218] sm:$0xff]
      %v346 = vld [vmem:[%s195 + $0x220] sm:$0xff]
      %v347 = vld [vmem:[%s195 + $0x228] sm:$0xff]
      %v348 = vld [vmem:[%s195 + $0x230] sm:$0xff]
      %v349 = vld [vmem:[%s195 + $0x238] sm:$0xff]
      %v350 = vld [vmem:[%s195 + $0x240] sm:$0xff]
      %v351 = vld [vmem:[%s195 + $0x248] sm:$0xff]
      %v352 = vld [vmem:[%s195 + $0x250] sm:$0xff]
      %v353 = vld [vmem:[%s195 + $0x258] sm:$0xff]
      %v354 = vld [vmem:[%s195 + $0x260] sm:$0xff]
      %v355 = vld [vmem:[%s195 + $0x268] sm:$0xff]
      %v356 = vld [vmem:[%s195 + $0x270] sm:$0xff]
      %v357 = vld [vmem:[%s195 + $0x278] sm:$0xff]
      %v358 = vld [vmem:[%s195 + $0x280] sm:$0xff]
      %v359 = vld [vmem:[%s195 + $0x288] sm:$0xff]
      %v360 = vld [vmem:[%s195 + $0x290] sm:$0xff]
      %v361 = vld [vmem:[%s195 + $0x298] sm:$0xff]
      %v362 = vld [vmem:[%s195 + $0x2a0] sm:$0xff]
      %v363 = vld [vmem:[%s195 + $0x2a8] sm:$0xff]
      %v364 = vld [vmem:[%s195 + $0x2b0] sm:$0xff]
      %v365 = vld [vmem:[%s195 + $0x2b8] sm:$0xff]
      %v366 = vld [vmem:[%s195 + $0x2c0] sm:$0xff]
      %v367 = vld [vmem:[%s195 + $0x2c8] sm:$0xff]
      %v368 = vld [vmem:[%s195 + $0x2d0] sm:$0xff]
      %v369 = vld [vmem:[%s195 + $0x2d8] sm:$0xff]
      %v370 = vld [vmem:[%s195 + $0x2e0] sm:$0xff]
      %v371 = vld [vmem:[%s195 + $0x2e8] sm:$0xff]
      %v372 = vld [vmem:[%s195 + $0x2f0] sm:$0xff]
      %v373 = vld [vmem:[%s195 + $0x2f8] sm:$0xff]
      %v374 = vld [vmem:[%s195 + $0x300] sm:$0xff]
      %v375 = vld [vmem:[%s195 + $0x308] sm:$0xff]
      %v376 = vld [vmem:[%s195 + $0x310] sm:$0xff]
      %v377 = vld [vmem:[%s195 + $0x318] sm:$0xff]
      %v378 = vld [vmem:[%s195 + $0x320] sm:$0xff]
      %v379 = vld [vmem:[%s195 + $0x328] sm:$0xff]
      %v380 = vld [vmem:[%s195 + $0x330] sm:$0xff]
      %v381 = vld [vmem:[%s195 + $0x338] sm:$0xff]
      %v382 = vld [vmem:[%s195 + $0x340] sm:$0xff]
      %v383 = vld [vmem:[%s195 + $0x348] sm:$0xff]
      %v384 = vld [vmem:[%s195 + $0x350] sm:$0xff]
      %v385 = vld [vmem:[%s195 + $0x358] sm:$0xff]
      %v386 = vld [vmem:[%s195 + $0x360] sm:$0xff]
      %v387 = vld [vmem:[%s195 + $0x368] sm:$0xff]
      %v388 = vld [vmem:[%s195 + $0x370] sm:$0xff]
      %v389 = vld [vmem:[%s195 + $0x378] sm:$0xff]
      %v390 = vld [vmem:[%s195 + $0x380] sm:$0xff]
      %v391 = vld [vmem:[%s195 + $0x388] sm:$0xff]
      %v392 = vld [vmem:[%s195 + $0x390] sm:$0xff]
      %v393 = vld [vmem:[%s195 + $0x398] sm:$0xff]
      %v394 = vld [vmem:[%s195 + $0x3a0] sm:$0xff]
      %v395 = vld [vmem:[%s195 + $0x3a8] sm:$0xff]
      %v396 = vld [vmem:[%s195 + $0x3b0] sm:$0xff]
      %v397 = vld [vmem:[%s195 + $0x3b8] sm:$0xff]
      %v398 = vld [vmem:[%s195 + $0x3c0] sm:$0xff]
      %v399 = vld [vmem:[%s195 + $0x3c8] sm:$0xff]
      %v400 = vld [vmem:[%s195 + $0x3d0] sm:$0xff]
      %v401 = vld [vmem:[%s195 + $0x3d8] sm:$0xff]
      %v402 = vld [vmem:[%s195 + $0x3e0] sm:$0xff]
      %v403 = vld [vmem:[%s195 + $0x3e8] sm:$0xff]
      %v530 = vunpack.c.l.b16 %v278
      %v531 = vunpack.c.h.b16 %v278
      %v532 = vunpack.c.l.b16 %v279
      %v533 = vunpack.c.h.b16 %v279
      %v534 = vunpack.c.l.b16 %v280
      %v535 = vunpack.c.h.b16 %v280
      %v536 = vunpack.c.l.b16 %v281
      %v537 = vunpack.c.h.b16 %v281
      %v538 = vunpack.c.l.b16 %v282
      %v539 = vunpack.c.h.b16 %v282
      %v540 = vunpack.c.l.b16 %v283
      %v541 = vunpack.c.h.b16 %v283
      %v542 = vunpack.c.l.b16 %v284
      %v543 = vunpack.c.h.b16 %v284
      %v544 = vunpack.c.l.b16 %v285
      %v545 = vunpack.c.h.b16 %v285
      %v546 = vunpack.c.l.b16 %v286
      %v547 = vunpack.c.h.b16 %v286
      %v548 = vunpack.c.l.b16 %v287
      %v549 = vunpack.c.h.b16 %v287
      %v550 = vunpack.c.l.b16 %v288
      %v551 = vunpack.c.h.b16 %v288
      %v552 = vunpack.c.l.b16 %v289
      %v553 = vunpack.c.h.b16 %v289
      %v554 = vunpack.c.l.b16 %v290
      %v555 = vunpack.c.h.b16 %v290
      %v556 = vunpack.c.l.b16 %v291
      %v557 = vunpack.c.h.b16 %v291
      %v558 = vunpack.c.l.b16 %v292
      %v559 = vunpack.c.h.b16 %v292
      %v560 = vunpack.c.l.b16 %v293
      %v561 = vunpack.c.h.b16 %v293
      %v562 = vunpack.c.l.b16 %v294
      %v563 = vunpack.c.h.b16 %v294
      %v564 = vunpack.c.l.b16 %v295
      %v565 = vunpack.c.h.b16 %v295
      %v566 = vunpack.c.l.b16 %v296
      %v567 = vunpack.c.h.b16 %v296
      %v568 = vunpack.c.l.b16 %v297
      %v569 = vunpack.c.h.b16 %v297
      %v570 = vunpack.c.l.b16 %v298
      %v571 = vunpack.c.h.b16 %v298
      %v572 = vunpack.c.l.b16 %v299
      %v573 = vunpack.c.h.b16 %v299
      %v574 = vunpack.c.l.b16 %v300
      %v575 = vunpack.c.h.b16 %v300
      %v576 = vunpack.c.l.b16 %v301
      %v577 = vunpack.c.h.b16 %v301
      %v578 = vunpack.c.l.b16 %v302
      %v579 = vunpack.c.h.b16 %v302
      %v580 = vunpack.c.l.b16 %v303
      %v581 = vunpack.c.h.b16 %v303
      %v582 = vunpack.c.l.b16 %v304
      %v583 = vunpack.c.h.b16 %v304
      %v584 = vunpack.c.l.b16 %v305
      %v585 = vunpack.c.h.b16 %v305
      %v586 = vunpack.c.l.b16 %v306
      %v587 = vunpack.c.h.b16 %v306
      %v588 = vunpack.c.l.b16 %v307
      %v589 = vunpack.c.h.b16 %v307
      %v590 = vunpack.c.l.b16 %v308
      %v591 = vunpack.c.h.b16 %v308
      %v592 = vunpack.c.l.b16 %v309
      %v593 = vunpack.c.h.b16 %v309
      %v594 = vunpack.c.l.b16 %v310
      %v595 = vunpack.c.h.b16 %v310
      %v596 = vunpack.c.l.b16 %v311
      %v597 = vunpack.c.h.b16 %v311
      %v598 = vunpack.c.l.b16 %v312
      %v599 = vunpack.c.h.b16 %v312
      %v600 = vunpack.c.l.b16 %v313
      %v601 = vunpack.c.h.b16 %v313
      %v602 = vunpack.c.l.b16 %v314
      %v603 = vunpack.c.h.b16 %v314
      %v604 = vunpack.c.l.b16 %v315
      %v605 = vunpack.c.h.b16 %v315
      %v606 = vunpack.c.l.b16 %v316
      %v607 = vunpack.c.h.b16 %v316
      %v608 = vunpack.c.l.b16 %v317
      %v609 = vunpack.c.h.b16 %v317
      %v610 = vunpack.c.l.b16 %v318
      %v611 = vunpack.c.h.b16 %v318
      %v612 = vunpack.c.l.b16 %v319
      %v613 = vunpack.c.h.b16 %v319
      %v614 = vunpack.c.l.b16 %v320
      %v615 = vunpack.c.h.b16 %v320
      %v616 = vunpack.c.l.b16 %v321
      %v617 = vunpack.c.h.b16 %v321
      %v618 = vunpack.c.l.b16 %v322
      %v619 = vunpack.c.h.b16 %v322
      %v620 = vunpack.c.l.b16 %v323
      %v621 = vunpack.c.h.b16 %v323
      %v622 = vunpack.c.l.b16 %v324
      %v623 = vunpack.c.h.b16 %v324
      %v624 = vunpack.c.l.b16 %v325
      %v625 = vunpack.c.h.b16 %v325
      %v626 = vunpack.c.l.b16 %v326
      %v627 = vunpack.c.h.b16 %v326
      %v628 = vunpack.c.l.b16 %v327
      %v629 = vunpack.c.h.b16 %v327
      %v630 = vunpack.c.l.b16 %v328
      %v631 = vunpack.c.h.b16 %v328
      %v632 = vunpack.c.l.b16 %v329
      %v633 = vunpack.c.h.b16 %v329
      %v634 = vunpack.c.l.b16 %v330
      %v635 = vunpack.c.h.b16 %v330
      %v636 = vunpack.c.l.b16 %v331
      %v637 = vunpack.c.h.b16 %v331
      %v638 = vunpack.c.l.b16 %v332
      %v639 = vunpack.c.h.b16 %v332
      %v640 = vunpack.c.l.b16 %v333
      %v641 = vunpack.c.h.b16 %v333
      %v642 = vunpack.c.l.b16 %v334
      %v643 = vunpack.c.h.b16 %v334
      %v644 = vunpack.c.l.b16 %v335
      %v645 = vunpack.c.h.b16 %v335
      %v646 = vunpack.c.l.b16 %v336
      %v647 = vunpack.c.h.b16 %v336
      %v648 = vunpack.c.l.b16 %v337
      %v649 = vunpack.c.h.b16 %v337
      %v650 = vunpack.c.l.b16 %v338
      %v651 = vunpack.c.h.b16 %v338
      %v652 = vunpack.c.l.b16 %v339
      %v653 = vunpack.c.h.b16 %v339
      %v654 = vunpack.c.l.b16 %v340
      %v655 = vunpack.c.h.b16 %v340
      %v656 = vunpack.c.l.b16 %v341
      %v657 = vunpack.c.h.b16 %v341
      %v658 = vunpack.c.l.b16 %v342
      %v659 = vunpack.c.h.b16 %v342
      %v660 = vunpack.c.l.b16 %v343
      %v661 = vunpack.c.h.b16 %v343
      %v662 = vunpack.c.l.b16 %v344
      %v663 = vunpack.c.h.b16 %v344
      %v664 = vunpack.c.l.b16 %v345
      %v665 = vunpack.c.h.b16 %v345
      %v666 = vunpack.c.l.b16 %v346
      %v667 = vunpack.c.h.b16 %v346
      %v668 = vunpack.c.l.b16 %v347
      %v669 = vunpack.c.h.b16 %v347
      %v670 = vunpack.c.l.b16 %v348
      %v671 = vunpack.c.h.b16 %v348
      %v672 = vunpack.c.l.b16 %v349
      %v673 = vunpack.c.h.b16 %v349
      %v674 = vunpack.c.l.b16 %v350
      %v675 = vunpack.c.h.b16 %v350
      %v676 = vunpack.c.l.b16 %v351
      %v677 = vunpack.c.h.b16 %v351
      %v678 = vunpack.c.l.b16 %v352
      %v679 = vunpack.c.h.b16 %v352
      %v680 = vunpack.c.l.b16 %v353
      %v681 = vunpack.c.h.b16 %v353
      %v682 = vunpack.c.l.b16 %v354
      %v683 = vunpack.c.h.b16 %v354
      %v684 = vunpack.c.l.b16 %v355
      %v685 = vunpack.c.h.b16 %v355
      %v686 = vunpack.c.l.b16 %v356
      %v687 = vunpack.c.h.b16 %v356
      %v688 = vunpack.c.l.b16 %v357
      %v689 = vunpack.c.h.b16 %v357
      %v690 = vunpack.c.l.b16 %v358
      %v691 = vunpack.c.h.b16 %v358
      %v692 = vunpack.c.l.b16 %v359
      %v693 = vunpack.c.h.b16 %v359
      %v694 = vunpack.c.l.b16 %v360
      %v695 = vunpack.c.h.b16 %v360
      %v696 = vunpack.c.l.b16 %v361
      %v697 = vunpack.c.h.b16 %v361
      %v698 = vunpack.c.l.b16 %v362
      %v699 = vunpack.c.h.b16 %v362
      %v700 = vunpack.c.l.b16 %v363
      %v701 = vunpack.c.h.b16 %v363
      %v702 = vunpack.c.l.b16 %v364
      %v703 = vunpack.c.h.b16 %v364
      %v704 = vunpack.c.l.b16 %v365
      %v705 = vunpack.c.h.b16 %v365
      %v706 = vunpack.c.l.b16 %v366
      %v707 = vunpack.c.h.b16 %v366
      %v708 = vunpack.c.l.b16 %v367
      %v709 = vunpack.c.h.b16 %v367
      %v710 = vunpack.c.l.b16 %v368
      %v711 = vunpack.c.h.b16 %v368
      %v712 = vunpack.c.l.b16 %v369
      %v713 = vunpack.c.h.b16 %v369
      %v714 = vunpack.c.l.b16 %v370
      %v715 = vunpack.c.h.b16 %v370
      %v716 = vunpack.c.l.b16 %v371
      %v717 = vunpack.c.h.b16 %v371
      %v718 = vunpack.c.l.b16 %v372
      %v719 = vunpack.c.h.b16 %v372
      %v720 = vunpack.c.l.b16 %v373
      %v721 = vunpack.c.h.b16 %v373
      %v722 = vunpack.c.l.b16 %v374
      %v723 = vunpack.c.h.b16 %v374
      %v724 = vunpack.c.l.b16 %v375
      %v725 = vunpack.c.h.b16 %v375
      %v726 = vunpack.c.l.b16 %v376
      %v727 = vunpack.c.h.b16 %v376
      %v728 = vunpack.c.l.b16 %v377
      %v729 = vunpack.c.h.b16 %v377
      %v730 = vunpack.c.l.b16 %v378
      %v731 = vunpack.c.h.b16 %v378
      %v732 = vunpack.c.l.b16 %v379
      %v733 = vunpack.c.h.b16 %v379
      %v734 = vunpack.c.l.b16 %v380
      %v735 = vunpack.c.h.b16 %v380
      %v736 = vunpack.c.l.b16 %v381
      %v737 = vunpack.c.h.b16 %v381
      %v738 = vunpack.c.l.b16 %v382
      %v739 = vunpack.c.h.b16 %v382
      %v740 = vunpack.c.l.b16 %v383
      %v741 = vunpack.c.h.b16 %v383
      %v742 = vunpack.c.l.b16 %v384
      %v743 = vunpack.c.h.b16 %v384
      %v744 = vunpack.c.l.b16 %v385
      %v745 = vunpack.c.h.b16 %v385
      %v746 = vunpack.c.l.b16 %v386
      %v747 = vunpack.c.h.b16 %v386
      %v748 = vunpack.c.l.b16 %v387
      %v749 = vunpack.c.h.b16 %v387
      %v750 = vunpack.c.l.b16 %v388
      %v751 = vunpack.c.h.b16 %v388
      %v752 = vunpack.c.l.b16 %v389
      %v753 = vunpack.c.h.b16 %v389
      %v754 = vunpack.c.l.b16 %v390
      %v755 = vunpack.c.h.b16 %v390
      %v756 = vunpack.c.l.b16 %v391
      %v757 = vunpack.c.h.b16 %v391
      %v758 = vunpack.c.l.b16 %v392
      %v759 = vunpack.c.h.b16 %v392
      %v760 = vunpack.c.l.b16 %v393
      %v761 = vunpack.c.h.b16 %v393
      %v762 = vunpack.c.l.b16 %v394
      %v763 = vunpack.c.h.b16 %v394
      %v764 = vunpack.c.l.b16 %v395
      %v765 = vunpack.c.h.b16 %v395
      %v766 = vunpack.c.l.b16 %v396
      %v767 = vunpack.c.h.b16 %v396
      %v768 = vunpack.c.l.b16 %v397
      %v769 = vunpack.c.h.b16 %v397
      %v770 = vunpack.c.l.b16 %v398
      %v771 = vunpack.c.h.b16 %v398
      %v772 = vunpack.c.l.b16 %v399
      %v773 = vunpack.c.h.b16 %v399
      %v774 = vunpack.c.l.b16 %v400
      %v775 = vunpack.c.h.b16 %v400
      %v776 = vunpack.c.l.b16 %v401
      %v777 = vunpack.c.h.b16 %v401
      %v778 = vunpack.c.l.b16 %v402
      %v779 = vunpack.c.h.b16 %v402
      %v780 = vunpack.c.l.b16 %v403
      %v781 = vunpack.c.h.b16 %v403
      %v782 = vpack.c.b16 %v566, %v530
      %v783 = vpack.c.b16 %v567, %v531
      %v784 = vpack.c.b16 %v568, %v532
      %v785 = vpack.c.b16 %v569, %v533
      %v786 = vpack.c.b16 %v570, %v534
      %v787 = vpack.c.b16 %v571, %v535
      %v788 = vpack.c.b16 %v572, %v536
      %v789 = vpack.c.b16 %v573, %v537
      %v790 = vpack.c.b16 %v574, %v538
      %v791 = vpack.c.b16 %v575, %v539
      %v792 = vpack.c.b16 %v576, %v540
      %v793 = vpack.c.b16 %v577, %v541
      %v794 = vpack.c.b16 %v578, %v542
      %v795 = vpack.c.b16 %v579, %v543
      %v796 = vpack.c.b16 %v580, %v544
      %v797 = vpack.c.b16 %v581, %v545
      %v798 = vpack.c.b16 %v582, %v546
      %v799 = vpack.c.b16 %v583, %v547
      %v800 = vpack.c.b16 %v584, %v548
      %v801 = vpack.c.b16 %v585, %v549
      %v802 = vpack.c.b16 %v586, %v550
      %v803 = vpack.c.b16 %v587, %v551
      %v804 = vpack.c.b16 %v588, %v552
      %v805 = vpack.c.b16 %v589, %v553
      %v806 = vpack.c.b16 %v590, %v554
      %v807 = vpack.c.b16 %v591, %v555
      %v808 = vpack.c.b16 %v592, %v556
      %v809 = vpack.c.b16 %v593, %v557
      %v810 = vpack.c.b16 %v594, %v558
      %v811 = vpack.c.b16 %v595, %v559
      %v812 = vpack.c.b16 %v596, %v560
      %v813 = vpack.c.b16 %v597, %v561
      %v814 = vpack.c.b16 %v598, %v562
      %v815 = vpack.c.b16 %v599, %v563
      %v816 = vpack.c.b16 %v600, %v564
      %v817 = vpack.c.b16 %v601, %v565
      %v818 = vpack.c.b16 %v638, %v602
      %v819 = vpack.c.b16 %v639, %v603
      %v820 = vpack.c.b16 %v640, %v604
      %v821 = vpack.c.b16 %v641, %v605
      %v822 = vpack.c.b16 %v642, %v606
      %v823 = vpack.c.b16 %v643, %v607
      %v824 = vpack.c.b16 %v644, %v608
      %v825 = vpack.c.b16 %v645, %v609
      %v826 = vpack.c.b16 %v646, %v610
      %v827 = vpack.c.b16 %v647, %v611
      %v828 = vpack.c.b16 %v648, %v612
      %v829 = vpack.c.b16 %v649, %v613
      %v830 = vpack.c.b16 %v650, %v614
      %v831 = vpack.c.b16 %v651, %v615
      %v832 = vpack.c.b16 %v652, %v616
      %v833 = vpack.c.b16 %v653, %v617
      %v834 = vpack.c.b16 %v654, %v618
      %v835 = vpack.c.b16 %v655, %v619
      %v836 = vpack.c.b16 %v656, %v620
      %v837 = vpack.c.b16 %v657, %v621
      %v838 = vpack.c.b16 %v658, %v622
      %v839 = vpack.c.b16 %v659, %v623
      %v840 = vpack.c.b16 %v660, %v624
      %v841 = vpack.c.b16 %v661, %v625
      %v842 = vpack.c.b16 %v662, %v626
      %v843 = vpack.c.b16 %v663, %v627
      %v844 = vpack.c.b16 %v664, %v628
      %v845 = vpack.c.b16 %v665, %v629
      %v846 = vpack.c.b16 %v666, %v630
      %v847 = vpack.c.b16 %v667, %v631
      %v848 = vpack.c.b16 %v668, %v632
      %v849 = vpack.c.b16 %v669, %v633
      %v850 = vpack.c.b16 %v670, %v634
      %v851 = vpack.c.b16 %v671, %v635
      %v852 = vpack.c.b16 %v672, %v636
      %v853 = vpack.c.b16 %v673, %v637
      %v854 = vpack.c.b16 %v710, %v674
      %v855 = vpack.c.b16 %v711, %v675
      %v856 = vpack.c.b16 %v712, %v676
      %v857 = vpack.c.b16 %v713, %v677
      %v858 = vpack.c.b16 %v714, %v678
      %v859 = vpack.c.b16 %v715, %v679
      %v860 = vpack.c.b16 %v716, %v680
      %v861 = vpack.c.b16 %v717, %v681
      %v862 = vpack.c.b16 %v718, %v682
      %v863 = vpack.c.b16 %v719, %v683
      %v864 = vpack.c.b16 %v720, %v684
      %v865 = vpack.c.b16 %v721, %v685
      %v866 = vpack.c.b16 %v722, %v686
      %v867 = vpack.c.b16 %v723, %v687
      %v868 = vpack.c.b16 %v724, %v688
      %v869 = vpack.c.b16 %v725, %v689
      %v870 = vpack.c.b16 %v726, %v690
      %v871 = vpack.c.b16 %v727, %v691
      %v872 = vpack.c.b16 %v728, %v692
      %v873 = vpack.c.b16 %v729, %v693
      %v874 = vpack.c.b16 %v730, %v694
      %v875 = vpack.c.b16 %v731, %v695
      %v876 = vpack.c.b16 %v732, %v696
      %v877 = vpack.c.b16 %v733, %v697
      %v878 = vpack.c.b16 %v734, %v698
      %v879 = vpack.c.b16 %v735, %v699
      %v880 = vpack.c.b16 %v736, %v700
      %v881 = vpack.c.b16 %v737, %v701
      %v882 = vpack.c.b16 %v738, %v702
      %v883 = vpack.c.b16 %v739, %v703
      %v884 = vpack.c.b16 %v740, %v704
      %v885 = vpack.c.b16 %v741, %v705
      %v886 = vpack.c.b16 %v742, %v706
      %v887 = vpack.c.b16 %v743, %v707
      %v888 = vpack.c.b16 %v744, %v708
      %v889 = vpack.c.b16 %v745, %v709
      %v890 = vpack.c.b16 %v746, %v746
      %v891 = vpack.c.b16 %v747, %v747
      %v892 = vpack.c.b16 %v748, %v748
      %v893 = vpack.c.b16 %v749, %v749
      %v894 = vpack.c.b16 %v750, %v750
      %v895 = vpack.c.b16 %v751, %v751
      %v896 = vpack.c.b16 %v752, %v752
      %v897 = vpack.c.b16 %v753, %v753
      %v898 = vpack.c.b16 %v754, %v754
      %v899 = vpack.c.b16 %v755, %v755
      %v900 = vpack.c.b16 %v756, %v756
      %v901 = vpack.c.b16 %v757, %v757
      %v902 = vpack.c.b16 %v758, %v758
      %v903 = vpack.c.b16 %v759, %v759
      %v904 = vpack.c.b16 %v760, %v760
      %v905 = vpack.c.b16 %v761, %v761
      %v906 = vpack.c.b16 %v762, %v762
      %v907 = vpack.c.b16 %v763, %v763
      %v908 = vpack.c.b16 %v764, %v764
      %v909 = vpack.c.b16 %v765, %v765
      %v910 = vpack.c.b16 %v766, %v766
      %v911 = vpack.c.b16 %v767, %v767
      %v912 = vpack.c.b16 %v768, %v768
      %v913 = vpack.c.b16 %v769, %v769
      %v914 = vpack.c.b16 %v770, %v770
      %v915 = vpack.c.b16 %v771, %v771
      %v916 = vpack.c.b16 %v772, %v772
      %v917 = vpack.c.b16 %v773, %v773
      %v918 = vpack.c.b16 %v774, %v774
      %v919 = vpack.c.b16 %v775, %v775
      %v920 = vpack.c.b16 %v776, %v776
      %v921 = vpack.c.b16 %v777, %v777
      %v922 = vpack.c.b16 %v778, %v778
      %v923 = vpack.c.b16 %v779, %v779
      %v924 = vpack.c.b16 %v780, %v780
      %v925 = vpack.c.b16 %v781, %v781
      %vm1034 = vcmask 457728
      %v1036 = vsel %vm1034, %v277, 0
      %vm1038 = vcmask 1043456
      %v1040 = vsel %vm1038, %v890, 0
      %v1043 = vsel %vm1038, %v891, 0
      %v1046 = vsel %vm1038, %v892, 0
      %v1049 = vsel %vm1038, %v893, 0
      %v1052 = vsel %vm1038, %v894, 0
      %v1055 = vsel %vm1038, %v895, 0
      %v1058 = vsel %vm1038, %v896, 0
      %v1061 = vsel %vm1038, %v897, 0
      %v1064 = vsel %vm1038, %v898, 0
      %v1067 = vsel %vm1038, %v899, 0
      %v1070 = vsel %vm1038, %v900, 0
      %v1073 = vsel %vm1038, %v901, 0
      %v1076 = vsel %vm1038, %v902, 0
      %v1079 = vsel %vm1038, %v903, 0
      %v1082 = vsel %vm1038, %v904, 0
      %v1085 = vsel %vm1038, %v905, 0
      %v1088 = vsel %vm1038, %v906, 0
      %v1091 = vsel %vm1038, %v907, 0
      %v1094 = vsel %vm1038, %v908, 0
      %v1097 = vsel %vm1038, %v909, 0
      %v1100 = vsel %vm1038, %v910, 0
      %v1103 = vsel %vm1038, %v911, 0
      %v1106 = vsel %vm1038, %v912, 0
      %v1109 = vsel %vm1038, %v913, 0
      %v1112 = vsel %vm1038, %v914, 0
      %v1115 = vsel %vm1038, %v915, 0
      %v1118 = vsel %vm1038, %v916, 0
      %v1121 = vsel %vm1038, %v917, 0
      %v1124 = vsel %vm1038, %v918, 0
      %v1127 = vsel %vm1038, %v919, 0
      %v1130 = vsel %vm1038, %v920, 0
      %v1133 = vsel %vm1038, %v921, 0
      %v1136 = vsel %vm1038, %v922, 0
      %v1139 = vsel %vm1038, %v923, 0
      %v1142 = vsel %vm1038, %v924, 0
      %v1145 = vsel %vm1038, %v925, 0
      %1147 = vmatprep.subr.bf16.mxu0 0
      %1148 = vmatpush1.bf16.msra.mxu0 0
      %1149 = vmatprep.subr.bf16.mxu0 0
      %1150 = vmatpush1.bf16.msra.mxu0 0
      %1151 = vmatprep.subr.bf16.mxu0 0
      %1152 = vmatpush1.bf16.msra.mxu0 0
      %1153 = vmatprep.subr.bf16.mxu0 0
      %1154 = vmatpush1.bf16.msra.mxu0 0
      %1155 = vmatprep.subr.bf16.mxu0 %v1043
      %1156 = vmatpush1.bf16.msra.mxu0 %v1040
      %1157 = vmatprep.subr.bf16.mxu0 %v855
      %1158 = vmatpush1.bf16.msra.mxu0 %v854
      %1159 = vmatprep.subr.bf16.mxu0 %v819
      %1160 = vmatpush1.bf16.msra.mxu0 %v818
      %1161 = vmatprep.subr.bf16.mxu0 %v783
      %1162 = vmatpush1.bf16.msra.mxu0 %v782
      %1163 = vmatprep.subr.bf16.mxu0 0
      %1164 = vmatpush2.bf16.msra.mxu0 0
      %1165 = vmatprep.subr.bf16.mxu0 0
      %1166 = vmatpush2.bf16.msra.mxu0 0
      %1167 = vmatprep.subr.bf16.mxu0 0
      %1168 = vmatpush2.bf16.msra.mxu0 0
      %1169 = vmatprep.subr.bf16.mxu0 0
      %1170 = vmatpush2.bf16.msra.mxu0 0
      %1171 = vmatprep.subr.bf16.mxu0 0
      %1172 = vmatpush2.bf16.msra.mxu0 0
      %1173 = vmatprep.subr.bf16.mxu0 0
      %1174 = vmatpush2.bf16.msra.mxu0 0
      %1175 = vmatprep.subr.bf16.mxu0 0
      %1176 = vmatpush2.bf16.msra.mxu0 0
      %1177 = vmatprep.subr.bf16.mxu0 0
      %1178 = vmatpush2.bf16.msra.mxu0 0
      %1179 = vmatprep.mubr.bf16.mxu0 0
      %1180 = vmatmul.mubr.bf16.gmra.mxu0 %v1036
      %v1181 = vpop.f32.mrf.mxu0
      %v1182 = vadd.f32 0.0, %v1181
      %v1183 = vpop.f32.mrf.mxu0
      %v1184 = vadd.f32 0.0, %v1183
      %v1185 = vpop.f32.mrf.mxu0
      %v1186 = vpop.f32.mrf.mxu0
      %1187 = vdwg.mxu0
      %1188 = vmatprep.subr.bf16.mxu0 0
      %1189 = vmatpush1.bf16.msra.mxu0 0
      %1190 = vmatprep.subr.bf16.mxu0 0
      %1191 = vmatpush1.bf16.msra.mxu0 0
      %1192 = vmatprep.subr.bf16.mxu0 0
      %1193 = vmatpush1.bf16.msra.mxu0 0
      %1194 = vmatprep.subr.bf16.mxu0 0
      %1195 = vmatpush1.bf16.msra.mxu0 0
      %1196 = vmatprep.subr.bf16.mxu0 %v1049
      %1197 = vmatpush1.bf16.msra.mxu0 %v1046
      %1198 = vmatprep.subr.bf16.mxu0 %v857
      %1199 = vmatpush1.bf16.msra.mxu0 %v856
      %1200 = vmatprep.subr.bf16.mxu0 %v821
      %1201 = vmatpush1.bf16.msra.mxu0 %v820
      %1202 = vmatprep.subr.bf16.mxu0 %v785
      %1203 = vmatpush1.bf16.msra.mxu0 %v784
      %1204 = vmatprep.subr.bf16.mxu0 0
      %1205 = vmatpush2.bf16.msra.mxu0 0
      %1206 = vmatprep.subr.bf16.mxu0 0
      %1207 = vmatpush2.bf16.msra.mxu0 0
      %1208 = vmatprep.subr.bf16.mxu0 0
      %1209 = vmatpush2.bf16.msra.mxu0 0
      %1210 = vmatprep.subr.bf16.mxu0 0
      %1211 = vmatpush2.bf16.msra.mxu0 0
      %1212 = vmatprep.subr.bf16.mxu0 0
      %1213 = vmatpush2.bf16.msra.mxu0 0
      %1214 = vmatprep.subr.bf16.mxu0 0
      %1215 = vmatpush2.bf16.msra.mxu0 0
      %1216 = vmatprep.subr.bf16.mxu0 0
      %1217 = vmatpush2.bf16.msra.mxu0 0
      %1218 = vmatprep.subr.bf16.mxu0 0
      %1219 = vmatpush2.bf16.msra.mxu0 0
      %1220 = vmatprep.mubr.bf16.mxu0 0
      %1221 = vmatmul.mubr.bf16.gmra.mxu0 %v1036
      %v1222 = vpop.f32.mrf.mxu0
      %v1223 = vadd.f32 0.0, %v1222
      %v1224 = vpop.f32.mrf.mxu0
      %v1225 = vadd.f32 0.0, %v1224
      %v1226 = vpop.f32.mrf.mxu0
      %v1227 = vpop.f32.mrf.mxu0
      %1228 = vdwg.mxu0
      %1229 = vmatprep.subr.bf16.mxu0 0
      %1230 = vmatpush1.bf16.msra.mxu0 0
      %1231 = vmatprep.subr.bf16.mxu0 0
      %1232 = vmatpush1.bf16.msra.mxu0 0
      %1233 = vmatprep.subr.bf16.mxu0 0
      %1234 = vmatpush1.bf16.msra.mxu0 0
      %1235 = vmatprep.subr.bf16.mxu0 0
      %1236 = vmatpush1.bf16.msra.mxu0 0
      %1237 = vmatprep.subr.bf16.mxu0 %v1055
      %1238 = vmatpush1.bf16.msra.mxu0 %v1052
      %1239 = vmatprep.subr.bf16.mxu0 %v859
      %1240 = vmatpush1.bf16.msra.mxu0 %v858
      %1241 = vmatprep.subr.bf16.mxu0 %v823
      %1242 = vmatpush1.bf16.msra.mxu0 %v822
      %1243 = vmatprep.subr.bf16.mxu0 %v787
      %1244 = vmatpush1.bf16.msra.mxu0 %v786
      %1245 = vmatprep.subr.bf16.mxu0 0
      %1246 = vmatpush2.bf16.msra.mxu0 0
      %1247 = vmatprep.subr.bf16.mxu0 0
      %1248 = vmatpush2.bf16.msra.mxu0 0
      %1249 = vmatprep.subr.bf16.mxu0 0
      %1250 = vmatpush2.bf16.msra.mxu0 0
      %1251 = vmatprep.subr.bf16.mxu0 0
      %1252 = vmatpush2.bf16.msra.mxu0 0
      %1253 = vmatprep.subr.bf16.mxu0 0
      %1254 = vmatpush2.bf16.msra.mxu0 0
      %1255 = vmatprep.subr.bf16.mxu0 0
      %1256 = vmatpush2.bf16.msra.mxu0 0
      %1257 = vmatprep.subr.bf16.mxu0 0
      %1258 = vmatpush2.bf16.msra.mxu0 0
      %1259 = vmatprep.subr.bf16.mxu0 0
      %1260 = vmatpush2.bf16.msra.mxu0 0
      %1261 = vmatprep.mubr.bf16.mxu0 0
      %1262 = vmatmul.mubr.bf16.gmra.mxu0 %v1036
      %v1263 = vpop.f32.mrf.mxu0
      %v1264 = vadd.f32 0.0, %v1263
      %v1265 = vpop.f32.mrf.mxu0
      %v1266 = vadd.f32 0.0, %v1265
      %v1267 = vpop.f32.mrf.mxu0
      %v1268 = vpop.f32.mrf.mxu0
      %1269 = vdwg.mxu0
      %1270 = vmatprep.subr.bf16.mxu0 0
      %1271 = vmatpush1.bf16.msra.mxu0 0
      %1272 = vmatprep.subr.bf16.mxu0 0
      %1273 = vmatpush1.bf16.msra.mxu0 0
      %1274 = vmatprep.subr.bf16.mxu0 0
      %1275 = vmatpush1.bf16.msra.mxu0 0
      %1276 = vmatprep.subr.bf16.mxu0 0
      %1277 = vmatpush1.bf16.msra.mxu0 0
      %1278 = vmatprep.subr.bf16.mxu0 %v1061
      %1279 = vmatpush1.bf16.msra.mxu0 %v1058
      %1280 = vmatprep.subr.bf16.mxu0 %v861
      %1281 = vmatpush1.bf16.msra.mxu0 %v860
      %1282 = vmatprep.subr.bf16.mxu0 %v825
      %1283 = vmatpush1.bf16.msra.mxu0 %v824
      %1284 = vmatprep.subr.bf16.mxu0 %v789
      %1285 = vmatpush1.bf16.msra.mxu0 %v788
      %1286 = vmatprep.subr.bf16.mxu0 0
      %1287 = vmatpush2.bf16.msra.mxu0 0
      %1288 = vmatprep.subr.bf16.mxu0 0
      %1289 = vmatpush2.bf16.msra.mxu0 0
      %1290 = vmatprep.subr.bf16.mxu0 0
      %1291 = vmatpush2.bf16.msra.mxu0 0
      %1292 = vmatprep.subr.bf16.mxu0 0
      %1293 = vmatpush2.bf16.msra.mxu0 0
      %1294 = vmatprep.subr.bf16.mxu0 0
      %1295 = vmatpush2.bf16.msra.mxu0 0
      %1296 = vmatprep.subr.bf16.mxu0 0
      %1297 = vmatpush2.bf16.msra.mxu0 0
      %1298 = vmatprep.subr.bf16.mxu0 0
      %1299 = vmatpush2.bf16.msra.mxu0 0
      %1300 = vmatprep.subr.bf16.mxu0 0
      %1301 = vmatpush2.bf16.msra.mxu0 0
      %1302 = vmatprep.mubr.bf16.mxu0 0
      %1303 = vmatmul.mubr.bf16.gmra.mxu0 %v1036
      %v1304 = vpop.f32.mrf.mxu0
      %v1305 = vadd.f32 0.0, %v1304
      %v1306 = vpop.f32.mrf.mxu0
      %v1307 = vadd.f32 0.0, %v1306
      %v1308 = vpop.f32.mrf.mxu0
      %v1309 = vpop.f32.mrf.mxu0
      %1310 = vdwg.mxu0
      %1311 = vmatprep.subr.bf16.mxu0 0
      %1312 = vmatpush1.bf16.msra.mxu0 0
      %1313 = vmatprep.subr.bf16.mxu0 0
      %1314 = vmatpush1.bf16.msra.mxu0 0
      %1315 = vmatprep.subr.bf16.mxu0 0
      %1316 = vmatpush1.bf16.msra.mxu0 0
      %1317 = vmatprep.subr.bf16.mxu0 0
      %1318 = vmatpush1.bf16.msra.mxu0 0
      %1319 = vmatprep.subr.bf16.mxu0 %v1067
      %1320 = vmatpush1.bf16.msra.mxu0 %v1064
      %1321 = vmatprep.subr.bf16.mxu0 %v863
      %1322 = vmatpush1.bf16.msra.mxu0 %v862
      %1323 = vmatprep.subr.bf16.mxu0 %v827
      %1324 = vmatpush1.bf16.msra.mxu0 %v826
      %1325 = vmatprep.subr.bf16.mxu0 %v791
      %1326 = vmatpush1.bf16.msra.mxu0 %v790
      %1327 = vmatprep.subr.bf16.mxu0 0
      %1328 = vmatpush2.bf16.msra.mxu0 0
      %1329 = vmatprep.subr.bf16.mxu0 0
      %1330 = vmatpush2.bf16.msra.mxu0 0
      %1331 = vmatprep.subr.bf16.mxu0 0
      %1332 = vmatpush2.bf16.msra.mxu0 0
      %1333 = vmatprep.subr.bf16.mxu0 0
      %1334 = vmatpush2.bf16.msra.mxu0 0
      %1335 = vmatprep.subr.bf16.mxu0 0
      %1336 = vmatpush2.bf16.msra.mxu0 0
      %1337 = vmatprep.subr.bf16.mxu0 0
      %1338 = vmatpush2.bf16.msra.mxu0 0
      %1339 = vmatprep.subr.bf16.mxu0 0
      %1340 = vmatpush2.bf16.msra.mxu0 0
      %1341 = vmatprep.subr.bf16.mxu0 0
      %1342 = vmatpush2.bf16.msra.mxu0 0
      %1343 = vmatprep.mubr.bf16.mxu0 0
      %1344 = vmatmul.mubr.bf16.gmra.mxu0 %v1036
      %v1345 = vpop.f32.mrf.mxu0
      %v1346 = vadd.f32 0.0, %v1345
      %v1347 = vpop.f32.mrf.mxu0
      %v1348 = vadd.f32 0.0, %v1347
      %v1349 = vpop.f32.mrf.mxu0
      %v1350 = vpop.f32.mrf.mxu0
      %1351 = vdwg.mxu0
      %1352 = vmatprep.subr.bf16.mxu0 0
      %1353 = vmatpush1.bf16.msra.mxu0 0
      %1354 = vmatprep.subr.bf16.mxu0 0
      %1355 = vmatpush1.bf16.msra.mxu0 0
      %1356 = vmatprep.subr.bf16.mxu0 0
      %1357 = vmatpush1.bf16.msra.mxu0 0
      %1358 = vmatprep.subr.bf16.mxu0 0
      %1359 = vmatpush1.bf16.msra.mxu0 0
      %1360 = vmatprep.subr.bf16.mxu0 %v1073
      %1361 = vmatpush1.bf16.msra.mxu0 %v1070
      %1362 = vmatprep.subr.bf16.mxu0 %v865
      %1363 = vmatpush1.bf16.msra.mxu0 %v864
      %1364 = vmatprep.subr.bf16.mxu0 %v829
      %1365 = vmatpush1.bf16.msra.mxu0 %v828
      %1366 = vmatprep.subr.bf16.mxu0 %v793
      %1367 = vmatpush1.bf16.msra.mxu0 %v792
      %1368 = vmatprep.subr.bf16.mxu0 0
      %1369 = vmatpush2.bf16.msra.mxu0 0
      %1370 = vmatprep.subr.bf16.mxu0 0
      %1371 = vmatpush2.bf16.msra.mxu0 0
      %1372 = vmatprep.subr.bf16.mxu0 0
      %1373 = vmatpush2.bf16.msra.mxu0 0
      %1374 = vmatprep.subr.bf16.mxu0 0
      %1375 = vmatpush2.bf16.msra.mxu0 0
      %1376 = vmatprep.subr.bf16.mxu0 0
      %1377 = vmatpush2.bf16.msra.mxu0 0
      %1378 = vmatprep.subr.bf16.mxu0 0
      %1379 = vmatpush2.bf16.msra.mxu0 0
      %1380 = vmatprep.subr.bf16.mxu0 0
      %1381 = vmatpush2.bf16.msra.mxu0 0
      %1382 = vmatprep.subr.bf16.mxu0 0
      %1383 = vmatpush2.bf16.msra.mxu0 0
      %1384 = vmatprep.mubr.bf16.mxu0 0
      %1385 = vmatmul.mubr.bf16.gmra.mxu0 %v1036
      %v1386 = vpop.f32.mrf.mxu0
      %v1387 = vadd.f32 0.0, %v1386
      %v1388 = vpop.f32.mrf.mxu0
      %v1389 = vadd.f32 0.0, %v1388
      %v1390 = vpop.f32.mrf.mxu0
      %v1391 = vpop.f32.mrf.mxu0
      %1392 = vdwg.mxu0
      %1393 = vmatprep.subr.bf16.mxu0 0
      %1394 = vmatpush1.bf16.msra.mxu0 0
      %1395 = vmatprep.subr.bf16.mxu0 0
      %1396 = vmatpush1.bf16.msra.mxu0 0
      %1397 = vmatprep.subr.bf16.mxu0 0
      %1398 = vmatpush1.bf16.msra.mxu0 0
      %1399 = vmatprep.subr.bf16.mxu0 0
      %1400 = vmatpush1.bf16.msra.mxu0 0
      %1401 = vmatprep.subr.bf16.mxu0 %v1079
      %1402 = vmatpush1.bf16.msra.mxu0 %v1076
      %1403 = vmatprep.subr.bf16.mxu0 %v867
      %1404 = vmatpush1.bf16.msra.mxu0 %v866
      %1405 = vmatprep.subr.bf16.mxu0 %v831
      %1406 = vmatpush1.bf16.msra.mxu0 %v830
      %1407 = vmatprep.subr.bf16.mxu0 %v795
      %1408 = vmatpush1.bf16.msra.mxu0 %v794
      %1409 = vmatprep.subr.bf16.mxu0 0
      %1410 = vmatpush2.bf16.msra.mxu0 0
      %1411 = vmatprep.subr.bf16.mxu0 0
      %1412 = vmatpush2.bf16.msra.mxu0 0
      %1413 = vmatprep.subr.bf16.mxu0 0
      %1414 = vmatpush2.bf16.msra.mxu0 0
      %1415 = vmatprep.subr.bf16.mxu0 0
      %1416 = vmatpush2.bf16.msra.mxu0 0
      %1417 = vmatprep.subr.bf16.mxu0 0
      %1418 = vmatpush2.bf16.msra.mxu0 0
      %1419 = vmatprep.subr.bf16.mxu0 0
      %1420 = vmatpush2.bf16.msra.mxu0 0
      %1421 = vmatprep.subr.bf16.mxu0 0
      %1422 = vmatpush2.bf16.msra.mxu0 0
      %1423 = vmatprep.subr.bf16.mxu0 0
      %1424 = vmatpush2.bf16.msra.mxu0 0
      %1425 = vmatprep.mubr.bf16.mxu0 0
      %1426 = vmatmul.mubr.bf16.gmra.mxu0 %v1036
      %v1427 = vpop.f32.mrf.mxu0
      %v1428 = vadd.f32 0.0, %v1427
      %v1429 = vpop.f32.mrf.mxu0
      %v1430 = vadd.f32 0.0, %v1429
      %v1431 = vpop.f32.mrf.mxu0
      %v1432 = vpop.f32.mrf.mxu0
      %1433 = vdwg.mxu0
      %1434 = vmatprep.subr.bf16.mxu0 0
      %1435 = vmatpush1.bf16.msra.mxu0 0
      %1436 = vmatprep.subr.bf16.mxu0 0
      %1437 = vmatpush1.bf16.msra.mxu0 0
      %1438 = vmatprep.subr.bf16.mxu0 0
      %1439 = vmatpush1.bf16.msra.mxu0 0
      %1440 = vmatprep.subr.bf16.mxu0 0
      %1441 = vmatpush1.bf16.msra.mxu0 0
      %1442 = vmatprep.subr.bf16.mxu0 %v1085
      %1443 = vmatpush1.bf16.msra.mxu0 %v1082
      %1444 = vmatprep.subr.bf16.mxu0 %v869
      %1445 = vmatpush1.bf16.msra.mxu0 %v868
      %1446 = vmatprep.subr.bf16.mxu0 %v833
      %1447 = vmatpush1.bf16.msra.mxu0 %v832
      %1448 = vmatprep.subr.bf16.mxu0 %v797
      %1449 = vmatpush1.bf16.msra.mxu0 %v796
      %1450 = vmatprep.subr.bf16.mxu0 0
      %1451 = vmatpush2.bf16.msra.mxu0 0
      %1452 = vmatprep.subr.bf16.mxu0 0
      %1453 = vmatpush2.bf16.msra.mxu0 0
      %1454 = vmatprep.subr.bf16.mxu0 0
      %1455 = vmatpush2.bf16.msra.mxu0 0
      %1456 = vmatprep.subr.bf16.mxu0 0
      %1457 = vmatpush2.bf16.msra.mxu0 0
      %1458 = vmatprep.subr.bf16.mxu0 0
      %1459 = vmatpush2.bf16.msra.mxu0 0
      %1460 = vmatprep.subr.bf16.mxu0 0
      %1461 = vmatpush2.bf16.msra.mxu0 0
      %1462 = vmatprep.subr.bf16.mxu0 0
      %1463 = vmatpush2.bf16.msra.mxu0 0
      %1464 = vmatprep.subr.bf16.mxu0 0
      %1465 = vmatpush2.bf16.msra.mxu0 0
      %1466 = vmatprep.mubr.bf16.mxu0 0
      %1467 = vmatmul.mubr.bf16.gmra.mxu0 %v1036
      %v1468 = vpop.f32.mrf.mxu0
      %v1469 = vadd.f32 0.0, %v1468
      %v1470 = vpop.f32.mrf.mxu0
      %v1471 = vadd.f32 0.0, %v1470
      %v1472 = vpop.f32.mrf.mxu0
      %v1473 = vpop.f32.mrf.mxu0
      %1474 = vdwg.mxu0
      %1475 = vmatprep.subr.bf16.mxu0 0
      %1476 = vmatpush1.bf16.msra.mxu0 0
      %1477 = vmatprep.subr.bf16.mxu0 0
      %1478 = vmatpush1.bf16.msra.mxu0 0
      %1479 = vmatprep.subr.bf16.mxu0 0
      %1480 = vmatpush1.bf16.msra.mxu0 0
      %1481 = vmatprep.subr.bf16.mxu0 0
      %1482 = vmatpush1.bf16.msra.mxu0 0
      %1483 = vmatprep.subr.bf16.mxu0 %v1091
      %1484 = vmatpush1.bf16.msra.mxu0 %v1088
      %1485 = vmatprep.subr.bf16.mxu0 %v871
      %1486 = vmatpush1.bf16.msra.mxu0 %v870
      %1487 = vmatprep.subr.bf16.mxu0 %v835
      %1488 = vmatpush1.bf16.msra.mxu0 %v834
      %1489 = vmatprep.subr.bf16.mxu0 %v799
      %1490 = vmatpush1.bf16.msra.mxu0 %v798
      %1491 = vmatprep.subr.bf16.mxu0 0
      %1492 = vmatpush2.bf16.msra.mxu0 0
      %1493 = vmatprep.subr.bf16.mxu0 0
      %1494 = vmatpush2.bf16.msra.mxu0 0
      %1495 = vmatprep.subr.bf16.mxu0 0
      %1496 = vmatpush2.bf16.msra.mxu0 0
      %1497 = vmatprep.subr.bf16.mxu0 0
      %1498 = vmatpush2.bf16.msra.mxu0 0
      %1499 = vmatprep.subr.bf16.mxu0 0
      %1500 = vmatpush2.bf16.msra.mxu0 0
      %1501 = vmatprep.subr.bf16.mxu0 0
      %1502 = vmatpush2.bf16.msra.mxu0 0
      %1503 = vmatprep.subr.bf16.mxu0 0
      %1504 = vmatpush2.bf16.msra.mxu0 0
      %1505 = vmatprep.subr.bf16.mxu0 0
      %1506 = vmatpush2.bf16.msra.mxu0 0
      %1507 = vmatprep.mubr.bf16.mxu0 0
      %1508 = vmatmul.mubr.bf16.gmra.mxu0 %v1036
      %v1509 = vpop.f32.mrf.mxu0
      %v1510 = vadd.f32 0.0, %v1509
      %v1511 = vpop.f32.mrf.mxu0
      %v1512 = vadd.f32 0.0, %v1511
      %v1513 = vpop.f32.mrf.mxu0
      %v1514 = vpop.f32.mrf.mxu0
      %1515 = vdwg.mxu0
      %1516 = vmatprep.subr.bf16.mxu0 0
      %1517 = vmatpush1.bf16.msra.mxu0 0
      %1518 = vmatprep.subr.bf16.mxu0 0
      %1519 = vmatpush1.bf16.msra.mxu0 0
      %1520 = vmatprep.subr.bf16.mxu0 0
      %1521 = vmatpush1.bf16.msra.mxu0 0
      %1522 = vmatprep.subr.bf16.mxu0 0
      %1523 = vmatpush1.bf16.msra.mxu0 0
      %1524 = vmatprep.subr.bf16.mxu0 %v1097
      %1525 = vmatpush1.bf16.msra.mxu0 %v1094
      %1526 = vmatprep.subr.bf16.mxu0 %v873
      %1527 = vmatpush1.bf16.msra.mxu0 %v872
      %1528 = vmatprep.subr.bf16.mxu0 %v837
      %1529 = vmatpush1.bf16.msra.mxu0 %v836
      %1530 = vmatprep.subr.bf16.mxu0 %v801
      %1531 = vmatpush1.bf16.msra.mxu0 %v800
      %1532 = vmatprep.subr.bf16.mxu0 0
      %1533 = vmatpush2.bf16.msra.mxu0 0
      %1534 = vmatprep.subr.bf16.mxu0 0
      %1535 = vmatpush2.bf16.msra.mxu0 0
      %1536 = vmatprep.subr.bf16.mxu0 0
      %1537 = vmatpush2.bf16.msra.mxu0 0
      %1538 = vmatprep.subr.bf16.mxu0 0
      %1539 = vmatpush2.bf16.msra.mxu0 0
      %1540 = vmatprep.subr.bf16.mxu0 0
      %1541 = vmatpush2.bf16.msra.mxu0 0
      %1542 = vmatprep.subr.bf16.mxu0 0
      %1543 = vmatpush2.bf16.msra.mxu0 0
      %1544 = vmatprep.subr.bf16.mxu0 0
      %1545 = vmatpush2.bf16.msra.mxu0 0
      %1546 = vmatprep.subr.bf16.mxu0 0
      %1547 = vmatpush2.bf16.msra.mxu0 0
      %1548 = vmatprep.mubr.bf16.mxu0 0
      %1549 = vmatmul.mubr.bf16.gmra.mxu0 %v1036
      %v1550 = vpop.f32.mrf.mxu0
      %v1551 = vadd.f32 0.0, %v1550
      %v1552 = vpop.f32.mrf.mxu0
      %v1553 = vadd.f32 0.0, %v1552
      %v1554 = vpop.f32.mrf.mxu0
      %v1555 = vpop.f32.mrf.mxu0
      %1556 = vdwg.mxu0
      %1557 = vmatprep.subr.bf16.mxu0 0
      %1558 = vmatpush1.bf16.msra.mxu0 0
      %1559 = vmatprep.subr.bf16.mxu0 0
      %1560 = vmatpush1.bf16.msra.mxu0 0
      %1561 = vmatprep.subr.bf16.mxu0 0
      %1562 = vmatpush1.bf16.msra.mxu0 0
      %1563 = vmatprep.subr.bf16.mxu0 0
      %1564 = vmatpush1.bf16.msra.mxu0 0
      %1565 = vmatprep.subr.bf16.mxu0 %v1103
      %1566 = vmatpush1.bf16.msra.mxu0 %v1100
      %1567 = vmatprep.subr.bf16.mxu0 %v875
      %1568 = vmatpush1.bf16.msra.mxu0 %v874
      %1569 = vmatprep.subr.bf16.mxu0 %v839
      %1570 = vmatpush1.bf16.msra.mxu0 %v838
      %1571 = vmatprep.subr.bf16.mxu0 %v803
      %1572 = vmatpush1.bf16.msra.mxu0 %v802
      %1573 = vmatprep.subr.bf16.mxu0 0
      %1574 = vmatpush2.bf16.msra.mxu0 0
      %1575 = vmatprep.subr.bf16.mxu0 0
      %1576 = vmatpush2.bf16.msra.mxu0 0
      %1577 = vmatprep.subr.bf16.mxu0 0
      %1578 = vmatpush2.bf16.msra.mxu0 0
      %1579 = vmatprep.subr.bf16.mxu0 0
      %1580 = vmatpush2.bf16.msra.mxu0 0
      %1581 = vmatprep.subr.bf16.mxu0 0
      %1582 = vmatpush2.bf16.msra.mxu0 0
      %1583 = vmatprep.subr.bf16.mxu0 0
      %1584 = vmatpush2.bf16.msra.mxu0 0
      %1585 = vmatprep.subr.bf16.mxu0 0
      %1586 = vmatpush2.bf16.msra.mxu0 0
      %1587 = vmatprep.subr.bf16.mxu0 0
      %1588 = vmatpush2.bf16.msra.mxu0 0
      %1589 = vmatprep.mubr.bf16.mxu0 0
      %1590 = vmatmul.mubr.bf16.gmra.mxu0 %v1036
      %v1591 = vpop.f32.mrf.mxu0
      %v1592 = vadd.f32 0.0, %v1591
      %v1593 = vpop.f32.mrf.mxu0
      %v1594 = vadd.f32 0.0, %v1593
      %v1595 = vpop.f32.mrf.mxu0
      %v1596 = vpop.f32.mrf.mxu0
      %1597 = vdwg.mxu0
      %1598 = vmatprep.subr.bf16.mxu0 0
      %1599 = vmatpush1.bf16.msra.mxu0 0
      %1600 = vmatprep.subr.bf16.mxu0 0
      %1601 = vmatpush1.bf16.msra.mxu0 0
      %1602 = vmatprep.subr.bf16.mxu0 0
      %1603 = vmatpush1.bf16.msra.mxu0 0
      %1604 = vmatprep.subr.bf16.mxu0 0
      %1605 = vmatpush1.bf16.msra.mxu0 0
      %1606 = vmatprep.subr.bf16.mxu0 %v1109
      %1607 = vmatpush1.bf16.msra.mxu0 %v1106
      %1608 = vmatprep.subr.bf16.mxu0 %v877
      %1609 = vmatpush1.bf16.msra.mxu0 %v876
      %1610 = vmatprep.subr.bf16.mxu0 %v841
      %1611 = vmatpush1.bf16.msra.mxu0 %v840
      %1612 = vmatprep.subr.bf16.mxu0 %v805
      %1613 = vmatpush1.bf16.msra.mxu0 %v804
      %1614 = vmatprep.subr.bf16.mxu0 0
      %1615 = vmatpush2.bf16.msra.mxu0 0
      %1616 = vmatprep.subr.bf16.mxu0 0
      %1617 = vmatpush2.bf16.msra.mxu0 0
      %1618 = vmatprep.subr.bf16.mxu0 0
      %1619 = vmatpush2.bf16.msra.mxu0 0
      %1620 = vmatprep.subr.bf16.mxu0 0
      %1621 = vmatpush2.bf16.msra.mxu0 0
      %1622 = vmatprep.subr.bf16.mxu0 0
      %1623 = vmatpush2.bf16.msra.mxu0 0
      %1624 = vmatprep.subr.bf16.mxu0 0
      %1625 = vmatpush2.bf16.msra.mxu0 0
      %1626 = vmatprep.subr.bf16.mxu0 0
      %1627 = vmatpush2.bf16.msra.mxu0 0
      %1628 = vmatprep.subr.bf16.mxu0 0
      %1629 = vmatpush2.bf16.msra.mxu0 0
      %1630 = vmatprep.mubr.bf16.mxu0 0
      %1631 = vmatmul.mubr.bf16.gmra.mxu0 %v1036
      %v1632 = vpop.f32.mrf.mxu0
      %v1633 = vadd.f32 0.0, %v1632
      %v1634 = vpop.f32.mrf.mxu0
      %v1635 = vadd.f32 0.0, %v1634
      %v1636 = vpop.f32.mrf.mxu0
      %v1637 = vpop.f32.mrf.mxu0
      %1638 = vdwg.mxu0
      %1639 = vmatprep.subr.bf16.mxu0 0
      %1640 = vmatpush1.bf16.msra.mxu0 0
      %1641 = vmatprep.subr.bf16.mxu0 0
      %1642 = vmatpush1.bf16.msra.mxu0 0
      %1643 = vmatprep.subr.bf16.mxu0 0
      %1644 = vmatpush1.bf16.msra.mxu0 0
      %1645 = vmatprep.subr.bf16.mxu0 0
      %1646 = vmatpush1.bf16.msra.mxu0 0
      %1647 = vmatprep.subr.bf16.mxu0 %v1115
      %1648 = vmatpush1.bf16.msra.mxu0 %v1112
      %1649 = vmatprep.subr.bf16.mxu0 %v879
      %1650 = vmatpush1.bf16.msra.mxu0 %v878
      %1651 = vmatprep.subr.bf16.mxu0 %v843
      %1652 = vmatpush1.bf16.msra.mxu0 %v842
      %1653 = vmatprep.subr.bf16.mxu0 %v807
      %1654 = vmatpush1.bf16.msra.mxu0 %v806
      %1655 = vmatprep.subr.bf16.mxu0 0
      %1656 = vmatpush2.bf16.msra.mxu0 0
      %1657 = vmatprep.subr.bf16.mxu0 0
      %1658 = vmatpush2.bf16.msra.mxu0 0
      %1659 = vmatprep.subr.bf16.mxu0 0
      %1660 = vmatpush2.bf16.msra.mxu0 0
      %1661 = vmatprep.subr.bf16.mxu0 0
      %1662 = vmatpush2.bf16.msra.mxu0 0
      %1663 = vmatprep.subr.bf16.mxu0 0
      %1664 = vmatpush2.bf16.msra.mxu0 0
      %1665 = vmatprep.subr.bf16.mxu0 0
      %1666 = vmatpush2.bf16.msra.mxu0 0
      %1667 = vmatprep.subr.bf16.mxu0 0
      %1668 = vmatpush2.bf16.msra.mxu0 0
      %1669 = vmatprep.subr.bf16.mxu0 0
      %1670 = vmatpush2.bf16.msra.mxu0 0
      %1671 = vmatprep.mubr.bf16.mxu0 0
      %1672 = vmatmul.mubr.bf16.gmra.mxu0 %v1036
      %v1673 = vpop.f32.mrf.mxu0
      %v1674 = vadd.f32 0.0, %v1673
      %v1675 = vpop.f32.mrf.mxu0
      %v1676 = vadd.f32 0.0, %v1675
      %v1677 = vpop.f32.mrf.mxu0
      %v1678 = vpop.f32.mrf.mxu0
      %1679 = vdwg.mxu0
      %1680 = vmatprep.subr.bf16.mxu0 0
      %1681 = vmatpush1.bf16.msra.mxu0 0
      %1682 = vmatprep.subr.bf16.mxu0 0
      %1683 = vmatpush1.bf16.msra.mxu0 0
      %1684 = vmatprep.subr.bf16.mxu0 0
      %1685 = vmatpush1.bf16.msra.mxu0 0
      %1686 = vmatprep.subr.bf16.mxu0 0
      %1687 = vmatpush1.bf16.msra.mxu0 0
      %1688 = vmatprep.subr.bf16.mxu0 %v1121
      %1689 = vmatpush1.bf16.msra.mxu0 %v1118
      %1690 = vmatprep.subr.bf16.mxu0 %v881
      %1691 = vmatpush1.bf16.msra.mxu0 %v880
      %1692 = vmatprep.subr.bf16.mxu0 %v845
      %1693 = vmatpush1.bf16.msra.mxu0 %v844
      %1694 = vmatprep.subr.bf16.mxu0 %v809
      %1695 = vmatpush1.bf16.msra.mxu0 %v808
      %1696 = vmatprep.subr.bf16.mxu0 0
      %1697 = vmatpush2.bf16.msra.mxu0 0
      %1698 = vmatprep.subr.bf16.mxu0 0
      %1699 = vmatpush2.bf16.msra.mxu0 0
      %1700 = vmatprep.subr.bf16.mxu0 0
      %1701 = vmatpush2.bf16.msra.mxu0 0
      %1702 = vmatprep.subr.bf16.mxu0 0
      %1703 = vmatpush2.bf16.msra.mxu0 0
      %1704 = vmatprep.subr.bf16.mxu0 0
      %1705 = vmatpush2.bf16.msra.mxu0 0
      %1706 = vmatprep.subr.bf16.mxu0 0
      %1707 = vmatpush2.bf16.msra.mxu0 0
      %1708 = vmatprep.subr.bf16.mxu0 0
      %1709 = vmatpush2.bf16.msra.mxu0 0
      %1710 = vmatprep.subr.bf16.mxu0 0
      %1711 = vmatpush2.bf16.msra.mxu0 0
      %1712 = vmatprep.mubr.bf16.mxu0 0
      %1713 = vmatmul.mubr.bf16.gmra.mxu0 %v1036
      %v1714 = vpop.f32.mrf.mxu0
      %v1715 = vadd.f32 0.0, %v1714
      %v1716 = vpop.f32.mrf.mxu0
      %v1717 = vadd.f32 0.0, %v1716
      %v1718 = vpop.f32.mrf.mxu0
      %v1719 = vpop.f32.mrf.mxu0
      %1720 = vdwg.mxu0
      %1721 = vmatprep.subr.bf16.mxu0 0
      %1722 = vmatpush1.bf16.msra.mxu0 0
      %1723 = vmatprep.subr.bf16.mxu0 0
      %1724 = vmatpush1.bf16.msra.mxu0 0
      %1725 = vmatprep.subr.bf16.mxu0 0
      %1726 = vmatpush1.bf16.msra.mxu0 0
      %1727 = vmatprep.subr.bf16.mxu0 0
      %1728 = vmatpush1.bf16.msra.mxu0 0
      %1729 = vmatprep.subr.bf16.mxu0 %v1127
      %1730 = vmatpush1.bf16.msra.mxu0 %v1124
      %1731 = vmatprep.subr.bf16.mxu0 %v883
      %1732 = vmatpush1.bf16.msra.mxu0 %v882
      %1733 = vmatprep.subr.bf16.mxu0 %v847
      %1734 = vmatpush1.bf16.msra.mxu0 %v846
      %1735 = vmatprep.subr.bf16.mxu0 %v811
      %1736 = vmatpush1.bf16.msra.mxu0 %v810
      %1737 = vmatprep.subr.bf16.mxu0 0
      %1738 = vmatpush2.bf16.msra.mxu0 0
      %1739 = vmatprep.subr.bf16.mxu0 0
      %1740 = vmatpush2.bf16.msra.mxu0 0
      %1741 = vmatprep.subr.bf16.mxu0 0
      %1742 = vmatpush2.bf16.msra.mxu0 0
      %1743 = vmatprep.subr.bf16.mxu0 0
      %1744 = vmatpush2.bf16.msra.mxu0 0
      %1745 = vmatprep.subr.bf16.mxu0 0
      %1746 = vmatpush2.bf16.msra.mxu0 0
      %1747 = vmatprep.subr.bf16.mxu0 0
      %1748 = vmatpush2.bf16.msra.mxu0 0
      %1749 = vmatprep.subr.bf16.mxu0 0
      %1750 = vmatpush2.bf16.msra.mxu0 0
      %1751 = vmatprep.subr.bf16.mxu0 0
      %1752 = vmatpush2.bf16.msra.mxu0 0
      %1753 = vmatprep.mubr.bf16.mxu0 0
      %1754 = vmatmul.mubr.bf16.gmra.mxu0 %v1036
      %v1755 = vpop.f32.mrf.mxu0
      %v1756 = vadd.f32 0.0, %v1755
      %v1757 = vpop.f32.mrf.mxu0
      %v1758 = vadd.f32 0.0, %v1757
      %v1759 = vpop.f32.mrf.mxu0
      %v1760 = vpop.f32.mrf.mxu0
      %1761 = vdwg.mxu0
      %1762 = vmatprep.subr.bf16.mxu0 0
      %1763 = vmatpush1.bf16.msra.mxu0 0
      %1764 = vmatprep.subr.bf16.mxu0 0
      %1765 = vmatpush1.bf16.msra.mxu0 0
      %1766 = vmatprep.subr.bf16.mxu0 0
      %1767 = vmatpush1.bf16.msra.mxu0 0
      %1768 = vmatprep.subr.bf16.mxu0 0
      %1769 = vmatpush1.bf16.msra.mxu0 0
      %1770 = vmatprep.subr.bf16.mxu0 %v1133
      %1771 = vmatpush1.bf16.msra.mxu0 %v1130
      %1772 = vmatprep.subr.bf16.mxu0 %v885
      %1773 = vmatpush1.bf16.msra.mxu0 %v884
      %1774 = vmatprep.subr.bf16.mxu0 %v849
      %1775 = vmatpush1.bf16.msra.mxu0 %v848
      %1776 = vmatprep.subr.bf16.mxu0 %v813
      %1777 = vmatpush1.bf16.msra.mxu0 %v812
      %1778 = vmatprep.subr.bf16.mxu0 0
      %1779 = vmatpush2.bf16.msra.mxu0 0
      %1780 = vmatprep.subr.bf16.mxu0 0
      %1781 = vmatpush2.bf16.msra.mxu0 0
      %1782 = vmatprep.subr.bf16.mxu0 0
      %1783 = vmatpush2.bf16.msra.mxu0 0
      %1784 = vmatprep.subr.bf16.mxu0 0
      %1785 = vmatpush2.bf16.msra.mxu0 0
      %1786 = vmatprep.subr.bf16.mxu0 0
      %1787 = vmatpush2.bf16.msra.mxu0 0
      %1788 = vmatprep.subr.bf16.mxu0 0
      %1789 = vmatpush2.bf16.msra.mxu0 0
      %1790 = vmatprep.subr.bf16.mxu0 0
      %1791 = vmatpush2.bf16.msra.mxu0 0
      %1792 = vmatprep.subr.bf16.mxu0 0
      %1793 = vmatpush2.bf16.msra.mxu0 0
      %1794 = vmatprep.mubr.bf16.mxu0 0
      %1795 = vmatmul.mubr.bf16.gmra.mxu0 %v1036
      %v1796 = vpop.f32.mrf.mxu0
      %v1797 = vadd.f32 0.0, %v1796
      %v1798 = vpop.f32.mrf.mxu0
      %v1799 = vadd.f32 0.0, %v1798
      %v1800 = vpop.f32.mrf.mxu0
      %v1801 = vpop.f32.mrf.mxu0
      %1802 = vdwg.mxu0
      %1803 = vmatprep.subr.bf16.mxu0 0
      %1804 = vmatpush1.bf16.msra.mxu0 0
      %1805 = vmatprep.subr.bf16.mxu0 0
      %1806 = vmatpush1.bf16.msra.mxu0 0
      %1807 = vmatprep.subr.bf16.mxu0 0
      %1808 = vmatpush1.bf16.msra.mxu0 0
      %1809 = vmatprep.subr.bf16.mxu0 0
      %1810 = vmatpush1.bf16.msra.mxu0 0
      %1811 = vmatprep.subr.bf16.mxu0 %v1139
      %1812 = vmatpush1.bf16.msra.mxu0 %v1136
      %1813 = vmatprep.subr.bf16.mxu0 %v887
      %1814 = vmatpush1.bf16.msra.mxu0 %v886
      %1815 = vmatprep.subr.bf16.mxu0 %v851
      %1816 = vmatpush1.bf16.msra.mxu0 %v850
      %1817 = vmatprep.subr.bf16.mxu0 %v815
      %1818 = vmatpush1.bf16.msra.mxu0 %v814
      %1819 = vmatprep.subr.bf16.mxu0 0
      %1820 = vmatpush2.bf16.msra.mxu0 0
      %1821 = vmatprep.subr.bf16.mxu0 0
      %1822 = vmatpush2.bf16.msra.mxu0 0
      %1823 = vmatprep.subr.bf16.mxu0 0
      %1824 = vmatpush2.bf16.msra.mxu0 0
      %1825 = vmatprep.subr.bf16.mxu0 0
      %1826 = vmatpush2.bf16.msra.mxu0 0
      %1827 = vmatprep.subr.bf16.mxu0 0
      %1828 = vmatpush2.bf16.msra.mxu0 0
      %1829 = vmatprep.subr.bf16.mxu0 0
      %1830 = vmatpush2.bf16.msra.mxu0 0
      %1831 = vmatprep.subr.bf16.mxu0 0
      %1832 = vmatpush2.bf16.msra.mxu0 0
      %1833 = vmatprep.subr.bf16.mxu0 0
      %1834 = vmatpush2.bf16.msra.mxu0 0
      %1835 = vmatprep.mubr.bf16.mxu0 0
      %1836 = vmatmul.mubr.bf16.gmra.mxu0 %v1036
      %v1837 = vpop.f32.mrf.mxu0
      %v1838 = vadd.f32 0.0, %v1837
      %v1839 = vpop.f32.mrf.mxu0
      %v1840 = vadd.f32 0.0, %v1839
      %v1841 = vpop.f32.mrf.mxu0
      %v1842 = vpop.f32.mrf.mxu0
      %1843 = vdwg.mxu0
      %1844 = vmatprep.subr.bf16.mxu0 0
      %1845 = vmatpush1.bf16.msra.mxu0 0
      %1846 = vmatprep.subr.bf16.mxu0 0
      %1847 = vmatpush1.bf16.msra.mxu0 0
      %1848 = vmatprep.subr.bf16.mxu0 0
      %1849 = vmatpush1.bf16.msra.mxu0 0
      %1850 = vmatprep.subr.bf16.mxu0 0
      %1851 = vmatpush1.bf16.msra.mxu0 0
      %1852 = vmatprep.subr.bf16.mxu0 %v1145
      %1853 = vmatpush1.bf16.msra.mxu0 %v1142
      %1854 = vmatprep.subr.bf16.mxu0 %v889
      %1855 = vmatpush1.bf16.msra.mxu0 %v888
      %1856 = vmatprep.subr.bf16.mxu0 %v853
      %1857 = vmatpush1.bf16.msra.mxu0 %v852
      %1858 = vmatprep.subr.bf16.mxu0 %v817
      %1859 = vmatpush1.bf16.msra.mxu0 %v816
      %1860 = vmatprep.subr.bf16.mxu0 0
      %1861 = vmatpush2.bf16.msra.mxu0 0
      %1862 = vmatprep.subr.bf16.mxu0 0
      %1863 = vmatpush2.bf16.msra.mxu0 0
      %1864 = vmatprep.subr.bf16.mxu0 0
      %1865 = vmatpush2.bf16.msra.mxu0 0
      %1866 = vmatprep.subr.bf16.mxu0 0
      %1867 = vmatpush2.bf16.msra.mxu0 0
      %1868 = vmatprep.subr.bf16.mxu0 0
      %1869 = vmatpush2.bf16.msra.mxu0 0
      %1870 = vmatprep.subr.bf16.mxu0 0
      %1871 = vmatpush2.bf16.msra.mxu0 0
      %1872 = vmatprep.subr.bf16.mxu0 0
      %1873 = vmatpush2.bf16.msra.mxu0 0
      %1874 = vmatprep.subr.bf16.mxu0 0
      %1875 = vmatpush2.bf16.msra.mxu0 0
      %1876 = vmatprep.mubr.bf16.mxu0 0
      %1877 = vmatmul.mubr.bf16.gmra.mxu0 %v1036
      %v1878 = vpop.f32.mrf.mxu0
      %v1879 = vadd.f32 0.0, %v1878
      %v1880 = vpop.f32.mrf.mxu0
      %v1881 = vadd.f32 0.0, %v1880
      %v1882 = vpop.f32.mrf.mxu0
      %v1883 = vpop.f32.mrf.mxu0
      %1884 = vdwg.mxu0
      %v1885 = vadd.f32 %v241, %v1182
      %v1886 = vadd.f32 %v242, %v1184
      %v1887 = vadd.f32 %v243, %v1223
      %v1888 = vadd.f32 %v244, %v1225
      %v1889 = vadd.f32 %v245, %v1264
      %v1890 = vadd.f32 %v246, %v1266
      %v1891 = vadd.f32 %v247, %v1305
      %v1892 = vadd.f32 %v248, %v1307
      %v1893 = vadd.f32 %v249, %v1346
      %v1894 = vadd.f32 %v250, %v1348
      %v1895 = vadd.f32 %v251, %v1387
      %v1896 = vadd.f32 %v252, %v1389
      %v1897 = vadd.f32 %v253, %v1428
      %v1898 = vadd.f32 %v254, %v1430
      %v1899 = vadd.f32 %v255, %v1469
      %v1900 = vadd.f32 %v256, %v1471
      %v1901 = vadd.f32 %v257, %v1510
      %v1902 = vadd.f32 %v258, %v1512
      %v1903 = vadd.f32 %v259, %v1551
      %v1904 = vadd.f32 %v260, %v1553
      %v1905 = vadd.f32 %v261, %v1592
      %v1906 = vadd.f32 %v262, %v1594
      %v1907 = vadd.f32 %v263, %v1633
      %v1908 = vadd.f32 %v264, %v1635
      %v1909 = vadd.f32 %v265, %v1674
      %v1910 = vadd.f32 %v266, %v1676
      %v1911 = vadd.f32 %v267, %v1715
      %v1912 = vadd.f32 %v268, %v1717
      %v1913 = vadd.f32 %v269, %v1756
      %v1914 = vadd.f32 %v270, %v1758
      %v1915 = vadd.f32 %v271, %v1797
      %v1916 = vadd.f32 %v272, %v1799
      %v1917 = vadd.f32 %v273, %v1838
      %v1918 = vadd.f32 %v274, %v1840
      %v1919 = vadd.f32 %v275, %v1879
      %v1920 = vadd.f32 %v276, %v1881
      %1921 = vst [vmem:[#allocation2] sm:$0x3f] %v1885
      %1922 = vst [vmem:[#allocation2 + $0x8] sm:$0x3f] %v1886
      %1923 = vst [vmem:[#allocation2 + $0x10] sm:$0x3f] %v1887
      %1924 = vst [vmem:[#allocation2 + $0x18] sm:$0x3f] %v1888
      %1925 = vst [vmem:[#allocation2 + $0x20] sm:$0x3f] %v1889
      %1926 = vst [vmem:[#allocation2 + $0x28] sm:$0x3f] %v1890
      %1927 = vst [vmem:[#allocation2 + $0x30] sm:$0x3f] %v1891
      %1928 = vst [vmem:[#allocation2 + $0x38] sm:$0x3f] %v1892
      %1929 = vst [vmem:[#allocation2 + $0x40] sm:$0x3f] %v1893
      %1930 = vst [vmem:[#allocation2 + $0x48] sm:$0x3f] %v1894
      %1931 = vst [vmem:[#allocation2 + $0x50] sm:$0x3f] %v1895
      %1932 = vst [vmem:[#allocation2 + $0x58] sm:$0x3f] %v1896
      %1933 = vst [vmem:[#allocation2 + $0x60] sm:$0x3f] %v1897
      %1934 = vst [vmem:[#allocation2 + $0x68] sm:$0x3f] %v1898
      %1935 = vst [vmem:[#allocation2 + $0x70] sm:$0x3f] %v1899
      %1936 = vst [vmem:[#allocation2 + $0x78] sm:$0x3f] %v1900
      %1937 = vst [vmem:[#allocation2 + $0x80] sm:$0x3f] %v1901
      %1938 = vst [vmem:[#allocation2 + $0x88] sm:$0x3f] %v1902
      %1939 = vst [vmem:[#allocation2 + $0x90] sm:$0x3f] %v1903
      %1940 = vst [vmem:[#allocation2 + $0x98] sm:$0x3f] %v1904
      %1941 = vst [vmem:[#allocation2 + $0xa0] sm:$0x3f] %v1905
      %1942 = vst [vmem:[#allocation2 + $0xa8] sm:$0x3f] %v1906
      %1943 = vst [vmem:[#allocation2 + $0xb0] sm:$0x3f] %v1907
      %1944 = vst [vmem:[#allocation2 + $0xb8] sm:$0x3f] %v1908
      %1945 = vst [vmem:[#allocation2 + $0xc0] sm:$0x3f] %v1909
      %1946 = vst [vmem:[#allocation2 + $0xc8] sm:$0x3f] %v1910
      %1947 = vst [vmem:[#allocation2 + $0xd0] sm:$0x3f] %v1911
      %1948 = vst [vmem:[#allocation2 + $0xd8] sm:$0x3f] %v1912
      %1949 = vst [vmem:[#allocation2 + $0xe0] sm:$0x3f] %v1913
      %1950 = vst [vmem:[#allocation2 + $0xe8] sm:$0x3f] %v1914
      %1951 = vst [vmem:[#allocation2 + $0xf0] sm:$0x3f] %v1915
      %1952 = vst [vmem:[#allocation2 + $0xf8] sm:$0x3f] %v1916
      %1953 = vst [vmem:[#allocation2 + $0x100] sm:$0x3f] %v1917
      %1954 = vst [vmem:[#allocation2 + $0x108] sm:$0x3f] %v1918
      %1955 = vst [vmem:[#allocation2 + $0x110] sm:$0x3f] %v1919
      %1956 = vst [vmem:[#allocation2 + $0x118] sm:$0x3f] %v1920
      %p1957 = scmp.eq.s32.totalorder %s15, 6
      // Predicated region
      $region41: #{cae_forward.17} parent=35 // pred_check
        %p1958 = pneg %p1957
      $region42: #{cae_forward.17} parent=35 // pred_check_branch
        %1960 = sbr.rel (%p1958) target = $region44
      $region43: #{cae_forward.17} parent=35 // pred_region
        %v1961 = vld [vmem:[#allocation2] sm:$0x3f]
        %v1962 = vld [vmem:[#allocation2 + $0x8] sm:$0x3f]
        %v1963 = vld [vmem:[#allocation2 + $0x10] sm:$0x3f]
        %v1964 = vld [vmem:[#allocation2 + $0x18] sm:$0x3f]
        %v1965 = vld [vmem:[#allocation2 + $0x20] sm:$0x3f]
        %v1966 = vld [vmem:[#allocation2 + $0x28] sm:$0x3f]
        %v1967 = vld [vmem:[#allocation2 + $0x30] sm:$0x3f]
        %v1968 = vld [vmem:[#allocation2 + $0x38] sm:$0x3f]
        %v1969 = vld [vmem:[#allocation2 + $0x40] sm:$0x3f]
        %v1970 = vld [vmem:[#allocation2 + $0x48] sm:$0x3f]
        %v1971 = vld [vmem:[#allocation2 + $0x50] sm:$0x3f]
        %v1972 = vld [vmem:[#allocation2 + $0x58] sm:$0x3f]
        %v1973 = vld [vmem:[#allocation2 + $0x60] sm:$0x3f]
        %v1974 = vld [vmem:[#allocation2 + $0x68] sm:$0x3f]
        %v1975 = vld [vmem:[#allocation2 + $0x70] sm:$0x3f]
        %v1976 = vld [vmem:[#allocation2 + $0x78] sm:$0x3f]
        %v1977 = vld [vmem:[#allocation2 + $0x80] sm:$0x3f]
        %v1978 = vld [vmem:[#allocation2 + $0x88] sm:$0x3f]
        %v1979 = vld [vmem:[#allocation2 + $0x90] sm:$0x3f]
        %v1980 = vld [vmem:[#allocation2 + $0x98] sm:$0x3f]
        %v1981 = vld [vmem:[#allocation2 + $0xa0] sm:$0x3f]
        %v1982 = vld [vmem:[#allocation2 + $0xa8] sm:$0x3f]
        %v1983 = vld [vmem:[#allocation2 + $0xb0] sm:$0x3f]
        %v1984 = vld [vmem:[#allocation2 + $0xb8] sm:$0x3f]
        %v1985 = vld [vmem:[#allocation2 + $0xc0] sm:$0x3f]
        %v1986 = vld [vmem:[#allocation2 + $0xc8] sm:$0x3f]
        %v1987 = vld [vmem:[#allocation2 + $0xd0] sm:$0x3f]
        %v1988 = vld [vmem:[#allocation2 + $0xd8] sm:$0x3f]
        %v1989 = vld [vmem:[#allocation2 + $0xe0] sm:$0x3f]
        %v1990 = vld [vmem:[#allocation2 + $0xe8] sm:$0x3f]
        %v1991 = vld [vmem:[#allocation2 + $0xf0] sm:$0x3f]
        %v1992 = vld [vmem:[#allocation2 + $0xf8] sm:$0x3f]
        %v1993 = vld [vmem:[#allocation2 + $0x100] sm:$0x3f]
        %v1994 = vld [vmem:[#allocation2 + $0x108] sm:$0x3f]
        %v1995 = vld [vmem:[#allocation2 + $0x110] sm:$0x3f]
        %v1996 = vld [vmem:[#allocation2 + $0x118] sm:$0x3f]
        %vm1997 = vcmask 1045504
        %v1998 = vsel %vm1997, %v1961, 0.0
        %v1999 = vsel %vm1997, %v1962, 0.0
        %v2000 = vadd.f32 %v1998, %v1999
        %v2001 = vsel %vm1997, %v1963, 0.0
        %v2002 = vadd.f32 %v2000, %v2001
        %v2003 = vsel %vm1997, %v1964, 0.0
        %v2004 = vadd.f32 %v2002, %v2003
        %v2005 = vsel %vm1997, %v1965, 0.0
        %v2006 = vadd.f32 %v2004, %v2005
        %v2007 = vsel %vm1997, %v1966, 0.0
        %v2008 = vadd.f32 %v2006, %v2007
        %v2009 = vsel %vm1997, %v1967, 0.0
        %v2010 = vadd.f32 %v2008, %v2009
        %v2011 = vsel %vm1997, %v1968, 0.0
        %v2012 = vadd.f32 %v2010, %v2011
        %v2013 = vsel %vm1997, %v1969, 0.0
        %v2014 = vadd.f32 %v2012, %v2013
        %v2015 = vsel %vm1997, %v1970, 0.0
        %v2016 = vadd.f32 %v2014, %v2015
        %v2017 = vsel %vm1997, %v1971, 0.0
        %v2018 = vadd.f32 %v2016, %v2017
        %v2019 = vsel %vm1997, %v1972, 0.0
        %v2020 = vadd.f32 %v2018, %v2019
        %v2021 = vsel %vm1997, %v1973, 0.0
        %v2022 = vadd.f32 %v2020, %v2021
        %v2023 = vsel %vm1997, %v1974, 0.0
        %v2024 = vadd.f32 %v2022, %v2023
        %v2025 = vsel %vm1997, %v1975, 0.0
        %v2026 = vadd.f32 %v2024, %v2025
        %v2027 = vsel %vm1997, %v1976, 0.0
        %v2028 = vadd.f32 %v2026, %v2027
        %v2029 = vsel %vm1997, %v1977, 0.0
        %v2030 = vadd.f32 %v2028, %v2029
        %v2031 = vsel %vm1997, %v1978, 0.0
        %v2032 = vadd.f32 %v2030, %v2031
        %v2033 = vsel %vm1997, %v1979, 0.0
        %v2034 = vadd.f32 %v2032, %v2033
        %v2035 = vsel %vm1997, %v1980, 0.0
        %v2036 = vadd.f32 %v2034, %v2035
        %v2037 = vsel %vm1997, %v1981, 0.0
        %v2038 = vadd.f32 %v2036, %v2037
        %v2039 = vsel %vm1997, %v1982, 0.0
        %v2040 = vadd.f32 %v2038, %v2039
        %v2041 = vsel %vm1997, %v1983, 0.0
        %v2042 = vadd.f32 %v2040, %v2041
        %v2043 = vsel %vm1997, %v1984, 0.0
        %v2044 = vadd.f32 %v2042, %v2043
        %v2045 = vsel %vm1997, %v1985, 0.0
        %v2046 = vadd.f32 %v2044, %v2045
        %v2047 = vsel %vm1997, %v1986, 0.0
        %v2048 = vadd.f32 %v2046, %v2047
        %v2049 = vsel %vm1997, %v1987, 0.0
        %v2050 = vadd.f32 %v2048, %v2049
        %v2051 = vsel %vm1997, %v1988, 0.0
        %v2052 = vadd.f32 %v2050, %v2051
        %v2053 = vsel %vm1997, %v1989, 0.0
        %v2054 = vadd.f32 %v2052, %v2053
        %v2055 = vsel %vm1997, %v1990, 0.0
        %v2056 = vadd.f32 %v2054, %v2055
        %v2057 = vsel %vm1997, %v1991, 0.0
        %v2058 = vadd.f32 %v2056, %v2057
        %v2059 = vsel %vm1997, %v1992, 0.0
        %v2060 = vadd.f32 %v2058, %v2059
        %v2061 = vsel %vm1997, %v1993, 0.0
        %v2062 = vadd.f32 %v2060, %v2061
        %v2063 = vsel %vm1997, %v1994, 0.0
        %v2064 = vadd.f32 %v2062, %v2063
        %v2065 = vsel %vm1997, %v1995, 0.0
        %v2066 = vadd.f32 %v2064, %v2065
        %v2067 = vsel %vm1997, %v1996, 0.0
        %v2068 = vadd.f32 %v2066, %v2067
        %2069 = vadd.xlane.f32.xlu0 %v2068
        %v2070 = vpop.xlane.xlu0 %2069
        %v2071 = vrcp.pop 4608.0
        %v2072 = vmul.f32 %v2070, %v2071
        %v2073 = vsub.f32 %v1961, %v2072
        %v2074 = vsub.f32 %v1962, %v2072
        %v2075 = vsub.f32 %v1963, %v2072
        %v2076 = vsub.f32 %v1964, %v2072
        %v2077 = vsub.f32 %v1965, %v2072
        %v2078 = vsub.f32 %v1966, %v2072
        %v2079 = vsub.f32 %v1967, %v2072
        %v2080 = vsub.f32 %v1968, %v2072
        %v2081 = vsub.f32 %v1969, %v2072
        %v2082 = vsub.f32 %v1970, %v2072
        %v2083 = vsub.f32 %v1971, %v2072
        %v2084 = vsub.f32 %v1972, %v2072
        %v2085 = vsub.f32 %v1973, %v2072
        %v2086 = vsub.f32 %v1974, %v2072
        %v2087 = vsub.f32 %v1975, %v2072
        %v2088 = vsub.f32 %v1976, %v2072
        %v2089 = vsub.f32 %v1977, %v2072
        %v2090 = vsub.f32 %v1978, %v2072
        %v2091 = vsub.f32 %v1979, %v2072
        %v2092 = vsub.f32 %v1980, %v2072
        %v2093 = vsub.f32 %v1981, %v2072
        %v2094 = vsub.f32 %v1982, %v2072
        %v2095 = vsub.f32 %v1983, %v2072
        %v2096 = vsub.f32 %v1984, %v2072
        %v2097 = vsub.f32 %v1985, %v2072
        %v2098 = vsub.f32 %v1986, %v2072
        %v2099 = vsub.f32 %v1987, %v2072
        %v2100 = vsub.f32 %v1988, %v2072
        %v2101 = vsub.f32 %v1989, %v2072
        %v2102 = vsub.f32 %v1990, %v2072
        %v2103 = vsub.f32 %v1991, %v2072
        %v2104 = vsub.f32 %v1992, %v2072
        %v2105 = vsub.f32 %v1993, %v2072
        %v2106 = vsub.f32 %v1994, %v2072
        %v2107 = vsub.f32 %v1995, %v2072
        %v2108 = vsub.f32 %v1996, %v2072
        %v2109 = vmul.f32 %v2073, %v2073
        %v2110 = vmul.f32 %v2074, %v2074
        %v2111 = vmul.f32 %v2075, %v2075
        %v2112 = vmul.f32 %v2076, %v2076
        %v2113 = vmul.f32 %v2077, %v2077
        %v2114 = vmul.f32 %v2078, %v2078
        %v2115 = vmul.f32 %v2079, %v2079
        %v2116 = vmul.f32 %v2080, %v2080
        %v2117 = vmul.f32 %v2081, %v2081
        %v2118 = vmul.f32 %v2082, %v2082
        %v2119 = vmul.f32 %v2083, %v2083
        %v2120 = vmul.f32 %v2084, %v2084
        %v2121 = vmul.f32 %v2085, %v2085
        %v2122 = vmul.f32 %v2086, %v2086
        %v2123 = vmul.f32 %v2087, %v2087
        %v2124 = vmul.f32 %v2088, %v2088
        %v2125 = vmul.f32 %v2089, %v2089
        %v2126 = vmul.f32 %v2090, %v2090
        %v2127 = vmul.f32 %v2091, %v2091
        %v2128 = vmul.f32 %v2092, %v2092
        %v2129 = vmul.f32 %v2093, %v2093
        %v2130 = vmul.f32 %v2094, %v2094
        %v2131 = vmul.f32 %v2095, %v2095
        %v2132 = vmul.f32 %v2096, %v2096
        %v2133 = vmul.f32 %v2097, %v2097
        %v2134 = vmul.f32 %v2098, %v2098
        %v2135 = vmul.f32 %v2099, %v2099
        %v2136 = vmul.f32 %v2100, %v2100
        %v2137 = vmul.f32 %v2101, %v2101
        %v2138 = vmul.f32 %v2102, %v2102
        %v2139 = vmul.f32 %v2103, %v2103
        %v2140 = vmul.f32 %v2104, %v2104
        %v2141 = vmul.f32 %v2105, %v2105
        %v2142 = vmul.f32 %v2106, %v2106
        %v2143 = vmul.f32 %v2107, %v2107
        %v2144 = vmul.f32 %v2108, %v2108
        %v2145 = vsel %vm1997, %v2109, 0.0
        %v2146 = vsel %vm1997, %v2110, 0.0
        %v2147 = vadd.f32 %v2145, %v2146
        %v2148 = vsel %vm1997, %v2111, 0.0
        %v2149 = vadd.f32 %v2147, %v2148
        %v2150 = vsel %vm1997, %v2112, 0.0
        %v2151 = vadd.f32 %v2149, %v2150
        %v2152 = vsel %vm1997, %v2113, 0.0
        %v2153 = vadd.f32 %v2151, %v2152
        %v2154 = vsel %vm1997, %v2114, 0.0
        %v2155 = vadd.f32 %v2153, %v2154
        %v2156 = vsel %vm1997, %v2115, 0.0
        %v2157 = vadd.f32 %v2155, %v2156
        %v2158 = vsel %vm1997, %v2116, 0.0
        %v2159 = vadd.f32 %v2157, %v2158
        %v2160 = vsel %vm1997, %v2117, 0.0
        %v2161 = vadd.f32 %v2159, %v2160
        %v2162 = vsel %vm1997, %v2118, 0.0
        %v2163 = vadd.f32 %v2161, %v2162
        %v2164 = vsel %vm1997, %v2119, 0.0
        %v2165 = vadd.f32 %v2163, %v2164
        %v2166 = vsel %vm1997, %v2120, 0.0
        %v2167 = vadd.f32 %v2165, %v2166
        %v2168 = vsel %vm1997, %v2121, 0.0
        %v2169 = vadd.f32 %v2167, %v2168
        %v2170 = vsel %vm1997, %v2122, 0.0
        %v2171 = vadd.f32 %v2169, %v2170
        %v2172 = vsel %vm1997, %v2123, 0.0
        %v2173 = vadd.f32 %v2171, %v2172
        %v2174 = vsel %vm1997, %v2124, 0.0
        %v2175 = vadd.f32 %v2173, %v2174
        %v2176 = vsel %vm1997, %v2125, 0.0
        %v2177 = vadd.f32 %v2175, %v2176
        %v2178 = vsel %vm1997, %v2126, 0.0
        %v2179 = vadd.f32 %v2177, %v2178
        %v2180 = vsel %vm1997, %v2127, 0.0
        %v2181 = vadd.f32 %v2179, %v2180
        %v2182 = vsel %vm1997, %v2128, 0.0
        %v2183 = vadd.f32 %v2181, %v2182
        %v2184 = vsel %vm1997, %v2129, 0.0
        %v2185 = vadd.f32 %v2183, %v2184
        %v2186 = vsel %vm1997, %v2130, 0.0
        %v2187 = vadd.f32 %v2185, %v2186
        %v2188 = vsel %vm1997, %v2131, 0.0
        %v2189 = vadd.f32 %v2187, %v2188
        %v2190 = vsel %vm1997, %v2132, 0.0
        %v2191 = vadd.f32 %v2189, %v2190
        %v2192 = vsel %vm1997, %v2133, 0.0
        %v2193 = vadd.f32 %v2191, %v2192
        %v2194 = vsel %vm1997, %v2134, 0.0
        %v2195 = vadd.f32 %v2193, %v2194
        %v2196 = vsel %vm1997, %v2135, 0.0
        %v2197 = vadd.f32 %v2195, %v2196
        %v2198 = vsel %vm1997, %v2136, 0.0
        %v2199 = vadd.f32 %v2197, %v2198
        %v2200 = vsel %vm1997, %v2137, 0.0
        %v2201 = vadd.f32 %v2199, %v2200
        %v2202 = vsel %vm1997, %v2138, 0.0
        %v2203 = vadd.f32 %v2201, %v2202
        %v2204 = vsel %vm1997, %v2139, 0.0
        %v2205 = vadd.f32 %v2203, %v2204
        %v2206 = vsel %vm1997, %v2140, 0.0
        %v2207 = vadd.f32 %v2205, %v2206
        %v2208 = vsel %vm1997, %v2141, 0.0
        %v2209 = vadd.f32 %v2207, %v2208
        %v2210 = vsel %vm1997, %v2142, 0.0
        %v2211 = vadd.f32 %v2209, %v2210
        %v2212 = vsel %vm1997, %v2143, 0.0
        %v2213 = vadd.f32 %v2211, %v2212
        %v2214 = vsel %vm1997, %v2144, 0.0
        %v2215 = vadd.f32 %v2213, %v2214
        %2216 = vadd.xlane.f32.xlu0 %v2215
        %v2217 = vpop.xlane.xlu0 %2216
        %v2218 = vmul.f32 %v2217, %v2071
        %v2219 = vadd.f32 %v2218, 1e-05
        %v2220 = vrsqrt.pop %v2219
        %v2221 = vmul.f32 %v2073, %v2220
        %v2222 = vmul.f32 %v2074, %v2220
        %v2223 = vmul.f32 %v2075, %v2220
        %v2224 = vmul.f32 %v2076, %v2220
        %v2225 = vmul.f32 %v2077, %v2220
        %v2226 = vmul.f32 %v2078, %v2220
        %v2227 = vmul.f32 %v2079, %v2220
        %v2228 = vmul.f32 %v2080, %v2220
        %v2229 = vmul.f32 %v2081, %v2220
        %v2230 = vmul.f32 %v2082, %v2220
        %v2231 = vmul.f32 %v2083, %v2220
        %v2232 = vmul.f32 %v2084, %v2220
        %v2233 = vmul.f32 %v2085, %v2220
        %v2234 = vmul.f32 %v2086, %v2220
        %v2235 = vmul.f32 %v2087, %v2220
        %v2236 = vmul.f32 %v2088, %v2220
        %v2237 = vmul.f32 %v2089, %v2220
        %v2238 = vmul.f32 %v2090, %v2220
        %v2239 = vmul.f32 %v2091, %v2220
        %v2240 = vmul.f32 %v2092, %v2220
        %v2241 = vmul.f32 %v2093, %v2220
        %v2242 = vmul.f32 %v2094, %v2220
        %v2243 = vmul.f32 %v2095, %v2220
        %v2244 = vmul.f32 %v2096, %v2220
        %v2245 = vmul.f32 %v2097, %v2220
        %v2246 = vmul.f32 %v2098, %v2220
        %v2247 = vmul.f32 %v2099, %v2220
        %v2248 = vmul.f32 %v2100, %v2220
        %v2249 = vmul.f32 %v2101, %v2220
        %v2250 = vmul.f32 %v2102, %v2220
        %v2251 = vmul.f32 %v2103, %v2220
        %v2252 = vmul.f32 %v2104, %v2220
        %v2253 = vmul.f32 %v2105, %v2220
        %v2254 = vmul.f32 %v2106, %v2220
        %v2255 = vmul.f32 %v2107, %v2220
        %v2256 = vmul.f32 %v2108, %v2220
        %v2257 = vld [vmem:[%s2] sm:$0x3f]
        %2259 = vset.pattern.permute.xlu0 0
        %2260 = vperm.xlu0 %2259, %v2257
        %v2261 = vpop.permute.xlu0 %2260
        %v2263 = vmul.f32 %v2221, %v2261
        %v2264 = vmul.f32 %v2222, %v2261
        %v2265 = vmul.f32 %v2223, %v2261
        %v2266 = vmul.f32 %v2224, %v2261
        %v2267 = vmul.f32 %v2225, %v2261
        %v2268 = vmul.f32 %v2226, %v2261
        %v2269 = vmul.f32 %v2227, %v2261
        %v2270 = vmul.f32 %v2228, %v2261
        %v2271 = vmul.f32 %v2229, %v2261
        %v2272 = vmul.f32 %v2230, %v2261
        %v2273 = vmul.f32 %v2231, %v2261
        %v2274 = vmul.f32 %v2232, %v2261
        %v2275 = vmul.f32 %v2233, %v2261
        %v2276 = vmul.f32 %v2234, %v2261
        %v2277 = vmul.f32 %v2235, %v2261
        %v2278 = vmul.f32 %v2236, %v2261
        %v2279 = vmul.f32 %v2237, %v2261
        %v2280 = vmul.f32 %v2238, %v2261
        %v2281 = vmul.f32 %v2239, %v2261
        %v2282 = vmul.f32 %v2240, %v2261
        %v2283 = vmul.f32 %v2241, %v2261
        %v2284 = vmul.f32 %v2242, %v2261
        %v2285 = vmul.f32 %v2243, %v2261
        %v2286 = vmul.f32 %v2244, %v2261
        %v2287 = vmul.f32 %v2245, %v2261
        %v2288 = vmul.f32 %v2246, %v2261
        %v2289 = vmul.f32 %v2247, %v2261
        %v2290 = vmul.f32 %v2248, %v2261
        %v2291 = vmul.f32 %v2249, %v2261
        %v2292 = vmul.f32 %v2250, %v2261
        %v2293 = vmul.f32 %v2251, %v2261
        %v2294 = vmul.f32 %v2252, %v2261
        %v2295 = vmul.f32 %v2253, %v2261
        %v2296 = vmul.f32 %v2254, %v2261
        %v2297 = vmul.f32 %v2255, %v2261
        %v2298 = vmul.f32 %v2256, %v2261
        %v2299 = vld [vmem:[%s3] sm:$0x3f]
        %2301 = vset.pattern.permute.xlu0 0
        %2302 = vperm.xlu0 %2301, %v2299
        %v2303 = vpop.permute.xlu0 %2302
        %v2305 = vadd.f32 %v2263, %v2303
        %v2306 = vadd.f32 %v2264, %v2303
        %v2307 = vadd.f32 %v2265, %v2303
        %v2308 = vadd.f32 %v2266, %v2303
        %v2309 = vadd.f32 %v2267, %v2303
        %v2310 = vadd.f32 %v2268, %v2303
        %v2311 = vadd.f32 %v2269, %v2303
        %v2312 = vadd.f32 %v2270, %v2303
        %v2313 = vadd.f32 %v2271, %v2303
        %v2314 = vadd.f32 %v2272, %v2303
        %v2315 = vadd.f32 %v2273, %v2303
        %v2316 = vadd.f32 %v2274, %v2303
        %v2317 = vadd.f32 %v2275, %v2303
        %v2318 = vadd.f32 %v2276, %v2303
        %v2319 = vadd.f32 %v2277, %v2303
        %v2320 = vadd.f32 %v2278, %v2303
        %v2321 = vadd.f32 %v2279, %v2303
        %v2322 = vadd.f32 %v2280, %v2303
        %v2323 = vadd.f32 %v2281, %v2303
        %v2324 = vadd.f32 %v2282, %v2303
        %v2325 = vadd.f32 %v2283, %v2303
        %v2326 = vadd.f32 %v2284, %v2303
        %v2327 = vadd.f32 %v2285, %v2303
        %v2328 = vadd.f32 %v2286, %v2303
        %v2329 = vadd.f32 %v2287, %v2303
        %v2330 = vadd.f32 %v2288, %v2303
        %v2331 = vadd.f32 %v2289, %v2303
        %v2332 = vadd.f32 %v2290, %v2303
        %v2333 = vadd.f32 %v2291, %v2303
        %v2334 = vadd.f32 %v2292, %v2303
        %v2335 = vadd.f32 %v2293, %v2303
        %v2336 = vadd.f32 %v2294, %v2303
        %v2337 = vadd.f32 %v2295, %v2303
        %v2338 = vadd.f32 %v2296, %v2303
        %v2339 = vadd.f32 %v2297, %v2303
        %v2340 = vadd.f32 %v2298, %v2303
        %v2341 = vmax.f32 %v2305, 0.0
        %v2342 = vmax.f32 %v2306, 0.0
        %v2343 = vmax.f32 %v2307, 0.0
        %v2344 = vmax.f32 %v2308, 0.0
        %v2345 = vmax.f32 %v2309, 0.0
        %v2346 = vmax.f32 %v2310, 0.0
        %v2347 = vmax.f32 %v2311, 0.0
        %v2348 = vmax.f32 %v2312, 0.0
        %v2349 = vmax.f32 %v2313, 0.0
        %v2350 = vmax.f32 %v2314, 0.0
        %v2351 = vmax.f32 %v2315, 0.0
        %v2352 = vmax.f32 %v2316, 0.0
        %v2353 = vmax.f32 %v2317, 0.0
        %v2354 = vmax.f32 %v2318, 0.0
        %v2355 = vmax.f32 %v2319, 0.0
        %v2356 = vmax.f32 %v2320, 0.0
        %v2357 = vmax.f32 %v2321, 0.0
        %v2358 = vmax.f32 %v2322, 0.0
        %v2359 = vmax.f32 %v2323, 0.0
        %v2360 = vmax.f32 %v2324, 0.0
        %v2361 = vmax.f32 %v2325, 0.0
        %v2362 = vmax.f32 %v2326, 0.0
        %v2363 = vmax.f32 %v2327, 0.0
        %v2364 = vmax.f32 %v2328, 0.0
        %v2365 = vmax.f32 %v2329, 0.0
        %v2366 = vmax.f32 %v2330, 0.0
        %v2367 = vmax.f32 %v2331, 0.0
        %v2368 = vmax.f32 %v2332, 0.0
        %v2369 = vmax.f32 %v2333, 0.0
        %v2370 = vmax.f32 %v2334, 0.0
        %v2371 = vmax.f32 %v2335, 0.0
        %v2372 = vmax.f32 %v2336, 0.0
        %v2373 = vmax.f32 %v2337, 0.0
        %v2374 = vmax.f32 %v2338, 0.0
        %v2375 = vmax.f32 %v2339, 0.0
        %v2376 = vmax.f32 %v2340, 0.0
        %2377 = vst [vmem:[%s4] sm:$0x3f] %v2341
        %2378 = vst [vmem:[%s4 + $0x8] sm:$0x3f] %v2342
        %2379 = vst [vmem:[%s4 + $0x10] sm:$0x3f] %v2343
        %2380 = vst [vmem:[%s4 + $0x18] sm:$0x3f] %v2344
        %2381 = vst [vmem:[%s4 + $0x20] sm:$0x3f] %v2345
        %2382 = vst [vmem:[%s4 + $0x28] sm:$0x3f] %v2346
        %2383 = vst [vmem:[%s4 + $0x30] sm:$0x3f] %v2347
        %2384 = vst [vmem:[%s4 + $0x38] sm:$0x3f] %v2348
        %2385 = vst [vmem:[%s4 + $0x40] sm:$0x3f] %v2349
        %2386 = vst [vmem:[%s4 + $0x48] sm:$0x3f] %v2350
        %2387 = vst [vmem:[%s4 + $0x50] sm:$0x3f] %v2351
        %2388 = vst [vmem:[%s4 + $0x58] sm:$0x3f] %v2352
        %2389 = vst [vmem:[%s4 + $0x60] sm:$0x3f] %v2353
        %2390 = vst [vmem:[%s4 + $0x68] sm:$0x3f] %v2354
        %2391 = vst [vmem:[%s4 + $0x70] sm:$0x3f] %v2355
        %2392 = vst [vmem:[%s4 + $0x78] sm:$0x3f] %v2356
        %2393 = vst [vmem:[%s4 + $0x80] sm:$0x3f] %v2357
        %2394 = vst [vmem:[%s4 + $0x88] sm:$0x3f] %v2358
        %2395 = vst [vmem:[%s4 + $0x90] sm:$0x3f] %v2359
        %2396 = vst [vmem:[%s4 + $0x98] sm:$0x3f] %v2360
        %2397 = vst [vmem:[%s4 + $0xa0] sm:$0x3f] %v2361
        %2398 = vst [vmem:[%s4 + $0xa8] sm:$0x3f] %v2362
        %2399 = vst [vmem:[%s4 + $0xb0] sm:$0x3f] %v2363
        %2400 = vst [vmem:[%s4 + $0xb8] sm:$0x3f] %v2364
        %2401 = vst [vmem:[%s4 + $0xc0] sm:$0x3f] %v2365
        %2402 = vst [vmem:[%s4 + $0xc8] sm:$0x3f] %v2366
        %2403 = vst [vmem:[%s4 + $0xd0] sm:$0x3f] %v2367
        %2404 = vst [vmem:[%s4 + $0xd8] sm:$0x3f] %v2368
        %2405 = vst [vmem:[%s4 + $0xe0] sm:$0x3f] %v2369
        %2406 = vst [vmem:[%s4 + $0xe8] sm:$0x3f] %v2370
        %2407 = vst [vmem:[%s4 + $0xf0] sm:$0x3f] %v2371
        %2408 = vst [vmem:[%s4 + $0xf8] sm:$0x3f] %v2372
        %2409 = vst [vmem:[%s4 + $0x100] sm:$0x3f] %v2373
        %2410 = vst [vmem:[%s4 + $0x108] sm:$0x3f] %v2374
        %2411 = vst [vmem:[%s4 + $0x110] sm:$0x3f] %v2375
        %2412 = vst [vmem:[%s4 + $0x118] sm:$0x3f] %v2376
      $region44: #{cae_forward.17} parent=35 // pred_fallthru
        _
      // Predicated region
      $region45: #{cae_forward.17} parent=35 // pred_check
        %p2413 = pneg %p122
      $region46: #{cae_forward.17} parent=35 // pred_check_branch
        %2415 = sbr.rel (%p2413) target = $region48
      $region47: #{cae_forward.17} parent=35 // pred_region
        _
      $region48: #{cae_forward.17} parent=35 // pred_fallthru
        _
      // Predicated region
      $region49: #{cae_forward.17} parent=35 // pred_check
        %p2416 = pneg %p122
      $region50: #{cae_forward.17} parent=35 // pred_check_branch
        %2418 = sbr.rel (%p2416) target = $region52
      $region51: #{cae_forward.17} parent=35 // pred_region
        _
      $region52: #{cae_forward.17} parent=35 // pred_fallthru
        _
    $region36: #{cae_forward.17} parent=5 // pred_fallthru
      _
    %p2419 = scmp.le.s32.totalorder 2, %s10
    // Predicated region
    $region53: #{cae_forward.17} parent=5 // pred_check
      %p2420 = pneg %p2419
    $region54: #{cae_forward.17} parent=5 // pred_check_branch
      %2422 = sbr.rel (%p2420) target = $region56
    $region55: #{cae_forward.17} parent=5 // pred_region
      %s2423 = ssub.s32 %s10, 2
    $region56: #{cae_forward.17} parent=5 // pred_fallthru
      _
  $region6: #{cae_forward.17} parent=0 // loop_footer
    %s14 = sadd.s32 1, %s10
  $region7: #{cae_forward.17} parent=0 // loop_footer_branch
    %9 = sbr.rel target = $region3
  $region8: #{cae_forward.17} parent=0 // loop_exit
    _

</llo_original>
